<compile_context>
chip_gen: v7x
topology: tpu7x:2x2x1
jax: 0.10.0
libtpu: 0.0.40
codegen_flags: <defaults>
</compile_context>

<pallas_src>
import numpy as np
import jax
import jax.numpy as jnp
from jax.experimental import pallas as pl
from jax.experimental.pallas import tpu as pltpu  # noqa: F401

F32 = jnp.float32
BF16 = jnp.bfloat16
EMB = 256
HEADS = 3
HC = HEADS * EMB
NEG = -1e30


# ----------------------------------------------------------------------------
# Fused per-block kernel: GATConv -> TopKPooling(0.8) -> inter Linear -> readout
# ----------------------------------------------------------------------------
def _gat_block_kernel(x_ref, adj_ref, valid_ref, memb_ref, membt_ref,
                      w_ref, attd_ref, atts_ref, gbias_ref,
                      poolw_ref, interw_ref, interb_ref,
                      xo_ref, keep_ref, adjo_ref, ro_ref):
    n = x_ref.shape[0]
    g = memb_ref.shape[1]
    c = EMB

    x = x_ref[...]                        # [N, Din]
    adj = adj_ref[...]                    # [N, N]  0/1, adj[dst, src], no self loops
    valid = valid_ref[...]                # [N, 1]  0/1 node validity
    memb = memb_ref[...]                  # [N, G]  one-hot graph membership
    membt = membt_ref[...]                # [G, N]  its transpose (host built)

    # ------------------- GATConv(heads=3, concat=True) -------------------
    # projection: bf16 operands, f32 accumulation on the MXU
    xp = jnp.dot(x.astype(BF16), w_ref[...], preferred_element_type=F32)     # [N, 3C]

    # all-head attention scores with two stacked matmuls (block-diagonal packing)
    dst_cols = jax.lax.dot_general(
        xp, attd_ref[...], dimension_numbers=(((1,), (1,)), ((), ())),
        preferred_element_type=F32)                                          # [N, H]
    src_rows = jax.lax.dot_general(
        atts_ref[...], xp, dimension_numbers=(((1,), (1,)), ((), ())),
        preferred_element_type=F32)                                          # [H, N]

    ri = jax.lax.broadcasted_iota(jnp.int32, (n, n), 0)
    ci = jax.lax.broadcasted_iota(jnp.int32, (n, n), 1)
    eye = jnp.where(ri == ci, 1.0, 0.0).astype(F32)
    amask = jnp.maximum(adj, eye)         # edges + self loops (every padded node)

    heads = []
    for h in range(HEADS):                # static unroll over 3 heads
        xh = xp[:, h * c:(h + 1) * c]                                        # [N, C]
        e = dst_cols[:, h:h + 1] + src_rows[h:h + 1, :]                      # [N, N]
        e = jnp.where(e >= 0, e, 0.2 * e)                                    # LeakyReLU(0.2)
        e = jnp.where(amask > 0, e, NEG)
        e = e - jnp.max(e, axis=-1, keepdims=True)
        p = jnp.exp(e)
        inv = pl.reciprocal(jnp.sum(p, axis=-1, keepdims=True), approx=True)
        alpha = p * inv                                                      # softmax over src
        # TODO(synk): GAT attention dropout (p=0.2) is identity in eval mode.
        heads.append(jnp.dot(alpha, xh, preferred_element_type=F32))         # [N, C]
    x_gat = jnp.concatenate(heads, axis=1) + gbias_ref[...]                  # [N, 3C]

    # --------------- TopKPooling(ratio=0.8), padded/mask formulation ---------------
    # score = tanh(x . w / ||w||); pool weight arrives pre-normalised as a [1, 3C] row.
    s_col = jax.lax.dot_general(
        x_gat, poolw_ref[...], dimension_numbers=(((1,), (1,)), ((), ())),
        preferred_element_type=F32)                                          # [N, 1]
    score = jnp.tanh(s_col)                                                  # [N, 1]

    ones_nn = jnp.ones((n, n), F32)
    # lane-oriented copy of the score (score_lanes[i, j] == score[j]) via matmul with
    # diag(score); avoids an unaligned [N,1] -> [1,N] relayout inside the kernel.
    score_lanes = jnp.dot(ones_nn, eye * score, preferred_element_type=F32)  # [N, N]

    # per-graph valid-node counts and k = ceil(0.8 * n)   (ratio = 4/5 -> exact in f32)
    n_g = jnp.dot(membt, valid, preferred_element_type=F32)                  # [G, 1]
    k_g = jnp.floor((4.0 * n_g + 4.0) / 5.0)                                 # [G, 1]
    k_node = jnp.dot(memb, k_g, preferred_element_type=F32)                  # [N, 1]

    # rank_i = #(valid same-graph j that outrank i); ties go to the lower index.
    # (Near-exact-tie ordering may differ from PyTorch by at most a rounding ulp.)
    same = jnp.dot(memb, membt, preferred_element_type=F32)                  # [N, N]
    beats = jnp.where(
        jnp.logical_or(score_lanes > score,
                       jnp.logical_and(score_lanes == score, ci < ri)),
        same, 0.0)
    beats = beats * (1.0 - eye)           # a node never outranks itself
    rank = jnp.dot(beats, valid, preferred_element_type=F32)                 # [N, 1]
    keep = valid * jnp.where(rank < k_node, 1.0, 0.0)                        # [N, 1]

    # gate kept nodes by their score (dropped nodes -> 0), then the inter Linear
    xg = x_gat * (score * keep)                                              # [N, 3C]
    x_new = jnp.dot(xg.astype(BF16), interw_ref[...],
                    preferred_element_type=F32) + interb_ref[...]            # [N, EMB]

    # adjacency restricted to kept nodes (rows = dst, cols = src)
    keep_lanes = jnp.dot(ones_nn, eye * keep, preferred_element_type=F32)    # [N, N]
    adj_new = adj * keep * keep_lanes

    # ------------------- global max / mean readout -------------------
    xk = x_new * keep                                                        # [N, EMB]
    cnt = jnp.dot(membt, keep, preferred_element_type=F32)                   # [G, 1]
    sums = jnp.dot(membt, xk, preferred_element_type=F32)                    # [G, EMB]
    mean = sums * pl.reciprocal(cnt, approx=True)                            # [G, EMB]
    # TODO(synk): an empty graph would yield NEG max / zero-count mean; cannot happen
    #             here since k >= 1 whenever a graph has >= 1 node.
    gio = jax.lax.broadcasted_iota(jnp.int32, (g, 1), 0)
    membk = memb * keep                                                      # [N, G]
    maxs = jnp.zeros((g, c), F32)
    for gg in range(g):                   # static unroll, few graphs
        mg = jnp.max(jnp.where(membk[:, gg:gg + 1] > 0, x_new, NEG),
                     axis=0, keepdims=True)                                  # [1, EMB]
        maxs = maxs + jnp.where(gio == gg, 1.0, 0.0) * mg

    # single lane-dense stores
    xo_ref[...] = x_new
    keep_ref[...] = keep
    adjo_ref[...] = adj_new
    ro_ref[...] = jnp.concatenate([maxs, mean], axis=1)                      # [G, 2*EMB]


def _block_diag_rows(a):
    """[H, C] -> [H, H*C]: row h occupies the h-th C-wide column block."""
    h, c = a.shape
    rows = [jnp.pad(a[i:i + 1, :], ((0, 0), (i * c, (h - 1 - i) * c)))
            for i in range(h)]
    return jnp.concatenate(rows, axis=0)


def gat_block_pallas(x, adj, valid, memb, membt, gcn_p, pool_w, inter_w, inter_b):
    n = x.shape[0]
    g = memb.shape[1]
    attd = _block_diag_rows(gcn_p["att_dst"]).astype(F32)       # [H, H*C]
    atts = _block_diag_rows(gcn_p["att_src"]).astype(F32)       # [H, H*C]
    pwn = (pool_w / jnp.linalg.norm(pool_w)).reshape(1, HC).astype(F32)
    out_shape = (
        jax.ShapeDtypeStruct((n, EMB), F32),        # node features (pool + inter)
        jax.ShapeDtypeStruct((n, 1), F32),          # new validity mask
        jax.ShapeDtypeStruct((n, n), F32),          # filtered adjacency
        jax.ShapeDtypeStruct((g, 2 * EMB), F32),    # [max-pool | mean-pool]
    )
    return pl.pallas_call(_gat_block_kernel, out_shape=out_shape)(
        x.astype(F32), adj.astype(F32), valid.astype(F32),
        memb.astype(F32), membt.astype(F32),
        gcn_p["w"].astype(BF16), attd, atts,
        gcn_p["bias"].reshape(1, HC).astype(F32),
        pwn,
        inter_w.astype(BF16), inter_b.reshape(1, EMB).astype(F32),
    )


# ----------------------------------------------------------------------------
# Fused MLP head: (x1 + x2 + x3) -> lin1 -> LeakyReLU(0.01) -> lin2
# ----------------------------------------------------------------------------
def _mlp_head_kernel(x1_ref, x2_ref, x3_ref, w1_ref, b1_ref, w2_ref, b2_ref, o_ref):
    x = x1_ref[...] + x2_ref[...] + x3_ref[...]                              # [G, 2*EMB]
    h = jnp.dot(x.astype(BF16), w1_ref[...], preferred_element_type=F32) + b1_ref[...]
    h = jnp.where(h >= 0, h, 0.01 * h)                                       # LeakyReLU
    o_ref[...] = jnp.dot(h.astype(BF16), w2_ref[...],
                         preferred_element_type=F32) + b2_ref[...]
    # TODO(synk): Dropout(p=0.3) is identity in eval mode.


def mlp_head_pallas(x1, x2, x3, lin1, lin2):
    g = x1.shape[0]
    return pl.pallas_call(
        _mlp_head_kernel,
        out_shape=jax.ShapeDtypeStruct((g, lin2["w"].shape[1]), F32),
    )(x1, x2, x3,
      lin1["w"].astype(BF16), lin1["b"].reshape(1, -1).astype(F32),
      lin2["w"].astype(BF16), lin2["b"].reshape(1, -1).astype(F32))


# ----------------------------------------------------------------------------
# Parameters & forward
# ----------------------------------------------------------------------------
def init_params(key, feature_size):
    ks = jax.random.split(key, 19)

    def nrm(k, shape, scale=0.05):
        return (scale * jax.random.normal(k, shape)).astype(F32)

    he = HC
    return {
        "gcn_1": dict(w=nrm(ks[0], (feature_size, he)), att_src=nrm(ks[1], (HEADS, EMB)),
                      att_dst=nrm(ks[2], (HEADS, EMB)), bias=nrm(ks[3], (he,))),
        "gcn_2": dict(w=nrm(ks[4], (EMB, he)), att_src=nrm(ks[5], (HEADS, EMB)),
                      att_dst=nrm(ks[6], (HEADS, EMB)), bias=nrm(ks[7], (he,))),
        "gcn_3": dict(w=nrm(ks[8], (EMB, he)), att_src=nrm(ks[9], (HEADS, EMB)),
                      att_dst=nrm(ks[10], (HEADS, EMB)), bias=nrm(ks[11], (he,))),
        "pool_1": dict(weight=nrm(ks[12], (he,))),
        "inter": dict(w=nrm(ks[13], (he, EMB)), b=nrm(ks[14], (EMB,))),
        "lin1": dict(w=nrm(ks[15], (2 * EMB, 1024)), b=nrm(ks[16], (1024,))),
        "lin2": dict(w=nrm(ks[17], (1024, 2)), b=nrm(ks[18], (2,))),
    }


@jax.jit
def _forward_device(params, x, adj0, memb, membt, valid0):
    pool_w = params["pool_1"]["weight"]
    iw, ib = params["inter"]["w"], params["inter"]["b"]
    cur_x, cur_adj, cur_valid = x, adj0, valid0
    readouts = []
    for name in ("gcn_1", "gcn_2", "gcn_3"):
        cur_x, cur_valid, cur_adj, ro = gat_block_pallas(
            cur_x, cur_adj, cur_valid, memb, membt, params[name], pool_w, iw, ib)
        readouts.append(ro)
    return mlp_head_pallas(readouts[0], readouts[1], readouts[2],
                           params["lin1"], params["lin2"])


def graphn_forward(params, x, edge_attr, edge_index, batch_idx):
    del edge_attr  # GATConv ignores it; pooling receives None in the reference forward
    n = x.shape[0]
    ei = np.asarray(edge_index)
    batch_np = np.asarray(batch_idx)
    g = int(batch_np.max()) + 1
    # Static graph structure -> dense masks, built once from the *inputs* only
    # (no device->host sync anywhere in the forward).
    adj0 = np.zeros((n, n), np.float32)
    adj0[ei[1], ei[0]] = 1.0                    # row = dst, col = src
    memb = np.zeros((n, g), np.float32)
    memb[np.arange(n), batch_np] = 1.0
    membt = memb.T.copy()
    valid0 = np.ones((n, 1), np.float32)
    return _forward_device(params, jnp.asarray(x, F32), jnp.asarray(adj0),
                           jnp.asarray(memb), jnp.asarray(membt),
                           jnp.asarray(valid0))


# ----------------------------------------------------------------------------
if __name__ == "__main__":
    key = jax.random.PRNGKey(0)
    feature_size = 32
    num_nodes = 12

    x = jax.random.normal(jax.random.fold_in(key, 1), (num_nodes, feature_size),
                          dtype=F32)

    # Two graphs: nodes 0-6 (ring of 7) and 7-11 (ring of 5), both directions.
    e0 = [(i, (i + 1) % 7) for i in range(7)]
    e1 = [(7 + i, 7 + (i + 1) % 5) for i in range(5)]
    edges = e0 + [(b, a) for a, b in e0] + e1 + [(b, a) for a, b in e1]
    edge_index = np.array(edges, dtype=np.int32).T            # [2, 24] row0=src row1=dst
    batch_idx = np.array([0] * 7 + [1] * 5, dtype=np.int32)   # [12]
    edge_attr = None

    params = init_params(key, feature_size)
    out = graphn_forward(params, x, edge_attr, edge_index, batch_idx)
    out = jax.block_until_ready(out)
    assert out.shape == (2, 2)
    assert bool(jnp.all(jnp.isfinite(out)))
    print("KERNEL_OK")
</pallas_src>

<mosaic_0001>
module attributes {stable_mosaic.version = 11 : i64} {
  func.func @_gat_block_kernel(%arg0: memref<12x32xf32, #tpu.memory_space<vmem>>, %arg1: memref<12x12xf32, #tpu.memory_space<vmem>>, %arg2: memref<12x1xf32, #tpu.memory_space<vmem>>, %arg3: memref<12x2xf32, #tpu.memory_space<vmem>>, %arg4: memref<2x12xf32, #tpu.memory_space<vmem>>, %arg5: memref<32x768xbf16, #tpu.memory_space<vmem>>, %arg6: memref<3x768xf32, #tpu.memory_space<vmem>>, %arg7: memref<3x768xf32, #tpu.memory_space<vmem>>, %arg8: memref<1x768xf32, #tpu.memory_space<vmem>>, %arg9: memref<1x768xf32, #tpu.memory_space<vmem>>, %arg10: memref<768x256xbf16, #tpu.memory_space<vmem>>, %arg11: memref<1x256xf32, #tpu.memory_space<vmem>>, %arg12: memref<12x256xf32, #tpu.memory_space<vmem>>, %arg13: memref<12x1xf32, #tpu.memory_space<vmem>>, %arg14: memref<12x12xf32, #tpu.memory_space<vmem>>, %arg15: memref<2x512xf32, #tpu.memory_space<vmem>>) attributes {dimension_semantics = [], scalar_prefetch = 0 : i64, scratch_operands = 0 : i64, tpu.core_type = #tpu.core_type<tc>} {
    %c0 = arith.constant 0 : index
    %c0_0 = arith.constant 0 : index
    %0 = vector.load %arg0[%c0, %c0_0] : memref<12x32xf32, #tpu.memory_space<vmem>>, vector<12x32xf32>
    %c0_1 = arith.constant 0 : index
    %c0_2 = arith.constant 0 : index
    %1 = vector.load %arg1[%c0_1, %c0_2] : memref<12x12xf32, #tpu.memory_space<vmem>>, vector<12x12xf32>
    %c0_3 = arith.constant 0 : index
    %c0_4 = arith.constant 0 : index
    %2 = vector.load %arg2[%c0_3, %c0_4] : memref<12x1xf32, #tpu.memory_space<vmem>>, vector<12x1xf32>
    %c0_5 = arith.constant 0 : index
    %c0_6 = arith.constant 0 : index
    %3 = vector.load %arg3[%c0_5, %c0_6] : memref<12x2xf32, #tpu.memory_space<vmem>>, vector<12x2xf32>
    %c0_7 = arith.constant 0 : index
    %c0_8 = arith.constant 0 : index
    %4 = vector.load %arg4[%c0_7, %c0_8] : memref<2x12xf32, #tpu.memory_space<vmem>>, vector<2x12xf32>
    %5 = arith.truncf %0 : vector<12x32xf32> to vector<12x32xbf16>
    %c0_9 = arith.constant 0 : index
    %c0_10 = arith.constant 0 : index
    %6 = vector.load %arg5[%c0_9, %c0_10] : memref<32x768xbf16, #tpu.memory_space<vmem>>, vector<32x768xbf16>
    %cst = arith.constant dense<0.000000e+00> : vector<12x768xf32>
    %7 = tpu.matmul %5, %6, %cst {dimension_numbers = #tpu.dot_dimension_numbers<[1], [0], [0], [1], [0, 0, 1, 1], [], []>} : vector<12x32xbf16>, vector<32x768xbf16>, vector<12x768xf32> -> vector<12x768xf32>
    %c0_11 = arith.constant 0 : index
    %c0_12 = arith.constant 0 : index
    %8 = vector.load %arg6[%c0_11, %c0_12] : memref<3x768xf32, #tpu.memory_space<vmem>>, vector<3x768xf32>
    %cst_13 = arith.constant dense<0.000000e+00> : vector<12x3xf32>
    %9 = tpu.matmul %7, %8, %cst_13 {dimension_numbers = #tpu.dot_dimension_numbers<[1], [1], [0], [0], [0, 0, 1, 0], [], []>} : vector<12x768xf32>, vector<3x768xf32>, vector<12x3xf32> -> vector<12x3xf32>
    %c0_14 = arith.constant 0 : index
    %c0_15 = arith.constant 0 : index
    %10 = vector.load %arg7[%c0_14, %c0_15] : memref<3x768xf32, #tpu.memory_space<vmem>>, vector<3x768xf32>
    %cst_16 = arith.constant dense<0.000000e+00> : vector<3x12xf32>
    %11 = tpu.matmul %10, %7, %cst_16 {dimension_numbers = #tpu.dot_dimension_numbers<[1], [1], [0], [0], [0, 0, 1, 0], [], []>} : vector<3x768xf32>, vector<12x768xf32>, vector<3x12xf32> -> vector<3x12xf32>
    %12 = tpu.iota {dimensions = array<i32: 0>} : vector<12x12xi32>
    %13 = tpu.iota {dimensions = array<i32: 1>} : vector<12x12xi32>
    %14 = arith.cmpi eq, %12, %13 : vector<12x12xi32>
    %cst_17 = arith.constant 1.000000e+00 : f32
    %cst_18 = arith.constant 0.000000e+00 : f32
    %15 = vector.broadcast %cst_17 : f32 to vector<12x12xf32>
    %16 = vector.broadcast %cst_18 : f32 to vector<12x12xf32>
    %17 = arith.select %14, %15, %16 : vector<12x12xi1>, vector<12x12xf32>
    %18 = arith.maximumf %1, %17 : vector<12x12xf32>
    %19 = vector.extract_strided_slice %7 {offsets = [0, 0], sizes = [12, 256], strides = [1, 1]} : vector<12x768xf32> to vector<12x256xf32>
    %20 = vector.extract_strided_slice %9 {offsets = [0, 0], sizes = [12, 1], strides = [1, 1]} : vector<12x3xf32> to vector<12x1xf32>
    %21 = vector.extract_strided_slice %11 {offsets = [0, 0], sizes = [1, 12], strides = [1, 1]} : vector<3x12xf32> to vector<1x12xf32>
    %22 = vector.broadcast %20 : vector<12x1xf32> to vector<12x12xf32>
    %23 = vector.broadcast %21 : vector<1x12xf32> to vector<12x12xf32>
    %24 = arith.addf %22, %23 : vector<12x12xf32>
    %cst_19 = arith.constant 0.000000e+00 : f32
    %25 = vector.broadcast %cst_19 : f32 to vector<12x12xf32>
    %26 = arith.cmpf oge, %24, %25 : vector<12x12xf32>
    %cst_20 = arith.constant 2.000000e-01 : f32
    %27 = vector.broadcast %cst_20 : f32 to vector<12x12xf32>
    %28 = arith.mulf %27, %24 : vector<12x12xf32>
    %29 = arith.select %26, %24, %28 : vector<12x12xi1>, vector<12x12xf32>
    %cst_21 = arith.constant 0.000000e+00 : f32
    %30 = vector.broadcast %cst_21 : f32 to vector<12x12xf32>
    %31 = arith.cmpf ogt, %18, %30 : vector<12x12xf32>
    %cst_22 = arith.constant -1.000000e+30 : f32
    %32 = vector.broadcast %cst_22 : f32 to vector<12x12xf32>
    %33 = arith.select %31, %29, %32 : vector<12x12xi1>, vector<12x12xf32>
    %cst_23 = arith.constant dense<0xFF800000> : vector<12xf32>
    %34 = vector.multi_reduction <maximumf>, %33, %cst_23 [1] : vector<12x12xf32> to vector<12xf32>
    %35 = vector.shape_cast %34 : vector<12xf32> to vector<12x1xf32>
    %36 = vector.broadcast %35 : vector<12x1xf32> to vector<12x12xf32>
    %37 = arith.subf %33, %36 : vector<12x12xf32>
    %38 = math.exp %37 : vector<12x12xf32>
    %cst_24 = arith.constant dense<0.000000e+00> : vector<12xf32>
    %39 = vector.multi_reduction <add>, %38, %cst_24 [1] : vector<12x12xf32> to vector<12xf32>
    %40 = vector.shape_cast %39 : vector<12xf32> to vector<12x1xf32>
    %41 = tpu.reciprocal %40 {approx = true} : vector<12x1xf32> -> vector<12x1xf32>
    %42 = vector.broadcast %41 : vector<12x1xf32> to vector<12x12xf32>
    %43 = arith.mulf %38, %42 : vector<12x12xf32>
    %cst_25 = arith.constant dense<0.000000e+00> : vector<12x256xf32>
    %44 = tpu.matmul %43, %19, %cst_25 {dimension_numbers = #tpu.dot_dimension_numbers<[1], [0], [0], [1], [0, 0, 1, 1], [], []>} : vector<12x12xf32>, vector<12x256xf32>, vector<12x256xf32> -> vector<12x256xf32>
    %45 = vector.extract_strided_slice %7 {offsets = [0, 256], sizes = [12, 256], strides = [1, 1]} : vector<12x768xf32> to vector<12x256xf32>
    %46 = vector.extract_strided_slice %9 {offsets = [0, 1], sizes = [12, 1], strides = [1, 1]} : vector<12x3xf32> to vector<12x1xf32>
    %47 = vector.extract_strided_slice %11 {offsets = [1, 0], sizes = [1, 12], strides = [1, 1]} : vector<3x12xf32> to vector<1x12xf32>
    %48 = vector.broadcast %46 : vector<12x1xf32> to vector<12x12xf32>
    %49 = vector.broadcast %47 : vector<1x12xf32> to vector<12x12xf32>
    %50 = arith.addf %48, %49 : vector<12x12xf32>
    %cst_26 = arith.constant 0.000000e+00 : f32
    %51 = vector.broadcast %cst_26 : f32 to vector<12x12xf32>
    %52 = arith.cmpf oge, %50, %51 : vector<12x12xf32>
    %cst_27 = arith.constant 2.000000e-01 : f32
    %53 = vector.broadcast %cst_27 : f32 to vector<12x12xf32>
    %54 = arith.mulf %53, %50 : vector<12x12xf32>
    %55 = arith.select %52, %50, %54 : vector<12x12xi1>, vector<12x12xf32>
    %cst_28 = arith.constant 0.000000e+00 : f32
    %56 = vector.broadcast %cst_28 : f32 to vector<12x12xf32>
    %57 = arith.cmpf ogt, %18, %56 : vector<12x12xf32>
    %cst_29 = arith.constant -1.000000e+30 : f32
    %58 = vector.broadcast %cst_29 : f32 to vector<12x12xf32>
    %59 = arith.select %57, %55, %58 : vector<12x12xi1>, vector<12x12xf32>
    %cst_30 = arith.constant dense<0xFF800000> : vector<12xf32>
    %60 = vector.multi_reduction <maximumf>, %59, %cst_30 [1] : vector<12x12xf32> to vector<12xf32>
    %61 = vector.shape_cast %60 : vector<12xf32> to vector<12x1xf32>
    %62 = vector.broadcast %61 : vector<12x1xf32> to vector<12x12xf32>
    %63 = arith.subf %59, %62 : vector<12x12xf32>
    %64 = math.exp %63 : vector<12x12xf32>
    %cst_31 = arith.constant dense<0.000000e+00> : vector<12xf32>
    %65 = vector.multi_reduction <add>, %64, %cst_31 [1] : vector<12x12xf32> to vector<12xf32>
    %66 = vector.shape_cast %65 : vector<12xf32> to vector<12x1xf32>
    %67 = tpu.reciprocal %66 {approx = true} : vector<12x1xf32> -> vector<12x1xf32>
    %68 = vector.broadcast %67 : vector<12x1xf32> to vector<12x12xf32>
    %69 = arith.mulf %64, %68 : vector<12x12xf32>
    %cst_32 = arith.constant dense<0.000000e+00> : vector<12x256xf32>
    %70 = tpu.matmul %69, %45, %cst_32 {dimension_numbers = #tpu.dot_dimension_numbers<[1], [0], [0], [1], [0, 0, 1, 1], [], []>} : vector<12x12xf32>, vector<12x256xf32>, vector<12x256xf32> -> vector<12x256xf32>
    %71 = vector.extract_strided_slice %7 {offsets = [0, 512], sizes = [12, 256], strides = [1, 1]} : vector<12x768xf32> to vector<12x256xf32>
    %72 = vector.extract_strided_slice %9 {offsets = [0, 2], sizes = [12, 1], strides = [1, 1]} : vector<12x3xf32> to vector<12x1xf32>
    %73 = vector.extract_strided_slice %11 {offsets = [2, 0], sizes = [1, 12], strides = [1, 1]} : vector<3x12xf32> to vector<1x12xf32>
    %74 = vector.broadcast %72 : vector<12x1xf32> to vector<12x12xf32>
    %75 = vector.broadcast %73 : vector<1x12xf32> to vector<12x12xf32>
    %76 = arith.addf %74, %75 : vector<12x12xf32>
    %cst_33 = arith.constant 0.000000e+00 : f32
    %77 = vector.broadcast %cst_33 : f32 to vector<12x12xf32>
    %78 = arith.cmpf oge, %76, %77 : vector<12x12xf32>
    %cst_34 = arith.constant 2.000000e-01 : f32
    %79 = vector.broadcast %cst_34 : f32 to vector<12x12xf32>
    %80 = arith.mulf %79, %76 : vector<12x12xf32>
    %81 = arith.select %78, %76, %80 : vector<12x12xi1>, vector<12x12xf32>
    %cst_35 = arith.constant 0.000000e+00 : f32
    %82 = vector.broadcast %cst_35 : f32 to vector<12x12xf32>
    %83 = arith.cmpf ogt, %18, %82 : vector<12x12xf32>
    %cst_36 = arith.constant -1.000000e+30 : f32
    %84 = vector.broadcast %cst_36 : f32 to vector<12x12xf32>
    %85 = arith.select %83, %81, %84 : vector<12x12xi1>, vector<12x12xf32>
    %cst_37 = arith.constant dense<0xFF800000> : vector<12xf32>
    %86 = vector.multi_reduction <maximumf>, %85, %cst_37 [1] : vector<12x12xf32> to vector<12xf32>
    %87 = vector.shape_cast %86 : vector<12xf32> to vector<12x1xf32>
    %88 = vector.broadcast %87 : vector<12x1xf32> to vector<12x12xf32>
    %89 = arith.subf %85, %88 : vector<12x12xf32>
    %90 = math.exp %89 : vector<12x12xf32>
    %cst_38 = arith.constant dense<0.000000e+00> : vector<12xf32>
    %91 = vector.multi_reduction <add>, %90, %cst_38 [1] : vector<12x12xf32> to vector<12xf32>
    %92 = vector.shape_cast %91 : vector<12xf32> to vector<12x1xf32>
    %93 = tpu.reciprocal %92 {approx = true} : vector<12x1xf32> -> vector<12x1xf32>
    %94 = vector.broadcast %93 : vector<12x1xf32> to vector<12x12xf32>
    %95 = arith.mulf %90, %94 : vector<12x12xf32>
    %cst_39 = arith.constant dense<0.000000e+00> : vector<12x256xf32>
    %96 = tpu.matmul %95, %71, %cst_39 {dimension_numbers = #tpu.dot_dimension_numbers<[1], [0], [0], [1], [0, 0, 1, 1], [], []>} : vector<12x12xf32>, vector<12x256xf32>, vector<12x256xf32> -> vector<12x256xf32>
    %97 = tpu.concatenate %44, %70, %96 in 1 : vector<12x256xf32>, vector<12x256xf32>, vector<12x256xf32> -> vector<12x768xf32>
    %c0_40 = arith.constant 0 : index
    %c0_41 = arith.constant 0 : index
    %98 = vector.load %arg8[%c0_40, %c0_41] : memref<1x768xf32, #tpu.memory_space<vmem>>, vector<1x768xf32>
    %99 = vector.broadcast %98 : vector<1x768xf32> to vector<12x768xf32>
    %100 = arith.addf %97, %99 : vector<12x768xf32>
    %c0_42 = arith.constant 0 : index
    %c0_43 = arith.constant 0 : index
    %101 = vector.load %arg9[%c0_42, %c0_43] : memref<1x768xf32, #tpu.memory_space<vmem>>, vector<1x768xf32>
    %cst_44 = arith.constant dense<0.000000e+00> : vector<12x1xf32>
    %102 = tpu.matmul %100, %101, %cst_44 {dimension_numbers = #tpu.dot_dimension_numbers<[1], [1], [0], [0], [0, 0, 1, 0], [], []>} : vector<12x768xf32>, vector<1x768xf32>, vector<12x1xf32> -> vector<12x1xf32>
    %103 = math.tanh %102 : vector<12x1xf32>
    %cst_45 = arith.constant 1.000000e+00 : f32
    %104 = vector.broadcast %cst_45 : f32 to vector<12x12xf32>
    %105 = vector.broadcast %103 : vector<12x1xf32> to vector<12x12xf32>
    %106 = arith.mulf %17, %105 : vector<12x12xf32>
    %cst_46 = arith.constant dense<0.000000e+00> : vector<12x12xf32>
    %107 = tpu.matmul %104, %106, %cst_46 {dimension_numbers = #tpu.dot_dimension_numbers<[1], [0], [0], [1], [0, 0, 1, 1], [], []>} : vector<12x12xf32>, vector<12x12xf32>, vector<12x12xf32> -> vector<12x12xf32>
    %cst_47 = arith.constant dense<0.000000e+00> : vector<2x1xf32>
    %108 = tpu.matmul %4, %2, %cst_47 {dimension_numbers = #tpu.dot_dimension_numbers<[1], [0], [0], [1], [0, 0, 1, 1], [], []>} : vector<2x12xf32>, vector<12x1xf32>, vector<2x1xf32> -> vector<2x1xf32>
    %cst_48 = arith.constant 4.000000e+00 : f32
    %109 = vector.broadcast %cst_48 : f32 to vector<2x1xf32>
    %110 = arith.mulf %109, %108 : vector<2x1xf32>
    %cst_49 = arith.constant 4.000000e+00 : f32
    %111 = vector.broadcast %cst_49 : f32 to vector<2x1xf32>
    %112 = arith.addf %110, %111 : vector<2x1xf32>
    %cst_50 = arith.constant 5.000000e+00 : f32
    %113 = vector.broadcast %cst_50 : f32 to vector<2x1xf32>
    %114 = arith.divf %112, %113 : vector<2x1xf32>
    %115 = math.floor %114 : vector<2x1xf32>
    %cst_51 = arith.constant dense<0.000000e+00> : vector<12x1xf32>
    %116 = tpu.matmul %3, %115, %cst_51 {dimension_numbers = #tpu.dot_dimension_numbers<[1], [0], [0], [1], [0, 0, 1, 1], [], []>} : vector<12x2xf32>, vector<2x1xf32>, vector<12x1xf32> -> vector<12x1xf32>
    %cst_52 = arith.constant dense<0.000000e+00> : vector<12x12xf32>
    %117 = tpu.matmul %3, %4, %cst_52 {dimension_numbers = #tpu.dot_dimension_numbers<[1], [0], [0], [1], [0, 0, 1, 1], [], []>} : vector<12x2xf32>, vector<2x12xf32>, vector<12x12xf32> -> vector<12x12xf32>
    %118 = vector.broadcast %103 : vector<12x1xf32> to vector<12x12xf32>
    %119 = arith.cmpf ogt, %107, %118 : vector<12x12xf32>
    %120 = vector.broadcast %103 : vector<12x1xf32> to vector<12x12xf32>
    %121 = arith.cmpf oeq, %107, %120 : vector<12x12xf32>
    %122 = arith.cmpi slt, %13, %12 : vector<12x12xi32>
    %123 = arith.andi %121, %122 : vector<12x12xi1>
    %124 = arith.ori %119, %123 : vector<12x12xi1>
    %cst_53 = arith.constant 0.000000e+00 : f32
    %125 = vector.broadcast %cst_53 : f32 to vector<12x12xf32>
    %126 = arith.select %124, %117, %125 : vector<12x12xi1>, vector<12x12xf32>
    %cst_54 = arith.constant 1.000000e+00 : f32
    %127 = vector.broadcast %cst_54 : f32 to vector<12x12xf32>
    %128 = arith.subf %127, %17 : vector<12x12xf32>
    %129 = arith.mulf %126, %128 : vector<12x12xf32>
    %cst_55 = arith.constant dense<0.000000e+00> : vector<12x1xf32>
    %130 = tpu.matmul %129, %2, %cst_55 {dimension_numbers = #tpu.dot_dimension_numbers<[1], [0], [0], [1], [0, 0, 1, 1], [], []>} : vector<12x12xf32>, vector<12x1xf32>, vector<12x1xf32> -> vector<12x1xf32>
    %131 = arith.cmpf olt, %130, %116 : vector<12x1xf32>
    %cst_56 = arith.constant 1.000000e+00 : f32
    %cst_57 = arith.constant 0.000000e+00 : f32
    %132 = vector.broadcast %cst_56 : f32 to vector<12x1xf32>
    %133 = vector.broadcast %cst_57 : f32 to vector<12x1xf32>
    %134 = arith.select %131, %132, %133 : vector<12x1xi1>, vector<12x1xf32>
    %135 = arith.mulf %2, %134 : vector<12x1xf32>
    %136 = arith.mulf %103, %135 : vector<12x1xf32>
    %137 = vector.broadcast %136 : vector<12x1xf32> to vector<12x768xf32>
    %138 = arith.mulf %100, %137 : vector<12x768xf32>
    %139 = arith.truncf %138 : vector<12x768xf32> to vector<12x768xbf16>
    %c0_58 = arith.constant 0 : index
    %c0_59 = arith.constant 0 : index
    %140 = vector.load %arg10[%c0_58, %c0_59] : memref<768x256xbf16, #tpu.memory_space<vmem>>, vector<768x256xbf16>
    %cst_60 = arith.constant dense<0.000000e+00> : vector<12x256xf32>
    %141 = tpu.matmul %139, %140, %cst_60 {dimension_numbers = #tpu.dot_dimension_numbers<[1], [0], [0], [1], [0, 0, 1, 1], [], []>} : vector<12x768xbf16>, vector<768x256xbf16>, vector<12x256xf32> -> vector<12x256xf32>
    %c0_61 = arith.constant 0 : index
    %c0_62 = arith.constant 0 : index
    %142 = vector.load %arg11[%c0_61, %c0_62] : memref<1x256xf32, #tpu.memory_space<vmem>>, vector<1x256xf32>
    %143 = vector.broadcast %142 : vector<1x256xf32> to vector<12x256xf32>
    %144 = arith.addf %141, %143 : vector<12x256xf32>
    %145 = vector.broadcast %135 : vector<12x1xf32> to vector<12x12xf32>
    %146 = arith.mulf %17, %145 : vector<12x12xf32>
    %cst_63 = arith.constant dense<0.000000e+00> : vector<12x12xf32>
    %147 = tpu.matmul %104, %146, %cst_63 {dimension_numbers = #tpu.dot_dimension_numbers<[1], [0], [0], [1], [0, 0, 1, 1], [], []>} : vector<12x12xf32>, vector<12x12xf32>, vector<12x12xf32> -> vector<12x12xf32>
    %148 = vector.broadcast %135 : vector<12x1xf32> to vector<12x12xf32>
    %149 = arith.mulf %1, %148 : vector<12x12xf32>
    %150 = arith.mulf %149, %147 : vector<12x12xf32>
    %151 = vector.broadcast %135 : vector<12x1xf32> to vector<12x256xf32>
    %152 = arith.mulf %144, %151 : vector<12x256xf32>
    %cst_64 = arith.constant dense<0.000000e+00> : vector<2x1xf32>
    %153 = tpu.matmul %4, %135, %cst_64 {dimension_numbers = #tpu.dot_dimension_numbers<[1], [0], [0], [1], [0, 0, 1, 1], [], []>} : vector<2x12xf32>, vector<12x1xf32>, vector<2x1xf32> -> vector<2x1xf32>
    %cst_65 = arith.constant dense<0.000000e+00> : vector<2x256xf32>
    %154 = tpu.matmul %4, %152, %cst_65 {dimension_numbers = #tpu.dot_dimension_numbers<[1], [0], [0], [1], [0, 0, 1, 1], [], []>} : vector<2x12xf32>, vector<12x256xf32>, vector<2x256xf32> -> vector<2x256xf32>
    %155 = tpu.reciprocal %153 {approx = true} : vector<2x1xf32> -> vector<2x1xf32>
    %156 = vector.broadcast %155 : vector<2x1xf32> to vector<2x256xf32>
    %157 = arith.mulf %154, %156 : vector<2x256xf32>
    %158 = tpu.iota {dimensions = array<i32: 0>} : vector<2x1xi32>
    %159 = vector.broadcast %135 : vector<12x1xf32> to vector<12x2xf32>
    %160 = arith.mulf %3, %159 : vector<12x2xf32>
    %cst_66 = arith.constant 0.000000e+00 : f32
    %161 = vector.broadcast %cst_66 : f32 to vector<2x256xf32>
    %162 = vector.extract_strided_slice %160 {offsets = [0, 0], sizes = [12, 1], strides = [1, 1]} : vector<12x2xf32> to vector<12x1xf32>
    %cst_67 = arith.constant 0.000000e+00 : f32
    %163 = vector.broadcast %cst_67 : f32 to vector<12x1xf32>
    %164 = arith.cmpf ogt, %162, %163 : vector<12x1xf32>
    %cst_68 = arith.constant -1.000000e+30 : f32
    %165 = vector.shape_cast %164 : vector<12x1xi1> to vector<12x1xi1>
    %166 = vector.broadcast %165 : vector<12x1xi1> to vector<12x256xi1>
    %167 = vector.broadcast %cst_68 : f32 to vector<12x256xf32>
    %168 = arith.select %166, %144, %167 : vector<12x256xi1>, vector<12x256xf32>
    %cst_69 = arith.constant dense<0xFF800000> : vector<256xf32>
    %169 = vector.multi_reduction <maximumf>, %168, %cst_69 [0] : vector<12x256xf32> to vector<256xf32>
    %170 = vector.shape_cast %169 : vector<256xf32> to vector<1x256xf32>
    %c0_i32 = arith.constant 0 : i32
    %171 = vector.broadcast %c0_i32 : i32 to vector<2x1xi32>
    %172 = arith.cmpi eq, %158, %171 : vector<2x1xi32>
    %cst_70 = arith.constant 1.000000e+00 : f32
    %cst_71 = arith.constant 0.000000e+00 : f32
    %173 = vector.broadcast %cst_70 : f32 to vector<2x1xf32>
    %174 = vector.broadcast %cst_71 : f32 to vector<2x1xf32>
    %175 = arith.select %172, %173, %174 : vector<2x1xi1>, vector<2x1xf32>
    %176 = vector.broadcast %175 : vector<2x1xf32> to vector<2x256xf32>
    %177 = vector.broadcast %170 : vector<1x256xf32> to vector<2x256xf32>
    %178 = arith.mulf %176, %177 : vector<2x256xf32>
    %179 = arith.addf %161, %178 : vector<2x256xf32>
    %180 = vector.extract_strided_slice %160 {offsets = [0, 1], sizes = [12, 1], strides = [1, 1]} : vector<12x2xf32> to vector<12x1xf32>
    %cst_72 = arith.constant 0.000000e+00 : f32
    %181 = vector.broadcast %cst_72 : f32 to vector<12x1xf32>
    %182 = arith.cmpf ogt, %180, %181 : vector<12x1xf32>
    %cst_73 = arith.constant -1.000000e+30 : f32
    %183 = vector.shape_cast %182 : vector<12x1xi1> to vector<12x1xi1>
    %184 = vector.broadcast %183 : vector<12x1xi1> to vector<12x256xi1>
    %185 = vector.broadcast %cst_73 : f32 to vector<12x256xf32>
    %186 = arith.select %184, %144, %185 : vector<12x256xi1>, vector<12x256xf32>
    %cst_74 = arith.constant dense<0xFF800000> : vector<256xf32>
    %187 = vector.multi_reduction <maximumf>, %186, %cst_74 [0] : vector<12x256xf32> to vector<256xf32>
    %188 = vector.shape_cast %187 : vector<256xf32> to vector<1x256xf32>
    %c1_i32 = arith.constant 1 : i32
    %189 = vector.broadcast %c1_i32 : i32 to vector<2x1xi32>
    %190 = arith.cmpi eq, %158, %189 : vector<2x1xi32>
    %cst_75 = arith.constant 1.000000e+00 : f32
    %cst_76 = arith.constant 0.000000e+00 : f32
    %191 = vector.broadcast %cst_75 : f32 to vector<2x1xf32>
    %192 = vector.broadcast %cst_76 : f32 to vector<2x1xf32>
    %193 = arith.select %190, %191, %192 : vector<2x1xi1>, vector<2x1xf32>
    %194 = vector.broadcast %193 : vector<2x1xf32> to vector<2x256xf32>
    %195 = vector.broadcast %188 : vector<1x256xf32> to vector<2x256xf32>
    %196 = arith.mulf %194, %195 : vector<2x256xf32>
    %197 = arith.addf %179, %196 : vector<2x256xf32>
    %c0_77 = arith.constant 0 : index
    %c0_78 = arith.constant 0 : index
    %198 = vector.load %arg12[%c0_77, %c0_78] : memref<12x256xf32, #tpu.memory_space<vmem>>, vector<12x256xf32>
    tpu.vector_store %arg12[%c0_77, %c0_78], %144 {strides = array<i32>} : memref<12x256xf32, #tpu.memory_space<vmem>>, vector<12x256xf32>,
    %c0_79 = arith.constant 0 : index
    %c0_80 = arith.constant 0 : index
    %199 = vector.load %arg13[%c0_79, %c0_80] : memref<12x1xf32, #tpu.memory_space<vmem>>, vector<12x1xf32>
    tpu.vector_store %arg13[%c0_79, %c0_80], %135 {strides = array<i32>} : memref<12x1xf32, #tpu.memory_space<vmem>>, vector<12x1xf32>,
    %c0_81 = arith.constant 0 : index
    %c0_82 = arith.constant 0 : index
    %200 = vector.load %arg14[%c0_81, %c0_82] : memref<12x12xf32, #tpu.memory_space<vmem>>, vector<12x12xf32>
    tpu.vector_store %arg14[%c0_81, %c0_82], %150 {strides = array<i32>} : memref<12x12xf32, #tpu.memory_space<vmem>>, vector<12x12xf32>,
    %201 = tpu.concatenate %197, %157 in 1 : vector<2x256xf32>, vector<2x256xf32> -> vector<2x512xf32>
    %c0_83 = arith.constant 0 : index
    %c0_84 = arith.constant 0 : index
    %202 = vector.load %arg15[%c0_83, %c0_84] : memref<2x512xf32, #tpu.memory_space<vmem>>, vector<2x512xf32>
    tpu.vector_store %arg15[%c0_83, %c0_84], %201 {strides = array<i32>} : memref<2x512xf32, #tpu.memory_space<vmem>>, vector<2x512xf32>,
    return
  }
}

module attributes {stable_mosaic.version = 11 : i64} {
  func.func @_gat_block_kernel(%arg0: memref<12x256xf32, #tpu.memory_space<vmem>>, %arg1: memref<12x12xf32, #tpu.memory_space<vmem>>, %arg2: memref<12x1xf32, #tpu.memory_space<vmem>>, %arg3: memref<12x2xf32, #tpu.memory_space<vmem>>, %arg4: memref<2x12xf32, #tpu.memory_space<vmem>>, %arg5: memref<256x768xbf16, #tpu.memory_space<vmem>>, %arg6: memref<3x768xf32, #tpu.memory_space<vmem>>, %arg7: memref<3x768xf32, #tpu.memory_space<vmem>>, %arg8: memref<1x768xf32, #tpu.memory_space<vmem>>, %arg9: memref<1x768xf32, #tpu.memory_space<vmem>>, %arg10: memref<768x256xbf16, #tpu.memory_space<vmem>>, %arg11: memref<1x256xf32, #tpu.memory_space<vmem>>, %arg12: memref<12x256xf32, #tpu.memory_space<vmem>>, %arg13: memref<12x1xf32, #tpu.memory_space<vmem>>, %arg14: memref<12x12xf32, #tpu.memory_space<vmem>>, %arg15: memref<2x512xf32, #tpu.memory_space<vmem>>) attributes {dimension_semantics = [], scalar_prefetch = 0 : i64, scratch_operands = 0 : i64, tpu.core_type = #tpu.core_type<tc>} {
    %c0 = arith.constant 0 : index
    %c0_0 = arith.constant 0 : index
    %0 = vector.load %arg0[%c0, %c0_0] : memref<12x256xf32, #tpu.memory_space<vmem>>, vector<12x256xf32>
    %c0_1 = arith.constant 0 : index
    %c0_2 = arith.constant 0 : index
    %1 = vector.load %arg1[%c0_1, %c0_2] : memref<12x12xf32, #tpu.memory_space<vmem>>, vector<12x12xf32>
    %c0_3 = arith.constant 0 : index
    %c0_4 = arith.constant 0 : index
    %2 = vector.load %arg2[%c0_3, %c0_4] : memref<12x1xf32, #tpu.memory_space<vmem>>, vector<12x1xf32>
    %c0_5 = arith.constant 0 : index
    %c0_6 = arith.constant 0 : index
    %3 = vector.load %arg3[%c0_5, %c0_6] : memref<12x2xf32, #tpu.memory_space<vmem>>, vector<12x2xf32>
    %c0_7 = arith.constant 0 : index
    %c0_8 = arith.constant 0 : index
    %4 = vector.load %arg4[%c0_7, %c0_8] : memref<2x12xf32, #tpu.memory_space<vmem>>, vector<2x12xf32>
    %5 = arith.truncf %0 : vector<12x256xf32> to vector<12x256xbf16>
    %c0_9 = arith.constant 0 : index
    %c0_10 = arith.constant 0 : index
    %6 = vector.load %arg5[%c0_9, %c0_10] : memref<256x768xbf16, #tpu.memory_space<vmem>>, vector<256x768xbf16>
    %cst = arith.constant dense<0.000000e+00> : vector<12x768xf32>
    %7 = tpu.matmul %5, %6, %cst {dimension_numbers = #tpu.dot_dimension_numbers<[1], [0], [0], [1], [0, 0, 1, 1], [], []>} : vector<12x256xbf16>, vector<256x768xbf16>, vector<12x768xf32> -> vector<12x768xf32>
    %c0_11 = arith.constant 0 : index
    %c0_12 = arith.constant 0 : index
    %8 = vector.load %arg6[%c0_11, %c0_12] : memref<3x768xf32, #tpu.memory_space<vmem>>, vector<3x768xf32>
    %cst_13 = arith.constant dense<0.000000e+00> : vector<12x3xf32>
    %9 = tpu.matmul %7, %8, %cst_13 {dimension_numbers = #tpu.dot_dimension_numbers<[1], [1], [0], [0], [0, 0, 1, 0], [], []>} : vector<12x768xf32>, vector<3x768xf32>, vector<12x3xf32> -> vector<12x3xf32>
    %c0_14 = arith.constant 0 : index
    %c0_15 = arith.constant 0 : index
    %10 = vector.load %arg7[%c0_14, %c0_15] : memref<3x768xf32, #tpu.memory_space<vmem>>, vector<3x768xf32>
    %cst_16 = arith.constant dense<0.000000e+00> : vector<3x12xf32>
    %11 = tpu.matmul %10, %7, %cst_16 {dimension_numbers = #tpu.dot_dimension_numbers<[1], [1], [0], [0], [0, 0, 1, 0], [], []>} : vector<3x768xf32>, vector<12x768xf32>, vector<3x12xf32> -> vector<3x12xf32>
    %12 = tpu.iota {dimensions = array<i32: 0>} : vector<12x12xi32>
    %13 = tpu.iota {dimensions = array<i32: 1>} : vector<12x12xi32>
    %14 = arith.cmpi eq, %12, %13 : vector<12x12xi32>
    %cst_17 = arith.constant 1.000000e+00 : f32
    %cst_18 = arith.constant 0.000000e+00 : f32
    %15 = vector.broadcast %cst_17 : f32 to vector<12x12xf32>
    %16 = vector.broadcast %cst_18 : f32 to vector<12x12xf32>
    %17 = arith.select %14, %15, %16 : vector<12x12xi1>, vector<12x12xf32>
    %18 = arith.maximumf %1, %17 : vector<12x12xf32>
    %19 = vector.extract_strided_slice %7 {offsets = [0, 0], sizes = [12, 256], strides = [1, 1]} : vector<12x768xf32> to vector<12x256xf32>
    %20 = vector.extract_strided_slice %9 {offsets = [0, 0], sizes = [12, 1], strides = [1, 1]} : vector<12x3xf32> to vector<12x1xf32>
    %21 = vector.extract_strided_slice %11 {offsets = [0, 0], sizes = [1, 12], strides = [1, 1]} : vector<3x12xf32> to vector<1x12xf32>
    %22 = vector.broadcast %20 : vector<12x1xf32> to vector<12x12xf32>
    %23 = vector.broadcast %21 : vector<1x12xf32> to vector<12x12xf32>
    %24 = arith.addf %22, %23 : vector<12x12xf32>
    %cst_19 = arith.constant 0.000000e+00 : f32
    %25 = vector.broadcast %cst_19 : f32 to vector<12x12xf32>
    %26 = arith.cmpf oge, %24, %25 : vector<12x12xf32>
    %cst_20 = arith.constant 2.000000e-01 : f32
    %27 = vector.broadcast %cst_20 : f32 to vector<12x12xf32>
    %28 = arith.mulf %27, %24 : vector<12x12xf32>
    %29 = arith.select %26, %24, %28 : vector<12x12xi1>, vector<12x12xf32>
    %cst_21 = arith.constant 0.000000e+00 : f32
    %30 = vector.broadcast %cst_21 : f32 to vector<12x12xf32>
    %31 = arith.cmpf ogt, %18, %30 : vector<12x12xf32>
    %cst_22 = arith.constant -1.000000e+30 : f32
    %32 = vector.broadcast %cst_22 : f32 to vector<12x12xf32>
    %33 = arith.select %31, %29, %32 : vector<12x12xi1>, vector<12x12xf32>
    %cst_23 = arith.constant dense<0xFF800000> : vector<12xf32>
    %34 = vector.multi_reduction <maximumf>, %33, %cst_23 [1] : vector<12x12xf32> to vector<12xf32>
    %35 = vector.shape_cast %34 : vector<12xf32> to vector<12x1xf32>
    %36 = vector.broadcast %35 : vector<12x1xf32> to vector<12x12xf32>
    %37 = arith.subf %33, %36 : vector<12x12xf32>
    %38 = math.exp %37 : vector<12x12xf32>
    %cst_24 = arith.constant dense<0.000000e+00> : vector<12xf32>
    %39 = vector.multi_reduction <add>, %38, %cst_24 [1] : vector<12x12xf32> to vector<12xf32>
    %40 = vector.shape_cast %39 : vector<12xf32> to vector<12x1xf32>
    %41 = tpu.reciprocal %40 {approx = true} : vector<12x1xf32> -> vector<12x1xf32>
    %42 = vector.broadcast %41 : vector<12x1xf32> to vector<12x12xf32>
    %43 = arith.mulf %38, %42 : vector<12x12xf32>
    %cst_25 = arith.constant dense<0.000000e+00> : vector<12x256xf32>
    %44 = tpu.matmul %43, %19, %cst_25 {dimension_numbers = #tpu.dot_dimension_numbers<[1], [0], [0], [1], [0, 0, 1, 1], [], []>} : vector<12x12xf32>, vector<12x256xf32>, vector<12x256xf32> -> vector<12x256xf32>
    %45 = vector.extract_strided_slice %7 {offsets = [0, 256], sizes = [12, 256], strides = [1, 1]} : vector<12x768xf32> to vector<12x256xf32>
    %46 = vector.extract_strided_slice %9 {offsets = [0, 1], sizes = [12, 1], strides = [1, 1]} : vector<12x3xf32> to vector<12x1xf32>
    %47 = vector.extract_strided_slice %11 {offsets = [1, 0], sizes = [1, 12], strides = [1, 1]} : vector<3x12xf32> to vector<1x12xf32>
    %48 = vector.broadcast %46 : vector<12x1xf32> to vector<12x12xf32>
    %49 = vector.broadcast %47 : vector<1x12xf32> to vector<12x12xf32>
    %50 = arith.addf %48, %49 : vector<12x12xf32>
    %cst_26 = arith.constant 0.000000e+00 : f32
    %51 = vector.broadcast %cst_26 : f32 to vector<12x12xf32>
    %52 = arith.cmpf oge, %50, %51 : vector<12x12xf32>
    %cst_27 = arith.constant 2.000000e-01 : f32
    %53 = vector.broadcast %cst_27 : f32 to vector<12x12xf32>
    %54 = arith.mulf %53, %50 : vector<12x12xf32>
    %55 = arith.select %52, %50, %54 : vector<12x12xi1>, vector<12x12xf32>
    %cst_28 = arith.constant 0.000000e+00 : f32
    %56 = vector.broadcast %cst_28 : f32 to vector<12x12xf32>
    %57 = arith.cmpf ogt, %18, %56 : vector<12x12xf32>
    %cst_29 = arith.constant -1.000000e+30 : f32
    %58 = vector.broadcast %cst_29 : f32 to vector<12x12xf32>
    %59 = arith.select %57, %55, %58 : vector<12x12xi1>, vector<12x12xf32>
    %cst_30 = arith.constant dense<0xFF800000> : vector<12xf32>
    %60 = vector.multi_reduction <maximumf>, %59, %cst_30 [1] : vector<12x12xf32> to vector<12xf32>
    %61 = vector.shape_cast %60 : vector<12xf32> to vector<12x1xf32>
    %62 = vector.broadcast %61 : vector<12x1xf32> to vector<12x12xf32>
    %63 = arith.subf %59, %62 : vector<12x12xf32>
    %64 = math.exp %63 : vector<12x12xf32>
    %cst_31 = arith.constant dense<0.000000e+00> : vector<12xf32>
    %65 = vector.multi_reduction <add>, %64, %cst_31 [1] : vector<12x12xf32> to vector<12xf32>
    %66 = vector.shape_cast %65 : vector<12xf32> to vector<12x1xf32>
    %67 = tpu.reciprocal %66 {approx = true} : vector<12x1xf32> -> vector<12x1xf32>
    %68 = vector.broadcast %67 : vector<12x1xf32> to vector<12x12xf32>
    %69 = arith.mulf %64, %68 : vector<12x12xf32>
    %cst_32 = arith.constant dense<0.000000e+00> : vector<12x256xf32>
    %70 = tpu.matmul %69, %45, %cst_32 {dimension_numbers = #tpu.dot_dimension_numbers<[1], [0], [0], [1], [0, 0, 1, 1], [], []>} : vector<12x12xf32>, vector<12x256xf32>, vector<12x256xf32> -> vector<12x256xf32>
    %71 = vector.extract_strided_slice %7 {offsets = [0, 512], sizes = [12, 256], strides = [1, 1]} : vector<12x768xf32> to vector<12x256xf32>
    %72 = vector.extract_strided_slice %9 {offsets = [0, 2], sizes = [12, 1], strides = [1, 1]} : vector<12x3xf32> to vector<12x1xf32>
    %73 = vector.extract_strided_slice %11 {offsets = [2, 0], sizes = [1, 12], strides = [1, 1]} : vector<3x12xf32> to vector<1x12xf32>
    %74 = vector.broadcast %72 : vector<12x1xf32> to vector<12x12xf32>
    %75 = vector.broadcast %73 : vector<1x12xf32> to vector<12x12xf32>
    %76 = arith.addf %74, %75 : vector<12x12xf32>
    %cst_33 = arith.constant 0.000000e+00 : f32
    %77 = vector.broadcast %cst_33 : f32 to vector<12x12xf32>
    %78 = arith.cmpf oge, %76, %77 : vector<12x12xf32>
    %cst_34 = arith.constant 2.000000e-01 : f32
    %79 = vector.broadcast %cst_34 : f32 to vector<12x12xf32>
    %80 = arith.mulf %79, %76 : vector<12x12xf32>
    %81 = arith.select %78, %76, %80 : vector<12x12xi1>, vector<12x12xf32>
    %cst_35 = arith.constant 0.000000e+00 : f32
    %82 = vector.broadcast %cst_35 : f32 to vector<12x12xf32>
    %83 = arith.cmpf ogt, %18, %82 : vector<12x12xf32>
    %cst_36 = arith.constant -1.000000e+30 : f32
    %84 = vector.broadcast %cst_36 : f32 to vector<12x12xf32>
    %85 = arith.select %83, %81, %84 : vector<12x12xi1>, vector<12x12xf32>
    %cst_37 = arith.constant dense<0xFF800000> : vector<12xf32>
    %86 = vector.multi_reduction <maximumf>, %85, %cst_37 [1] : vector<12x12xf32> to vector<12xf32>
    %87 = vector.shape_cast %86 : vector<12xf32> to vector<12x1xf32>
    %88 = vector.broadcast %87 : vector<12x1xf32> to vector<12x12xf32>
    %89 = arith.subf %85, %88 : vector<12x12xf32>
    %90 = math.exp %89 : vector<12x12xf32>
    %cst_38 = arith.constant dense<0.000000e+00> : vector<12xf32>
    %91 = vector.multi_reduction <add>, %90, %cst_38 [1] : vector<12x12xf32> to vector<12xf32>
    %92 = vector.shape_cast %91 : vector<12xf32> to vector<12x1xf32>
    %93 = tpu.reciprocal %92 {approx = true} : vector<12x1xf32> -> vector<12x1xf32>
    %94 = vector.broadcast %93 : vector<12x1xf32> to vector<12x12xf32>
    %95 = arith.mulf %90, %94 : vector<12x12xf32>
    %cst_39 = arith.constant dense<0.000000e+00> : vector<12x256xf32>
    %96 = tpu.matmul %95, %71, %cst_39 {dimension_numbers = #tpu.dot_dimension_numbers<[1], [0], [0], [1], [0, 0, 1, 1], [], []>} : vector<12x12xf32>, vector<12x256xf32>, vector<12x256xf32> -> vector<12x256xf32>
    %97 = tpu.concatenate %44, %70, %96 in 1 : vector<12x256xf32>, vector<12x256xf32>, vector<12x256xf32> -> vector<12x768xf32>
    %c0_40 = arith.constant 0 : index
    %c0_41 = arith.constant 0 : index
    %98 = vector.load %arg8[%c0_40, %c0_41] : memref<1x768xf32, #tpu.memory_space<vmem>>, vector<1x768xf32>
    %99 = vector.broadcast %98 : vector<1x768xf32> to vector<12x768xf32>
    %100 = arith.addf %97, %99 : vector<12x768xf32>
    %c0_42 = arith.constant 0 : index
    %c0_43 = arith.constant 0 : index
    %101 = vector.load %arg9[%c0_42, %c0_43] : memref<1x768xf32, #tpu.memory_space<vmem>>, vector<1x768xf32>
    %cst_44 = arith.constant dense<0.000000e+00> : vector<12x1xf32>
    %102 = tpu.matmul %100, %101, %cst_44 {dimension_numbers = #tpu.dot_dimension_numbers<[1], [1], [0], [0], [0, 0, 1, 0], [], []>} : vector<12x768xf32>, vector<1x768xf32>, vector<12x1xf32> -> vector<12x1xf32>
    %103 = math.tanh %102 : vector<12x1xf32>
    %cst_45 = arith.constant 1.000000e+00 : f32
    %104 = vector.broadcast %cst_45 : f32 to vector<12x12xf32>
    %105 = vector.broadcast %103 : vector<12x1xf32> to vector<12x12xf32>
    %106 = arith.mulf %17, %105 : vector<12x12xf32>
    %cst_46 = arith.constant dense<0.000000e+00> : vector<12x12xf32>
    %107 = tpu.matmul %104, %106, %cst_46 {dimension_numbers = #tpu.dot_dimension_numbers<[1], [0], [0], [1], [0, 0, 1, 1], [], []>} : vector<12x12xf32>, vector<12x12xf32>, vector<12x12xf32> -> vector<12x12xf32>
    %cst_47 = arith.constant dense<0.000000e+00> : vector<2x1xf32>
    %108 = tpu.matmul %4, %2, %cst_47 {dimension_numbers = #tpu.dot_dimension_numbers<[1], [0], [0], [1], [0, 0, 1, 1], [], []>} : vector<2x12xf32>, vector<12x1xf32>, vector<2x1xf32> -> vector<2x1xf32>
    %cst_48 = arith.constant 4.000000e+00 : f32
    %109 = vector.broadcast %cst_48 : f32 to vector<2x1xf32>
    %110 = arith.mulf %109, %108 : vector<2x1xf32>
    %cst_49 = arith.constant 4.000000e+00 : f32
    %111 = vector.broadcast %cst_49 : f32 to vector<2x1xf32>
    %112 = arith.addf %110, %111 : vector<2x1xf32>
    %cst_50 = arith.constant 5.000000e+00 : f32
    %113 = vector.broadcast %cst_50 : f32 to vector<2x1xf32>
    %114 = arith.divf %112, %113 : vector<2x1xf32>
    %115 = math.floor %114 : vector<2x1xf32>
    %cst_51 = arith.constant dense<0.000000e+00> : vector<12x1xf32>
    %116 = tpu.matmul %3, %115, %cst_51 {dimension_numbers = #tpu.dot_dimension_numbers<[1], [0], [0], [1], [0, 0, 1, 1], [], []>} : vector<12x2xf32>, vector<2x1xf32>, vector<12x1xf32> -> vector<12x1xf32>
    %cst_52 = arith.constant dense<0.000000e+00> : vector<12x12xf32>
    %117 = tpu.matmul %3, %4, %cst_52 {dimension_numbers = #tpu.dot_dimension_numbers<[1], [0], [0], [1], [0, 0, 1, 1], [], []>} : vector<12x2xf32>, vector<2x12xf32>, vector<12x12xf32> -> vector<12x12xf32>
    %118 = vector.broadcast %103 : vector<12x1xf32> to vector<12x12xf32>
    %119 = arith.cmpf ogt, %107, %118 : vector<12x12xf32>
    %120 = vector.broadcast %103 : vector<12x1xf32> to vector<12x12xf32>
    %121 = arith.cmpf oeq, %107, %120 : vector<12x12xf32>
    %122 = arith.cmpi slt, %13, %12 : vector<12x12xi32>
    %123 = arith.andi %121, %122 : vector<12x12xi1>
    %124 = arith.ori %119, %123 : vector<12x12xi1>
    %cst_53 = arith.constant 0.000000e+00 : f32
    %125 = vector.broadcast %cst_53 : f32 to vector<12x12xf32>
    %126 = arith.select %124, %117, %125 : vector<12x12xi1>, vector<12x12xf32>
    %cst_54 = arith.constant 1.000000e+00 : f32
    %127 = vector.broadcast %cst_54 : f32 to vector<12x12xf32>
    %128 = arith.subf %127, %17 : vector<12x12xf32>
    %129 = arith.mulf %126, %128 : vector<12x12xf32>
    %cst_55 = arith.constant dense<0.000000e+00> : vector<12x1xf32>
    %130 = tpu.matmul %129, %2, %cst_55 {dimension_numbers = #tpu.dot_dimension_numbers<[1], [0], [0], [1], [0, 0, 1, 1], [], []>} : vector<12x12xf32>, vector<12x1xf32>, vector<12x1xf32> -> vector<12x1xf32>
    %131 = arith.cmpf olt, %130, %116 : vector<12x1xf32>
    %cst_56 = arith.constant 1.000000e+00 : f32
    %cst_57 = arith.constant 0.000000e+00 : f32
    %132 = vector.broadcast %cst_56 : f32 to vector<12x1xf32>
    %133 = vector.broadcast %cst_57 : f32 to vector<12x1xf32>
    %134 = arith.select %131, %132, %133 : vector<12x1xi1>, vector<12x1xf32>
    %135 = arith.mulf %2, %134 : vector<12x1xf32>
    %136 = arith.mulf %103, %135 : vector<12x1xf32>
    %137 = vector.broadcast %136 : vector<12x1xf32> to vector<12x768xf32>
    %138 = arith.mulf %100, %137 : vector<12x768xf32>
    %139 = arith.truncf %138 : vector<12x768xf32> to vector<12x768xbf16>
    %c0_58 = arith.constant 0 : index
    %c0_59 = arith.constant 0 : index
    %140 = vector.load %arg10[%c0_58, %c0_59] : memref<768x256xbf16, #tpu.memory_space<vmem>>, vector<768x256xbf16>
    %cst_60 = arith.constant dense<0.000000e+00> : vector<12x256xf32>
    %141 = tpu.matmul %139, %140, %cst_60 {dimension_numbers = #tpu.dot_dimension_numbers<[1], [0], [0], [1], [0, 0, 1, 1], [], []>} : vector<12x768xbf16>, vector<768x256xbf16>, vector<12x256xf32> -> vector<12x256xf32>
    %c0_61 = arith.constant 0 : index
    %c0_62 = arith.constant 0 : index
    %142 = vector.load %arg11[%c0_61, %c0_62] : memref<1x256xf32, #tpu.memory_space<vmem>>, vector<1x256xf32>
    %143 = vector.broadcast %142 : vector<1x256xf32> to vector<12x256xf32>
    %144 = arith.addf %141, %143 : vector<12x256xf32>
    %145 = vector.broadcast %135 : vector<12x1xf32> to vector<12x12xf32>
    %146 = arith.mulf %17, %145 : vector<12x12xf32>
    %cst_63 = arith.constant dense<0.000000e+00> : vector<12x12xf32>
    %147 = tpu.matmul %104, %146, %cst_63 {dimension_numbers = #tpu.dot_dimension_numbers<[1], [0], [0], [1], [0, 0, 1, 1], [], []>} : vector<12x12xf32>, vector<12x12xf32>, vector<12x12xf32> -> vector<12x12xf32>
    %148 = vector.broadcast %135 : vector<12x1xf32> to vector<12x12xf32>
    %149 = arith.mulf %1, %148 : vector<12x12xf32>
    %150 = arith.mulf %149, %147 : vector<12x12xf32>
    %151 = vector.broadcast %135 : vector<12x1xf32> to vector<12x256xf32>
    %152 = arith.mulf %144, %151 : vector<12x256xf32>
    %cst_64 = arith.constant dense<0.000000e+00> : vector<2x1xf32>
    %153 = tpu.matmul %4, %135, %cst_64 {dimension_numbers = #tpu.dot_dimension_numbers<[1], [0], [0], [1], [0, 0, 1, 1], [], []>} : vector<2x12xf32>, vector<12x1xf32>, vector<2x1xf32> -> vector<2x1xf32>
    %cst_65 = arith.constant dense<0.000000e+00> : vector<2x256xf32>
    %154 = tpu.matmul %4, %152, %cst_65 {dimension_numbers = #tpu.dot_dimension_numbers<[1], [0], [0], [1], [0, 0, 1, 1], [], []>} : vector<2x12xf32>, vector<12x256xf32>, vector<2x256xf32> -> vector<2x256xf32>
    %155 = tpu.reciprocal %153 {approx = true} : vector<2x1xf32> -> vector<2x1xf32>
    %156 = vector.broadcast %155 : vector<2x1xf32> to vector<2x256xf32>
    %157 = arith.mulf %154, %156 : vector<2x256xf32>
    %158 = tpu.iota {dimensions = array<i32: 0>} : vector<2x1xi32>
    %159 = vector.broadcast %135 : vector<12x1xf32> to vector<12x2xf32>
    %160 = arith.mulf %3, %159 : vector<12x2xf32>
    %cst_66 = arith.constant 0.000000e+00 : f32
    %161 = vector.broadcast %cst_66 : f32 to vector<2x256xf32>
    %162 = vector.extract_strided_slice %160 {offsets = [0, 0], sizes = [12, 1], strides = [1, 1]} : vector<12x2xf32> to vector<12x1xf32>
    %cst_67 = arith.constant 0.000000e+00 : f32
    %163 = vector.broadcast %cst_67 : f32 to vector<12x1xf32>
    %164 = arith.cmpf ogt, %162, %163 : vector<12x1xf32>
    %cst_68 = arith.constant -1.000000e+30 : f32
    %165 = vector.shape_cast %164 : vector<12x1xi1> to vector<12x1xi1>
    %166 = vector.broadcast %165 : vector<12x1xi1> to vector<12x256xi1>
    %167 = vector.broadcast %cst_68 : f32 to vector<12x256xf32>
    %168 = arith.select %166, %144, %167 : vector<12x256xi1>, vector<12x256xf32>
    %cst_69 = arith.constant dense<0xFF800000> : vector<256xf32>
    %169 = vector.multi_reduction <maximumf>, %168, %cst_69 [0] : vector<12x256xf32> to vector<256xf32>
    %170 = vector.shape_cast %169 : vector<256xf32> to vector<1x256xf32>
    %c0_i32 = arith.constant 0 : i32
    %171 = vector.broadcast %c0_i32 : i32 to vector<2x1xi32>
    %172 = arith.cmpi eq, %158, %171 : vector<2x1xi32>
    %cst_70 = arith.constant 1.000000e+00 : f32
    %cst_71 = arith.constant 0.000000e+00 : f32
    %173 = vector.broadcast %cst_70 : f32 to vector<2x1xf32>
    %174 = vector.broadcast %cst_71 : f32 to vector<2x1xf32>
    %175 = arith.select %172, %173, %174 : vector<2x1xi1>, vector<2x1xf32>
    %176 = vector.broadcast %175 : vector<2x1xf32> to vector<2x256xf32>
    %177 = vector.broadcast %170 : vector<1x256xf32> to vector<2x256xf32>
    %178 = arith.mulf %176, %177 : vector<2x256xf32>
    %179 = arith.addf %161, %178 : vector<2x256xf32>
    %180 = vector.extract_strided_slice %160 {offsets = [0, 1], sizes = [12, 1], strides = [1, 1]} : vector<12x2xf32> to vector<12x1xf32>
    %cst_72 = arith.constant 0.000000e+00 : f32
    %181 = vector.broadcast %cst_72 : f32 to vector<12x1xf32>
    %182 = arith.cmpf ogt, %180, %181 : vector<12x1xf32>
    %cst_73 = arith.constant -1.000000e+30 : f32
    %183 = vector.shape_cast %182 : vector<12x1xi1> to vector<12x1xi1>
    %184 = vector.broadcast %183 : vector<12x1xi1> to vector<12x256xi1>
    %185 = vector.broadcast %cst_73 : f32 to vector<12x256xf32>
    %186 = arith.select %184, %144, %185 : vector<12x256xi1>, vector<12x256xf32>
    %cst_74 = arith.constant dense<0xFF800000> : vector<256xf32>
    %187 = vector.multi_reduction <maximumf>, %186, %cst_74 [0] : vector<12x256xf32> to vector<256xf32>
    %188 = vector.shape_cast %187 : vector<256xf32> to vector<1x256xf32>
    %c1_i32 = arith.constant 1 : i32
    %189 = vector.broadcast %c1_i32 : i32 to vector<2x1xi32>
    %190 = arith.cmpi eq, %158, %189 : vector<2x1xi32>
    %cst_75 = arith.constant 1.000000e+00 : f32
    %cst_76 = arith.constant 0.000000e+00 : f32
    %191 = vector.broadcast %cst_75 : f32 to vector<2x1xf32>
    %192 = vector.broadcast %cst_76 : f32 to vector<2x1xf32>
    %193 = arith.select %190, %191, %192 : vector<2x1xi1>, vector<2x1xf32>
    %194 = vector.broadcast %193 : vector<2x1xf32> to vector<2x256xf32>
    %195 = vector.broadcast %188 : vector<1x256xf32> to vector<2x256xf32>
    %196 = arith.mulf %194, %195 : vector<2x256xf32>
    %197 = arith.addf %179, %196 : vector<2x256xf32>
    %c0_77 = arith.constant 0 : index
    %c0_78 = arith.constant 0 : index
    %198 = vector.load %arg12[%c0_77, %c0_78] : memref<12x256xf32, #tpu.memory_space<vmem>>, vector<12x256xf32>
    tpu.vector_store %arg12[%c0_77, %c0_78], %144 {strides = array<i32>} : memref<12x256xf32, #tpu.memory_space<vmem>>, vector<12x256xf32>,
    %c0_79 = arith.constant 0 : index
    %c0_80 = arith.constant 0 : index
    %199 = vector.load %arg13[%c0_79, %c0_80] : memref<12x1xf32, #tpu.memory_space<vmem>>, vector<12x1xf32>
    tpu.vector_store %arg13[%c0_79, %c0_80], %135 {strides = array<i32>} : memref<12x1xf32, #tpu.memory_space<vmem>>, vector<12x1xf32>,
    %c0_81 = arith.constant 0 : index
    %c0_82 = arith.constant 0 : index
    %200 = vector.load %arg14[%c0_81, %c0_82] : memref<12x12xf32, #tpu.memory_space<vmem>>, vector<12x12xf32>
    tpu.vector_store %arg14[%c0_81, %c0_82], %150 {strides = array<i32>} : memref<12x12xf32, #tpu.memory_space<vmem>>, vector<12x12xf32>,
    %201 = tpu.concatenate %197, %157 in 1 : vector<2x256xf32>, vector<2x256xf32> -> vector<2x512xf32>
    %c0_83 = arith.constant 0 : index
    %c0_84 = arith.constant 0 : index
    %202 = vector.load %arg15[%c0_83, %c0_84] : memref<2x512xf32, #tpu.memory_space<vmem>>, vector<2x512xf32>
    tpu.vector_store %arg15[%c0_83, %c0_84], %201 {strides = array<i32>} : memref<2x512xf32, #tpu.memory_space<vmem>>, vector<2x512xf32>,
    return
  }
}

module attributes {stable_mosaic.version = 11 : i64} {
  func.func @_gat_block_kernel(%arg0: memref<12x256xf32, #tpu.memory_space<vmem>>, %arg1: memref<12x12xf32, #tpu.memory_space<vmem>>, %arg2: memref<12x1xf32, #tpu.memory_space<vmem>>, %arg3: memref<12x2xf32, #tpu.memory_space<vmem>>, %arg4: memref<2x12xf32, #tpu.memory_space<vmem>>, %arg5: memref<256x768xbf16, #tpu.memory_space<vmem>>, %arg6: memref<3x768xf32, #tpu.memory_space<vmem>>, %arg7: memref<3x768xf32, #tpu.memory_space<vmem>>, %arg8: memref<1x768xf32, #tpu.memory_space<vmem>>, %arg9: memref<1x768xf32, #tpu.memory_space<vmem>>, %arg10: memref<768x256xbf16, #tpu.memory_space<vmem>>, %arg11: memref<1x256xf32, #tpu.memory_space<vmem>>, %arg12: memref<12x256xf32, #tpu.memory_space<vmem>>, %arg13: memref<12x1xf32, #tpu.memory_space<vmem>>, %arg14: memref<12x12xf32, #tpu.memory_space<vmem>>, %arg15: memref<2x512xf32, #tpu.memory_space<vmem>>) attributes {dimension_semantics = [], scalar_prefetch = 0 : i64, scratch_operands = 0 : i64, tpu.core_type = #tpu.core_type<tc>} {
    %c0 = arith.constant 0 : index
    %c0_0 = arith.constant 0 : index
    %0 = vector.load %arg0[%c0, %c0_0] : memref<12x256xf32, #tpu.memory_space<vmem>>, vector<12x256xf32>
    %c0_1 = arith.constant 0 : index
    %c0_2 = arith.constant 0 : index
    %1 = vector.load %arg1[%c0_1, %c0_2] : memref<12x12xf32, #tpu.memory_space<vmem>>, vector<12x12xf32>
    %c0_3 = arith.constant 0 : index
    %c0_4 = arith.constant 0 : index
    %2 = vector.load %arg2[%c0_3, %c0_4] : memref<12x1xf32, #tpu.memory_space<vmem>>, vector<12x1xf32>
    %c0_5 = arith.constant 0 : index
    %c0_6 = arith.constant 0 : index
    %3 = vector.load %arg3[%c0_5, %c0_6] : memref<12x2xf32, #tpu.memory_space<vmem>>, vector<12x2xf32>
    %c0_7 = arith.constant 0 : index
    %c0_8 = arith.constant 0 : index
    %4 = vector.load %arg4[%c0_7, %c0_8] : memref<2x12xf32, #tpu.memory_space<vmem>>, vector<2x12xf32>
    %5 = arith.truncf %0 : vector<12x256xf32> to vector<12x256xbf16>
    %c0_9 = arith.constant 0 : index
    %c0_10 = arith.constant 0 : index
    %6 = vector.load %arg5[%c0_9, %c0_10] : memref<256x768xbf16, #tpu.memory_space<vmem>>, vector<256x768xbf16>
    %cst = arith.constant dense<0.000000e+00> : vector<12x768xf32>
    %7 = tpu.matmul %5, %6, %cst {dimension_numbers = #tpu.dot_dimension_numbers<[1], [0], [0], [1], [0, 0, 1, 1], [], []>} : vector<12x256xbf16>, vector<256x768xbf16>, vector<12x768xf32> -> vector<12x768xf32>
    %c0_11 = arith.constant 0 : index
    %c0_12 = arith.constant 0 : index
    %8 = vector.load %arg6[%c0_11, %c0_12] : memref<3x768xf32, #tpu.memory_space<vmem>>, vector<3x768xf32>
    %cst_13 = arith.constant dense<0.000000e+00> : vector<12x3xf32>
    %9 = tpu.matmul %7, %8, %cst_13 {dimension_numbers = #tpu.dot_dimension_numbers<[1], [1], [0], [0], [0, 0, 1, 0], [], []>} : vector<12x768xf32>, vector<3x768xf32>, vector<12x3xf32> -> vector<12x3xf32>
    %c0_14 = arith.constant 0 : index
    %c0_15 = arith.constant 0 : index
    %10 = vector.load %arg7[%c0_14, %c0_15] : memref<3x768xf32, #tpu.memory_space<vmem>>, vector<3x768xf32>
    %cst_16 = arith.constant dense<0.000000e+00> : vector<3x12xf32>
    %11 = tpu.matmul %10, %7, %cst_16 {dimension_numbers = #tpu.dot_dimension_numbers<[1], [1], [0], [0], [0, 0, 1, 0], [], []>} : vector<3x768xf32>, vector<12x768xf32>, vector<3x12xf32> -> vector<3x12xf32>
    %12 = tpu.iota {dimensions = array<i32: 0>} : vector<12x12xi32>
    %13 = tpu.iota {dimensions = array<i32: 1>} : vector<12x12xi32>
    %14 = arith.cmpi eq, %12, %13 : vector<12x12xi32>
    %cst_17 = arith.constant 1.000000e+00 : f32
    %cst_18 = arith.constant 0.000000e+00 : f32
    %15 = vector.broadcast %cst_17 : f32 to vector<12x12xf32>
    %16 = vector.broadcast %cst_18 : f32 to vector<12x12xf32>
    %17 = arith.select %14, %15, %16 : vector<12x12xi1>, vector<12x12xf32>
    %18 = arith.maximumf %1, %17 : vector<12x12xf32>
    %19 = vector.extract_strided_slice %7 {offsets = [0, 0], sizes = [12, 256], strides = [1, 1]} : vector<12x768xf32> to vector<12x256xf32>
    %20 = vector.extract_strided_slice %9 {offsets = [0, 0], sizes = [12, 1], strides = [1, 1]} : vector<12x3xf32> to vector<12x1xf32>
    %21 = vector.extract_strided_slice %11 {offsets = [0, 0], sizes = [1, 12], strides = [1, 1]} : vector<3x12xf32> to vector<1x12xf32>
    %22 = vector.broadcast %20 : vector<12x1xf32> to vector<12x12xf32>
    %23 = vector.broadcast %21 : vector<1x12xf32> to vector<12x12xf32>
    %24 = arith.addf %22, %23 : vector<12x12xf32>
    %cst_19 = arith.constant 0.000000e+00 : f32
    %25 = vector.broadcast %cst_19 : f32 to vector<12x12xf32>
    %26 = arith.cmpf oge, %24, %25 : vector<12x12xf32>
    %cst_20 = arith.constant 2.000000e-01 : f32
    %27 = vector.broadcast %cst_20 : f32 to vector<12x12xf32>
    %28 = arith.mulf %27, %24 : vector<12x12xf32>
    %29 = arith.select %26, %24, %28 : vector<12x12xi1>, vector<12x12xf32>
    %cst_21 = arith.constant 0.000000e+00 : f32
    %30 = vector.broadcast %cst_21 : f32 to vector<12x12xf32>
    %31 = arith.cmpf ogt, %18, %30 : vector<12x12xf32>
    %cst_22 = arith.constant -1.000000e+30 : f32
    %32 = vector.broadcast %cst_22 : f32 to vector<12x12xf32>
    %33 = arith.select %31, %29, %32 : vector<12x12xi1>, vector<12x12xf32>
    %cst_23 = arith.constant dense<0xFF800000> : vector<12xf32>
    %34 = vector.multi_reduction <maximumf>, %33, %cst_23 [1] : vector<12x12xf32> to vector<12xf32>
    %35 = vector.shape_cast %34 : vector<12xf32> to vector<12x1xf32>
    %36 = vector.broadcast %35 : vector<12x1xf32> to vector<12x12xf32>
    %37 = arith.subf %33, %36 : vector<12x12xf32>
    %38 = math.exp %37 : vector<12x12xf32>
    %cst_24 = arith.constant dense<0.000000e+00> : vector<12xf32>
    %39 = vector.multi_reduction <add>, %38, %cst_24 [1] : vector<12x12xf32> to vector<12xf32>
    %40 = vector.shape_cast %39 : vector<12xf32> to vector<12x1xf32>
    %41 = tpu.reciprocal %40 {approx = true} : vector<12x1xf32> -> vector<12x1xf32>
    %42 = vector.broadcast %41 : vector<12x1xf32> to vector<12x12xf32>
    %43 = arith.mulf %38, %42 : vector<12x12xf32>
    %cst_25 = arith.constant dense<0.000000e+00> : vector<12x256xf32>
    %44 = tpu.matmul %43, %19, %cst_25 {dimension_numbers = #tpu.dot_dimension_numbers<[1], [0], [0], [1], [0, 0, 1, 1], [], []>} : vector<12x12xf32>, vector<12x256xf32>, vector<12x256xf32> -> vector<12x256xf32>
    %45 = vector.extract_strided_slice %7 {offsets = [0, 256], sizes = [12, 256], strides = [1, 1]} : vector<12x768xf32> to vector<12x256xf32>
    %46 = vector.extract_strided_slice %9 {offsets = [0, 1], sizes = [12, 1], strides = [1, 1]} : vector<12x3xf32> to vector<12x1xf32>
    %47 = vector.extract_strided_slice %11 {offsets = [1, 0], sizes = [1, 12], strides = [1, 1]} : vector<3x12xf32> to vector<1x12xf32>
    %48 = vector.broadcast %46 : vector<12x1xf32> to vector<12x12xf32>
    %49 = vector.broadcast %47 : vector<1x12xf32> to vector<12x12xf32>
    %50 = arith.addf %48, %49 : vector<12x12xf32>
    %cst_26 = arith.constant 0.000000e+00 : f32
    %51 = vector.broadcast %cst_26 : f32 to vector<12x12xf32>
    %52 = arith.cmpf oge, %50, %51 : vector<12x12xf32>
    %cst_27 = arith.constant 2.000000e-01 : f32
    %53 = vector.broadcast %cst_27 : f32 to vector<12x12xf32>
    %54 = arith.mulf %53, %50 : vector<12x12xf32>
    %55 = arith.select %52, %50, %54 : vector<12x12xi1>, vector<12x12xf32>
    %cst_28 = arith.constant 0.000000e+00 : f32
    %56 = vector.broadcast %cst_28 : f32 to vector<12x12xf32>
    %57 = arith.cmpf ogt, %18, %56 : vector<12x12xf32>
    %cst_29 = arith.constant -1.000000e+30 : f32
    %58 = vector.broadcast %cst_29 : f32 to vector<12x12xf32>
    %59 = arith.select %57, %55, %58 : vector<12x12xi1>, vector<12x12xf32>
    %cst_30 = arith.constant dense<0xFF800000> : vector<12xf32>
    %60 = vector.multi_reduction <maximumf>, %59, %cst_30 [1] : vector<12x12xf32> to vector<12xf32>
    %61 = vector.shape_cast %60 : vector<12xf32> to vector<12x1xf32>
    %62 = vector.broadcast %61 : vector<12x1xf32> to vector<12x12xf32>
    %63 = arith.subf %59, %62 : vector<12x12xf32>
    %64 = math.exp %63 : vector<12x12xf32>
    %cst_31 = arith.constant dense<0.000000e+00> : vector<12xf32>
    %65 = vector.multi_reduction <add>, %64, %cst_31 [1] : vector<12x12xf32> to vector<12xf32>
    %66 = vector.shape_cast %65 : vector<12xf32> to vector<12x1xf32>
    %67 = tpu.reciprocal %66 {approx = true} : vector<12x1xf32> -> vector<12x1xf32>
    %68 = vector.broadcast %67 : vector<12x1xf32> to vector<12x12xf32>
    %69 = arith.mulf %64, %68 : vector<12x12xf32>
    %cst_32 = arith.constant dense<0.000000e+00> : vector<12x256xf32>
    %70 = tpu.matmul %69, %45, %cst_32 {dimension_numbers = #tpu.dot_dimension_numbers<[1], [0], [0], [1], [0, 0, 1, 1], [], []>} : vector<12x12xf32>, vector<12x256xf32>, vector<12x256xf32> -> vector<12x256xf32>
    %71 = vector.extract_strided_slice %7 {offsets = [0, 512], sizes = [12, 256], strides = [1, 1]} : vector<12x768xf32> to vector<12x256xf32>
    %72 = vector.extract_strided_slice %9 {offsets = [0, 2], sizes = [12, 1], strides = [1, 1]} : vector<12x3xf32> to vector<12x1xf32>
    %73 = vector.extract_strided_slice %11 {offsets = [2, 0], sizes = [1, 12], strides = [1, 1]} : vector<3x12xf32> to vector<1x12xf32>
    %74 = vector.broadcast %72 : vector<12x1xf32> to vector<12x12xf32>
    %75 = vector.broadcast %73 : vector<1x12xf32> to vector<12x12xf32>
    %76 = arith.addf %74, %75 : vector<12x12xf32>
    %cst_33 = arith.constant 0.000000e+00 : f32
    %77 = vector.broadcast %cst_33 : f32 to vector<12x12xf32>
    %78 = arith.cmpf oge, %76, %77 : vector<12x12xf32>
    %cst_34 = arith.constant 2.000000e-01 : f32
    %79 = vector.broadcast %cst_34 : f32 to vector<12x12xf32>
    %80 = arith.mulf %79, %76 : vector<12x12xf32>
    %81 = arith.select %78, %76, %80 : vector<12x12xi1>, vector<12x12xf32>
    %cst_35 = arith.constant 0.000000e+00 : f32
    %82 = vector.broadcast %cst_35 : f32 to vector<12x12xf32>
    %83 = arith.cmpf ogt, %18, %82 : vector<12x12xf32>
    %cst_36 = arith.constant -1.000000e+30 : f32
    %84 = vector.broadcast %cst_36 : f32 to vector<12x12xf32>
    %85 = arith.select %83, %81, %84 : vector<12x12xi1>, vector<12x12xf32>
    %cst_37 = arith.constant dense<0xFF800000> : vector<12xf32>
    %86 = vector.multi_reduction <maximumf>, %85, %cst_37 [1] : vector<12x12xf32> to vector<12xf32>
    %87 = vector.shape_cast %86 : vector<12xf32> to vector<12x1xf32>
    %88 = vector.broadcast %87 : vector<12x1xf32> to vector<12x12xf32>
    %89 = arith.subf %85, %88 : vector<12x12xf32>
    %90 = math.exp %89 : vector<12x12xf32>
    %cst_38 = arith.constant dense<0.000000e+00> : vector<12xf32>
    %91 = vector.multi_reduction <add>, %90, %cst_38 [1] : vector<12x12xf32> to vector<12xf32>
    %92 = vector.shape_cast %91 : vector<12xf32> to vector<12x1xf32>
    %93 = tpu.reciprocal %92 {approx = true} : vector<12x1xf32> -> vector<12x1xf32>
    %94 = vector.broadcast %93 : vector<12x1xf32> to vector<12x12xf32>
    %95 = arith.mulf %90, %94 : vector<12x12xf32>
    %cst_39 = arith.constant dense<0.000000e+00> : vector<12x256xf32>
    %96 = tpu.matmul %95, %71, %cst_39 {dimension_numbers = #tpu.dot_dimension_numbers<[1], [0], [0], [1], [0, 0, 1, 1], [], []>} : vector<12x12xf32>, vector<12x256xf32>, vector<12x256xf32> -> vector<12x256xf32>
    %97 = tpu.concatenate %44, %70, %96 in 1 : vector<12x256xf32>, vector<12x256xf32>, vector<12x256xf32> -> vector<12x768xf32>
    %c0_40 = arith.constant 0 : index
    %c0_41 = arith.constant 0 : index
    %98 = vector.load %arg8[%c0_40, %c0_41] : memref<1x768xf32, #tpu.memory_space<vmem>>, vector<1x768xf32>
    %99 = vector.broadcast %98 : vector<1x768xf32> to vector<12x768xf32>
    %100 = arith.addf %97, %99 : vector<12x768xf32>
    %c0_42 = arith.constant 0 : index
    %c0_43 = arith.constant 0 : index
    %101 = vector.load %arg9[%c0_42, %c0_43] : memref<1x768xf32, #tpu.memory_space<vmem>>, vector<1x768xf32>
    %cst_44 = arith.constant dense<0.000000e+00> : vector<12x1xf32>
    %102 = tpu.matmul %100, %101, %cst_44 {dimension_numbers = #tpu.dot_dimension_numbers<[1], [1], [0], [0], [0, 0, 1, 0], [], []>} : vector<12x768xf32>, vector<1x768xf32>, vector<12x1xf32> -> vector<12x1xf32>
    %103 = math.tanh %102 : vector<12x1xf32>
    %cst_45 = arith.constant 1.000000e+00 : f32
    %104 = vector.broadcast %cst_45 : f32 to vector<12x12xf32>
    %105 = vector.broadcast %103 : vector<12x1xf32> to vector<12x12xf32>
    %106 = arith.mulf %17, %105 : vector<12x12xf32>
    %cst_46 = arith.constant dense<0.000000e+00> : vector<12x12xf32>
    %107 = tpu.matmul %104, %106, %cst_46 {dimension_numbers = #tpu.dot_dimension_numbers<[1], [0], [0], [1], [0, 0, 1, 1], [], []>} : vector<12x12xf32>, vector<12x12xf32>, vector<12x12xf32> -> vector<12x12xf32>
    %cst_47 = arith.constant dense<0.000000e+00> : vector<2x1xf32>
    %108 = tpu.matmul %4, %2, %cst_47 {dimension_numbers = #tpu.dot_dimension_numbers<[1], [0], [0], [1], [0, 0, 1, 1], [], []>} : vector<2x12xf32>, vector<12x1xf32>, vector<2x1xf32> -> vector<2x1xf32>
    %cst_48 = arith.constant 4.000000e+00 : f32
    %109 = vector.broadcast %cst_48 : f32 to vector<2x1xf32>
    %110 = arith.mulf %109, %108 : vector<2x1xf32>
    %cst_49 = arith.constant 4.000000e+00 : f32
    %111 = vector.broadcast %cst_49 : f32 to vector<2x1xf32>
    %112 = arith.addf %110, %111 : vector<2x1xf32>
    %cst_50 = arith.constant 5.000000e+00 : f32
    %113 = vector.broadcast %cst_50 : f32 to vector<2x1xf32>
    %114 = arith.divf %112, %113 : vector<2x1xf32>
    %115 = math.floor %114 : vector<2x1xf32>
    %cst_51 = arith.constant dense<0.000000e+00> : vector<12x1xf32>
    %116 = tpu.matmul %3, %115, %cst_51 {dimension_numbers = #tpu.dot_dimension_numbers<[1], [0], [0], [1], [0, 0, 1, 1], [], []>} : vector<12x2xf32>, vector<2x1xf32>, vector<12x1xf32> -> vector<12x1xf32>
    %cst_52 = arith.constant dense<0.000000e+00> : vector<12x12xf32>
    %117 = tpu.matmul %3, %4, %cst_52 {dimension_numbers = #tpu.dot_dimension_numbers<[1], [0], [0], [1], [0, 0, 1, 1], [], []>} : vector<12x2xf32>, vector<2x12xf32>, vector<12x12xf32> -> vector<12x12xf32>
    %118 = vector.broadcast %103 : vector<12x1xf32> to vector<12x12xf32>
    %119 = arith.cmpf ogt, %107, %118 : vector<12x12xf32>
    %120 = vector.broadcast %103 : vector<12x1xf32> to vector<12x12xf32>
    %121 = arith.cmpf oeq, %107, %120 : vector<12x12xf32>
    %122 = arith.cmpi slt, %13, %12 : vector<12x12xi32>
    %123 = arith.andi %121, %122 : vector<12x12xi1>
    %124 = arith.ori %119, %123 : vector<12x12xi1>
    %cst_53 = arith.constant 0.000000e+00 : f32
    %125 = vector.broadcast %cst_53 : f32 to vector<12x12xf32>
    %126 = arith.select %124, %117, %125 : vector<12x12xi1>, vector<12x12xf32>
    %cst_54 = arith.constant 1.000000e+00 : f32
    %127 = vector.broadcast %cst_54 : f32 to vector<12x12xf32>
    %128 = arith.subf %127, %17 : vector<12x12xf32>
    %129 = arith.mulf %126, %128 : vector<12x12xf32>
    %cst_55 = arith.constant dense<0.000000e+00> : vector<12x1xf32>
    %130 = tpu.matmul %129, %2, %cst_55 {dimension_numbers = #tpu.dot_dimension_numbers<[1], [0], [0], [1], [0, 0, 1, 1], [], []>} : vector<12x12xf32>, vector<12x1xf32>, vector<12x1xf32> -> vector<12x1xf32>
    %131 = arith.cmpf olt, %130, %116 : vector<12x1xf32>
    %cst_56 = arith.constant 1.000000e+00 : f32
    %cst_57 = arith.constant 0.000000e+00 : f32
    %132 = vector.broadcast %cst_56 : f32 to vector<12x1xf32>
    %133 = vector.broadcast %cst_57 : f32 to vector<12x1xf32>
    %134 = arith.select %131, %132, %133 : vector<12x1xi1>, vector<12x1xf32>
    %135 = arith.mulf %2, %134 : vector<12x1xf32>
    %136 = arith.mulf %103, %135 : vector<12x1xf32>
    %137 = vector.broadcast %136 : vector<12x1xf32> to vector<12x768xf32>
    %138 = arith.mulf %100, %137 : vector<12x768xf32>
    %139 = arith.truncf %138 : vector<12x768xf32> to vector<12x768xbf16>
    %c0_58 = arith.constant 0 : index
    %c0_59 = arith.constant 0 : index
    %140 = vector.load %arg10[%c0_58, %c0_59] : memref<768x256xbf16, #tpu.memory_space<vmem>>, vector<768x256xbf16>
    %cst_60 = arith.constant dense<0.000000e+00> : vector<12x256xf32>
    %141 = tpu.matmul %139, %140, %cst_60 {dimension_numbers = #tpu.dot_dimension_numbers<[1], [0], [0], [1], [0, 0, 1, 1], [], []>} : vector<12x768xbf16>, vector<768x256xbf16>, vector<12x256xf32> -> vector<12x256xf32>
    %c0_61 = arith.constant 0 : index
    %c0_62 = arith.constant 0 : index
    %142 = vector.load %arg11[%c0_61, %c0_62] : memref<1x256xf32, #tpu.memory_space<vmem>>, vector<1x256xf32>
    %143 = vector.broadcast %142 : vector<1x256xf32> to vector<12x256xf32>
    %144 = arith.addf %141, %143 : vector<12x256xf32>
    %145 = vector.broadcast %135 : vector<12x1xf32> to vector<12x12xf32>
    %146 = arith.mulf %17, %145 : vector<12x12xf32>
    %cst_63 = arith.constant dense<0.000000e+00> : vector<12x12xf32>
    %147 = tpu.matmul %104, %146, %cst_63 {dimension_numbers = #tpu.dot_dimension_numbers<[1], [0], [0], [1], [0, 0, 1, 1], [], []>} : vector<12x12xf32>, vector<12x12xf32>, vector<12x12xf32> -> vector<12x12xf32>
    %148 = vector.broadcast %135 : vector<12x1xf32> to vector<12x12xf32>
    %149 = arith.mulf %1, %148 : vector<12x12xf32>
    %150 = arith.mulf %149, %147 : vector<12x12xf32>
    %151 = vector.broadcast %135 : vector<12x1xf32> to vector<12x256xf32>
    %152 = arith.mulf %144, %151 : vector<12x256xf32>
    %cst_64 = arith.constant dense<0.000000e+00> : vector<2x1xf32>
    %153 = tpu.matmul %4, %135, %cst_64 {dimension_numbers = #tpu.dot_dimension_numbers<[1], [0], [0], [1], [0, 0, 1, 1], [], []>} : vector<2x12xf32>, vector<12x1xf32>, vector<2x1xf32> -> vector<2x1xf32>
    %cst_65 = arith.constant dense<0.000000e+00> : vector<2x256xf32>
    %154 = tpu.matmul %4, %152, %cst_65 {dimension_numbers = #tpu.dot_dimension_numbers<[1], [0], [0], [1], [0, 0, 1, 1], [], []>} : vector<2x12xf32>, vector<12x256xf32>, vector<2x256xf32> -> vector<2x256xf32>
    %155 = tpu.reciprocal %153 {approx = true} : vector<2x1xf32> -> vector<2x1xf32>
    %156 = vector.broadcast %155 : vector<2x1xf32> to vector<2x256xf32>
    %157 = arith.mulf %154, %156 : vector<2x256xf32>
    %158 = tpu.iota {dimensions = array<i32: 0>} : vector<2x1xi32>
    %159 = vector.broadcast %135 : vector<12x1xf32> to vector<12x2xf32>
    %160 = arith.mulf %3, %159 : vector<12x2xf32>
    %cst_66 = arith.constant 0.000000e+00 : f32
    %161 = vector.broadcast %cst_66 : f32 to vector<2x256xf32>
    %162 = vector.extract_strided_slice %160 {offsets = [0, 0], sizes = [12, 1], strides = [1, 1]} : vector<12x2xf32> to vector<12x1xf32>
    %cst_67 = arith.constant 0.000000e+00 : f32
    %163 = vector.broadcast %cst_67 : f32 to vector<12x1xf32>
    %164 = arith.cmpf ogt, %162, %163 : vector<12x1xf32>
    %cst_68 = arith.constant -1.000000e+30 : f32
    %165 = vector.shape_cast %164 : vector<12x1xi1> to vector<12x1xi1>
    %166 = vector.broadcast %165 : vector<12x1xi1> to vector<12x256xi1>
    %167 = vector.broadcast %cst_68 : f32 to vector<12x256xf32>
    %168 = arith.select %166, %144, %167 : vector<12x256xi1>, vector<12x256xf32>
    %cst_69 = arith.constant dense<0xFF800000> : vector<256xf32>
    %169 = vector.multi_reduction <maximumf>, %168, %cst_69 [0] : vector<12x256xf32> to vector<256xf32>
    %170 = vector.shape_cast %169 : vector<256xf32> to vector<1x256xf32>
    %c0_i32 = arith.constant 0 : i32
    %171 = vector.broadcast %c0_i32 : i32 to vector<2x1xi32>
    %172 = arith.cmpi eq, %158, %171 : vector<2x1xi32>
    %cst_70 = arith.constant 1.000000e+00 : f32
    %cst_71 = arith.constant 0.000000e+00 : f32
    %173 = vector.broadcast %cst_70 : f32 to vector<2x1xf32>
    %174 = vector.broadcast %cst_71 : f32 to vector<2x1xf32>
    %175 = arith.select %172, %173, %174 : vector<2x1xi1>, vector<2x1xf32>
    %176 = vector.broadcast %175 : vector<2x1xf32> to vector<2x256xf32>
    %177 = vector.broadcast %170 : vector<1x256xf32> to vector<2x256xf32>
    %178 = arith.mulf %176, %177 : vector<2x256xf32>
    %179 = arith.addf %161, %178 : vector<2x256xf32>
    %180 = vector.extract_strided_slice %160 {offsets = [0, 1], sizes = [12, 1], strides = [1, 1]} : vector<12x2xf32> to vector<12x1xf32>
    %cst_72 = arith.constant 0.000000e+00 : f32
    %181 = vector.broadcast %cst_72 : f32 to vector<12x1xf32>
    %182 = arith.cmpf ogt, %180, %181 : vector<12x1xf32>
    %cst_73 = arith.constant -1.000000e+30 : f32
    %183 = vector.shape_cast %182 : vector<12x1xi1> to vector<12x1xi1>
    %184 = vector.broadcast %183 : vector<12x1xi1> to vector<12x256xi1>
    %185 = vector.broadcast %cst_73 : f32 to vector<12x256xf32>
    %186 = arith.select %184, %144, %185 : vector<12x256xi1>, vector<12x256xf32>
    %cst_74 = arith.constant dense<0xFF800000> : vector<256xf32>
    %187 = vector.multi_reduction <maximumf>, %186, %cst_74 [0] : vector<12x256xf32> to vector<256xf32>
    %188 = vector.shape_cast %187 : vector<256xf32> to vector<1x256xf32>
    %c1_i32 = arith.constant 1 : i32
    %189 = vector.broadcast %c1_i32 : i32 to vector<2x1xi32>
    %190 = arith.cmpi eq, %158, %189 : vector<2x1xi32>
    %cst_75 = arith.constant 1.000000e+00 : f32
    %cst_76 = arith.constant 0.000000e+00 : f32
    %191 = vector.broadcast %cst_75 : f32 to vector<2x1xf32>
    %192 = vector.broadcast %cst_76 : f32 to vector<2x1xf32>
    %193 = arith.select %190, %191, %192 : vector<2x1xi1>, vector<2x1xf32>
    %194 = vector.broadcast %193 : vector<2x1xf32> to vector<2x256xf32>
    %195 = vector.broadcast %188 : vector<1x256xf32> to vector<2x256xf32>
    %196 = arith.mulf %194, %195 : vector<2x256xf32>
    %197 = arith.addf %179, %196 : vector<2x256xf32>
    %c0_77 = arith.constant 0 : index
    %c0_78 = arith.constant 0 : index
    %198 = vector.load %arg12[%c0_77, %c0_78] : memref<12x256xf32, #tpu.memory_space<vmem>>, vector<12x256xf32>
    tpu.vector_store %arg12[%c0_77, %c0_78], %144 {strides = array<i32>} : memref<12x256xf32, #tpu.memory_space<vmem>>, vector<12x256xf32>,
    %c0_79 = arith.constant 0 : index
    %c0_80 = arith.constant 0 : index
    %199 = vector.load %arg13[%c0_79, %c0_80] : memref<12x1xf32, #tpu.memory_space<vmem>>, vector<12x1xf32>
    tpu.vector_store %arg13[%c0_79, %c0_80], %135 {strides = array<i32>} : memref<12x1xf32, #tpu.memory_space<vmem>>, vector<12x1xf32>,
    %c0_81 = arith.constant 0 : index
    %c0_82 = arith.constant 0 : index
    %200 = vector.load %arg14[%c0_81, %c0_82] : memref<12x12xf32, #tpu.memory_space<vmem>>, vector<12x12xf32>
    tpu.vector_store %arg14[%c0_81, %c0_82], %150 {strides = array<i32>} : memref<12x12xf32, #tpu.memory_space<vmem>>, vector<12x12xf32>,
    %201 = tpu.concatenate %197, %157 in 1 : vector<2x256xf32>, vector<2x256xf32> -> vector<2x512xf32>
    %c0_83 = arith.constant 0 : index
    %c0_84 = arith.constant 0 : index
    %202 = vector.load %arg15[%c0_83, %c0_84] : memref<2x512xf32, #tpu.memory_space<vmem>>, vector<2x512xf32>
    tpu.vector_store %arg15[%c0_83, %c0_84], %201 {strides = array<i32>} : memref<2x512xf32, #tpu.memory_space<vmem>>, vector<2x512xf32>,
    return
  }
}

module attributes {stable_mosaic.version = 11 : i64} {
  func.func @_mlp_head_kernel(%arg0: memref<2x512xf32, #tpu.memory_space<vmem>>, %arg1: memref<2x512xf32, #tpu.memory_space<vmem>>, %arg2: memref<2x512xf32, #tpu.memory_space<vmem>>, %arg3: memref<512x1024xbf16, #tpu.memory_space<vmem>>, %arg4: memref<1x1024xf32, #tpu.memory_space<vmem>>, %arg5: memref<1024x2xbf16, #tpu.memory_space<vmem>>, %arg6: memref<1x2xf32, #tpu.memory_space<vmem>>, %arg7: memref<2x2xf32, #tpu.memory_space<vmem>>) attributes {dimension_semantics = [], scalar_prefetch = 0 : i64, scratch_operands = 0 : i64, tpu.core_type = #tpu.core_type<tc>} {
    %c0 = arith.constant 0 : index
    %c0_0 = arith.constant 0 : index
    %0 = vector.load %arg0[%c0, %c0_0] : memref<2x512xf32, #tpu.memory_space<vmem>>, vector<2x512xf32>
    %c0_1 = arith.constant 0 : index
    %c0_2 = arith.constant 0 : index
    %1 = vector.load %arg1[%c0_1, %c0_2] : memref<2x512xf32, #tpu.memory_space<vmem>>, vector<2x512xf32>
    %2 = arith.addf %0, %1 : vector<2x512xf32>
    %c0_3 = arith.constant 0 : index
    %c0_4 = arith.constant 0 : index
    %3 = vector.load %arg2[%c0_3, %c0_4] : memref<2x512xf32, #tpu.memory_space<vmem>>, vector<2x512xf32>
    %4 = arith.addf %2, %3 : vector<2x512xf32>
    %5 = arith.truncf %4 : vector<2x512xf32> to vector<2x512xbf16>
    %c0_5 = arith.constant 0 : index
    %c0_6 = arith.constant 0 : index
    %6 = vector.load %arg3[%c0_5, %c0_6] : memref<512x1024xbf16, #tpu.memory_space<vmem>>, vector<512x1024xbf16>
    %cst = arith.constant dense<0.000000e+00> : vector<2x1024xf32>
    %7 = tpu.matmul %5, %6, %cst {dimension_numbers = #tpu.dot_dimension_numbers<[1], [0], [0], [1], [0, 0, 1, 1], [], []>} : vector<2x512xbf16>, vector<512x1024xbf16>, vector<2x1024xf32> -> vector<2x1024xf32>
    %c0_7 = arith.constant 0 : index
    %c0_8 = arith.constant 0 : index
    %8 = vector.load %arg4[%c0_7, %c0_8] : memref<1x1024xf32, #tpu.memory_space<vmem>>, vector<1x1024xf32>
    %9 = vector.broadcast %8 : vector<1x1024xf32> to vector<2x1024xf32>
    %10 = arith.addf %7, %9 : vector<2x1024xf32>
    %cst_9 = arith.constant 0.000000e+00 : f32
    %11 = vector.broadcast %cst_9 : f32 to vector<2x1024xf32>
    %12 = arith.cmpf oge, %10, %11 : vector<2x1024xf32>
    %cst_10 = arith.constant 0.00999999977 : f32
    %13 = vector.broadcast %cst_10 : f32 to vector<2x1024xf32>
    %14 = arith.mulf %13, %10 : vector<2x1024xf32>
    %15 = arith.select %12, %10, %14 : vector<2x1024xi1>, vector<2x1024xf32>
    %16 = arith.truncf %15 : vector<2x1024xf32> to vector<2x1024xbf16>
    %c0_11 = arith.constant 0 : index
    %c0_12 = arith.constant 0 : index
    %17 = vector.load %arg5[%c0_11, %c0_12] : memref<1024x2xbf16, #tpu.memory_space<vmem>>, vector<1024x2xbf16>
    %cst_13 = arith.constant dense<0.000000e+00> : vector<2x2xf32>
    %18 = tpu.matmul %16, %17, %cst_13 {dimension_numbers = #tpu.dot_dimension_numbers<[1], [0], [0], [1], [0, 0, 1, 1], [], []>} : vector<2x1024xbf16>, vector<1024x2xbf16>, vector<2x2xf32> -> vector<2x2xf32>
    %c0_14 = arith.constant 0 : index
    %c0_15 = arith.constant 0 : index
    %19 = vector.load %arg6[%c0_14, %c0_15] : memref<1x2xf32, #tpu.memory_space<vmem>>, vector<1x2xf32>
    %20 = vector.broadcast %19 : vector<1x2xf32> to vector<2x2xf32>
    %21 = arith.addf %18, %20 : vector<2x2xf32>
    %c0_16 = arith.constant 0 : index
    %c0_17 = arith.constant 0 : index
    %22 = vector.load %arg7[%c0_16, %c0_17] : memref<2x2xf32, #tpu.memory_space<vmem>>, vector<2x2xf32>
    tpu.vector_store %arg7[%c0_16, %c0_17], %21 {strides = array<i32>} : memref<2x2xf32, #tpu.memory_space<vmem>>, vector<2x2xf32>,
    return
  }
}

</mosaic_0001>

<llo_original>
// kernel: _forward_device.4
$region0: #{_forward_device.4}
  #allocation0 [shape = 'u32[]', space=smem, size = 0x4, offset = 0x4, fixed_abs, tag = 'smem constant byte address 0x4 - core index']
  #allocation1 [shape = 'u32[144,128]{1,0:T(1,128)}', space=vmem, size = 0x12000, scoped, tag = 'internal scratch']
  %s0 = inlined_call_operand.hbm [shape: f32[12,32], index: 0, kind: input, shape index: {}]
  %s1 = inlined_call_operand.hbm [shape: f32[12,12], index: 1, kind: input, shape index: {}]
  %s2 = inlined_call_operand.vmem [shape: f32[12,1], index: 2, kind: input, shape index: {}]
  %s3 = inlined_call_operand.vmem [shape: f32[12,2], index: 3, kind: input, shape index: {}]
  %s4 = inlined_call_operand.hbm [shape: f32[2,12], index: 4, kind: input, shape index: {}]
  %s5 = inlined_call_operand.vmem [shape: bf16[32,768], index: 5, kind: input, shape index: {}]
  %s6 = inlined_call_operand.vmem [shape: f32[3,768], index: 6, kind: input, shape index: {}]
  %s7 = inlined_call_operand.vmem [shape: f32[3,768], index: 7, kind: input, shape index: {}]
  %s8 = inlined_call_operand.vmem [shape: f32[1,768], index: 8, kind: input, shape index: {}]
  %s9 = inlined_call_operand.vmem [shape: f32[1,768], index: 9, kind: input, shape index: {}]
  %s10 = inlined_call_operand.vmem [shape: bf16[768,256], index: 10, kind: input, shape index: {}]
  %s11 = inlined_call_operand.hbm [shape: f32[1,256], index: 11, kind: input, shape index: {}]
  %s12 = inlined_call_operand.vmem [shape: f32[12,256], index: 12, kind: output, shape index: {0}]
  %s13 = inlined_call_operand.vmem [shape: f32[12,1], index: 13, kind: output, shape index: {1}]
  %s14 = inlined_call_operand.vmem [shape: f32[12,12], index: 14, kind: output, shape index: {2}]
  %s15 = inlined_call_operand.vmem [shape: f32[2,512], index: 15, kind: output, shape index: {3}]
  %16 = xla_tuple %s12, %s13, %s14, %s15
  %s17 = sld [smem:[#allocation0]]
  $region98: #{_forward_device.4} parent=0
    _
  %s19 = ssub.s32 1, %s17
  %s20 = scalar_select 0, %s19, %s17
  $region1: #{_forward_device.4} parent=0
    #allocation2 [shape = 'u8[8192]{0}', space=vmem, size = 0x2000, scoped, tag = 'input window, operand 0, single buffered']
    #allocation3 [shape = 's32[1]{0}', space=sflag, size = 0x4, scoped, tag = 'scoped memory for _forward_device.4']
    #allocation4 [shape = 'u8[8192]{0}', space=vmem, size = 0x2000, scoped, tag = 'input window, operand 1, single buffered']
    #allocation5 [shape = 's32[1]{0}', space=sflag, size = 0x4, scoped, tag = 'scoped memory for _forward_device.4']
    #allocation6 [shape = 'u8[1024]{0}', space=vmem, size = 0x400, scoped, tag = 'input window, operand 4, single buffered']
    #allocation7 [shape = 'u8[1024]{0}', space=vmem, size = 0x400, scoped, tag = 'input window, operand 11, single buffered']
    #allocation8 [shape = 's32[1]{0}', space=sflag, size = 0x4, scoped, tag = 'scoped memory for _forward_device.4']
    %21 = vsyncpa [#allocation3], 0
    %22 = vsyncpa [#allocation5], 0
    %23 = vsyncpa [#allocation8], 0
    // Predicated region
    $region2: #{_forward_device.4} parent=1 // pred_check
      _
    $region3: #{_forward_device.4} parent=1 // pred_check_branch
      %25 = sbr.rel (0) target = $region5
    $region4: #{_forward_device.4} parent=1 // pred_region
      %s27 = ssub.s32 256, 256
      %28 = vsyncadd [#allocation3], %s27
      %s29 = sshll.u32 [#allocation2], 4
      %s30 = int_to_ptr.vmem [resolvable:$true] %s29
      %35 = dma.hbm_to_vmem [thread:$0]  %s0, 256, %s30, [#allocation3], 128, 128, 8
    $region5: #{_forward_device.4} parent=1 // pred_fallthru
      _
    // Predicated region
    $region6: #{_forward_device.4} parent=1 // pred_check
      _
    $region7: #{_forward_device.4} parent=1 // pred_check_branch
      %37 = sbr.rel (0) target = $region9
    $region8: #{_forward_device.4} parent=1 // pred_region
      %s39 = ssub.s32 256, 256
      %40 = vsyncadd [#allocation5], %s39
      %s41 = sshll.u32 [#allocation4], 4
      %s42 = int_to_ptr.vmem [resolvable:$true] %s41
      %47 = dma.hbm_to_vmem [thread:$0]  %s1, 256, %s42, [#allocation5], 128, 128, 8
    $region9: #{_forward_device.4} parent=1 // pred_fallthru
      _
    // Predicated region
    $region10: #{_forward_device.4} parent=1 // pred_check
      _
    $region11: #{_forward_device.4} parent=1 // pred_check_branch
      %49 = sbr.rel (0) target = $region13
    $region12: #{_forward_device.4} parent=1 // pred_region
      _
    $region13: #{_forward_device.4} parent=1 // pred_fallthru
      _
    // Predicated region
    $region14: #{_forward_device.4} parent=1 // pred_check
      _
    $region15: #{_forward_device.4} parent=1 // pred_check_branch
      %51 = sbr.rel (0) target = $region17
    $region16: #{_forward_device.4} parent=1 // pred_region
      _
    $region17: #{_forward_device.4} parent=1 // pred_fallthru
      _
    // Predicated region
    $region18: #{_forward_device.4} parent=1 // pred_check
      _
    $region19: #{_forward_device.4} parent=1 // pred_check_branch
      %53 = sbr.rel (0) target = $region21
    $region20: #{_forward_device.4} parent=1 // pred_region
      %s55 = ssub.s32 32, 32
      %56 = vsyncadd [#allocation5], %s55
      %s58 = sshll.u32 [#allocation6], 4
      %s59 = int_to_ptr.vmem [resolvable:$true] %s58
      %61 = dma.hbm_to_vmem [thread:$0]  %s4, 32, %s59, [#allocation5]
    $region21: #{_forward_device.4} parent=1 // pred_fallthru
      _
    // Predicated region
    $region22: #{_forward_device.4} parent=1 // pred_check
      _
    $region23: #{_forward_device.4} parent=1 // pred_check_branch
      %63 = sbr.rel (0) target = $region25
    $region24: #{_forward_device.4} parent=1 // pred_region
      _
    $region25: #{_forward_device.4} parent=1 // pred_fallthru
      _
    // Predicated region
    $region26: #{_forward_device.4} parent=1 // pred_check
      _
    $region27: #{_forward_device.4} parent=1 // pred_check_branch
      %65 = sbr.rel (0) target = $region29
    $region28: #{_forward_device.4} parent=1 // pred_region
      _
    $region29: #{_forward_device.4} parent=1 // pred_fallthru
      _
    // Predicated region
    $region30: #{_forward_device.4} parent=1 // pred_check
      _
    $region31: #{_forward_device.4} parent=1 // pred_check_branch
      %67 = sbr.rel (0) target = $region33
    $region32: #{_forward_device.4} parent=1 // pred_region
      _
    $region33: #{_forward_device.4} parent=1 // pred_fallthru
      _
    // Predicated region
    $region34: #{_forward_device.4} parent=1 // pred_check
      _
    $region35: #{_forward_device.4} parent=1 // pred_check_branch
      %69 = sbr.rel (0) target = $region37
    $region36: #{_forward_device.4} parent=1 // pred_region
      _
    $region37: #{_forward_device.4} parent=1 // pred_fallthru
      _
    // Predicated region
    $region38: #{_forward_device.4} parent=1 // pred_check
      _
    $region39: #{_forward_device.4} parent=1 // pred_check_branch
      %71 = sbr.rel (0) target = $region41
    $region40: #{_forward_device.4} parent=1 // pred_region
      _
    $region41: #{_forward_device.4} parent=1 // pred_fallthru
      _
    // Predicated region
    $region42: #{_forward_device.4} parent=1 // pred_check
      _
    $region43: #{_forward_device.4} parent=1 // pred_check_branch
      %73 = sbr.rel (0) target = $region45
    $region44: #{_forward_device.4} parent=1 // pred_region
      _
    $region45: #{_forward_device.4} parent=1 // pred_fallthru
      _
    // Predicated region
    $region46: #{_forward_device.4} parent=1 // pred_check
      _
    $region47: #{_forward_device.4} parent=1 // pred_check_branch
      %75 = sbr.rel (0) target = $region49
    $region48: #{_forward_device.4} parent=1 // pred_region
      %s77 = ssub.s32 32, 32
      %78 = vsyncadd [#allocation8], %s77
      %s80 = sshll.u32 [#allocation7], 4
      %s81 = int_to_ptr.vmem [resolvable:$true] %s80
      %83 = dma.hbm_to_vmem [thread:$0]  %s11, 32, %s81, [#allocation8]
    $region49: #{_forward_device.4} parent=1 // pred_fallthru
      _
    // Predicated region
    $region50: #{_forward_device.4} parent=1 // pred_check
      _
    $region51: #{_forward_device.4} parent=1 // pred_check_branch
      %85 = sbr.rel (0) target = $region53
    $region52: #{_forward_device.4} parent=1 // pred_region
      %86 = dma.done [#allocation3], 256
    $region53: #{_forward_device.4} parent=1 // pred_fallthru
      _
    // Predicated region
    $region54: #{_forward_device.4} parent=1 // pred_check
      _
    $region55: #{_forward_device.4} parent=1 // pred_check_branch
      %88 = sbr.rel (0) target = $region57
    $region56: #{_forward_device.4} parent=1 // pred_region
      %89 = dma.done [#allocation5], 256
    $region57: #{_forward_device.4} parent=1 // pred_fallthru
      _
    // Predicated region
    $region58: #{_forward_device.4} parent=1 // pred_check
      _
    $region59: #{_forward_device.4} parent=1 // pred_check_branch
      %91 = sbr.rel (0) target = $region61
    $region60: #{_forward_device.4} parent=1 // pred_region
      %92 = dma.done [#allocation5], 32
    $region61: #{_forward_device.4} parent=1 // pred_fallthru
      _
    // Predicated region
    $region62: #{_forward_device.4} parent=1 // pred_check
      _
    $region63: #{_forward_device.4} parent=1 // pred_check_branch
      %94 = sbr.rel (0) target = $region65
    $region64: #{_forward_device.4} parent=1 // pred_region
      %95 = dma.done [#allocation8], 32
    $region65: #{_forward_device.4} parent=1 // pred_fallthru
      _
    %v97 = vld [vmem:[#allocation2] sm:$0xff]
    %v98 = vld [vmem:[#allocation2 + $0x8] sm:$0xf]
    %v99 = vld [vmem:[#allocation4] sm:$0xff]
    %v100 = vld [vmem:[#allocation4 + $0x8] sm:$0xf]
    %v101 = vld [vmem:[%s2] sm:$0xff]
    %v102 = vld [vmem:[%s2 + $0x8] sm:$0xf]
    %v103 = vld [vmem:[%s3] sm:$0xff]
    %v104 = vld [vmem:[%s3 + $0x8] sm:$0xf]
    %v105 = vld [vmem:[#allocation6] sm:$0x3]
    %v106 = vpack.c.bf16 %v98, %v97
    %v107 = vld [vmem:[%s5] sm:$0xff]
    %v108 = vld [vmem:[%s5 + $0x8] sm:$0xff]
    %v109 = vld [vmem:[%s5 + $0x10] sm:$0xff]
    %v110 = vld [vmem:[%s5 + $0x18] sm:$0xff]
    %v111 = vld [vmem:[%s5 + $0x20] sm:$0xff]
    %v112 = vld [vmem:[%s5 + $0x28] sm:$0xff]
    %v113 = vld [vmem:[%s5 + $0x30] sm:$0xff]
    %v114 = vld [vmem:[%s5 + $0x38] sm:$0xff]
    %v115 = vld [vmem:[%s5 + $0x40] sm:$0xff]
    %v116 = vld [vmem:[%s5 + $0x48] sm:$0xff]
    %v117 = vld [vmem:[%s5 + $0x50] sm:$0xff]
    %v118 = vld [vmem:[%s5 + $0x58] sm:$0xff]
    %v131 = vunpack.c.l.b16 %v107
    %v132 = vunpack.c.h.b16 %v107
    %v133 = vunpack.c.l.b16 %v108
    %v134 = vunpack.c.h.b16 %v108
    %v135 = vunpack.c.l.b16 %v109
    %v136 = vunpack.c.h.b16 %v109
    %v137 = vunpack.c.l.b16 %v110
    %v138 = vunpack.c.h.b16 %v110
    %v139 = vunpack.c.l.b16 %v111
    %v140 = vunpack.c.h.b16 %v111
    %v141 = vunpack.c.l.b16 %v112
    %v142 = vunpack.c.h.b16 %v112
    %v143 = vunpack.c.l.b16 %v113
    %v144 = vunpack.c.h.b16 %v113
    %v145 = vunpack.c.l.b16 %v114
    %v146 = vunpack.c.h.b16 %v114
    %v147 = vunpack.c.l.b16 %v115
    %v148 = vunpack.c.h.b16 %v115
    %v149 = vunpack.c.l.b16 %v116
    %v150 = vunpack.c.h.b16 %v116
    %v151 = vunpack.c.l.b16 %v117
    %v152 = vunpack.c.h.b16 %v117
    %v153 = vunpack.c.l.b16 %v118
    %v154 = vunpack.c.h.b16 %v118
    %v155 = vpack.c.b16 %v137, %v131
    %v156 = vpack.c.b16 %v138, %v132
    %v157 = vpack.c.b16 %v139, %v133
    %v158 = vpack.c.b16 %v140, %v134
    %v159 = vpack.c.b16 %v141, %v135
    %v160 = vpack.c.b16 %v142, %v136
    %v161 = vpack.c.b16 %v149, %v143
    %v162 = vpack.c.b16 %v150, %v144
    %v163 = vpack.c.b16 %v151, %v145
    %v164 = vpack.c.b16 %v152, %v146
    %v165 = vpack.c.b16 %v153, %v147
    %v166 = vpack.c.b16 %v154, %v148
    %vm179 = vcmask 261120
    %v181 = vsel %vm179, %v106, 0
    %183 = vmatprep.subr.bf16.mxu0 %v156
    %184 = vmatpush1.bf16.msra.mxu0 %v155
    %185 = vmatprep.subr.bf16.mxu0 %v162
    %186 = vmatpush1.bf16.msra.mxu0 %v161
    %187 = vmatprep.subr.bf16.mxu0 0
    %188 = vmatpush1.bf16.msra.mxu0 0
    %189 = vmatprep.subr.bf16.mxu0 0
    %190 = vmatpush1.bf16.msra.mxu0 0
    %191 = vmatprep.subr.bf16.mxu0 0
    %192 = vmatpush1.bf16.msra.mxu0 0
    %193 = vmatprep.subr.bf16.mxu0 0
    %194 = vmatpush1.bf16.msra.mxu0 0
    %195 = vmatprep.subr.bf16.mxu0 0
    %196 = vmatpush1.bf16.msra.mxu0 0
    %197 = vmatprep.subr.bf16.mxu0 0
    %198 = vmatpush1.bf16.msra.mxu0 0
    %199 = vmatprep.subr.bf16.mxu0 0
    %200 = vmatpush1.bf16.msra.mxu0 0
    %201 = vmatprep.subr.bf16.mxu0 0
    %202 = vmatpush1.bf16.msra.mxu0 0
    %203 = vmatprep.subr.bf16.mxu0 0
    %204 = vmatpush1.bf16.msra.mxu0 0
    %205 = vmatprep.subr.bf16.mxu0 0
    %206 = vmatpush1.bf16.msra.mxu0 0
    %207 = vmatprep.subr.bf16.mxu0 0
    %208 = vmatpush1.bf16.msra.mxu0 0
    %209 = vmatprep.subr.bf16.mxu0 0
    %210 = vmatpush1.bf16.msra.mxu0 0
    %211 = vmatprep.subr.bf16.mxu0 0
    %212 = vmatpush1.bf16.msra.mxu0 0
    %213 = vmatprep.subr.bf16.mxu0 0
    %214 = vmatpush1.bf16.msra.mxu0 0
    %215 = vmatprep.mubr.bf16.mxu0 0
    %216 = vmatmul.mubr.bf16.gmra.mrb[0].mxu0 %v181
    %v217 = vpop.f32.mrb[0].mxu0
    %v218 = vadd.f32 0.0, %v217
    %v219 = vpop.f32.mrb[0].mxu0
    %v220 = vadd.f32 0.0, %v219
    %v221 = vpop.f32.mrb[0].mxu0
    %v222 = vadd.f32 0.0, %v221
    %v223 = vpop.f32.mrb[0].mxu0
    %v224 = vadd.f32 0.0, %v223
    %225 = vdwg.mxu0
    %226 = vmatprep.subr.bf16.mxu0 %v158
    %227 = vmatpush1.bf16.msra.mxu0 %v157
    %228 = vmatprep.subr.bf16.mxu0 %v164
    %229 = vmatpush1.bf16.msra.mxu0 %v163
    %230 = vmatprep.subr.bf16.mxu0 0
    %231 = vmatpush1.bf16.msra.mxu0 0
    %232 = vmatprep.subr.bf16.mxu0 0
    %233 = vmatpush1.bf16.msra.mxu0 0
    %234 = vmatprep.subr.bf16.mxu0 0
    %235 = vmatpush1.bf16.msra.mxu0 0
    %236 = vmatprep.subr.bf16.mxu0 0
    %237 = vmatpush1.bf16.msra.mxu0 0
    %238 = vmatprep.subr.bf16.mxu0 0
    %239 = vmatpush1.bf16.msra.mxu0 0
    %240 = vmatprep.subr.bf16.mxu0 0
    %241 = vmatpush1.bf16.msra.mxu0 0
    %242 = vmatprep.subr.bf16.mxu0 0
    %243 = vmatpush1.bf16.msra.mxu0 0
    %244 = vmatprep.subr.bf16.mxu0 0
    %245 = vmatpush1.bf16.msra.mxu0 0
    %246 = vmatprep.subr.bf16.mxu0 0
    %247 = vmatpush1.bf16.msra.mxu0 0
    %248 = vmatprep.subr.bf16.mxu0 0
    %249 = vmatpush1.bf16.msra.mxu0 0
    %250 = vmatprep.subr.bf16.mxu0 0
    %251 = vmatpush1.bf16.msra.mxu0 0
    %252 = vmatprep.subr.bf16.mxu0 0
    %253 = vmatpush1.bf16.msra.mxu0 0
    %254 = vmatprep.subr.bf16.mxu0 0
    %255 = vmatpush1.bf16.msra.mxu0 0
    %256 = vmatprep.subr.bf16.mxu0 0
    %257 = vmatpush1.bf16.msra.mxu0 0
    %258 = vmatprep.mubr.bf16.mxu0 0
    %259 = vmatmul.mubr.bf16.gmra.mrb[0].mxu0 %v181
    %v260 = vpop.f32.mrb[0].mxu0
    %v261 = vadd.f32 0.0, %v260
    %v262 = vpop.f32.mrb[0].mxu0
    %v263 = vadd.f32 0.0, %v262
    %v264 = vpop.f32.mrb[0].mxu0
    %v265 = vadd.f32 0.0, %v264
    %v266 = vpop.f32.mrb[0].mxu0
    %v267 = vadd.f32 0.0, %v266
    %268 = vdwg.mxu0
    %269 = vmatprep.subr.bf16.mxu0 %v160
    %270 = vmatpush1.bf16.msra.mxu0 %v159
    %271 = vmatprep.subr.bf16.mxu0 %v166
    %272 = vmatpush1.bf16.msra.mxu0 %v165
    %273 = vmatprep.subr.bf16.mxu0 0
    %274 = vmatpush1.bf16.msra.mxu0 0
    %275 = vmatprep.subr.bf16.mxu0 0
    %276 = vmatpush1.bf16.msra.mxu0 0
    %277 = vmatprep.subr.bf16.mxu0 0
    %278 = vmatpush1.bf16.msra.mxu0 0
    %279 = vmatprep.subr.bf16.mxu0 0
    %280 = vmatpush1.bf16.msra.mxu0 0
    %281 = vmatprep.subr.bf16.mxu0 0
    %282 = vmatpush1.bf16.msra.mxu0 0
    %283 = vmatprep.subr.bf16.mxu0 0
    %284 = vmatpush1.bf16.msra.mxu0 0
    %285 = vmatprep.subr.bf16.mxu0 0
    %286 = vmatpush1.bf16.msra.mxu0 0
    %287 = vmatprep.subr.bf16.mxu0 0
    %288 = vmatpush1.bf16.msra.mxu0 0
    %289 = vmatprep.subr.bf16.mxu0 0
    %290 = vmatpush1.bf16.msra.mxu0 0
    %291 = vmatprep.subr.bf16.mxu0 0
    %292 = vmatpush1.bf16.msra.mxu0 0
    %293 = vmatprep.subr.bf16.mxu0 0
    %294 = vmatpush1.bf16.msra.mxu0 0
    %295 = vmatprep.subr.bf16.mxu0 0
    %296 = vmatpush1.bf16.msra.mxu0 0
    %297 = vmatprep.subr.bf16.mxu0 0
    %298 = vmatpush1.bf16.msra.mxu0 0
    %299 = vmatprep.subr.bf16.mxu0 0
    %300 = vmatpush1.bf16.msra.mxu0 0
    %301 = vmatprep.mubr.bf16.mxu0 0
    %302 = vmatmul.mubr.bf16.gmra.mrb[0].mxu0 %v181
    %v303 = vpop.f32.mrb[0].mxu0
    %v304 = vadd.f32 0.0, %v303
    %v305 = vpop.f32.mrb[0].mxu0
    %v306 = vadd.f32 0.0, %v305
    %v307 = vpop.f32.mrb[0].mxu0
    %v308 = vadd.f32 0.0, %v307
    %v309 = vpop.f32.mrb[0].mxu0
    %v310 = vadd.f32 0.0, %v309
    %311 = vdwg.mxu0
    %v312 = vld [vmem:[%s6] sm:$0x77]
    %v313 = vld [vmem:[%s6 + $0x8] sm:$0x77]
    %v314 = vld [vmem:[%s6 + $0x10] sm:$0x77]
    %v318 = vcombine.high %v312, %v312
    %v319 = vcombine.high %v313, %v313
    %v320 = vcombine.high %v314, %v314
    %324 = vmatprep.subr.mxu0 %v318
    %325 = vmatpush1.xpose.msra.mxu0 %v312
    %326 = vmatprep.subr.mxu0 0.0
    %327 = vmatpush1.xpose.msra.mxu0 0.0
    %328 = vmatprep.subr.mxu0 0.0
    %329 = vmatpush1.xpose.msra.mxu0 0.0
    %330 = vmatprep.subr.mxu0 0.0
    %331 = vmatpush1.xpose.msra.mxu0 0.0
    %332 = vmatprep.subr.mxu0 0.0
    %333 = vmatpush1.xpose.msra.mxu0 0.0
    %334 = vmatprep.subr.mxu0 0.0
    %335 = vmatpush1.xpose.msra.mxu0 0.0
    %336 = vmatprep.subr.mxu0 0.0
    %337 = vmatpush1.xpose.msra.mxu0 0.0
    %338 = vmatprep.subr.mxu0 0.0
    %339 = vmatpush1.xpose.msra.mxu0 0.0
    %340 = vmatprep.subr.mxu0 0.0
    %341 = vmatpush1.xpose.msra.mxu0 0.0
    %342 = vmatprep.subr.mxu0 0.0
    %343 = vmatpush1.xpose.msra.mxu0 0.0
    %344 = vmatprep.subr.mxu0 0.0
    %345 = vmatpush1.xpose.msra.mxu0 0.0
    %346 = vmatprep.subr.mxu0 0.0
    %347 = vmatpush1.xpose.msra.mxu0 0.0
    %348 = vmatprep.subr.mxu0 0.0
    %349 = vmatpush1.xpose.msra.mxu0 0.0
    %350 = vmatprep.subr.mxu0 0.0
    %351 = vmatpush1.xpose.msra.mxu0 0.0
    %352 = vmatprep.subr.mxu0 0.0
    %353 = vmatpush1.xpose.msra.mxu0 0.0
    %354 = vmatprep.subr.mxu0 0.0
    %355 = vmatpush1.xpose.msra.mxu0 0.0
    %356 = vmatprep.subr.mxu0 0.0
    %357 = vmatpush1.xpose.msra.mxu0 0.0
    %358 = vmatprep.subr.mxu0 0.0
    %359 = vmatpush1.xpose.msra.mxu0 0.0
    %360 = vmatprep.subr.mxu0 0.0
    %361 = vmatpush1.xpose.msra.mxu0 0.0
    %362 = vmatprep.subr.mxu0 0.0
    %363 = vmatpush1.xpose.msra.mxu0 0.0
    %364 = vmatprep.subr.mxu0 0.0
    %365 = vmatpush1.xpose.msra.mxu0 0.0
    %366 = vmatprep.subr.mxu0 0.0
    %367 = vmatpush1.xpose.msra.mxu0 0.0
    %368 = vmatprep.subr.mxu0 0.0
    %369 = vmatpush1.xpose.msra.mxu0 0.0
    %370 = vmatprep.subr.mxu0 0.0
    %371 = vmatpush1.xpose.msra.mxu0 0.0
    %372 = vmatprep.subr.mxu0 0.0
    %373 = vmatpush1.xpose.msra.mxu0 0.0
    %374 = vmatprep.subr.mxu0 0.0
    %375 = vmatpush1.xpose.msra.mxu0 0.0
    %376 = vmatprep.subr.mxu0 0.0
    %377 = vmatpush1.xpose.msra.mxu0 0.0
    %378 = vmatprep.subr.mxu0 0.0
    %379 = vmatpush1.xpose.msra.mxu0 0.0
    %380 = vmatprep.subr.mxu0 0.0
    %381 = vmatpush1.xpose.msra.mxu0 0.0
    %382 = vmatprep.subr.mxu0 0.0
    %383 = vmatpush1.xpose.msra.mxu0 0.0
    %384 = vmatprep.subr.mxu0 0.0
    %385 = vmatpush1.xpose.msra.mxu0 0.0
    %386 = vmatprep.subr.mxu0 0.0
    %387 = vmatpush1.xpose.msra.mxu0 0.0
    %388 = vmatprep.mubr.f32.mxu0 %v220
    %389 = vmatmul.mubr.f32.gmra.mrb[0].mxu0 %v218
    %v390 = vpop.f32.mrb[0].mxu0
    %v391 = vadd.f32 0.0, %v390
    %v392 = vpop.f32.mrb[0].mxu0
    %393 = vmatprep.mubr.f32.mxu0 %v224
    %394 = vmatmul.mubr.f32.gmra.mrb[0].mxu0 %v222
    %v395 = vpop.f32.mrb[0].mxu0
    %v396 = vadd.f32 0.0, %v395
    %v397 = vpop.f32.mrb[0].mxu0
    %398 = vdwg.mxu0
    %399 = vmatprep.subr.mxu0 %v319
    %400 = vmatpush1.xpose.msra.mxu0 %v313
    %401 = vmatprep.subr.mxu0 0.0
    %402 = vmatpush1.xpose.msra.mxu0 0.0
    %403 = vmatprep.subr.mxu0 0.0
    %404 = vmatpush1.xpose.msra.mxu0 0.0
    %405 = vmatprep.subr.mxu0 0.0
    %406 = vmatpush1.xpose.msra.mxu0 0.0
    %407 = vmatprep.subr.mxu0 0.0
    %408 = vmatpush1.xpose.msra.mxu0 0.0
    %409 = vmatprep.subr.mxu0 0.0
    %410 = vmatpush1.xpose.msra.mxu0 0.0
    %411 = vmatprep.subr.mxu0 0.0
    %412 = vmatpush1.xpose.msra.mxu0 0.0
    %413 = vmatprep.subr.mxu0 0.0
    %414 = vmatpush1.xpose.msra.mxu0 0.0
    %415 = vmatprep.subr.mxu0 0.0
    %416 = vmatpush1.xpose.msra.mxu0 0.0
    %417 = vmatprep.subr.mxu0 0.0
    %418 = vmatpush1.xpose.msra.mxu0 0.0
    %419 = vmatprep.subr.mxu0 0.0
    %420 = vmatpush1.xpose.msra.mxu0 0.0
    %421 = vmatprep.subr.mxu0 0.0
    %422 = vmatpush1.xpose.msra.mxu0 0.0
    %423 = vmatprep.subr.mxu0 0.0
    %424 = vmatpush1.xpose.msra.mxu0 0.0
    %425 = vmatprep.subr.mxu0 0.0
    %426 = vmatpush1.xpose.msra.mxu0 0.0
    %427 = vmatprep.subr.mxu0 0.0
    %428 = vmatpush1.xpose.msra.mxu0 0.0
    %429 = vmatprep.subr.mxu0 0.0
    %430 = vmatpush1.xpose.msra.mxu0 0.0
    %431 = vmatprep.subr.mxu0 0.0
    %432 = vmatpush1.xpose.msra.mxu0 0.0
    %433 = vmatprep.subr.mxu0 0.0
    %434 = vmatpush1.xpose.msra.mxu0 0.0
    %435 = vmatprep.subr.mxu0 0.0
    %436 = vmatpush1.xpose.msra.mxu0 0.0
    %437 = vmatprep.subr.mxu0 0.0
    %438 = vmatpush1.xpose.msra.mxu0 0.0
    %439 = vmatprep.subr.mxu0 0.0
    %440 = vmatpush1.xpose.msra.mxu0 0.0
    %441 = vmatprep.subr.mxu0 0.0
    %442 = vmatpush1.xpose.msra.mxu0 0.0
    %443 = vmatprep.subr.mxu0 0.0
    %444 = vmatpush1.xpose.msra.mxu0 0.0
    %445 = vmatprep.subr.mxu0 0.0
    %446 = vmatpush1.xpose.msra.mxu0 0.0
    %447 = vmatprep.subr.mxu0 0.0
    %448 = vmatpush1.xpose.msra.mxu0 0.0
    %449 = vmatprep.subr.mxu0 0.0
    %450 = vmatpush1.xpose.msra.mxu0 0.0
    %451 = vmatprep.subr.mxu0 0.0
    %452 = vmatpush1.xpose.msra.mxu0 0.0
    %453 = vmatprep.subr.mxu0 0.0
    %454 = vmatpush1.xpose.msra.mxu0 0.0
    %455 = vmatprep.subr.mxu0 0.0
    %456 = vmatpush1.xpose.msra.mxu0 0.0
    %457 = vmatprep.subr.mxu0 0.0
    %458 = vmatpush1.xpose.msra.mxu0 0.0
    %459 = vmatprep.subr.mxu0 0.0
    %460 = vmatpush1.xpose.msra.mxu0 0.0
    %461 = vmatprep.subr.mxu0 0.0
    %462 = vmatpush1.xpose.msra.mxu0 0.0
    %463 = vmatprep.mubr.f32.mxu0 %v263
    %464 = vmatmul.mubr.f32.gmra.mrb[0].mxu0 %v261
    %v465 = vpop.f32.mrb[0].mxu0
    %v466 = vadd.f32 %v391, %v465
    %v467 = vpop.f32.mrb[0].mxu0
    %468 = vmatprep.mubr.f32.mxu0 %v267
    %469 = vmatmul.mubr.f32.gmra.mrb[0].mxu0 %v265
    %v470 = vpop.f32.mrb[0].mxu0
    %v471 = vadd.f32 %v396, %v470
    %v472 = vpop.f32.mrb[0].mxu0
    %473 = vdwg.mxu0
    %474 = vmatprep.subr.mxu0 %v320
    %475 = vmatpush1.xpose.msra.mxu0 %v314
    %476 = vmatprep.subr.mxu0 0.0
    %477 = vmatpush1.xpose.msra.mxu0 0.0
    %478 = vmatprep.subr.mxu0 0.0
    %479 = vmatpush1.xpose.msra.mxu0 0.0
    %480 = vmatprep.subr.mxu0 0.0
    %481 = vmatpush1.xpose.msra.mxu0 0.0
    %482 = vmatprep.subr.mxu0 0.0
    %483 = vmatpush1.xpose.msra.mxu0 0.0
    %484 = vmatprep.subr.mxu0 0.0
    %485 = vmatpush1.xpose.msra.mxu0 0.0
    %486 = vmatprep.subr.mxu0 0.0
    %487 = vmatpush1.xpose.msra.mxu0 0.0
    %488 = vmatprep.subr.mxu0 0.0
    %489 = vmatpush1.xpose.msra.mxu0 0.0
    %490 = vmatprep.subr.mxu0 0.0
    %491 = vmatpush1.xpose.msra.mxu0 0.0
    %492 = vmatprep.subr.mxu0 0.0
    %493 = vmatpush1.xpose.msra.mxu0 0.0
    %494 = vmatprep.subr.mxu0 0.0
    %495 = vmatpush1.xpose.msra.mxu0 0.0
    %496 = vmatprep.subr.mxu0 0.0
    %497 = vmatpush1.xpose.msra.mxu0 0.0
    %498 = vmatprep.subr.mxu0 0.0
    %499 = vmatpush1.xpose.msra.mxu0 0.0
    %500 = vmatprep.subr.mxu0 0.0
    %501 = vmatpush1.xpose.msra.mxu0 0.0
    %502 = vmatprep.subr.mxu0 0.0
    %503 = vmatpush1.xpose.msra.mxu0 0.0
    %504 = vmatprep.subr.mxu0 0.0
    %505 = vmatpush1.xpose.msra.mxu0 0.0
    %506 = vmatprep.subr.mxu0 0.0
    %507 = vmatpush1.xpose.msra.mxu0 0.0
    %508 = vmatprep.subr.mxu0 0.0
    %509 = vmatpush1.xpose.msra.mxu0 0.0
    %510 = vmatprep.subr.mxu0 0.0
    %511 = vmatpush1.xpose.msra.mxu0 0.0
    %512 = vmatprep.subr.mxu0 0.0
    %513 = vmatpush1.xpose.msra.mxu0 0.0
    %514 = vmatprep.subr.mxu0 0.0
    %515 = vmatpush1.xpose.msra.mxu0 0.0
    %516 = vmatprep.subr.mxu0 0.0
    %517 = vmatpush1.xpose.msra.mxu0 0.0
    %518 = vmatprep.subr.mxu0 0.0
    %519 = vmatpush1.xpose.msra.mxu0 0.0
    %520 = vmatprep.subr.mxu0 0.0
    %521 = vmatpush1.xpose.msra.mxu0 0.0
    %522 = vmatprep.subr.mxu0 0.0
    %523 = vmatpush1.xpose.msra.mxu0 0.0
    %524 = vmatprep.subr.mxu0 0.0
    %525 = vmatpush1.xpose.msra.mxu0 0.0
    %526 = vmatprep.subr.mxu0 0.0
    %527 = vmatpush1.xpose.msra.mxu0 0.0
    %528 = vmatprep.subr.mxu0 0.0
    %529 = vmatpush1.xpose.msra.mxu0 0.0
    %530 = vmatprep.subr.mxu0 0.0
    %531 = vmatpush1.xpose.msra.mxu0 0.0
    %532 = vmatprep.subr.mxu0 0.0
    %533 = vmatpush1.xpose.msra.mxu0 0.0
    %534 = vmatprep.subr.mxu0 0.0
    %535 = vmatpush1.xpose.msra.mxu0 0.0
    %536 = vmatprep.subr.mxu0 0.0
    %537 = vmatpush1.xpose.msra.mxu0 0.0
    %538 = vmatprep.mubr.f32.mxu0 %v306
    %539 = vmatmul.mubr.f32.gmra.mrb[0].mxu0 %v304
    %v540 = vpop.f32.mrb[0].mxu0
    %v541 = vadd.f32 %v466, %v540
    %v542 = vpop.f32.mrb[0].mxu0
    %543 = vmatprep.mubr.f32.mxu0 %v310
    %544 = vmatmul.mubr.f32.gmra.mrb[0].mxu0 %v308
    %v545 = vpop.f32.mrb[0].mxu0
    %v546 = vadd.f32 %v471, %v545
    %v547 = vpop.f32.mrb[0].mxu0
    %548 = vdwg.mxu0
    %v549 = vld [vmem:[%s7] sm:$0x77]
    %v550 = vld [vmem:[%s7 + $0x8] sm:$0x77]
    %v551 = vld [vmem:[%s7 + $0x10] sm:$0x77]
    %v555 = vcombine.high %v549, %v549
    %v556 = vcombine.high %v550, %v550
    %v557 = vcombine.high %v551, %v551
    %561 = vmatprep.subr.mxu0 %v220
    %562 = vmatpush1.xpose.msra.mxu0 %v218
    %563 = vmatprep.subr.mxu0 %v224
    %564 = vmatpush1.xpose.msra.mxu0 %v222
    %565 = vmatprep.subr.mxu0 0.0
    %566 = vmatpush1.xpose.msra.mxu0 0.0
    %567 = vmatprep.subr.mxu0 0.0
    %568 = vmatpush1.xpose.msra.mxu0 0.0
    %569 = vmatprep.subr.mxu0 0.0
    %570 = vmatpush1.xpose.msra.mxu0 0.0
    %571 = vmatprep.subr.mxu0 0.0
    %572 = vmatpush1.xpose.msra.mxu0 0.0
    %573 = vmatprep.subr.mxu0 0.0
    %574 = vmatpush1.xpose.msra.mxu0 0.0
    %575 = vmatprep.subr.mxu0 0.0
    %576 = vmatpush1.xpose.msra.mxu0 0.0
    %577 = vmatprep.subr.mxu0 0.0
    %578 = vmatpush1.xpose.msra.mxu0 0.0
    %579 = vmatprep.subr.mxu0 0.0
    %580 = vmatpush1.xpose.msra.mxu0 0.0
    %581 = vmatprep.subr.mxu0 0.0
    %582 = vmatpush1.xpose.msra.mxu0 0.0
    %583 = vmatprep.subr.mxu0 0.0
    %584 = vmatpush1.xpose.msra.mxu0 0.0
    %585 = vmatprep.subr.mxu0 0.0
    %586 = vmatpush1.xpose.msra.mxu0 0.0
    %587 = vmatprep.subr.mxu0 0.0
    %588 = vmatpush1.xpose.msra.mxu0 0.0
    %589 = vmatprep.subr.mxu0 0.0
    %590 = vmatpush1.xpose.msra.mxu0 0.0
    %591 = vmatprep.subr.mxu0 0.0
    %592 = vmatpush1.xpose.msra.mxu0 0.0
    %593 = vmatprep.subr.mxu0 0.0
    %594 = vmatpush1.xpose.msra.mxu0 0.0
    %595 = vmatprep.subr.mxu0 0.0
    %596 = vmatpush1.xpose.msra.mxu0 0.0
    %597 = vmatprep.subr.mxu0 0.0
    %598 = vmatpush1.xpose.msra.mxu0 0.0
    %599 = vmatprep.subr.mxu0 0.0
    %600 = vmatpush1.xpose.msra.mxu0 0.0
    %601 = vmatprep.subr.mxu0 0.0
    %602 = vmatpush1.xpose.msra.mxu0 0.0
    %603 = vmatprep.subr.mxu0 0.0
    %604 = vmatpush1.xpose.msra.mxu0 0.0
    %605 = vmatprep.subr.mxu0 0.0
    %606 = vmatpush1.xpose.msra.mxu0 0.0
    %607 = vmatprep.subr.mxu0 0.0
    %608 = vmatpush1.xpose.msra.mxu0 0.0
    %609 = vmatprep.subr.mxu0 0.0
    %610 = vmatpush1.xpose.msra.mxu0 0.0
    %611 = vmatprep.subr.mxu0 0.0
    %612 = vmatpush1.xpose.msra.mxu0 0.0
    %613 = vmatprep.subr.mxu0 0.0
    %614 = vmatpush1.xpose.msra.mxu0 0.0
    %615 = vmatprep.subr.mxu0 0.0
    %616 = vmatpush1.xpose.msra.mxu0 0.0
    %617 = vmatprep.subr.mxu0 0.0
    %618 = vmatpush1.xpose.msra.mxu0 0.0
    %619 = vmatprep.subr.mxu0 0.0
    %620 = vmatpush1.xpose.msra.mxu0 0.0
    %621 = vmatprep.subr.mxu0 0.0
    %622 = vmatpush1.xpose.msra.mxu0 0.0
    %623 = vmatprep.subr.mxu0 0.0
    %624 = vmatpush1.xpose.msra.mxu0 0.0
    %625 = vmatprep.mubr.f32.mxu0 %v555
    %626 = vmatmul.mubr.f32.gmra.mrb[0].mxu0 %v549
    %v627 = vpop.f32.mrb[0].mxu0
    %v628 = vadd.f32 0.0, %v627
    %v629 = vpop.f32.mrb[0].mxu0
    %630 = vdwg.mxu0
    %631 = vmatprep.subr.mxu0 %v263
    %632 = vmatpush1.xpose.msra.mxu0 %v261
    %633 = vmatprep.subr.mxu0 %v267
    %634 = vmatpush1.xpose.msra.mxu0 %v265
    %635 = vmatprep.subr.mxu0 0.0
    %636 = vmatpush1.xpose.msra.mxu0 0.0
    %637 = vmatprep.subr.mxu0 0.0
    %638 = vmatpush1.xpose.msra.mxu0 0.0
    %639 = vmatprep.subr.mxu0 0.0
    %640 = vmatpush1.xpose.msra.mxu0 0.0
    %641 = vmatprep.subr.mxu0 0.0
    %642 = vmatpush1.xpose.msra.mxu0 0.0
    %643 = vmatprep.subr.mxu0 0.0
    %644 = vmatpush1.xpose.msra.mxu0 0.0
    %645 = vmatprep.subr.mxu0 0.0
    %646 = vmatpush1.xpose.msra.mxu0 0.0
    %647 = vmatprep.subr.mxu0 0.0
    %648 = vmatpush1.xpose.msra.mxu0 0.0
    %649 = vmatprep.subr.mxu0 0.0
    %650 = vmatpush1.xpose.msra.mxu0 0.0
    %651 = vmatprep.subr.mxu0 0.0
    %652 = vmatpush1.xpose.msra.mxu0 0.0
    %653 = vmatprep.subr.mxu0 0.0
    %654 = vmatpush1.xpose.msra.mxu0 0.0
    %655 = vmatprep.subr.mxu0 0.0
    %656 = vmatpush1.xpose.msra.mxu0 0.0
    %657 = vmatprep.subr.mxu0 0.0
    %658 = vmatpush1.xpose.msra.mxu0 0.0
    %659 = vmatprep.subr.mxu0 0.0
    %660 = vmatpush1.xpose.msra.mxu0 0.0
    %661 = vmatprep.subr.mxu0 0.0
    %662 = vmatpush1.xpose.msra.mxu0 0.0
    %663 = vmatprep.subr.mxu0 0.0
    %664 = vmatpush1.xpose.msra.mxu0 0.0
    %665 = vmatprep.subr.mxu0 0.0
    %666 = vmatpush1.xpose.msra.mxu0 0.0
    %667 = vmatprep.subr.mxu0 0.0
    %668 = vmatpush1.xpose.msra.mxu0 0.0
    %669 = vmatprep.subr.mxu0 0.0
    %670 = vmatpush1.xpose.msra.mxu0 0.0
    %671 = vmatprep.subr.mxu0 0.0
    %672 = vmatpush1.xpose.msra.mxu0 0.0
    %673 = vmatprep.subr.mxu0 0.0
    %674 = vmatpush1.xpose.msra.mxu0 0.0
    %675 = vmatprep.subr.mxu0 0.0
    %676 = vmatpush1.xpose.msra.mxu0 0.0
    %677 = vmatprep.subr.mxu0 0.0
    %678 = vmatpush1.xpose.msra.mxu0 0.0
    %679 = vmatprep.subr.mxu0 0.0
    %680 = vmatpush1.xpose.msra.mxu0 0.0
    %681 = vmatprep.subr.mxu0 0.0
    %682 = vmatpush1.xpose.msra.mxu0 0.0
    %683 = vmatprep.subr.mxu0 0.0
    %684 = vmatpush1.xpose.msra.mxu0 0.0
    %685 = vmatprep.subr.mxu0 0.0
    %686 = vmatpush1.xpose.msra.mxu0 0.0
    %687 = vmatprep.subr.mxu0 0.0
    %688 = vmatpush1.xpose.msra.mxu0 0.0
    %689 = vmatprep.subr.mxu0 0.0
    %690 = vmatpush1.xpose.msra.mxu0 0.0
    %691 = vmatprep.subr.mxu0 0.0
    %692 = vmatpush1.xpose.msra.mxu0 0.0
    %693 = vmatprep.subr.mxu0 0.0
    %694 = vmatpush1.xpose.msra.mxu0 0.0
    %695 = vmatprep.mubr.f32.mxu0 %v556
    %696 = vmatmul.mubr.f32.gmra.mrb[0].mxu0 %v550
    %v697 = vpop.f32.mrb[0].mxu0
    %v698 = vadd.f32 %v628, %v697
    %v699 = vpop.f32.mrb[0].mxu0
    %700 = vdwg.mxu0
    %701 = vmatprep.subr.mxu0 %v306
    %702 = vmatpush1.xpose.msra.mxu0 %v304
    %703 = vmatprep.subr.mxu0 %v310
    %704 = vmatpush1.xpose.msra.mxu0 %v308
    %705 = vmatprep.subr.mxu0 0.0
    %706 = vmatpush1.xpose.msra.mxu0 0.0
    %707 = vmatprep.subr.mxu0 0.0
    %708 = vmatpush1.xpose.msra.mxu0 0.0
    %709 = vmatprep.subr.mxu0 0.0
    %710 = vmatpush1.xpose.msra.mxu0 0.0
    %711 = vmatprep.subr.mxu0 0.0
    %712 = vmatpush1.xpose.msra.mxu0 0.0
    %713 = vmatprep.subr.mxu0 0.0
    %714 = vmatpush1.xpose.msra.mxu0 0.0
    %715 = vmatprep.subr.mxu0 0.0
    %716 = vmatpush1.xpose.msra.mxu0 0.0
    %717 = vmatprep.subr.mxu0 0.0
    %718 = vmatpush1.xpose.msra.mxu0 0.0
    %719 = vmatprep.subr.mxu0 0.0
    %720 = vmatpush1.xpose.msra.mxu0 0.0
    %721 = vmatprep.subr.mxu0 0.0
    %722 = vmatpush1.xpose.msra.mxu0 0.0
    %723 = vmatprep.subr.mxu0 0.0
    %724 = vmatpush1.xpose.msra.mxu0 0.0
    %725 = vmatprep.subr.mxu0 0.0
    %726 = vmatpush1.xpose.msra.mxu0 0.0
    %727 = vmatprep.subr.mxu0 0.0
    %728 = vmatpush1.xpose.msra.mxu0 0.0
    %729 = vmatprep.subr.mxu0 0.0
    %730 = vmatpush1.xpose.msra.mxu0 0.0
    %731 = vmatprep.subr.mxu0 0.0
    %732 = vmatpush1.xpose.msra.mxu0 0.0
    %733 = vmatprep.subr.mxu0 0.0
    %734 = vmatpush1.xpose.msra.mxu0 0.0
    %735 = vmatprep.subr.mxu0 0.0
    %736 = vmatpush1.xpose.msra.mxu0 0.0
    %737 = vmatprep.subr.mxu0 0.0
    %738 = vmatpush1.xpose.msra.mxu0 0.0
    %739 = vmatprep.subr.mxu0 0.0
    %740 = vmatpush1.xpose.msra.mxu0 0.0
    %741 = vmatprep.subr.mxu0 0.0
    %742 = vmatpush1.xpose.msra.mxu0 0.0
    %743 = vmatprep.subr.mxu0 0.0
    %744 = vmatpush1.xpose.msra.mxu0 0.0
    %745 = vmatprep.subr.mxu0 0.0
    %746 = vmatpush1.xpose.msra.mxu0 0.0
    %747 = vmatprep.subr.mxu0 0.0
    %748 = vmatpush1.xpose.msra.mxu0 0.0
    %749 = vmatprep.subr.mxu0 0.0
    %750 = vmatpush1.xpose.msra.mxu0 0.0
    %751 = vmatprep.subr.mxu0 0.0
    %752 = vmatpush1.xpose.msra.mxu0 0.0
    %753 = vmatprep.subr.mxu0 0.0
    %754 = vmatpush1.xpose.msra.mxu0 0.0
    %755 = vmatprep.subr.mxu0 0.0
    %756 = vmatpush1.xpose.msra.mxu0 0.0
    %757 = vmatprep.subr.mxu0 0.0
    %758 = vmatpush1.xpose.msra.mxu0 0.0
    %759 = vmatprep.subr.mxu0 0.0
    %760 = vmatpush1.xpose.msra.mxu0 0.0
    %761 = vmatprep.subr.mxu0 0.0
    %762 = vmatpush1.xpose.msra.mxu0 0.0
    %763 = vmatprep.subr.mxu0 0.0
    %764 = vmatpush1.xpose.msra.mxu0 0.0
    %765 = vmatprep.mubr.f32.mxu0 %v557
    %766 = vmatmul.mubr.f32.gmra.mrb[0].mxu0 %v551
    %v767 = vpop.f32.mrb[0].mxu0
    %v768 = vadd.f32 %v698, %v767
    %v769 = vpop.f32.mrb[0].mxu0
    %770 = vdwg.mxu0
    %v771 = vlaneseq
    %v772 = vshrl.u32 %v771, 7
    %v773 = vadd.s32 %v772, 8
    %v774 = vlaneseq
    %v775 = vand.u32 %v774, 127
    %vm776 = vcmp.eq.s32.totalorder %v772, %v775
    %vm777 = vcmp.eq.s32.totalorder %v773, %v775
    %v778 = vsel %vm776, 1.0, 0.0
    %v779 = vsel %vm777, 1.0, 0.0
    %v780 = vmax.f32 %v99, %v778
    %v781 = vmax.f32 %v100, %v779
    %783 = vset.pattern.permute.xlu0 0
    %784 = vperm.xlu0 %783, %v541
    %v785 = vpop.permute.xlu0 %784
    %788 = vset.pattern.permute.xlu0 0
    %789 = vperm.xlu0 %788, %v546
    %v790 = vpop.permute.xlu0 %789
    %v792 = vlaneseq
    %v793 = vshrl.u32 %v792, 7
    %v794 = vsub.s32 0, %v793
    %v795 = vrot.slane %v768, %v794
    %v796 = vadd.f32 %v785, %v795
    %v797 = vadd.f32 %v790, %v795
    %vm798 = vcmp.ge.f32.partialorder %v796, 0.0
    %vm799 = vcmp.ge.f32.partialorder %v797, 0.0
    %v800 = vmul.f32 %v796, 0.2
    %v801 = vmul.f32 %v797, 0.2
    %v802 = vsel %vm798, %v796, %v800
    %v803 = vsel %vm799, %v797, %v801
    %vm804 = vcmp.gt.f32.partialorder %v780, 0.0
    %vm805 = vcmp.gt.f32.partialorder %v781, 0.0
    %v806 = vsel %vm804, %v802, -1e+30
    %v807 = vsel %vm805, %v803, -1e+30
    %vm808 = vcmask 97280
    %v809 = vsel %vm808, %v806, -inf
    %810 = vmax.xlane.f32.xlu0 %v809
    %v811 = vpop.xlane.xlu0 %810
    %vm812 = vcmask 93184
    %v813 = vsel %vm812, %v807, -inf
    %814 = vmax.xlane.f32.xlu0 %v813
    %v815 = vpop.xlane.xlu0 %814
    %v816 = vsub.f32 %v806, %v811
    %v817 = vsub.f32 %v807, %v815
    %v818 = vmul.f32 %v816, 1.442695
    %v819 = vpow.pop %v818
    %v820 = vmul.f32 %v817, 1.442695
    %v821 = vpow.pop %v820
    %v822 = vsel %vm808, %v819, 0.0
    %823 = vadd.xlane.f32.xlu0 %v822
    %v824 = vpop.xlane.xlu0 %823
    %v825 = vsel %vm812, %v821, 0.0
    %826 = vadd.xlane.f32.xlu0 %v825
    %v827 = vpop.xlane.xlu0 %826
    %v828 = vrcp.pop %v824
    %v829 = vrcp.pop %v827
    %v830 = vmul.f32 %v819, %v828
    %v831 = vmul.f32 %v821, %v829
    %v833 = vsel %vm808, %v830, 0
    %v836 = vsel %vm808, %v831, 0
    %vm838 = vcmask 1043456
    %v840 = vsel %vm838, %v222, 0
    %v843 = vsel %vm838, %v224, 0
    %845 = vmatprep.subr.mxu0 %v220
    %846 = vmatpush1.msra.mxu0 %v218
    %847 = vmatprep.subr.mxu0 %v843
    %848 = vmatpush1.msra.mxu0 %v840
    %849 = vmatprep.subr.mxu0 0.0
    %850 = vmatpush1.msra.mxu0 0.0
    %851 = vmatprep.subr.mxu0 0.0
    %852 = vmatpush1.msra.mxu0 0.0
    %853 = vmatprep.subr.mxu0 0.0
    %854 = vmatpush1.msra.mxu0 0.0
    %855 = vmatprep.subr.mxu0 0.0
    %856 = vmatpush1.msra.mxu0 0.0
    %857 = vmatprep.subr.mxu0 0.0
    %858 = vmatpush1.msra.mxu0 0.0
    %859 = vmatprep.subr.mxu0 0.0
    %860 = vmatpush1.msra.mxu0 0.0
    %861 = vmatprep.subr.mxu0 0.0
    %862 = vmatpush1.msra.mxu0 0.0
    %863 = vmatprep.subr.mxu0 0.0
    %864 = vmatpush1.msra.mxu0 0.0
    %865 = vmatprep.subr.mxu0 0.0
    %866 = vmatpush1.msra.mxu0 0.0
    %867 = vmatprep.subr.mxu0 0.0
    %868 = vmatpush1.msra.mxu0 0.0
    %869 = vmatprep.subr.mxu0 0.0
    %870 = vmatpush1.msra.mxu0 0.0
    %871 = vmatprep.subr.mxu0 0.0
    %872 = vmatpush1.msra.mxu0 0.0
    %873 = vmatprep.subr.mxu0 0.0
    %874 = vmatpush1.msra.mxu0 0.0
    %875 = vmatprep.subr.mxu0 0.0
    %876 = vmatpush1.msra.mxu0 0.0
    %877 = vmatprep.subr.mxu0 0.0
    %878 = vmatpush1.msra.mxu0 0.0
    %879 = vmatprep.subr.mxu0 0.0
    %880 = vmatpush1.msra.mxu0 0.0
    %881 = vmatprep.subr.mxu0 0.0
    %882 = vmatpush1.msra.mxu0 0.0
    %883 = vmatprep.subr.mxu0 0.0
    %884 = vmatpush1.msra.mxu0 0.0
    %885 = vmatprep.subr.mxu0 0.0
    %886 = vmatpush1.msra.mxu0 0.0
    %887 = vmatprep.subr.mxu0 0.0
    %888 = vmatpush1.msra.mxu0 0.0
    %889 = vmatprep.subr.mxu0 0.0
    %890 = vmatpush1.msra.mxu0 0.0
    %891 = vmatprep.subr.mxu0 0.0
    %892 = vmatpush1.msra.mxu0 0.0
    %893 = vmatprep.subr.mxu0 0.0
    %894 = vmatpush1.msra.mxu0 0.0
    %895 = vmatprep.subr.mxu0 0.0
    %896 = vmatpush1.msra.mxu0 0.0
    %897 = vmatprep.subr.mxu0 0.0
    %898 = vmatpush1.msra.mxu0 0.0
    %899 = vmatprep.subr.mxu0 0.0
    %900 = vmatpush1.msra.mxu0 0.0
    %901 = vmatprep.subr.mxu0 0.0
    %902 = vmatpush1.msra.mxu0 0.0
    %903 = vmatprep.subr.mxu0 0.0
    %904 = vmatpush1.msra.mxu0 0.0
    %905 = vmatprep.subr.mxu0 0.0
    %906 = vmatpush1.msra.mxu0 0.0
    %907 = vmatprep.subr.mxu0 0.0
    %908 = vmatpush1.msra.mxu0 0.0
    %909 = vmatprep.mubr.f32.mxu0 0.0
    %910 = vmatmul.mubr.f32.gmra.mrb[0].mxu0 %v833
    %v911 = vpop.f32.mrb[0].mxu0
    %v912 = vadd.f32 0.0, %v911
    %v913 = vpop.f32.mrb[0].mxu0
    %v914 = vadd.f32 0.0, %v913
    %915 = vmatprep.mubr.f32.mxu0 0.0
    %916 = vmatmul.mubr.f32.gmra.mrb[0].mxu0 %v836
    %v917 = vpop.f32.mrb[0].mxu0
    %v918 = vadd.f32 0.0, %v917
    %v919 = vpop.f32.mrb[0].mxu0
    %v920 = vadd.f32 0.0, %v919
    %921 = vdwg.mxu0
    %922 = vset.pattern.permute.xlu0 1
    %923 = vperm.xlu0 %922, %v541
    %v924 = vpop.permute.xlu0 %923
    %926 = vset.pattern.permute.xlu0 1
    %927 = vperm.xlu0 %926, %v546
    %v928 = vpop.permute.xlu0 %927
    %v930 = vlaneseq
    %v931 = vshrl.u32 %v930, 7
    %v932 = vsub.s32 1, %v931
    %v933 = vrot.slane %v768, %v932
    %v934 = vadd.f32 %v924, %v933
    %v935 = vadd.f32 %v928, %v933
    %vm936 = vcmp.ge.f32.partialorder %v934, 0.0
    %vm937 = vcmp.ge.f32.partialorder %v935, 0.0
    %v938 = vmul.f32 %v934, 0.2
    %v939 = vmul.f32 %v935, 0.2
    %v940 = vsel %vm936, %v934, %v938
    %v941 = vsel %vm937, %v935, %v939
    %v942 = vsel %vm804, %v940, -1e+30
    %v943 = vsel %vm805, %v941, -1e+30
    %v944 = vsel %vm808, %v942, -inf
    %945 = vmax.xlane.f32.xlu0 %v944
    %v946 = vpop.xlane.xlu0 %945
    %v947 = vsel %vm812, %v943, -inf
    %948 = vmax.xlane.f32.xlu0 %v947
    %v949 = vpop.xlane.xlu0 %948
    %v950 = vsub.f32 %v942, %v946
    %v951 = vsub.f32 %v943, %v949
    %v952 = vmul.f32 %v950, 1.442695
    %v953 = vpow.pop %v952
    %v954 = vmul.f32 %v951, 1.442695
    %v955 = vpow.pop %v954
    %v956 = vsel %vm808, %v953, 0.0
    %957 = vadd.xlane.f32.xlu0 %v956
    %v958 = vpop.xlane.xlu0 %957
    %v959 = vsel %vm812, %v955, 0.0
    %960 = vadd.xlane.f32.xlu0 %v959
    %v961 = vpop.xlane.xlu0 %960
    %v962 = vrcp.pop %v958
    %v963 = vrcp.pop %v961
    %v964 = vmul.f32 %v953, %v962
    %v965 = vmul.f32 %v955, %v963
    %v967 = vsel %vm808, %v964, 0
    %v970 = vsel %vm808, %v965, 0
    %v973 = vsel %vm838, %v265, 0
    %v976 = vsel %vm838, %v267, 0
    %978 = vmatprep.subr.mxu0 %v263
    %979 = vmatpush1.msra.mxu0 %v261
    %980 = vmatprep.subr.mxu0 %v976
    %981 = vmatpush1.msra.mxu0 %v973
    %982 = vmatprep.subr.mxu0 0.0
    %983 = vmatpush1.msra.mxu0 0.0
    %984 = vmatprep.subr.mxu0 0.0
    %985 = vmatpush1.msra.mxu0 0.0
    %986 = vmatprep.subr.mxu0 0.0
    %987 = vmatpush1.msra.mxu0 0.0
    %988 = vmatprep.subr.mxu0 0.0
    %989 = vmatpush1.msra.mxu0 0.0
    %990 = vmatprep.subr.mxu0 0.0
    %991 = vmatpush1.msra.mxu0 0.0
    %992 = vmatprep.subr.mxu0 0.0
    %993 = vmatpush1.msra.mxu0 0.0
    %994 = vmatprep.subr.mxu0 0.0
    %995 = vmatpush1.msra.mxu0 0.0
    %996 = vmatprep.subr.mxu0 0.0
    %997 = vmatpush1.msra.mxu0 0.0
    %998 = vmatprep.subr.mxu0 0.0
    %999 = vmatpush1.msra.mxu0 0.0
    %1000 = vmatprep.subr.mxu0 0.0
    %1001 = vmatpush1.msra.mxu0 0.0
    %1002 = vmatprep.subr.mxu0 0.0
    %1003 = vmatpush1.msra.mxu0 0.0
    %1004 = vmatprep.subr.mxu0 0.0
    %1005 = vmatpush1.msra.mxu0 0.0
    %1006 = vmatprep.subr.mxu0 0.0
    %1007 = vmatpush1.msra.mxu0 0.0
    %1008 = vmatprep.subr.mxu0 0.0
    %1009 = vmatpush1.msra.mxu0 0.0
    %1010 = vmatprep.subr.mxu0 0.0
    %1011 = vmatpush1.msra.mxu0 0.0
    %1012 = vmatprep.subr.mxu0 0.0
    %1013 = vmatpush1.msra.mxu0 0.0
    %1014 = vmatprep.subr.mxu0 0.0
    %1015 = vmatpush1.msra.mxu0 0.0
    %1016 = vmatprep.subr.mxu0 0.0
    %1017 = vmatpush1.msra.mxu0 0.0
    %1018 = vmatprep.subr.mxu0 0.0
    %1019 = vmatpush1.msra.mxu0 0.0
    %1020 = vmatprep.subr.mxu0 0.0
    %1021 = vmatpush1.msra.mxu0 0.0
    %1022 = vmatprep.subr.mxu0 0.0
    %1023 = vmatpush1.msra.mxu0 0.0
    %1024 = vmatprep.subr.mxu0 0.0
    %1025 = vmatpush1.msra.mxu0 0.0
    %1026 = vmatprep.subr.mxu0 0.0
    %1027 = vmatpush1.msra.mxu0 0.0
    %1028 = vmatprep.subr.mxu0 0.0
    %1029 = vmatpush1.msra.mxu0 0.0
    %1030 = vmatprep.subr.mxu0 0.0
    %1031 = vmatpush1.msra.mxu0 0.0
    %1032 = vmatprep.subr.mxu0 0.0
    %1033 = vmatpush1.msra.mxu0 0.0
    %1034 = vmatprep.subr.mxu0 0.0
    %1035 = vmatpush1.msra.mxu0 0.0
    %1036 = vmatprep.subr.mxu0 0.0
    %1037 = vmatpush1.msra.mxu0 0.0
    %1038 = vmatprep.subr.mxu0 0.0
    %1039 = vmatpush1.msra.mxu0 0.0
    %1040 = vmatprep.subr.mxu0 0.0
    %1041 = vmatpush1.msra.mxu0 0.0
    %1042 = vmatprep.mubr.f32.mxu0 0.0
    %1043 = vmatmul.mubr.f32.gmra.mrb[0].mxu0 %v967
    %v1044 = vpop.f32.mrb[0].mxu0
    %v1045 = vadd.f32 0.0, %v1044
    %v1046 = vpop.f32.mrb[0].mxu0
    %v1047 = vadd.f32 0.0, %v1046
    %1048 = vmatprep.mubr.f32.mxu0 0.0
    %1049 = vmatmul.mubr.f32.gmra.mrb[0].mxu0 %v970
    %v1050 = vpop.f32.mrb[0].mxu0
    %v1051 = vadd.f32 0.0, %v1050
    %v1052 = vpop.f32.mrb[0].mxu0
    %v1053 = vadd.f32 0.0, %v1052
    %1054 = vdwg.mxu0
    %1055 = vset.pattern.permute.xlu0 2
    %1056 = vperm.xlu0 %1055, %v541
    %v1057 = vpop.permute.xlu0 %1056
    %1059 = vset.pattern.permute.xlu0 2
    %1060 = vperm.xlu0 %1059, %v546
    %v1061 = vpop.permute.xlu0 %1060
    %v1063 = vlaneseq
    %v1064 = vshrl.u32 %v1063, 7
    %v1065 = vsub.s32 2, %v1064
    %v1066 = vrot.slane %v768, %v1065
    %v1067 = vadd.f32 %v1057, %v1066
    %v1068 = vadd.f32 %v1061, %v1066
    %vm1069 = vcmp.ge.f32.partialorder %v1067, 0.0
    %vm1070 = vcmp.ge.f32.partialorder %v1068, 0.0
    %v1071 = vmul.f32 %v1067, 0.2
    %v1072 = vmul.f32 %v1068, 0.2
    %v1073 = vsel %vm1069, %v1067, %v1071
    %v1074 = vsel %vm1070, %v1068, %v1072
    %v1075 = vsel %vm804, %v1073, -1e+30
    %v1076 = vsel %vm805, %v1074, -1e+30
    %v1077 = vsel %vm808, %v1075, -inf
    %1078 = vmax.xlane.f32.xlu0 %v1077
    %v1079 = vpop.xlane.xlu0 %1078
    %v1080 = vsel %vm812, %v1076, -inf
    %1081 = vmax.xlane.f32.xlu0 %v1080
    %v1082 = vpop.xlane.xlu0 %1081
    %v1083 = vsub.f32 %v1075, %v1079
    %v1084 = vsub.f32 %v1076, %v1082
    %v1085 = vmul.f32 %v1083, 1.442695
    %v1086 = vpow.pop %v1085
    %v1087 = vmul.f32 %v1084, 1.442695
    %v1088 = vpow.pop %v1087
    %v1089 = vsel %vm808, %v1086, 0.0
    %1090 = vadd.xlane.f32.xlu0 %v1089
    %v1091 = vpop.xlane.xlu0 %1090
    %v1092 = vsel %vm812, %v1088, 0.0
    %1093 = vadd.xlane.f32.xlu0 %v1092
    %v1094 = vpop.xlane.xlu0 %1093
    %v1095 = vrcp.pop %v1091
    %v1096 = vrcp.pop %v1094
    %v1097 = vmul.f32 %v1086, %v1095
    %v1098 = vmul.f32 %v1088, %v1096
    %v1100 = vsel %vm808, %v1097, 0
    %v1103 = vsel %vm808, %v1098, 0
    %v1106 = vsel %vm838, %v308, 0
    %v1109 = vsel %vm838, %v310, 0
    %1111 = vmatprep.subr.mxu0 %v306
    %1112 = vmatpush1.msra.mxu0 %v304
    %1113 = vmatprep.subr.mxu0 %v1109
    %1114 = vmatpush1.msra.mxu0 %v1106
    %1115 = vmatprep.subr.mxu0 0.0
    %1116 = vmatpush1.msra.mxu0 0.0
    %1117 = vmatprep.subr.mxu0 0.0
    %1118 = vmatpush1.msra.mxu0 0.0
    %1119 = vmatprep.subr.mxu0 0.0
    %1120 = vmatpush1.msra.mxu0 0.0
    %1121 = vmatprep.subr.mxu0 0.0
    %1122 = vmatpush1.msra.mxu0 0.0
    %1123 = vmatprep.subr.mxu0 0.0
    %1124 = vmatpush1.msra.mxu0 0.0
    %1125 = vmatprep.subr.mxu0 0.0
    %1126 = vmatpush1.msra.mxu0 0.0
    %1127 = vmatprep.subr.mxu0 0.0
    %1128 = vmatpush1.msra.mxu0 0.0
    %1129 = vmatprep.subr.mxu0 0.0
    %1130 = vmatpush1.msra.mxu0 0.0
    %1131 = vmatprep.subr.mxu0 0.0
    %1132 = vmatpush1.msra.mxu0 0.0
    %1133 = vmatprep.subr.mxu0 0.0
    %1134 = vmatpush1.msra.mxu0 0.0
    %1135 = vmatprep.subr.mxu0 0.0
    %1136 = vmatpush1.msra.mxu0 0.0
    %1137 = vmatprep.subr.mxu0 0.0
    %1138 = vmatpush1.msra.mxu0 0.0
    %1139 = vmatprep.subr.mxu0 0.0
    %1140 = vmatpush1.msra.mxu0 0.0
    %1141 = vmatprep.subr.mxu0 0.0
    %1142 = vmatpush1.msra.mxu0 0.0
    %1143 = vmatprep.subr.mxu0 0.0
    %1144 = vmatpush1.msra.mxu0 0.0
    %1145 = vmatprep.subr.mxu0 0.0
    %1146 = vmatpush1.msra.mxu0 0.0
    %1147 = vmatprep.subr.mxu0 0.0
    %1148 = vmatpush1.msra.mxu0 0.0
    %1149 = vmatprep.subr.mxu0 0.0
    %1150 = vmatpush1.msra.mxu0 0.0
    %1151 = vmatprep.subr.mxu0 0.0
    %1152 = vmatpush1.msra.mxu0 0.0
    %1153 = vmatprep.subr.mxu0 0.0
    %1154 = vmatpush1.msra.mxu0 0.0
    %1155 = vmatprep.subr.mxu0 0.0
    %1156 = vmatpush1.msra.mxu0 0.0
    %1157 = vmatprep.subr.mxu0 0.0
    %1158 = vmatpush1.msra.mxu0 0.0
    %1159 = vmatprep.subr.mxu0 0.0
    %1160 = vmatpush1.msra.mxu0 0.0
    %1161 = vmatprep.subr.mxu0 0.0
    %1162 = vmatpush1.msra.mxu0 0.0
    %1163 = vmatprep.subr.mxu0 0.0
    %1164 = vmatpush1.msra.mxu0 0.0
    %1165 = vmatprep.subr.mxu0 0.0
    %1166 = vmatpush1.msra.mxu0 0.0
    %1167 = vmatprep.subr.mxu0 0.0
    %1168 = vmatpush1.msra.mxu0 0.0
    %1169 = vmatprep.subr.mxu0 0.0
    %1170 = vmatpush1.msra.mxu0 0.0
    %1171 = vmatprep.subr.mxu0 0.0
    %1172 = vmatpush1.msra.mxu0 0.0
    %1173 = vmatprep.subr.mxu0 0.0
    %1174 = vmatpush1.msra.mxu0 0.0
    %1175 = vmatprep.mubr.f32.mxu0 0.0
    %1176 = vmatmul.mubr.f32.gmra.mrb[0].mxu0 %v1100
    %v1177 = vpop.f32.mrb[0].mxu0
    %v1178 = vadd.f32 0.0, %v1177
    %v1179 = vpop.f32.mrb[0].mxu0
    %v1180 = vadd.f32 0.0, %v1179
    %1181 = vmatprep.mubr.f32.mxu0 0.0
    %1182 = vmatmul.mubr.f32.gmra.mrb[0].mxu0 %v1103
    %v1183 = vpop.f32.mrb[0].mxu0
    %v1184 = vadd.f32 0.0, %v1183
    %v1185 = vpop.f32.mrb[0].mxu0
    %v1186 = vadd.f32 0.0, %v1185
    %1187 = vdwg.mxu0
    %v1188 = vld [vmem:[%s8] sm:$0x3f]
    %v1190 = vlaneseq
    %v1191 = vshrl.u32 %v1190, 7
    %v1192 = vsub.s32 0, %v1191
    %v1193 = vrot.slane %v1188, %v1192
    %v1194 = vlaneseq
    %v1195 = vshrl.u32 %v1194, 7
    %v1196 = vsub.s32 1, %v1195
    %v1197 = vrot.slane %v1188, %v1196
    %v1198 = vlaneseq
    %v1199 = vshrl.u32 %v1198, 7
    %v1200 = vsub.s32 2, %v1199
    %v1201 = vrot.slane %v1188, %v1200
    %v1202 = vlaneseq
    %v1203 = vshrl.u32 %v1202, 7
    %v1204 = vsub.s32 3, %v1203
    %v1205 = vrot.slane %v1188, %v1204
    %v1206 = vlaneseq
    %v1207 = vshrl.u32 %v1206, 7
    %v1208 = vsub.s32 4, %v1207
    %v1209 = vrot.slane %v1188, %v1208
    %v1210 = vlaneseq
    %v1211 = vshrl.u32 %v1210, 7
    %v1212 = vsub.s32 5, %v1211
    %v1213 = vrot.slane %v1188, %v1212
    %v1220 = vadd.f32 %v912, %v1193
    %v1221 = vadd.f32 %v914, %v1197
    %v1222 = vadd.f32 %v1045, %v1201
    %v1223 = vadd.f32 %v1047, %v1205
    %v1224 = vadd.f32 %v1178, %v1209
    %v1225 = vadd.f32 %v1180, %v1213
    %v1226 = vadd.f32 %v918, %v1193
    %v1227 = vadd.f32 %v920, %v1197
    %v1228 = vadd.f32 %v1051, %v1201
    %v1229 = vadd.f32 %v1053, %v1205
    %v1230 = vadd.f32 %v1184, %v1209
    %v1231 = vadd.f32 %v1186, %v1213
    %v1232 = vld [vmem:[%s9] sm:$0x3f]
    %v1234 = vlaneseq
    %v1235 = vshrl.u32 %v1234, 7
    %v1236 = vsub.s32 0, %v1235
    %v1237 = vrot.slane %v1232, %v1236
    %v1238 = vlaneseq
    %v1239 = vshrl.u32 %v1238, 7
    %v1240 = vsub.s32 1, %v1239
    %v1241 = vrot.slane %v1232, %v1240
    %v1242 = vlaneseq
    %v1243 = vshrl.u32 %v1242, 7
    %v1244 = vsub.s32 2, %v1243
    %v1245 = vrot.slane %v1232, %v1244
    %v1246 = vlaneseq
    %v1247 = vshrl.u32 %v1246, 7
    %v1248 = vsub.s32 3, %v1247
    %v1249 = vrot.slane %v1232, %v1248
    %v1250 = vlaneseq
    %v1251 = vshrl.u32 %v1250, 7
    %v1252 = vsub.s32 4, %v1251
    %v1253 = vrot.slane %v1232, %v1252
    %v1254 = vlaneseq
    %v1255 = vshrl.u32 %v1254, 7
    %v1256 = vsub.s32 5, %v1255
    %v1257 = vrot.slane %v1232, %v1256
    %v1264 = vmul.f32 %v1220, %v1237
    %v1265 = vmul.f32 %v1221, %v1241
    %v1266 = vmul.f32 %v1222, %v1245
    %v1267 = vmul.f32 %v1223, %v1249
    %v1268 = vmul.f32 %v1224, %v1253
    %v1269 = vmul.f32 %v1225, %v1257
    %v1270 = vmul.f32 %v1226, %v1237
    %v1271 = vmul.f32 %v1227, %v1241
    %v1272 = vmul.f32 %v1228, %v1245
    %v1273 = vmul.f32 %v1229, %v1249
    %v1274 = vmul.f32 %v1230, %v1253
    %v1275 = vmul.f32 %v1231, %v1257
    %v1276 = vadd.f32 %v1264, %v1265
    %v1277 = vadd.f32 %v1276, %v1266
    %v1278 = vadd.f32 %v1277, %v1267
    %v1279 = vadd.f32 %v1278, %v1268
    %v1280 = vadd.f32 %v1279, %v1269
    %1281 = vadd.xlane.f32.xlu0 %v1280
    %v1282 = vpop.xlane.xlu0 %1281
    %v1283 = vsel %vm838, %v1270, 0.0
    %v1284 = vsel %vm838, %v1271, 0.0
    %v1285 = vadd.f32 %v1283, %v1284
    %v1286 = vsel %vm838, %v1272, 0.0
    %v1287 = vadd.f32 %v1285, %v1286
    %v1288 = vsel %vm838, %v1273, 0.0
    %v1289 = vadd.f32 %v1287, %v1288
    %v1290 = vsel %vm838, %v1274, 0.0
    %v1291 = vadd.f32 %v1289, %v1290
    %v1292 = vsel %vm838, %v1275, 0.0
    %v1293 = vadd.f32 %v1291, %v1292
    %1294 = vadd.xlane.f32.xlu0 %v1293
    %v1295 = vpop.xlane.xlu0 %1294
    %v1296 = vtanh.pop %v1282
    %v1297 = vtanh.pop %v1295
    %v1298 = vmul.f32 %v778, %v1296
    %v1299 = vmul.f32 %v779, %v1297
    %v1301 = vsel %vm808, 1.0, 0
    %v1304 = vsel %vm838, %v1299, 0
    %1306 = vmatprep.subr.mxu0 0.0
    %1307 = vmatpush1.msra.mxu0 %v1298
    %1308 = vmatprep.subr.mxu0 0.0
    %1309 = vmatpush1.msra.mxu0 %v1304
    %1310 = vmatprep.subr.mxu0 0.0
    %1311 = vmatpush1.msra.mxu0 0.0
    %1312 = vmatprep.subr.mxu0 0.0
    %1313 = vmatpush1.msra.mxu0 0.0
    %1314 = vmatprep.subr.mxu0 0.0
    %1315 = vmatpush1.msra.mxu0 0.0
    %1316 = vmatprep.subr.mxu0 0.0
    %1317 = vmatpush1.msra.mxu0 0.0
    %1318 = vmatprep.subr.mxu0 0.0
    %1319 = vmatpush1.msra.mxu0 0.0
    %1320 = vmatprep.subr.mxu0 0.0
    %1321 = vmatpush1.msra.mxu0 0.0
    %1322 = vmatprep.subr.mxu0 0.0
    %1323 = vmatpush1.msra.mxu0 0.0
    %1324 = vmatprep.subr.mxu0 0.0
    %1325 = vmatpush1.msra.mxu0 0.0
    %1326 = vmatprep.subr.mxu0 0.0
    %1327 = vmatpush1.msra.mxu0 0.0
    %1328 = vmatprep.subr.mxu0 0.0
    %1329 = vmatpush1.msra.mxu0 0.0
    %1330 = vmatprep.subr.mxu0 0.0
    %1331 = vmatpush1.msra.mxu0 0.0
    %1332 = vmatprep.subr.mxu0 0.0
    %1333 = vmatpush1.msra.mxu0 0.0
    %1334 = vmatprep.subr.mxu0 0.0
    %1335 = vmatpush1.msra.mxu0 0.0
    %1336 = vmatprep.subr.mxu0 0.0
    %1337 = vmatpush1.msra.mxu0 0.0
    %1338 = vmatprep.subr.mxu0 0.0
    %1339 = vmatpush1.msra.mxu0 0.0
    %1340 = vmatprep.subr.mxu0 0.0
    %1341 = vmatpush1.msra.mxu0 0.0
    %1342 = vmatprep.subr.mxu0 0.0
    %1343 = vmatpush1.msra.mxu0 0.0
    %1344 = vmatprep.subr.mxu0 0.0
    %1345 = vmatpush1.msra.mxu0 0.0
    %1346 = vmatprep.subr.mxu0 0.0
    %1347 = vmatpush1.msra.mxu0 0.0
    %1348 = vmatprep.subr.mxu0 0.0
    %1349 = vmatpush1.msra.mxu0 0.0
    %1350 = vmatprep.subr.mxu0 0.0
    %1351 = vmatpush1.msra.mxu0 0.0
    %1352 = vmatprep.subr.mxu0 0.0
    %1353 = vmatpush1.msra.mxu0 0.0
    %1354 = vmatprep.subr.mxu0 0.0
    %1355 = vmatpush1.msra.mxu0 0.0
    %1356 = vmatprep.subr.mxu0 0.0
    %1357 = vmatpush1.msra.mxu0 0.0
    %1358 = vmatprep.subr.mxu0 0.0
    %1359 = vmatpush1.msra.mxu0 0.0
    %1360 = vmatprep.subr.mxu0 0.0
    %1361 = vmatpush1.msra.mxu0 0.0
    %1362 = vmatprep.subr.mxu0 0.0
    %1363 = vmatpush1.msra.mxu0 0.0
    %1364 = vmatprep.subr.mxu0 0.0
    %1365 = vmatpush1.msra.mxu0 0.0
    %1366 = vmatprep.subr.mxu0 0.0
    %1367 = vmatpush1.msra.mxu0 0.0
    %1368 = vmatprep.subr.mxu0 0.0
    %1369 = vmatpush1.msra.mxu0 0.0
    %1370 = vmatprep.mubr.f32.mxu0 0.0
    %1371 = vmatmul.mubr.f32.gmra.mrb[0].mxu0 %v1301
    %v1372 = vpop.f32.mrb[0].mxu0
    %v1373 = vadd.f32 0.0, %v1372
    %v1374 = vpop.f32.mrb[0].mxu0
    %1375 = vmatprep.mubr.f32.mxu0 0.0
    %1376 = vmatmul.mubr.f32.gmra.mrb[0].mxu0 %v1301
    %v1377 = vpop.f32.mrb[0].mxu0
    %v1378 = vadd.f32 0.0, %v1377
    %v1379 = vpop.f32.mrb[0].mxu0
    %1380 = vdwg.mxu0
    %v1382 = vsel %vm808, %v105, 0
    %v1385 = vsel %vm838, %v102, 0
    %1387 = vmatprep.subr.mxu0 0.0
    %1388 = vmatpush1.msra.mxu0 %v101
    %1389 = vmatprep.subr.mxu0 0.0
    %1390 = vmatpush1.msra.mxu0 %v1385
    %1391 = vmatprep.subr.mxu0 0.0
    %1392 = vmatpush1.msra.mxu0 0.0
    %1393 = vmatprep.subr.mxu0 0.0
    %1394 = vmatpush1.msra.mxu0 0.0
    %1395 = vmatprep.subr.mxu0 0.0
    %1396 = vmatpush1.msra.mxu0 0.0
    %1397 = vmatprep.subr.mxu0 0.0
    %1398 = vmatpush1.msra.mxu0 0.0
    %1399 = vmatprep.subr.mxu0 0.0
    %1400 = vmatpush1.msra.mxu0 0.0
    %1401 = vmatprep.subr.mxu0 0.0
    %1402 = vmatpush1.msra.mxu0 0.0
    %1403 = vmatprep.subr.mxu0 0.0
    %1404 = vmatpush1.msra.mxu0 0.0
    %1405 = vmatprep.subr.mxu0 0.0
    %1406 = vmatpush1.msra.mxu0 0.0
    %1407 = vmatprep.subr.mxu0 0.0
    %1408 = vmatpush1.msra.mxu0 0.0
    %1409 = vmatprep.subr.mxu0 0.0
    %1410 = vmatpush1.msra.mxu0 0.0
    %1411 = vmatprep.subr.mxu0 0.0
    %1412 = vmatpush1.msra.mxu0 0.0
    %1413 = vmatprep.subr.mxu0 0.0
    %1414 = vmatpush1.msra.mxu0 0.0
    %1415 = vmatprep.subr.mxu0 0.0
    %1416 = vmatpush1.msra.mxu0 0.0
    %1417 = vmatprep.subr.mxu0 0.0
    %1418 = vmatpush1.msra.mxu0 0.0
    %1419 = vmatprep.subr.mxu0 0.0
    %1420 = vmatpush1.msra.mxu0 0.0
    %1421 = vmatprep.subr.mxu0 0.0
    %1422 = vmatpush1.msra.mxu0 0.0
    %1423 = vmatprep.subr.mxu0 0.0
    %1424 = vmatpush1.msra.mxu0 0.0
    %1425 = vmatprep.subr.mxu0 0.0
    %1426 = vmatpush1.msra.mxu0 0.0
    %1427 = vmatprep.subr.mxu0 0.0
    %1428 = vmatpush1.msra.mxu0 0.0
    %1429 = vmatprep.subr.mxu0 0.0
    %1430 = vmatpush1.msra.mxu0 0.0
    %1431 = vmatprep.subr.mxu0 0.0
    %1432 = vmatpush1.msra.mxu0 0.0
    %1433 = vmatprep.subr.mxu0 0.0
    %1434 = vmatpush1.msra.mxu0 0.0
    %1435 = vmatprep.subr.mxu0 0.0
    %1436 = vmatpush1.msra.mxu0 0.0
    %1437 = vmatprep.subr.mxu0 0.0
    %1438 = vmatpush1.msra.mxu0 0.0
    %1439 = vmatprep.subr.mxu0 0.0
    %1440 = vmatpush1.msra.mxu0 0.0
    %1441 = vmatprep.subr.mxu0 0.0
    %1442 = vmatpush1.msra.mxu0 0.0
    %1443 = vmatprep.subr.mxu0 0.0
    %1444 = vmatpush1.msra.mxu0 0.0
    %1445 = vmatprep.subr.mxu0 0.0
    %1446 = vmatpush1.msra.mxu0 0.0
    %1447 = vmatprep.subr.mxu0 0.0
    %1448 = vmatpush1.msra.mxu0 0.0
    %1449 = vmatprep.subr.mxu0 0.0
    %1450 = vmatpush1.msra.mxu0 0.0
    %1451 = vmatprep.mubr.f32.mxu0 0.0
    %1452 = vmatmul.mubr.f32.gmra.mrb[0].mxu0 %v1382
    %v1453 = vpop.f32.mrb[0].mxu0
    %v1454 = vadd.f32 0.0, %v1453
    %v1455 = vpop.f32.mrb[0].mxu0
    %1456 = vdwg.mxu0
    %v1457 = vmul.f32 %v1454, 4.0
    %v1458 = vadd.f32 %v1457, 4.0
    %v1459 = vrcp.pop 5.0
    %v1460 = vmul.f32 %v1458, %v1459
    %v1461 = vfloor.f32 %v1460
    %vm1462 = vcmask 15360
    %v1464 = vsel %vm1462, %v103, 0
    %v1467 = vsel %vm1462, %v104, 0
    %vm1469 = vcmask 1041408
    %v1471 = vsel %vm1469, %v1461, 0
    %1473 = vmatprep.subr.mxu0 0.0
    %1474 = vmatpush1.msra.mxu0 %v1471
    %1475 = vmatprep.subr.mxu0 0.0
    %1476 = vmatpush1.msra.mxu0 0.0
    %1477 = vmatprep.subr.mxu0 0.0
    %1478 = vmatpush1.msra.mxu0 0.0
    %1479 = vmatprep.subr.mxu0 0.0
    %1480 = vmatpush1.msra.mxu0 0.0
    %1481 = vmatprep.subr.mxu0 0.0
    %1482 = vmatpush1.msra.mxu0 0.0
    %1483 = vmatprep.subr.mxu0 0.0
    %1484 = vmatpush1.msra.mxu0 0.0
    %1485 = vmatprep.subr.mxu0 0.0
    %1486 = vmatpush1.msra.mxu0 0.0
    %1487 = vmatprep.subr.mxu0 0.0
    %1488 = vmatpush1.msra.mxu0 0.0
    %1489 = vmatprep.subr.mxu0 0.0
    %1490 = vmatpush1.msra.mxu0 0.0
    %1491 = vmatprep.subr.mxu0 0.0
    %1492 = vmatpush1.msra.mxu0 0.0
    %1493 = vmatprep.subr.mxu0 0.0
    %1494 = vmatpush1.msra.mxu0 0.0
    %1495 = vmatprep.subr.mxu0 0.0
    %1496 = vmatpush1.msra.mxu0 0.0
    %1497 = vmatprep.subr.mxu0 0.0
    %1498 = vmatpush1.msra.mxu0 0.0
    %1499 = vmatprep.subr.mxu0 0.0
    %1500 = vmatpush1.msra.mxu0 0.0
    %1501 = vmatprep.subr.mxu0 0.0
    %1502 = vmatpush1.msra.mxu0 0.0
    %1503 = vmatprep.subr.mxu0 0.0
    %1504 = vmatpush1.msra.mxu0 0.0
    %1505 = vmatprep.subr.mxu0 0.0
    %1506 = vmatpush1.msra.mxu0 0.0
    %1507 = vmatprep.subr.mxu0 0.0
    %1508 = vmatpush1.msra.mxu0 0.0
    %1509 = vmatprep.subr.mxu0 0.0
    %1510 = vmatpush1.msra.mxu0 0.0
    %1511 = vmatprep.subr.mxu0 0.0
    %1512 = vmatpush1.msra.mxu0 0.0
    %1513 = vmatprep.subr.mxu0 0.0
    %1514 = vmatpush1.msra.mxu0 0.0
    %1515 = vmatprep.subr.mxu0 0.0
    %1516 = vmatpush1.msra.mxu0 0.0
    %1517 = vmatprep.subr.mxu0 0.0
    %1518 = vmatpush1.msra.mxu0 0.0
    %1519 = vmatprep.subr.mxu0 0.0
    %1520 = vmatpush1.msra.mxu0 0.0
    %1521 = vmatprep.subr.mxu0 0.0
    %1522 = vmatpush1.msra.mxu0 0.0
    %1523 = vmatprep.subr.mxu0 0.0
    %1524 = vmatpush1.msra.mxu0 0.0
    %1525 = vmatprep.subr.mxu0 0.0
    %1526 = vmatpush1.msra.mxu0 0.0
    %1527 = vmatprep.subr.mxu0 0.0
    %1528 = vmatpush1.msra.mxu0 0.0
    %1529 = vmatprep.subr.mxu0 0.0
    %1530 = vmatpush1.msra.mxu0 0.0
    %1531 = vmatprep.subr.mxu0 0.0
    %1532 = vmatpush1.msra.mxu0 0.0
    %1533 = vmatprep.subr.mxu0 0.0
    %1534 = vmatpush1.msra.mxu0 0.0
    %1535 = vmatprep.subr.mxu0 0.0
    %1536 = vmatpush1.msra.mxu0 0.0
    %1537 = vmatprep.mubr.f32.mxu0 0.0
    %1538 = vmatmul.mubr.f32.gmra.mrb[0].mxu0 %v1464
    %v1539 = vpop.f32.mrb[0].mxu0
    %v1540 = vadd.f32 0.0, %v1539
    %v1541 = vpop.f32.mrb[0].mxu0
    %1542 = vmatprep.mubr.f32.mxu0 0.0
    %1543 = vmatmul.mubr.f32.gmra.mrb[0].mxu0 %v1467
    %v1544 = vpop.f32.mrb[0].mxu0
    %v1545 = vadd.f32 0.0, %v1544
    %v1546 = vpop.f32.mrb[0].mxu0
    %1547 = vdwg.mxu0
    %v1548 = vsel %vm1469, %v105, 0
    %1550 = vmatprep.subr.mxu0 0.0
    %1551 = vmatpush1.msra.mxu0 %v1548
    %1552 = vmatprep.subr.mxu0 0.0
    %1553 = vmatpush1.msra.mxu0 0.0
    %1554 = vmatprep.subr.mxu0 0.0
    %1555 = vmatpush1.msra.mxu0 0.0
    %1556 = vmatprep.subr.mxu0 0.0
    %1557 = vmatpush1.msra.mxu0 0.0
    %1558 = vmatprep.subr.mxu0 0.0
    %1559 = vmatpush1.msra.mxu0 0.0
    %1560 = vmatprep.subr.mxu0 0.0
    %1561 = vmatpush1.msra.mxu0 0.0
    %1562 = vmatprep.subr.mxu0 0.0
    %1563 = vmatpush1.msra.mxu0 0.0
    %1564 = vmatprep.subr.mxu0 0.0
    %1565 = vmatpush1.msra.mxu0 0.0
    %1566 = vmatprep.subr.mxu0 0.0
    %1567 = vmatpush1.msra.mxu0 0.0
    %1568 = vmatprep.subr.mxu0 0.0
    %1569 = vmatpush1.msra.mxu0 0.0
    %1570 = vmatprep.subr.mxu0 0.0
    %1571 = vmatpush1.msra.mxu0 0.0
    %1572 = vmatprep.subr.mxu0 0.0
    %1573 = vmatpush1.msra.mxu0 0.0
    %1574 = vmatprep.subr.mxu0 0.0
    %1575 = vmatpush1.msra.mxu0 0.0
    %1576 = vmatprep.subr.mxu0 0.0
    %1577 = vmatpush1.msra.mxu0 0.0
    %1578 = vmatprep.subr.mxu0 0.0
    %1579 = vmatpush1.msra.mxu0 0.0
    %1580 = vmatprep.subr.mxu0 0.0
    %1581 = vmatpush1.msra.mxu0 0.0
    %1582 = vmatprep.subr.mxu0 0.0
    %1583 = vmatpush1.msra.mxu0 0.0
    %1584 = vmatprep.subr.mxu0 0.0
    %1585 = vmatpush1.msra.mxu0 0.0
    %1586 = vmatprep.subr.mxu0 0.0
    %1587 = vmatpush1.msra.mxu0 0.0
    %1588 = vmatprep.subr.mxu0 0.0
    %1589 = vmatpush1.msra.mxu0 0.0
    %1590 = vmatprep.subr.mxu0 0.0
    %1591 = vmatpush1.msra.mxu0 0.0
    %1592 = vmatprep.subr.mxu0 0.0
    %1593 = vmatpush1.msra.mxu0 0.0
    %1594 = vmatprep.subr.mxu0 0.0
    %1595 = vmatpush1.msra.mxu0 0.0
    %1596 = vmatprep.subr.mxu0 0.0
    %1597 = vmatpush1.msra.mxu0 0.0
    %1598 = vmatprep.subr.mxu0 0.0
    %1599 = vmatpush1.msra.mxu0 0.0
    %1600 = vmatprep.subr.mxu0 0.0
    %1601 = vmatpush1.msra.mxu0 0.0
    %1602 = vmatprep.subr.mxu0 0.0
    %1603 = vmatpush1.msra.mxu0 0.0
    %1604 = vmatprep.subr.mxu0 0.0
    %1605 = vmatpush1.msra.mxu0 0.0
    %1606 = vmatprep.subr.mxu0 0.0
    %1607 = vmatpush1.msra.mxu0 0.0
    %1608 = vmatprep.subr.mxu0 0.0
    %1609 = vmatpush1.msra.mxu0 0.0
    %1610 = vmatprep.subr.mxu0 0.0
    %1611 = vmatpush1.msra.mxu0 0.0
    %1612 = vmatprep.subr.mxu0 0.0
    %1613 = vmatpush1.msra.mxu0 0.0
    %1614 = vmatprep.mubr.f32.mxu0 0.0
    %1615 = vmatmul.mubr.f32.gmra.mrb[0].mxu0 %v1464
    %v1616 = vpop.f32.mrb[0].mxu0
    %v1617 = vadd.f32 0.0, %v1616
    %v1618 = vpop.f32.mrb[0].mxu0
    %1619 = vmatprep.mubr.f32.mxu0 0.0
    %1620 = vmatmul.mubr.f32.gmra.mrb[0].mxu0 %v1467
    %v1621 = vpop.f32.mrb[0].mxu0
    %v1622 = vadd.f32 0.0, %v1621
    %v1623 = vpop.f32.mrb[0].mxu0
    %1624 = vdwg.mxu0
    %vm1625 = vcmp.gt.f32.partialorder %v1373, %v1296
    %vm1626 = vcmp.gt.f32.partialorder %v1378, %v1297
    %vm1627 = vcmp.eq.f32.partialorder %v1373, %v1296
    %vm1628 = vcmp.eq.f32.partialorder %v1378, %v1297
    %vm1629 = vcmp.lt.s32.totalorder %v775, %v772
    %vm1630 = vcmp.lt.s32.totalorder %v775, %v773
    %vm1631 = vmand %vm1627, %vm1629
    %vm1632 = vmand %vm1628, %vm1630
    %vm1633 = vmor %vm1625, %vm1631
    %vm1634 = vmor %vm1626, %vm1632
    %v1635 = vsel %vm1633, %v1617, 0.0
    %v1636 = vsel %vm1634, %v1622, 0.0
    %v1637 = vsub.f32 1.0, %v778
    %v1638 = vsub.f32 1.0, %v779
    %v1639 = vmul.f32 %v1635, %v1637
    %v1640 = vmul.f32 %v1636, %v1638
    %v1642 = vsel %vm808, %v1639, 0
    %v1645 = vsel %vm808, %v1640, 0
    %1647 = vmatprep.subr.mxu0 0.0
    %1648 = vmatpush1.msra.mxu0 %v101
    %1649 = vmatprep.subr.mxu0 0.0
    %1650 = vmatpush1.msra.mxu0 %v1385
    %1651 = vmatprep.subr.mxu0 0.0
    %1652 = vmatpush1.msra.mxu0 0.0
    %1653 = vmatprep.subr.mxu0 0.0
    %1654 = vmatpush1.msra.mxu0 0.0
    %1655 = vmatprep.subr.mxu0 0.0
    %1656 = vmatpush1.msra.mxu0 0.0
    %1657 = vmatprep.subr.mxu0 0.0
    %1658 = vmatpush1.msra.mxu0 0.0
    %1659 = vmatprep.subr.mxu0 0.0
    %1660 = vmatpush1.msra.mxu0 0.0
    %1661 = vmatprep.subr.mxu0 0.0
    %1662 = vmatpush1.msra.mxu0 0.0
    %1663 = vmatprep.subr.mxu0 0.0
    %1664 = vmatpush1.msra.mxu0 0.0
    %1665 = vmatprep.subr.mxu0 0.0
    %1666 = vmatpush1.msra.mxu0 0.0
    %1667 = vmatprep.subr.mxu0 0.0
    %1668 = vmatpush1.msra.mxu0 0.0
    %1669 = vmatprep.subr.mxu0 0.0
    %1670 = vmatpush1.msra.mxu0 0.0
    %1671 = vmatprep.subr.mxu0 0.0
    %1672 = vmatpush1.msra.mxu0 0.0
    %1673 = vmatprep.subr.mxu0 0.0
    %1674 = vmatpush1.msra.mxu0 0.0
    %1675 = vmatprep.subr.mxu0 0.0
    %1676 = vmatpush1.msra.mxu0 0.0
    %1677 = vmatprep.subr.mxu0 0.0
    %1678 = vmatpush1.msra.mxu0 0.0
    %1679 = vmatprep.subr.mxu0 0.0
    %1680 = vmatpush1.msra.mxu0 0.0
    %1681 = vmatprep.subr.mxu0 0.0
    %1682 = vmatpush1.msra.mxu0 0.0
    %1683 = vmatprep.subr.mxu0 0.0
    %1684 = vmatpush1.msra.mxu0 0.0
    %1685 = vmatprep.subr.mxu0 0.0
    %1686 = vmatpush1.msra.mxu0 0.0
    %1687 = vmatprep.subr.mxu0 0.0
    %1688 = vmatpush1.msra.mxu0 0.0
    %1689 = vmatprep.subr.mxu0 0.0
    %1690 = vmatpush1.msra.mxu0 0.0
    %1691 = vmatprep.subr.mxu0 0.0
    %1692 = vmatpush1.msra.mxu0 0.0
    %1693 = vmatprep.subr.mxu0 0.0
    %1694 = vmatpush1.msra.mxu0 0.0
    %1695 = vmatprep.subr.mxu0 0.0
    %1696 = vmatpush1.msra.mxu0 0.0
    %1697 = vmatprep.subr.mxu0 0.0
    %1698 = vmatpush1.msra.mxu0 0.0
    %1699 = vmatprep.subr.mxu0 0.0
    %1700 = vmatpush1.msra.mxu0 0.0
    %1701 = vmatprep.subr.mxu0 0.0
    %1702 = vmatpush1.msra.mxu0 0.0
    %1703 = vmatprep.subr.mxu0 0.0
    %1704 = vmatpush1.msra.mxu0 0.0
    %1705 = vmatprep.subr.mxu0 0.0
    %1706 = vmatpush1.msra.mxu0 0.0
    %1707 = vmatprep.subr.mxu0 0.0
    %1708 = vmatpush1.msra.mxu0 0.0
    %1709 = vmatprep.subr.mxu0 0.0
    %1710 = vmatpush1.msra.mxu0 0.0
    %1711 = vmatprep.mubr.f32.mxu0 0.0
    %1712 = vmatmul.mubr.f32.gmra.mrb[0].mxu0 %v1642
    %v1713 = vpop.f32.mrb[0].mxu0
    %v1714 = vadd.f32 0.0, %v1713
    %v1715 = vpop.f32.mrb[0].mxu0
    %1716 = vmatprep.mubr.f32.mxu0 0.0
    %1717 = vmatmul.mubr.f32.gmra.mrb[0].mxu0 %v1645
    %v1718 = vpop.f32.mrb[0].mxu0
    %v1719 = vadd.f32 0.0, %v1718
    %v1720 = vpop.f32.mrb[0].mxu0
    %1721 = vdwg.mxu0
    %vm1722 = vcmp.lt.f32.partialorder %v1714, %v1540
    %vm1723 = vcmp.lt.f32.partialorder %v1719, %v1545
    %v1724 = vsel %vm1722, 1.0, 0.0
    %v1725 = vsel %vm1723, 1.0, 0.0
    %v1726 = vmul.f32 %v101, %v1724
    %v1727 = vmul.f32 %v102, %v1725
    %v1728 = vmul.f32 %v1296, %v1726
    %v1729 = vmul.f32 %v1297, %v1727
    %1731 = vset.pattern.permute.xlu0 0
    %1732 = vperm.xlu0 %1731, %v1728
    %v1733 = vpop.permute.xlu0 %1732
    %1736 = vset.pattern.permute.xlu0 0
    %1737 = vperm.xlu0 %1736, %v1729
    %v1738 = vpop.permute.xlu0 %1737
    %v1740 = vmul.f32 %v1220, %v1733
    %v1741 = vmul.f32 %v1221, %v1733
    %v1742 = vmul.f32 %v1222, %v1733
    %v1743 = vmul.f32 %v1223, %v1733
    %v1744 = vmul.f32 %v1224, %v1733
    %v1745 = vmul.f32 %v1225, %v1733
    %v1746 = vmul.f32 %v1226, %v1738
    %v1747 = vmul.f32 %v1227, %v1738
    %v1748 = vmul.f32 %v1228, %v1738
    %v1749 = vmul.f32 %v1229, %v1738
    %v1750 = vmul.f32 %v1230, %v1738
    %v1751 = vmul.f32 %v1231, %v1738
    %v1752 = vpack.c.bf16 %v1746, %v1740
    %v1753 = vpack.c.bf16 %v1747, %v1741
    %v1754 = vpack.c.bf16 %v1748, %v1742
    %v1755 = vpack.c.bf16 %v1749, %v1743
    %v1756 = vpack.c.bf16 %v1750, %v1744
    %v1757 = vpack.c.bf16 %v1751, %v1745
    %v1758 = vld [vmem:[%s10] sm:$0xff]
    %v1759 = vld [vmem:[%s10 + $0x8] sm:$0xff]
    %v1760 = vld [vmem:[%s10 + $0x10] sm:$0xff]
    %v1761 = vld [vmem:[%s10 + $0x18] sm:$0xff]
    %v1762 = vld [vmem:[%s10 + $0x20] sm:$0xff]
    %v1763 = vld [vmem:[%s10 + $0x28] sm:$0xff]
    %v1764 = vld [vmem:[%s10 + $0x30] sm:$0xff]
    %v1765 = vld [vmem:[%s10 + $0x38] sm:$0xff]
    %v1766 = vld [vmem:[%s10 + $0x40] sm:$0xff]
    %v1767 = vld [vmem:[%s10 + $0x48] sm:$0xff]
    %v1768 = vld [vmem:[%s10 + $0x50] sm:$0xff]
    %v1769 = vld [vmem:[%s10 + $0x58] sm:$0xff]
    %v1770 = vld [vmem:[%s10 + $0x60] sm:$0xff]
    %v1771 = vld [vmem:[%s10 + $0x68] sm:$0xff]
    %v1772 = vld [vmem:[%s10 + $0x70] sm:$0xff]
    %v1773 = vld [vmem:[%s10 + $0x78] sm:$0xff]
    %v1774 = vld [vmem:[%s10 + $0x80] sm:$0xff]
    %v1775 = vld [vmem:[%s10 + $0x88] sm:$0xff]
    %v1776 = vld [vmem:[%s10 + $0x90] sm:$0xff]
    %v1777 = vld [vmem:[%s10 + $0x98] sm:$0xff]
    %v1778 = vld [vmem:[%s10 + $0xa0] sm:$0xff]
    %v1779 = vld [vmem:[%s10 + $0xa8] sm:$0xff]
    %v1780 = vld [vmem:[%s10 + $0xb0] sm:$0xff]
    %v1781 = vld [vmem:[%s10 + $0xb8] sm:$0xff]
    %v1782 = vld [vmem:[%s10 + $0xc0] sm:$0xff]
    %v1783 = vld [vmem:[%s10 + $0xc8] sm:$0xff]
    %v1784 = vld [vmem:[%s10 + $0xd0] sm:$0xff]
    %v1785 = vld [vmem:[%s10 + $0xd8] sm:$0xff]
    %v1786 = vld [vmem:[%s10 + $0xe0] sm:$0xff]
    %v1787 = vld [vmem:[%s10 + $0xe8] sm:$0xff]
    %v1788 = vld [vmem:[%s10 + $0xf0] sm:$0xff]
    %v1789 = vld [vmem:[%s10 + $0xf8] sm:$0xff]
    %v1790 = vld [vmem:[%s10 + $0x100] sm:$0xff]
    %v1791 = vld [vmem:[%s10 + $0x108] sm:$0xff]
    %v1792 = vld [vmem:[%s10 + $0x110] sm:$0xff]
    %v1793 = vld [vmem:[%s10 + $0x118] sm:$0xff]
    %v1794 = vld [vmem:[%s10 + $0x120] sm:$0xff]
    %v1795 = vld [vmem:[%s10 + $0x128] sm:$0xff]
    %v1796 = vld [vmem:[%s10 + $0x130] sm:$0xff]
    %v1797 = vld [vmem:[%s10 + $0x138] sm:$0xff]
    %v1798 = vld [vmem:[%s10 + $0x140] sm:$0xff]
    %v1799 = vld [vmem:[%s10 + $0x148] sm:$0xff]
    %v1800 = vld [vmem:[%s10 + $0x150] sm:$0xff]
    %v1801 = vld [vmem:[%s10 + $0x158] sm:$0xff]
    %v1802 = vld [vmem:[%s10 + $0x160] sm:$0xff]
    %v1803 = vld [vmem:[%s10 + $0x168] sm:$0xff]
    %v1804 = vld [vmem:[%s10 + $0x170] sm:$0xff]
    %v1805 = vld [vmem:[%s10 + $0x178] sm:$0xff]
    %v1806 = vld [vmem:[%s10 + $0x180] sm:$0xff]
    %v1807 = vld [vmem:[%s10 + $0x188] sm:$0xff]
    %v1808 = vld [vmem:[%s10 + $0x190] sm:$0xff]
    %v1809 = vld [vmem:[%s10 + $0x198] sm:$0xff]
    %v1810 = vld [vmem:[%s10 + $0x1a0] sm:$0xff]
    %v1811 = vld [vmem:[%s10 + $0x1a8] sm:$0xff]
    %v1812 = vld [vmem:[%s10 + $0x1b0] sm:$0xff]
    %v1813 = vld [vmem:[%s10 + $0x1b8] sm:$0xff]
    %v1814 = vld [vmem:[%s10 + $0x1c0] sm:$0xff]
    %v1815 = vld [vmem:[%s10 + $0x1c8] sm:$0xff]
    %v1816 = vld [vmem:[%s10 + $0x1d0] sm:$0xff]
    %v1817 = vld [vmem:[%s10 + $0x1d8] sm:$0xff]
    %v1818 = vld [vmem:[%s10 + $0x1e0] sm:$0xff]
    %v1819 = vld [vmem:[%s10 + $0x1e8] sm:$0xff]
    %v1820 = vld [vmem:[%s10 + $0x1f0] sm:$0xff]
    %v1821 = vld [vmem:[%s10 + $0x1f8] sm:$0xff]
    %v1822 = vld [vmem:[%s10 + $0x200] sm:$0xff]
    %v1823 = vld [vmem:[%s10 + $0x208] sm:$0xff]
    %v1824 = vld [vmem:[%s10 + $0x210] sm:$0xff]
    %v1825 = vld [vmem:[%s10 + $0x218] sm:$0xff]
    %v1826 = vld [vmem:[%s10 + $0x220] sm:$0xff]
    %v1827 = vld [vmem:[%s10 + $0x228] sm:$0xff]
    %v1828 = vld [vmem:[%s10 + $0x230] sm:$0xff]
    %v1829 = vld [vmem:[%s10 + $0x238] sm:$0xff]
    %v1830 = vld [vmem:[%s10 + $0x240] sm:$0xff]
    %v1831 = vld [vmem:[%s10 + $0x248] sm:$0xff]
    %v1832 = vld [vmem:[%s10 + $0x250] sm:$0xff]
    %v1833 = vld [vmem:[%s10 + $0x258] sm:$0xff]
    %v1834 = vld [vmem:[%s10 + $0x260] sm:$0xff]
    %v1835 = vld [vmem:[%s10 + $0x268] sm:$0xff]
    %v1836 = vld [vmem:[%s10 + $0x270] sm:$0xff]
    %v1837 = vld [vmem:[%s10 + $0x278] sm:$0xff]
    %v1838 = vld [vmem:[%s10 + $0x280] sm:$0xff]
    %v1839 = vld [vmem:[%s10 + $0x288] sm:$0xff]
    %v1840 = vld [vmem:[%s10 + $0x290] sm:$0xff]
    %v1841 = vld [vmem:[%s10 + $0x298] sm:$0xff]
    %v1842 = vld [vmem:[%s10 + $0x2a0] sm:$0xff]
    %v1843 = vld [vmem:[%s10 + $0x2a8] sm:$0xff]
    %v1844 = vld [vmem:[%s10 + $0x2b0] sm:$0xff]
    %v1845 = vld [vmem:[%s10 + $0x2b8] sm:$0xff]
    %v1846 = vld [vmem:[%s10 + $0x2c0] sm:$0xff]
    %v1847 = vld [vmem:[%s10 + $0x2c8] sm:$0xff]
    %v1848 = vld [vmem:[%s10 + $0x2d0] sm:$0xff]
    %v1849 = vld [vmem:[%s10 + $0x2d8] sm:$0xff]
    %v1850 = vld [vmem:[%s10 + $0x2e0] sm:$0xff]
    %v1851 = vld [vmem:[%s10 + $0x2e8] sm:$0xff]
    %v1852 = vld [vmem:[%s10 + $0x2f0] sm:$0xff]
    %v1853 = vld [vmem:[%s10 + $0x2f8] sm:$0xff]
    %v1854 = vld [vmem:[#allocation7] sm:$0x3]
    %v1856 = vlaneseq
    %v1857 = vshrl.u32 %v1856, 7
    %v1858 = vsub.s32 0, %v1857
    %v1859 = vrot.slane %v1854, %v1858
    %v1860 = vlaneseq
    %v1861 = vshrl.u32 %v1860, 7
    %v1862 = vsub.s32 1, %v1861
    %v1863 = vrot.slane %v1854, %v1862
    %v1962 = vunpack.c.l.b16 %v1758
    %v1963 = vunpack.c.h.b16 %v1758
    %v1964 = vunpack.c.l.b16 %v1759
    %v1965 = vunpack.c.h.b16 %v1759
    %v1966 = vunpack.c.l.b16 %v1760
    %v1967 = vunpack.c.h.b16 %v1760
    %v1968 = vunpack.c.l.b16 %v1761
    %v1969 = vunpack.c.h.b16 %v1761
    %v1970 = vunpack.c.l.b16 %v1762
    %v1971 = vunpack.c.h.b16 %v1762
    %v1972 = vunpack.c.l.b16 %v1763
    %v1973 = vunpack.c.h.b16 %v1763
    %v1974 = vunpack.c.l.b16 %v1764
    %v1975 = vunpack.c.h.b16 %v1764
    %v1976 = vunpack.c.l.b16 %v1765
    %v1977 = vunpack.c.h.b16 %v1765
    %v1978 = vunpack.c.l.b16 %v1766
    %v1979 = vunpack.c.h.b16 %v1766
    %v1980 = vunpack.c.l.b16 %v1767
    %v1981 = vunpack.c.h.b16 %v1767
    %v1982 = vunpack.c.l.b16 %v1768
    %v1983 = vunpack.c.h.b16 %v1768
    %v1984 = vunpack.c.l.b16 %v1769
    %v1985 = vunpack.c.h.b16 %v1769
    %v1986 = vunpack.c.l.b16 %v1770
    %v1987 = vunpack.c.h.b16 %v1770
    %v1988 = vunpack.c.l.b16 %v1771
    %v1989 = vunpack.c.h.b16 %v1771
    %v1990 = vunpack.c.l.b16 %v1772
    %v1991 = vunpack.c.h.b16 %v1772
    %v1992 = vunpack.c.l.b16 %v1773
    %v1993 = vunpack.c.h.b16 %v1773
    %v1994 = vunpack.c.l.b16 %v1774
    %v1995 = vunpack.c.h.b16 %v1774
    %v1996 = vunpack.c.l.b16 %v1775
    %v1997 = vunpack.c.h.b16 %v1775
    %v1998 = vunpack.c.l.b16 %v1776
    %v1999 = vunpack.c.h.b16 %v1776
    %v2000 = vunpack.c.l.b16 %v1777
    %v2001 = vunpack.c.h.b16 %v1777
    %v2002 = vunpack.c.l.b16 %v1778
    %v2003 = vunpack.c.h.b16 %v1778
    %v2004 = vunpack.c.l.b16 %v1779
    %v2005 = vunpack.c.h.b16 %v1779
    %v2006 = vunpack.c.l.b16 %v1780
    %v2007 = vunpack.c.h.b16 %v1780
    %v2008 = vunpack.c.l.b16 %v1781
    %v2009 = vunpack.c.h.b16 %v1781
    %v2010 = vunpack.c.l.b16 %v1782
    %v2011 = vunpack.c.h.b16 %v1782
    %v2012 = vunpack.c.l.b16 %v1783
    %v2013 = vunpack.c.h.b16 %v1783
    %v2014 = vunpack.c.l.b16 %v1784
    %v2015 = vunpack.c.h.b16 %v1784
    %v2016 = vunpack.c.l.b16 %v1785
    %v2017 = vunpack.c.h.b16 %v1785
    %v2018 = vunpack.c.l.b16 %v1786
    %v2019 = vunpack.c.h.b16 %v1786
    %v2020 = vunpack.c.l.b16 %v1787
    %v2021 = vunpack.c.h.b16 %v1787
    %v2022 = vunpack.c.l.b16 %v1788
    %v2023 = vunpack.c.h.b16 %v1788
    %v2024 = vunpack.c.l.b16 %v1789
    %v2025 = vunpack.c.h.b16 %v1789
    %v2026 = vunpack.c.l.b16 %v1790
    %v2027 = vunpack.c.h.b16 %v1790
    %v2028 = vunpack.c.l.b16 %v1791
    %v2029 = vunpack.c.h.b16 %v1791
    %v2030 = vunpack.c.l.b16 %v1792
    %v2031 = vunpack.c.h.b16 %v1792
    %v2032 = vunpack.c.l.b16 %v1793
    %v2033 = vunpack.c.h.b16 %v1793
    %v2034 = vunpack.c.l.b16 %v1794
    %v2035 = vunpack.c.h.b16 %v1794
    %v2036 = vunpack.c.l.b16 %v1795
    %v2037 = vunpack.c.h.b16 %v1795
    %v2038 = vunpack.c.l.b16 %v1796
    %v2039 = vunpack.c.h.b16 %v1796
    %v2040 = vunpack.c.l.b16 %v1797
    %v2041 = vunpack.c.h.b16 %v1797
    %v2042 = vunpack.c.l.b16 %v1798
    %v2043 = vunpack.c.h.b16 %v1798
    %v2044 = vunpack.c.l.b16 %v1799
    %v2045 = vunpack.c.h.b16 %v1799
    %v2046 = vunpack.c.l.b16 %v1800
    %v2047 = vunpack.c.h.b16 %v1800
    %v2048 = vunpack.c.l.b16 %v1801
    %v2049 = vunpack.c.h.b16 %v1801
    %v2050 = vunpack.c.l.b16 %v1802
    %v2051 = vunpack.c.h.b16 %v1802
    %v2052 = vunpack.c.l.b16 %v1803
    %v2053 = vunpack.c.h.b16 %v1803
    %v2054 = vunpack.c.l.b16 %v1804
    %v2055 = vunpack.c.h.b16 %v1804
    %v2056 = vunpack.c.l.b16 %v1805
    %v2057 = vunpack.c.h.b16 %v1805
    %v2058 = vunpack.c.l.b16 %v1806
    %v2059 = vunpack.c.h.b16 %v1806
    %v2060 = vunpack.c.l.b16 %v1807
    %v2061 = vunpack.c.h.b16 %v1807
    %v2062 = vunpack.c.l.b16 %v1808
    %v2063 = vunpack.c.h.b16 %v1808
    %v2064 = vunpack.c.l.b16 %v1809
    %v2065 = vunpack.c.h.b16 %v1809
    %v2066 = vunpack.c.l.b16 %v1810
    %v2067 = vunpack.c.h.b16 %v1810
    %v2068 = vunpack.c.l.b16 %v1811
    %v2069 = vunpack.c.h.b16 %v1811
    %v2070 = vunpack.c.l.b16 %v1812
    %v2071 = vunpack.c.h.b16 %v1812
    %v2072 = vunpack.c.l.b16 %v1813
    %v2073 = vunpack.c.h.b16 %v1813
    %v2074 = vunpack.c.l.b16 %v1814
    %v2075 = vunpack.c.h.b16 %v1814
    %v2076 = vunpack.c.l.b16 %v1815
    %v2077 = vunpack.c.h.b16 %v1815
    %v2078 = vunpack.c.l.b16 %v1816
    %v2079 = vunpack.c.h.b16 %v1816
    %v2080 = vunpack.c.l.b16 %v1817
    %v2081 = vunpack.c.h.b16 %v1817
    %v2082 = vunpack.c.l.b16 %v1818
    %v2083 = vunpack.c.h.b16 %v1818
    %v2084 = vunpack.c.l.b16 %v1819
    %v2085 = vunpack.c.h.b16 %v1819
    %v2086 = vunpack.c.l.b16 %v1820
    %v2087 = vunpack.c.h.b16 %v1820
    %v2088 = vunpack.c.l.b16 %v1821
    %v2089 = vunpack.c.h.b16 %v1821
    %v2090 = vunpack.c.l.b16 %v1822
    %v2091 = vunpack.c.h.b16 %v1822
    %v2092 = vunpack.c.l.b16 %v1823
    %v2093 = vunpack.c.h.b16 %v1823
    %v2094 = vunpack.c.l.b16 %v1824
    %v2095 = vunpack.c.h.b16 %v1824
    %v2096 = vunpack.c.l.b16 %v1825
    %v2097 = vunpack.c.h.b16 %v1825
    %v2098 = vunpack.c.l.b16 %v1826
    %v2099 = vunpack.c.h.b16 %v1826
    %v2100 = vunpack.c.l.b16 %v1827
    %v2101 = vunpack.c.h.b16 %v1827
    %v2102 = vunpack.c.l.b16 %v1828
    %v2103 = vunpack.c.h.b16 %v1828
    %v2104 = vunpack.c.l.b16 %v1829
    %v2105 = vunpack.c.h.b16 %v1829
    %v2106 = vunpack.c.l.b16 %v1830
    %v2107 = vunpack.c.h.b16 %v1830
    %v2108 = vunpack.c.l.b16 %v1831
    %v2109 = vunpack.c.h.b16 %v1831
    %v2110 = vunpack.c.l.b16 %v1832
    %v2111 = vunpack.c.h.b16 %v1832
    %v2112 = vunpack.c.l.b16 %v1833
    %v2113 = vunpack.c.h.b16 %v1833
    %v2114 = vunpack.c.l.b16 %v1834
    %v2115 = vunpack.c.h.b16 %v1834
    %v2116 = vunpack.c.l.b16 %v1835
    %v2117 = vunpack.c.h.b16 %v1835
    %v2118 = vunpack.c.l.b16 %v1836
    %v2119 = vunpack.c.h.b16 %v1836
    %v2120 = vunpack.c.l.b16 %v1837
    %v2121 = vunpack.c.h.b16 %v1837
    %v2122 = vunpack.c.l.b16 %v1838
    %v2123 = vunpack.c.h.b16 %v1838
    %v2124 = vunpack.c.l.b16 %v1839
    %v2125 = vunpack.c.h.b16 %v1839
    %v2126 = vunpack.c.l.b16 %v1840
    %v2127 = vunpack.c.h.b16 %v1840
    %v2128 = vunpack.c.l.b16 %v1841
    %v2129 = vunpack.c.h.b16 %v1841
    %v2130 = vunpack.c.l.b16 %v1842
    %v2131 = vunpack.c.h.b16 %v1842
    %v2132 = vunpack.c.l.b16 %v1843
    %v2133 = vunpack.c.h.b16 %v1843
    %v2134 = vunpack.c.l.b16 %v1844
    %v2135 = vunpack.c.h.b16 %v1844
    %v2136 = vunpack.c.l.b16 %v1845
    %v2137 = vunpack.c.h.b16 %v1845
    %v2138 = vunpack.c.l.b16 %v1846
    %v2139 = vunpack.c.h.b16 %v1846
    %v2140 = vunpack.c.l.b16 %v1847
    %v2141 = vunpack.c.h.b16 %v1847
    %v2142 = vunpack.c.l.b16 %v1848
    %v2143 = vunpack.c.h.b16 %v1848
    %v2144 = vunpack.c.l.b16 %v1849
    %v2145 = vunpack.c.h.b16 %v1849
    %v2146 = vunpack.c.l.b16 %v1850
    %v2147 = vunpack.c.h.b16 %v1850
    %v2148 = vunpack.c.l.b16 %v1851
    %v2149 = vunpack.c.h.b16 %v1851
    %v2150 = vunpack.c.l.b16 %v1852
    %v2151 = vunpack.c.h.b16 %v1852
    %v2152 = vunpack.c.l.b16 %v1853
    %v2153 = vunpack.c.h.b16 %v1853
    %v2154 = vpack.c.b16 %v1964, %v1962
    %v2155 = vpack.c.b16 %v1965, %v1963
    %v2156 = vpack.c.b16 %v1968, %v1966
    %v2157 = vpack.c.b16 %v1969, %v1967
    %v2158 = vpack.c.b16 %v1972, %v1970
    %v2159 = vpack.c.b16 %v1973, %v1971
    %v2160 = vpack.c.b16 %v1976, %v1974
    %v2161 = vpack.c.b16 %v1977, %v1975
    %v2162 = vpack.c.b16 %v1980, %v1978
    %v2163 = vpack.c.b16 %v1981, %v1979
    %v2164 = vpack.c.b16 %v1984, %v1982
    %v2165 = vpack.c.b16 %v1985, %v1983
    %v2166 = vpack.c.b16 %v1988, %v1986
    %v2167 = vpack.c.b16 %v1989, %v1987
    %v2168 = vpack.c.b16 %v1992, %v1990
    %v2169 = vpack.c.b16 %v1993, %v1991
    %v2170 = vpack.c.b16 %v1996, %v1994
    %v2171 = vpack.c.b16 %v1997, %v1995
    %v2172 = vpack.c.b16 %v2000, %v1998
    %v2173 = vpack.c.b16 %v2001, %v1999
    %v2174 = vpack.c.b16 %v2004, %v2002
    %v2175 = vpack.c.b16 %v2005, %v2003
    %v2176 = vpack.c.b16 %v2008, %v2006
    %v2177 = vpack.c.b16 %v2009, %v2007
    %v2178 = vpack.c.b16 %v2012, %v2010
    %v2179 = vpack.c.b16 %v2013, %v2011
    %v2180 = vpack.c.b16 %v2016, %v2014
    %v2181 = vpack.c.b16 %v2017, %v2015
    %v2182 = vpack.c.b16 %v2020, %v2018
    %v2183 = vpack.c.b16 %v2021, %v2019
    %v2184 = vpack.c.b16 %v2024, %v2022
    %v2185 = vpack.c.b16 %v2025, %v2023
    %v2186 = vpack.c.b16 %v2028, %v2026
    %v2187 = vpack.c.b16 %v2029, %v2027
    %v2188 = vpack.c.b16 %v2032, %v2030
    %v2189 = vpack.c.b16 %v2033, %v2031
    %v2190 = vpack.c.b16 %v2036, %v2034
    %v2191 = vpack.c.b16 %v2037, %v2035
    %v2192 = vpack.c.b16 %v2040, %v2038
    %v2193 = vpack.c.b16 %v2041, %v2039
    %v2194 = vpack.c.b16 %v2044, %v2042
    %v2195 = vpack.c.b16 %v2045, %v2043
    %v2196 = vpack.c.b16 %v2048, %v2046
    %v2197 = vpack.c.b16 %v2049, %v2047
    %v2198 = vpack.c.b16 %v2052, %v2050
    %v2199 = vpack.c.b16 %v2053, %v2051
    %v2200 = vpack.c.b16 %v2056, %v2054
    %v2201 = vpack.c.b16 %v2057, %v2055
    %v2202 = vpack.c.b16 %v2060, %v2058
    %v2203 = vpack.c.b16 %v2061, %v2059
    %v2204 = vpack.c.b16 %v2064, %v2062
    %v2205 = vpack.c.b16 %v2065, %v2063
    %v2206 = vpack.c.b16 %v2068, %v2066
    %v2207 = vpack.c.b16 %v2069, %v2067
    %v2208 = vpack.c.b16 %v2072, %v2070
    %v2209 = vpack.c.b16 %v2073, %v2071
    %v2210 = vpack.c.b16 %v2076, %v2074
    %v2211 = vpack.c.b16 %v2077, %v2075
    %v2212 = vpack.c.b16 %v2080, %v2078
    %v2213 = vpack.c.b16 %v2081, %v2079
    %v2214 = vpack.c.b16 %v2084, %v2082
    %v2215 = vpack.c.b16 %v2085, %v2083
    %v2216 = vpack.c.b16 %v2088, %v2086
    %v2217 = vpack.c.b16 %v2089, %v2087
    %v2218 = vpack.c.b16 %v2092, %v2090
    %v2219 = vpack.c.b16 %v2093, %v2091
    %v2220 = vpack.c.b16 %v2096, %v2094
    %v2221 = vpack.c.b16 %v2097, %v2095
    %v2222 = vpack.c.b16 %v2100, %v2098
    %v2223 = vpack.c.b16 %v2101, %v2099
    %v2224 = vpack.c.b16 %v2104, %v2102
    %v2225 = vpack.c.b16 %v2105, %v2103
    %v2226 = vpack.c.b16 %v2108, %v2106
    %v2227 = vpack.c.b16 %v2109, %v2107
    %v2228 = vpack.c.b16 %v2112, %v2110
    %v2229 = vpack.c.b16 %v2113, %v2111
    %v2230 = vpack.c.b16 %v2116, %v2114
    %v2231 = vpack.c.b16 %v2117, %v2115
    %v2232 = vpack.c.b16 %v2120, %v2118
    %v2233 = vpack.c.b16 %v2121, %v2119
    %v2234 = vpack.c.b16 %v2124, %v2122
    %v2235 = vpack.c.b16 %v2125, %v2123
    %v2236 = vpack.c.b16 %v2128, %v2126
    %v2237 = vpack.c.b16 %v2129, %v2127
    %v2238 = vpack.c.b16 %v2132, %v2130
    %v2239 = vpack.c.b16 %v2133, %v2131
    %v2240 = vpack.c.b16 %v2136, %v2134
    %v2241 = vpack.c.b16 %v2137, %v2135
    %v2242 = vpack.c.b16 %v2140, %v2138
    %v2243 = vpack.c.b16 %v2141, %v2139
    %v2244 = vpack.c.b16 %v2144, %v2142
    %v2245 = vpack.c.b16 %v2145, %v2143
    %v2246 = vpack.c.b16 %v2148, %v2146
    %v2247 = vpack.c.b16 %v2149, %v2147
    %v2248 = vpack.c.b16 %v2152, %v2150
    %v2249 = vpack.c.b16 %v2153, %v2151
    %2346 = vmatprep.subr.bf16.mxu0 %v2155
    %2347 = vmatpush1.bf16.msra.mxu0 %v2154
    %2348 = vmatprep.subr.bf16.mxu0 %v2157
    %2349 = vmatpush1.bf16.msra.mxu0 %v2156
    %2350 = vmatprep.subr.bf16.mxu0 %v2159
    %2351 = vmatpush1.bf16.msra.mxu0 %v2158
    %2352 = vmatprep.subr.bf16.mxu0 %v2161
    %2353 = vmatpush1.bf16.msra.mxu0 %v2160
    %2354 = vmatprep.subr.bf16.mxu0 %v2163
    %2355 = vmatpush1.bf16.msra.mxu0 %v2162
    %2356 = vmatprep.subr.bf16.mxu0 %v2165
    %2357 = vmatpush1.bf16.msra.mxu0 %v2164
    %2358 = vmatprep.subr.bf16.mxu0 %v2167
    %2359 = vmatpush1.bf16.msra.mxu0 %v2166
    %2360 = vmatprep.subr.bf16.mxu0 %v2169
    %2361 = vmatpush1.bf16.msra.mxu0 %v2168
    %2362 = vmatprep.subr.bf16.mxu0 %v2171
    %2363 = vmatpush1.bf16.msra.mxu0 %v2170
    %2364 = vmatprep.subr.bf16.mxu0 %v2173
    %2365 = vmatpush1.bf16.msra.mxu0 %v2172
    %2366 = vmatprep.subr.bf16.mxu0 %v2175
    %2367 = vmatpush1.bf16.msra.mxu0 %v2174
    %2368 = vmatprep.subr.bf16.mxu0 %v2177
    %2369 = vmatpush1.bf16.msra.mxu0 %v2176
    %2370 = vmatprep.subr.bf16.mxu0 %v2179
    %2371 = vmatpush1.bf16.msra.mxu0 %v2178
    %2372 = vmatprep.subr.bf16.mxu0 %v2181
    %2373 = vmatpush1.bf16.msra.mxu0 %v2180
    %2374 = vmatprep.subr.bf16.mxu0 %v2183
    %2375 = vmatpush1.bf16.msra.mxu0 %v2182
    %2376 = vmatprep.subr.bf16.mxu0 %v2185
    %2377 = vmatpush1.bf16.msra.mxu0 %v2184
    %2378 = vmatprep.mubr.bf16.mxu0 %v1753
    %2379 = vmatmul.mubr.bf16.gmra.mrb[0].mxu0 %v1752
    %v2380 = vpop.f32.mrb[0].mxu0
    %v2381 = vadd.f32 %v1859, %v2380
    %v2382 = vpop.f32.mrb[0].mxu0
    %v2383 = vadd.f32 %v1863, %v2382
    %v2384 = vpop.f32.mrb[0].mxu0
    %v2385 = vadd.f32 %v1859, %v2384
    %v2386 = vpop.f32.mrb[0].mxu0
    %v2387 = vadd.f32 %v1863, %v2386
    %2388 = vdwg.mxu0
    %2389 = vmatprep.subr.bf16.mxu0 %v2187
    %2390 = vmatpush1.bf16.msra.mxu0 %v2186
    %2391 = vmatprep.subr.bf16.mxu0 %v2189
    %2392 = vmatpush1.bf16.msra.mxu0 %v2188
    %2393 = vmatprep.subr.bf16.mxu0 %v2191
    %2394 = vmatpush1.bf16.msra.mxu0 %v2190
    %2395 = vmatprep.subr.bf16.mxu0 %v2193
    %2396 = vmatpush1.bf16.msra.mxu0 %v2192
    %2397 = vmatprep.subr.bf16.mxu0 %v2195
    %2398 = vmatpush1.bf16.msra.mxu0 %v2194
    %2399 = vmatprep.subr.bf16.mxu0 %v2197
    %2400 = vmatpush1.bf16.msra.mxu0 %v2196
    %2401 = vmatprep.subr.bf16.mxu0 %v2199
    %2402 = vmatpush1.bf16.msra.mxu0 %v2198
    %2403 = vmatprep.subr.bf16.mxu0 %v2201
    %2404 = vmatpush1.bf16.msra.mxu0 %v2200
    %2405 = vmatprep.subr.bf16.mxu0 %v2203
    %2406 = vmatpush1.bf16.msra.mxu0 %v2202
    %2407 = vmatprep.subr.bf16.mxu0 %v2205
    %2408 = vmatpush1.bf16.msra.mxu0 %v2204
    %2409 = vmatprep.subr.bf16.mxu0 %v2207
    %2410 = vmatpush1.bf16.msra.mxu0 %v2206
    %2411 = vmatprep.subr.bf16.mxu0 %v2209
    %2412 = vmatpush1.bf16.msra.mxu0 %v2208
    %2413 = vmatprep.subr.bf16.mxu0 %v2211
    %2414 = vmatpush1.bf16.msra.mxu0 %v2210
    %2415 = vmatprep.subr.bf16.mxu0 %v2213
    %2416 = vmatpush1.bf16.msra.mxu0 %v2212
    %2417 = vmatprep.subr.bf16.mxu0 %v2215
    %2418 = vmatpush1.bf16.msra.mxu0 %v2214
    %2419 = vmatprep.subr.bf16.mxu0 %v2217
    %2420 = vmatpush1.bf16.msra.mxu0 %v2216
    %2421 = vmatprep.mubr.bf16.mxu0 %v1755
    %2422 = vmatmul.mubr.bf16.gmra.mrb[0].mxu0 %v1754
    %v2423 = vpop.f32.mrb[0].mxu0
    %v2424 = vadd.f32 %v2381, %v2423
    %v2425 = vpop.f32.mrb[0].mxu0
    %v2426 = vadd.f32 %v2383, %v2425
    %v2427 = vpop.f32.mrb[0].mxu0
    %v2428 = vadd.f32 %v2385, %v2427
    %v2429 = vpop.f32.mrb[0].mxu0
    %v2430 = vadd.f32 %v2387, %v2429
    %2431 = vdwg.mxu0
    %2432 = vmatprep.subr.bf16.mxu0 %v2219
    %2433 = vmatpush1.bf16.msra.mxu0 %v2218
    %2434 = vmatprep.subr.bf16.mxu0 %v2221
    %2435 = vmatpush1.bf16.msra.mxu0 %v2220
    %2436 = vmatprep.subr.bf16.mxu0 %v2223
    %2437 = vmatpush1.bf16.msra.mxu0 %v2222
    %2438 = vmatprep.subr.bf16.mxu0 %v2225
    %2439 = vmatpush1.bf16.msra.mxu0 %v2224
    %2440 = vmatprep.subr.bf16.mxu0 %v2227
    %2441 = vmatpush1.bf16.msra.mxu0 %v2226
    %2442 = vmatprep.subr.bf16.mxu0 %v2229
    %2443 = vmatpush1.bf16.msra.mxu0 %v2228
    %2444 = vmatprep.subr.bf16.mxu0 %v2231
    %2445 = vmatpush1.bf16.msra.mxu0 %v2230
    %2446 = vmatprep.subr.bf16.mxu0 %v2233
    %2447 = vmatpush1.bf16.msra.mxu0 %v2232
    %2448 = vmatprep.subr.bf16.mxu0 %v2235
    %2449 = vmatpush1.bf16.msra.mxu0 %v2234
    %2450 = vmatprep.subr.bf16.mxu0 %v2237
    %2451 = vmatpush1.bf16.msra.mxu0 %v2236
    %2452 = vmatprep.subr.bf16.mxu0 %v2239
    %2453 = vmatpush1.bf16.msra.mxu0 %v2238
    %2454 = vmatprep.subr.bf16.mxu0 %v2241
    %2455 = vmatpush1.bf16.msra.mxu0 %v2240
    %2456 = vmatprep.subr.bf16.mxu0 %v2243
    %2457 = vmatpush1.bf16.msra.mxu0 %v2242
    %2458 = vmatprep.subr.bf16.mxu0 %v2245
    %2459 = vmatpush1.bf16.msra.mxu0 %v2244
    %2460 = vmatprep.subr.bf16.mxu0 %v2247
    %2461 = vmatpush1.bf16.msra.mxu0 %v2246
    %2462 = vmatprep.subr.bf16.mxu0 %v2249
    %2463 = vmatpush1.bf16.msra.mxu0 %v2248
    %2464 = vmatprep.mubr.bf16.mxu0 %v1757
    %2465 = vmatmul.mubr.bf16.gmra.mrb[0].mxu0 %v1756
    %v2466 = vpop.f32.mrb[0].mxu0
    %v2467 = vadd.f32 %v2424, %v2466
    %v2468 = vpop.f32.mrb[0].mxu0
    %v2469 = vadd.f32 %v2426, %v2468
    %v2470 = vpop.f32.mrb[0].mxu0
    %v2471 = vadd.f32 %v2428, %v2470
    %v2472 = vpop.f32.mrb[0].mxu0
    %v2473 = vadd.f32 %v2430, %v2472
    %2474 = vdwg.mxu0
    %2476 = vset.pattern.permute.xlu0 0
    %2477 = vperm.xlu0 %2476, %v1726
    %v2478 = vpop.permute.xlu0 %2477
    %2481 = vset.pattern.permute.xlu0 0
    %2482 = vperm.xlu0 %2481, %v1727
    %v2483 = vpop.permute.xlu0 %2482
    %v2485 = vmul.f32 %v778, %v2478
    %v2486 = vmul.f32 %v779, %v2483
    %v2488 = vsel %vm838, %v2486, 0
    %2490 = vmatprep.subr.mxu0 0.0
    %2491 = vmatpush1.msra.mxu0 %v2485
    %2492 = vmatprep.subr.mxu0 0.0
    %2493 = vmatpush1.msra.mxu0 %v2488
    %2494 = vmatprep.subr.mxu0 0.0
    %2495 = vmatpush1.msra.mxu0 0.0
    %2496 = vmatprep.subr.mxu0 0.0
    %2497 = vmatpush1.msra.mxu0 0.0
    %2498 = vmatprep.subr.mxu0 0.0
    %2499 = vmatpush1.msra.mxu0 0.0
    %2500 = vmatprep.subr.mxu0 0.0
    %2501 = vmatpush1.msra.mxu0 0.0
    %2502 = vmatprep.subr.mxu0 0.0
    %2503 = vmatpush1.msra.mxu0 0.0
    %2504 = vmatprep.subr.mxu0 0.0
    %2505 = vmatpush1.msra.mxu0 0.0
    %2506 = vmatprep.subr.mxu0 0.0
    %2507 = vmatpush1.msra.mxu0 0.0
    %2508 = vmatprep.subr.mxu0 0.0
    %2509 = vmatpush1.msra.mxu0 0.0
    %2510 = vmatprep.subr.mxu0 0.0
    %2511 = vmatpush1.msra.mxu0 0.0
    %2512 = vmatprep.subr.mxu0 0.0
    %2513 = vmatpush1.msra.mxu0 0.0
    %2514 = vmatprep.subr.mxu0 0.0
    %2515 = vmatpush1.msra.mxu0 0.0
    %2516 = vmatprep.subr.mxu0 0.0
    %2517 = vmatpush1.msra.mxu0 0.0
    %2518 = vmatprep.subr.mxu0 0.0
    %2519 = vmatpush1.msra.mxu0 0.0
    %2520 = vmatprep.subr.mxu0 0.0
    %2521 = vmatpush1.msra.mxu0 0.0
    %2522 = vmatprep.subr.mxu0 0.0
    %2523 = vmatpush1.msra.mxu0 0.0
    %2524 = vmatprep.subr.mxu0 0.0
    %2525 = vmatpush1.msra.mxu0 0.0
    %2526 = vmatprep.subr.mxu0 0.0
    %2527 = vmatpush1.msra.mxu0 0.0
    %2528 = vmatprep.subr.mxu0 0.0
    %2529 = vmatpush1.msra.mxu0 0.0
    %2530 = vmatprep.subr.mxu0 0.0
    %2531 = vmatpush1.msra.mxu0 0.0
    %2532 = vmatprep.subr.mxu0 0.0
    %2533 = vmatpush1.msra.mxu0 0.0
    %2534 = vmatprep.subr.mxu0 0.0
    %2535 = vmatpush1.msra.mxu0 0.0
    %2536 = vmatprep.subr.mxu0 0.0
    %2537 = vmatpush1.msra.mxu0 0.0
    %2538 = vmatprep.subr.mxu0 0.0
    %2539 = vmatpush1.msra.mxu0 0.0
    %2540 = vmatprep.subr.mxu0 0.0
    %2541 = vmatpush1.msra.mxu0 0.0
    %2542 = vmatprep.subr.mxu0 0.0
    %2543 = vmatpush1.msra.mxu0 0.0
    %2544 = vmatprep.subr.mxu0 0.0
    %2545 = vmatpush1.msra.mxu0 0.0
    %2546 = vmatprep.subr.mxu0 0.0
    %2547 = vmatpush1.msra.mxu0 0.0
    %2548 = vmatprep.subr.mxu0 0.0
    %2549 = vmatpush1.msra.mxu0 0.0
    %2550 = vmatprep.subr.mxu0 0.0
    %2551 = vmatpush1.msra.mxu0 0.0
    %2552 = vmatprep.subr.mxu0 0.0
    %2553 = vmatpush1.msra.mxu0 0.0
    %2554 = vmatprep.mubr.f32.mxu0 0.0
    %2555 = vmatmul.mubr.f32.gmra.mrb[0].mxu0 %v1301
    %v2556 = vpop.f32.mrb[0].mxu0
    %v2557 = vadd.f32 0.0, %v2556
    %v2558 = vpop.f32.mrb[0].mxu0
    %2559 = vmatprep.mubr.f32.mxu0 0.0
    %2560 = vmatmul.mubr.f32.gmra.mrb[0].mxu0 %v1301
    %v2561 = vpop.f32.mrb[0].mxu0
    %v2562 = vadd.f32 0.0, %v2561
    %v2563 = vpop.f32.mrb[0].mxu0
    %2564 = vdwg.mxu0
    %v2565 = vmul.f32 %v99, %v2478
    %v2566 = vmul.f32 %v100, %v2483
    %v2567 = vmul.f32 %v2565, %v2557
    %v2568 = vmul.f32 %v2566, %v2562
    %v2569 = vmul.f32 %v2467, %v2478
    %v2570 = vmul.f32 %v2469, %v2478
    %v2571 = vmul.f32 %v2471, %v2483
    %v2572 = vmul.f32 %v2473, %v2483
    %v2573 = vsel %vm838, %v1727, 0
    %2575 = vmatprep.subr.mxu0 0.0
    %2576 = vmatpush1.msra.mxu0 %v1726
    %2577 = vmatprep.subr.mxu0 0.0
    %2578 = vmatpush1.msra.mxu0 %v2573
    %2579 = vmatprep.subr.mxu0 0.0
    %2580 = vmatpush1.msra.mxu0 0.0
    %2581 = vmatprep.subr.mxu0 0.0
    %2582 = vmatpush1.msra.mxu0 0.0
    %2583 = vmatprep.subr.mxu0 0.0
    %2584 = vmatpush1.msra.mxu0 0.0
    %2585 = vmatprep.subr.mxu0 0.0
    %2586 = vmatpush1.msra.mxu0 0.0
    %2587 = vmatprep.subr.mxu0 0.0
    %2588 = vmatpush1.msra.mxu0 0.0
    %2589 = vmatprep.subr.mxu0 0.0
    %2590 = vmatpush1.msra.mxu0 0.0
    %2591 = vmatprep.subr.mxu0 0.0
    %2592 = vmatpush1.msra.mxu0 0.0
    %2593 = vmatprep.subr.mxu0 0.0
    %2594 = vmatpush1.msra.mxu0 0.0
    %2595 = vmatprep.subr.mxu0 0.0
    %2596 = vmatpush1.msra.mxu0 0.0
    %2597 = vmatprep.subr.mxu0 0.0
    %2598 = vmatpush1.msra.mxu0 0.0
    %2599 = vmatprep.subr.mxu0 0.0
    %2600 = vmatpush1.msra.mxu0 0.0
    %2601 = vmatprep.subr.mxu0 0.0
    %2602 = vmatpush1.msra.mxu0 0.0
    %2603 = vmatprep.subr.mxu0 0.0
    %2604 = vmatpush1.msra.mxu0 0.0
    %2605 = vmatprep.subr.mxu0 0.0
    %2606 = vmatpush1.msra.mxu0 0.0
    %2607 = vmatprep.subr.mxu0 0.0
    %2608 = vmatpush1.msra.mxu0 0.0
    %2609 = vmatprep.subr.mxu0 0.0
    %2610 = vmatpush1.msra.mxu0 0.0
    %2611 = vmatprep.subr.mxu0 0.0
    %2612 = vmatpush1.msra.mxu0 0.0
    %2613 = vmatprep.subr.mxu0 0.0
    %2614 = vmatpush1.msra.mxu0 0.0
    %2615 = vmatprep.subr.mxu0 0.0
    %2616 = vmatpush1.msra.mxu0 0.0
    %2617 = vmatprep.subr.mxu0 0.0
    %2618 = vmatpush1.msra.mxu0 0.0
    %2619 = vmatprep.subr.mxu0 0.0
    %2620 = vmatpush1.msra.mxu0 0.0
    %2621 = vmatprep.subr.mxu0 0.0
    %2622 = vmatpush1.msra.mxu0 0.0
    %2623 = vmatprep.subr.mxu0 0.0
    %2624 = vmatpush1.msra.mxu0 0.0
    %2625 = vmatprep.subr.mxu0 0.0
    %2626 = vmatpush1.msra.mxu0 0.0
    %2627 = vmatprep.subr.mxu0 0.0
    %2628 = vmatpush1.msra.mxu0 0.0
    %2629 = vmatprep.subr.mxu0 0.0
    %2630 = vmatpush1.msra.mxu0 0.0
    %2631 = vmatprep.subr.mxu0 0.0
    %2632 = vmatpush1.msra.mxu0 0.0
    %2633 = vmatprep.subr.mxu0 0.0
    %2634 = vmatpush1.msra.mxu0 0.0
    %2635 = vmatprep.subr.mxu0 0.0
    %2636 = vmatpush1.msra.mxu0 0.0
    %2637 = vmatprep.subr.mxu0 0.0
    %2638 = vmatpush1.msra.mxu0 0.0
    %2639 = vmatprep.mubr.f32.mxu0 0.0
    %2640 = vmatmul.mubr.f32.gmra.mrb[0].mxu0 %v1382
    %v2641 = vpop.f32.mrb[0].mxu0
    %v2642 = vadd.f32 0.0, %v2641
    %v2643 = vpop.f32.mrb[0].mxu0
    %2644 = vdwg.mxu0
    %v2646 = vsel %vm838, %v2571, 0
    %v2649 = vsel %vm838, %v2572, 0
    %2651 = vmatprep.subr.mxu0 %v2570
    %2652 = vmatpush1.msra.mxu0 %v2569
    %2653 = vmatprep.subr.mxu0 %v2649
    %2654 = vmatpush1.msra.mxu0 %v2646
    %2655 = vmatprep.subr.mxu0 0.0
    %2656 = vmatpush1.msra.mxu0 0.0
    %2657 = vmatprep.subr.mxu0 0.0
    %2658 = vmatpush1.msra.mxu0 0.0
    %2659 = vmatprep.subr.mxu0 0.0
    %2660 = vmatpush1.msra.mxu0 0.0
    %2661 = vmatprep.subr.mxu0 0.0
    %2662 = vmatpush1.msra.mxu0 0.0
    %2663 = vmatprep.subr.mxu0 0.0
    %2664 = vmatpush1.msra.mxu0 0.0
    %2665 = vmatprep.subr.mxu0 0.0
    %2666 = vmatpush1.msra.mxu0 0.0
    %2667 = vmatprep.subr.mxu0 0.0
    %2668 = vmatpush1.msra.mxu0 0.0
    %2669 = vmatprep.subr.mxu0 0.0
    %2670 = vmatpush1.msra.mxu0 0.0
    %2671 = vmatprep.subr.mxu0 0.0
    %2672 = vmatpush1.msra.mxu0 0.0
    %2673 = vmatprep.subr.mxu0 0.0
    %2674 = vmatpush1.msra.mxu0 0.0
    %2675 = vmatprep.subr.mxu0 0.0
    %2676 = vmatpush1.msra.mxu0 0.0
    %2677 = vmatprep.subr.mxu0 0.0
    %2678 = vmatpush1.msra.mxu0 0.0
    %2679 = vmatprep.subr.mxu0 0.0
    %2680 = vmatpush1.msra.mxu0 0.0
    %2681 = vmatprep.subr.mxu0 0.0
    %2682 = vmatpush1.msra.mxu0 0.0
    %2683 = vmatprep.subr.mxu0 0.0
    %2684 = vmatpush1.msra.mxu0 0.0
    %2685 = vmatprep.subr.mxu0 0.0
    %2686 = vmatpush1.msra.mxu0 0.0
    %2687 = vmatprep.subr.mxu0 0.0
    %2688 = vmatpush1.msra.mxu0 0.0
    %2689 = vmatprep.subr.mxu0 0.0
    %2690 = vmatpush1.msra.mxu0 0.0
    %2691 = vmatprep.subr.mxu0 0.0
    %2692 = vmatpush1.msra.mxu0 0.0
    %2693 = vmatprep.subr.mxu0 0.0
    %2694 = vmatpush1.msra.mxu0 0.0
    %2695 = vmatprep.subr.mxu0 0.0
    %2696 = vmatpush1.msra.mxu0 0.0
    %2697 = vmatprep.subr.mxu0 0.0
    %2698 = vmatpush1.msra.mxu0 0.0
    %2699 = vmatprep.subr.mxu0 0.0
    %2700 = vmatpush1.msra.mxu0 0.0
    %2701 = vmatprep.subr.mxu0 0.0
    %2702 = vmatpush1.msra.mxu0 0.0
    %2703 = vmatprep.subr.mxu0 0.0
    %2704 = vmatpush1.msra.mxu0 0.0
    %2705 = vmatprep.subr.mxu0 0.0
    %2706 = vmatpush1.msra.mxu0 0.0
    %2707 = vmatprep.subr.mxu0 0.0
    %2708 = vmatpush1.msra.mxu0 0.0
    %2709 = vmatprep.subr.mxu0 0.0
    %2710 = vmatpush1.msra.mxu0 0.0
    %2711 = vmatprep.subr.mxu0 0.0
    %2712 = vmatpush1.msra.mxu0 0.0
    %2713 = vmatprep.subr.mxu0 0.0
    %2714 = vmatpush1.msra.mxu0 0.0
    %2715 = vmatprep.mubr.f32.mxu0 0.0
    %2716 = vmatmul.mubr.f32.gmra.mrb[0].mxu0 %v1382
    %v2717 = vpop.f32.mrb[0].mxu0
    %v2718 = vadd.f32 0.0, %v2717
    %v2719 = vpop.f32.mrb[0].mxu0
    %v2720 = vadd.f32 0.0, %v2719
    %2721 = vdwg.mxu0
    %v2722 = vrcp.pop %v2642
    %2724 = vset.pattern.permute.xlu0 0
    %2725 = vperm.xlu0 %2724, %v2722
    %v2726 = vpop.permute.xlu0 %2725
    %v2728 = vmul.f32 %v2718, %v2726
    %v2729 = vmul.f32 %v2720, %v2726
    %v2730 = vmul.f32 %v103, %v2478
    %v2731 = vmul.f32 %v104, %v2483
    %vm2732 = vcmp.gt.f32.partialorder %v2730, 0.0
    %vm2733 = vcmp.gt.f32.partialorder %v2731, 0.0
    %v2734 = vsel %vm2732, 1, 0
    %v2735 = vsel %vm2733, 1, 0
    %2736 = vset.pattern.permute.xlu0 0
    %2737 = vperm.xlu0 %2736, %v2734
    %v2738 = vpop.permute.xlu0 %2737
    %2739 = vset.pattern.permute.xlu0 0
    %2740 = vperm.xlu0 %2739, %v2735
    %v2741 = vpop.permute.xlu0 %2740
    %vm2742 = vcmp.eq.s32.totalorder %v2738, 1
    %vm2743 = vcmp.eq.s32.totalorder %v2741, 1
    %v2744 = vsel %vm2742, %v2467, -1e+30
    %v2745 = vsel %vm2742, %v2469, -1e+30
    %v2746 = vsel %vm2743, %v2471, -1e+30
    %v2747 = vsel %vm2743, %v2473, -1e+30
    %v2748 = vsel %vm838, %v2746, -inf
    %v2749 = vmax.f32 %v2744, %v2748
    %v2750 = vrot.slane %v2749, 4
    %v2751 = vmax.f32 %v2749, %v2750
    %v2752 = vrot.slane %v2751, 2
    %v2753 = vmax.f32 %v2751, %v2752
    %v2754 = vrot.slane %v2753, 1
    %v2755 = vmax.f32 %v2753, %v2754
    %v2756 = vsel %vm838, %v2747, -inf
    %v2757 = vmax.f32 %v2745, %v2756
    %v2758 = vrot.slane %v2757, 4
    %v2759 = vmax.f32 %v2757, %v2758
    %v2760 = vrot.slane %v2759, 2
    %v2761 = vmax.f32 %v2759, %v2760
    %v2762 = vrot.slane %v2761, 1
    %v2763 = vmax.f32 %v2761, %v2762
    %vm2764 = vcmp.eq.s32.totalorder %v772, 0
    %v2765 = vsel %vm2764, 1.0, 0.0
    %v2766 = vmul.f32 %v2765, %v2755
    %v2767 = vmul.f32 %v2765, %v2763
    %v2768 = vadd.f32 %v2766, 0.0
    %v2769 = vadd.f32 %v2767, 0.0
    %2770 = vset.pattern.permute.xlu0 1
    %2771 = vperm.xlu0 %2770, %v2734
    %v2772 = vpop.permute.xlu0 %2771
    %2773 = vset.pattern.permute.xlu0 1
    %2774 = vperm.xlu0 %2773, %v2735
    %v2775 = vpop.permute.xlu0 %2774
    %vm2776 = vcmp.eq.s32.totalorder %v2772, 1
    %vm2777 = vcmp.eq.s32.totalorder %v2775, 1
    %v2778 = vsel %vm2776, %v2467, -1e+30
    %v2779 = vsel %vm2776, %v2469, -1e+30
    %v2780 = vsel %vm2777, %v2471, -1e+30
    %v2781 = vsel %vm2777, %v2473, -1e+30
    %v2782 = vsel %vm838, %v2780, -inf
    %v2783 = vmax.f32 %v2778, %v2782
    %v2784 = vrot.slane %v2783, 4
    %v2785 = vmax.f32 %v2783, %v2784
    %v2786 = vrot.slane %v2785, 2
    %v2787 = vmax.f32 %v2785, %v2786
    %v2788 = vrot.slane %v2787, 1
    %v2789 = vmax.f32 %v2787, %v2788
    %v2790 = vsel %vm838, %v2781, -inf
    %v2791 = vmax.f32 %v2779, %v2790
    %v2792 = vrot.slane %v2791, 4
    %v2793 = vmax.f32 %v2791, %v2792
    %v2794 = vrot.slane %v2793, 2
    %v2795 = vmax.f32 %v2793, %v2794
    %v2796 = vrot.slane %v2795, 1
    %v2797 = vmax.f32 %v2795, %v2796
    %vm2798 = vcmp.eq.s32.totalorder %v772, 1
    %v2799 = vsel %vm2798, 1.0, 0.0
    %v2800 = vmul.f32 %v2799, %v2789
    %v2801 = vmul.f32 %v2799, %v2797
    %v2802 = vadd.f32 %v2768, %v2800
    %v2803 = vadd.f32 %v2769, %v2801
    %2804 = vst [vmem:[%s12] sm:$0xff] %v2467
    %2805 = vst [vmem:[%s12 + $0x8] sm:$0xff] %v2469
    %2806 = vst [vmem:[%s12 + $0x10] sm:$0xf] %v2471
    %2807 = vst [vmem:[%s12 + $0x18] sm:$0xf] %v2473
    %vm2808 = vcmask 7168
    %2809 = vst.msk [vmem:[%s13] sm:$0xff] %vm2808, %v1726
    %vm2810 = vcmask 3072
    %2811 = vst.msk [vmem:[%s13 + $0x8] sm:$0xf] %vm2810, %v1727
    %2812 = vst.msk [vmem:[%s14] sm:$0xff] %vm808, %v2567
    %2813 = vst.msk [vmem:[%s14 + $0x8] sm:$0xf] %vm812, %v2568
    %v2818 = vcombine.low %v2802, %v2803
    %v2819 = vcombine.low %v2728, %v2729
    %v2821 = vunpack.c.l.s4 1983009808
    %v2822 = vunpack.c.0.s8 %v2821
    %v2823 = vlaneseq
    %v2824 = vshrl.u32 %v2823, 7
    %v2825 = vsub.s32 %v2822, %v2824
    %v2826 = vrot.slane %v2818, %v2825
    %v2828 = vunpack.c.l.s4 1983009808
    %v2829 = vunpack.c.0.s8 %v2828
    %v2830 = vlaneseq
    %v2831 = vshrl.u32 %v2830, 7
    %v2832 = vsub.s32 %v2829, %v2831
    %v2833 = vrot.slane %v2819, %v2832
    %v2834 = vcombine.low %v2826, %v2833
    %2836 = vst [vmem:[%s15] sm:$0xff] %v2834
    // Predicated region
    $region66: #{_forward_device.4} parent=1 // pred_check
      _
    $region67: #{_forward_device.4} parent=1 // pred_check_branch
      %2838 = sbr.rel (0) target = $region69
    $region68: #{_forward_device.4} parent=1 // pred_region
      _
    $region69: #{_forward_device.4} parent=1 // pred_fallthru
      _
    // Predicated region
    $region70: #{_forward_device.4} parent=1 // pred_check
      _
    $region71: #{_forward_device.4} parent=1 // pred_check_branch
      %2840 = sbr.rel (0) target = $region73
    $region72: #{_forward_device.4} parent=1 // pred_region
      _
    $region73: #{_forward_device.4} parent=1 // pred_fallthru
      _
    // Predicated region
    $region74: #{_forward_device.4} parent=1 // pred_check
      _
    $region75: #{_forward_device.4} parent=1 // pred_check_branch
      %2842 = sbr.rel (0) target = $region77
    $region76: #{_forward_device.4} parent=1 // pred_region
      _
    $region77: #{_forward_device.4} parent=1 // pred_fallthru
      _
    // Predicated region
    $region78: #{_forward_device.4} parent=1 // pred_check
      _
    $region79: #{_forward_device.4} parent=1 // pred_check_branch
      %2844 = sbr.rel (0) target = $region81
    $region80: #{_forward_device.4} parent=1 // pred_region
      _
    $region81: #{_forward_device.4} parent=1 // pred_fallthru
      _
    // Predicated region
    $region82: #{_forward_device.4} parent=1 // pred_check
      _
    $region83: #{_forward_device.4} parent=1 // pred_check_branch
      %2846 = sbr.rel (0) target = $region85
    $region84: #{_forward_device.4} parent=1 // pred_region
      _
    $region85: #{_forward_device.4} parent=1 // pred_fallthru
      _
    // Predicated region
    $region86: #{_forward_device.4} parent=1 // pred_check
      _
    $region87: #{_forward_device.4} parent=1 // pred_check_branch
      %2848 = sbr.rel (0) target = $region89
    $region88: #{_forward_device.4} parent=1 // pred_region
      _
    $region89: #{_forward_device.4} parent=1 // pred_fallthru
      _
    // Predicated region
    $region90: #{_forward_device.4} parent=1 // pred_check
      _
    $region91: #{_forward_device.4} parent=1 // pred_check_branch
      %2850 = sbr.rel (0) target = $region93
    $region92: #{_forward_device.4} parent=1 // pred_region
      _
    $region93: #{_forward_device.4} parent=1 // pred_fallthru
      _
    // Predicated region
    $region94: #{_forward_device.4} parent=1 // pred_check
      _
    $region95: #{_forward_device.4} parent=1 // pred_check_branch
      %2852 = sbr.rel (0) target = $region97
    $region96: #{_forward_device.4} parent=1 // pred_region
      _
    $region97: #{_forward_device.4} parent=1 // pred_fallthru
      _
    %2853 = vsyncpa [#allocation3], 1
    %2854 = vsyncpa [#allocation5], 1
    %2855 = vsyncpa [#allocation8], 1

// kernel: _forward_device.6
$region0: #{_forward_device.6}
  #allocation0 [shape = 'u32[]', space=smem, size = 0x4, offset = 0x4, fixed_abs, tag = 'smem constant byte address 0x4 - core index']
  #allocation1 [shape = 'u32[144,128]{1,0:T(1,128)}', space=vmem, size = 0x12000, scoped, tag = 'internal scratch']
  %s0 = inlined_call_operand.vmem [shape: f32[12,256], index: 0, kind: input, shape index: {}]
  %s1 = inlined_call_operand.vmem [shape: f32[12,12], index: 1, kind: input, shape index: {}]
  %s2 = inlined_call_operand.vmem [shape: f32[12,1], index: 2, kind: input, shape index: {}]
  %s3 = inlined_call_operand.vmem [shape: f32[12,2], index: 3, kind: input, shape index: {}]
  %s4 = inlined_call_operand.vmem [shape: f32[2,12], index: 4, kind: input, shape index: {}]
  %s5 = inlined_call_operand.vmem [shape: bf16[256,768], index: 5, kind: input, shape index: {}]
  %s6 = inlined_call_operand.vmem [shape: f32[3,768], index: 6, kind: input, shape index: {}]
  %s7 = inlined_call_operand.vmem [shape: f32[3,768], index: 7, kind: input, shape index: {}]
  %s8 = inlined_call_operand.vmem [shape: f32[1,768], index: 8, kind: input, shape index: {}]
  %s9 = inlined_call_operand.vmem [shape: f32[1,768], index: 9, kind: input, shape index: {}]
  %s10 = inlined_call_operand.vmem [shape: bf16[768,256], index: 10, kind: input, shape index: {}]
  %s11 = inlined_call_operand.vmem [shape: f32[1,256], index: 11, kind: input, shape index: {}]
  %s12 = inlined_call_operand.hbm [shape: f32[12,256], index: 12, kind: output, shape index: {0}]
  %s13 = inlined_call_operand.hbm [shape: f32[12,1], index: 13, kind: output, shape index: {1}]
  %s14 = inlined_call_operand.hbm [shape: f32[12,12], index: 14, kind: output, shape index: {2}]
  %s15 = inlined_call_operand.vmem [shape: f32[2,512], index: 15, kind: output, shape index: {3}]
  %16 = xla_tuple %s12, %s13, %s14, %s15
  %s17 = sld [smem:[#allocation0]]
  $region82: #{_forward_device.6} parent=0
    _
  %s19 = ssub.s32 1, %s17
  %s20 = scalar_select 0, %s19, %s17
  $region1: #{_forward_device.6} parent=0
    #allocation2 [shape = 'u8[16384]{0}', space=vmem, size = 0x4000, scoped, tag = 'output window, operand 0, single buffered']
    #allocation3 [shape = 's32[1]{0}', space=sflag, size = 0x4, scoped, tag = 'scoped memory for _forward_device.6']
    #allocation4 [shape = 'u8[8192]{0}', space=vmem, size = 0x2000, scoped, tag = 'output window, operand 1, single buffered']
    #allocation5 [shape = 's32[1]{0}', space=sflag, size = 0x4, scoped, tag = 'scoped memory for _forward_device.6']
    #allocation6 [shape = 'u8[8192]{0}', space=vmem, size = 0x2000, scoped, tag = 'output window, operand 2, single buffered']
    %21 = vsyncpa [#allocation3], 0
    %22 = vsyncpa [#allocation5], 0
    // Predicated region
    $region2: #{_forward_device.6} parent=1 // pred_check
      _
    $region3: #{_forward_device.6} parent=1 // pred_check_branch
      %24 = sbr.rel (0) target = $region5
    $region4: #{_forward_device.6} parent=1 // pred_region
      _
    $region5: #{_forward_device.6} parent=1 // pred_fallthru
      _
    // Predicated region
    $region6: #{_forward_device.6} parent=1 // pred_check
      _
    $region7: #{_forward_device.6} parent=1 // pred_check_branch
      %26 = sbr.rel (0) target = $region9
    $region8: #{_forward_device.6} parent=1 // pred_region
      _
    $region9: #{_forward_device.6} parent=1 // pred_fallthru
      _
    // Predicated region
    $region10: #{_forward_device.6} parent=1 // pred_check
      _
    $region11: #{_forward_device.6} parent=1 // pred_check_branch
      %28 = sbr.rel (0) target = $region13
    $region12: #{_forward_device.6} parent=1 // pred_region
      _
    $region13: #{_forward_device.6} parent=1 // pred_fallthru
      _
    // Predicated region
    $region14: #{_forward_device.6} parent=1 // pred_check
      _
    $region15: #{_forward_device.6} parent=1 // pred_check_branch
      %30 = sbr.rel (0) target = $region17
    $region16: #{_forward_device.6} parent=1 // pred_region
      _
    $region17: #{_forward_device.6} parent=1 // pred_fallthru
      _
    // Predicated region
    $region18: #{_forward_device.6} parent=1 // pred_check
      _
    $region19: #{_forward_device.6} parent=1 // pred_check_branch
      %32 = sbr.rel (0) target = $region21
    $region20: #{_forward_device.6} parent=1 // pred_region
      _
    $region21: #{_forward_device.6} parent=1 // pred_fallthru
      _
    // Predicated region
    $region22: #{_forward_device.6} parent=1 // pred_check
      _
    $region23: #{_forward_device.6} parent=1 // pred_check_branch
      %34 = sbr.rel (0) target = $region25
    $region24: #{_forward_device.6} parent=1 // pred_region
      _
    $region25: #{_forward_device.6} parent=1 // pred_fallthru
      _
    // Predicated region
    $region26: #{_forward_device.6} parent=1 // pred_check
      _
    $region27: #{_forward_device.6} parent=1 // pred_check_branch
      %36 = sbr.rel (0) target = $region29
    $region28: #{_forward_device.6} parent=1 // pred_region
      _
    $region29: #{_forward_device.6} parent=1 // pred_fallthru
      _
    // Predicated region
    $region30: #{_forward_device.6} parent=1 // pred_check
      _
    $region31: #{_forward_device.6} parent=1 // pred_check_branch
      %38 = sbr.rel (0) target = $region33
    $region32: #{_forward_device.6} parent=1 // pred_region
      _
    $region33: #{_forward_device.6} parent=1 // pred_fallthru
      _
    // Predicated region
    $region34: #{_forward_device.6} parent=1 // pred_check
      _
    $region35: #{_forward_device.6} parent=1 // pred_check_branch
      %40 = sbr.rel (0) target = $region37
    $region36: #{_forward_device.6} parent=1 // pred_region
      _
    $region37: #{_forward_device.6} parent=1 // pred_fallthru
      _
    // Predicated region
    $region38: #{_forward_device.6} parent=1 // pred_check
      _
    $region39: #{_forward_device.6} parent=1 // pred_check_branch
      %42 = sbr.rel (0) target = $region41
    $region40: #{_forward_device.6} parent=1 // pred_region
      _
    $region41: #{_forward_device.6} parent=1 // pred_fallthru
      _
    // Predicated region
    $region42: #{_forward_device.6} parent=1 // pred_check
      _
    $region43: #{_forward_device.6} parent=1 // pred_check_branch
      %44 = sbr.rel (0) target = $region45
    $region44: #{_forward_device.6} parent=1 // pred_region
      _
    $region45: #{_forward_device.6} parent=1 // pred_fallthru
      _
    // Predicated region
    $region46: #{_forward_device.6} parent=1 // pred_check
      _
    $region47: #{_forward_device.6} parent=1 // pred_check_branch
      %46 = sbr.rel (0) target = $region49
    $region48: #{_forward_device.6} parent=1 // pred_region
      _
    $region49: #{_forward_device.6} parent=1 // pred_fallthru
      _
    %v47 = vld [vmem:[%s0] sm:$0xff]
    %v48 = vld [vmem:[%s0 + $0x8] sm:$0xff]
    %v49 = vld [vmem:[%s0 + $0x10] sm:$0xf]
    %v50 = vld [vmem:[%s0 + $0x18] sm:$0xf]
    %v51 = vld [vmem:[%s1] sm:$0xff]
    %v52 = vld [vmem:[%s1 + $0x8] sm:$0xf]
    %v53 = vld [vmem:[%s2] sm:$0xff]
    %v54 = vld [vmem:[%s2 + $0x8] sm:$0xf]
    %v55 = vld [vmem:[%s3] sm:$0xff]
    %v56 = vld [vmem:[%s3 + $0x8] sm:$0xf]
    %v57 = vld [vmem:[%s4] sm:$0x3]
    %v58 = vpack.c.bf16 %v49, %v47
    %v59 = vpack.c.bf16 %v50, %v48
    %v60 = vld [vmem:[%s5] sm:$0xff]
    %v61 = vld [vmem:[%s5 + $0x8] sm:$0xff]
    %v62 = vld [vmem:[%s5 + $0x10] sm:$0xff]
    %v63 = vld [vmem:[%s5 + $0x18] sm:$0xff]
    %v64 = vld [vmem:[%s5 + $0x20] sm:$0xff]
    %v65 = vld [vmem:[%s5 + $0x28] sm:$0xff]
    %v66 = vld [vmem:[%s5 + $0x30] sm:$0xff]
    %v67 = vld [vmem:[%s5 + $0x38] sm:$0xff]
    %v68 = vld [vmem:[%s5 + $0x40] sm:$0xff]
    %v69 = vld [vmem:[%s5 + $0x48] sm:$0xff]
    %v70 = vld [vmem:[%s5 + $0x50] sm:$0xff]
    %v71 = vld [vmem:[%s5 + $0x58] sm:$0xff]
    %v72 = vld [vmem:[%s5 + $0x60] sm:$0xff]
    %v73 = vld [vmem:[%s5 + $0x68] sm:$0xff]
    %v74 = vld [vmem:[%s5 + $0x70] sm:$0xff]
    %v75 = vld [vmem:[%s5 + $0x78] sm:$0xff]
    %v76 = vld [vmem:[%s5 + $0x80] sm:$0xff]
    %v77 = vld [vmem:[%s5 + $0x88] sm:$0xff]
    %v78 = vld [vmem:[%s5 + $0x90] sm:$0xff]
    %v79 = vld [vmem:[%s5 + $0x98] sm:$0xff]
    %v80 = vld [vmem:[%s5 + $0xa0] sm:$0xff]
    %v81 = vld [vmem:[%s5 + $0xa8] sm:$0xff]
    %v82 = vld [vmem:[%s5 + $0xb0] sm:$0xff]
    %v83 = vld [vmem:[%s5 + $0xb8] sm:$0xff]
    %v84 = vld [vmem:[%s5 + $0xc0] sm:$0xff]
    %v85 = vld [vmem:[%s5 + $0xc8] sm:$0xff]
    %v86 = vld [vmem:[%s5 + $0xd0] sm:$0xff]
    %v87 = vld [vmem:[%s5 + $0xd8] sm:$0xff]
    %v88 = vld [vmem:[%s5 + $0xe0] sm:$0xff]
    %v89 = vld [vmem:[%s5 + $0xe8] sm:$0xff]
    %v90 = vld [vmem:[%s5 + $0xf0] sm:$0xff]
    %v91 = vld [vmem:[%s5 + $0xf8] sm:$0xff]
    %v92 = vld [vmem:[%s5 + $0x100] sm:$0xff]
    %v93 = vld [vmem:[%s5 + $0x108] sm:$0xff]
    %v94 = vld [vmem:[%s5 + $0x110] sm:$0xff]
    %v95 = vld [vmem:[%s5 + $0x118] sm:$0xff]
    %v96 = vld [vmem:[%s5 + $0x120] sm:$0xff]
    %v97 = vld [vmem:[%s5 + $0x128] sm:$0xff]
    %v98 = vld [vmem:[%s5 + $0x130] sm:$0xff]
    %v99 = vld [vmem:[%s5 + $0x138] sm:$0xff]
    %v100 = vld [vmem:[%s5 + $0x140] sm:$0xff]
    %v101 = vld [vmem:[%s5 + $0x148] sm:$0xff]
    %v102 = vld [vmem:[%s5 + $0x150] sm:$0xff]
    %v103 = vld [vmem:[%s5 + $0x158] sm:$0xff]
    %v104 = vld [vmem:[%s5 + $0x160] sm:$0xff]
    %v105 = vld [vmem:[%s5 + $0x168] sm:$0xff]
    %v106 = vld [vmem:[%s5 + $0x170] sm:$0xff]
    %v107 = vld [vmem:[%s5 + $0x178] sm:$0xff]
    %v108 = vld [vmem:[%s5 + $0x180] sm:$0xff]
    %v109 = vld [vmem:[%s5 + $0x188] sm:$0xff]
    %v110 = vld [vmem:[%s5 + $0x190] sm:$0xff]
    %v111 = vld [vmem:[%s5 + $0x198] sm:$0xff]
    %v112 = vld [vmem:[%s5 + $0x1a0] sm:$0xff]
    %v113 = vld [vmem:[%s5 + $0x1a8] sm:$0xff]
    %v114 = vld [vmem:[%s5 + $0x1b0] sm:$0xff]
    %v115 = vld [vmem:[%s5 + $0x1b8] sm:$0xff]
    %v116 = vld [vmem:[%s5 + $0x1c0] sm:$0xff]
    %v117 = vld [vmem:[%s5 + $0x1c8] sm:$0xff]
    %v118 = vld [vmem:[%s5 + $0x1d0] sm:$0xff]
    %v119 = vld [vmem:[%s5 + $0x1d8] sm:$0xff]
    %v120 = vld [vmem:[%s5 + $0x1e0] sm:$0xff]
    %v121 = vld [vmem:[%s5 + $0x1e8] sm:$0xff]
    %v122 = vld [vmem:[%s5 + $0x1f0] sm:$0xff]
    %v123 = vld [vmem:[%s5 + $0x1f8] sm:$0xff]
    %v124 = vld [vmem:[%s5 + $0x200] sm:$0xff]
    %v125 = vld [vmem:[%s5 + $0x208] sm:$0xff]
    %v126 = vld [vmem:[%s5 + $0x210] sm:$0xff]
    %v127 = vld [vmem:[%s5 + $0x218] sm:$0xff]
    %v128 = vld [vmem:[%s5 + $0x220] sm:$0xff]
    %v129 = vld [vmem:[%s5 + $0x228] sm:$0xff]
    %v130 = vld [vmem:[%s5 + $0x230] sm:$0xff]
    %v131 = vld [vmem:[%s5 + $0x238] sm:$0xff]
    %v132 = vld [vmem:[%s5 + $0x240] sm:$0xff]
    %v133 = vld [vmem:[%s5 + $0x248] sm:$0xff]
    %v134 = vld [vmem:[%s5 + $0x250] sm:$0xff]
    %v135 = vld [vmem:[%s5 + $0x258] sm:$0xff]
    %v136 = vld [vmem:[%s5 + $0x260] sm:$0xff]
    %v137 = vld [vmem:[%s5 + $0x268] sm:$0xff]
    %v138 = vld [vmem:[%s5 + $0x270] sm:$0xff]
    %v139 = vld [vmem:[%s5 + $0x278] sm:$0xff]
    %v140 = vld [vmem:[%s5 + $0x280] sm:$0xff]
    %v141 = vld [vmem:[%s5 + $0x288] sm:$0xff]
    %v142 = vld [vmem:[%s5 + $0x290] sm:$0xff]
    %v143 = vld [vmem:[%s5 + $0x298] sm:$0xff]
    %v144 = vld [vmem:[%s5 + $0x2a0] sm:$0xff]
    %v145 = vld [vmem:[%s5 + $0x2a8] sm:$0xff]
    %v146 = vld [vmem:[%s5 + $0x2b0] sm:$0xff]
    %v147 = vld [vmem:[%s5 + $0x2b8] sm:$0xff]
    %v148 = vld [vmem:[%s5 + $0x2c0] sm:$0xff]
    %v149 = vld [vmem:[%s5 + $0x2c8] sm:$0xff]
    %v150 = vld [vmem:[%s5 + $0x2d0] sm:$0xff]
    %v151 = vld [vmem:[%s5 + $0x2d8] sm:$0xff]
    %v152 = vld [vmem:[%s5 + $0x2e0] sm:$0xff]
    %v153 = vld [vmem:[%s5 + $0x2e8] sm:$0xff]
    %v154 = vld [vmem:[%s5 + $0x2f0] sm:$0xff]
    %v155 = vld [vmem:[%s5 + $0x2f8] sm:$0xff]
    %v252 = vunpack.c.l.b16 %v60
    %v253 = vunpack.c.h.b16 %v60
    %v254 = vunpack.c.l.b16 %v61
    %v255 = vunpack.c.h.b16 %v61
    %v256 = vunpack.c.l.b16 %v62
    %v257 = vunpack.c.h.b16 %v62
    %v258 = vunpack.c.l.b16 %v63
    %v259 = vunpack.c.h.b16 %v63
    %v260 = vunpack.c.l.b16 %v64
    %v261 = vunpack.c.h.b16 %v64
    %v262 = vunpack.c.l.b16 %v65
    %v263 = vunpack.c.h.b16 %v65
    %v264 = vunpack.c.l.b16 %v66
    %v265 = vunpack.c.h.b16 %v66
    %v266 = vunpack.c.l.b16 %v67
    %v267 = vunpack.c.h.b16 %v67
    %v268 = vunpack.c.l.b16 %v68
    %v269 = vunpack.c.h.b16 %v68
    %v270 = vunpack.c.l.b16 %v69
    %v271 = vunpack.c.h.b16 %v69
    %v272 = vunpack.c.l.b16 %v70
    %v273 = vunpack.c.h.b16 %v70
    %v274 = vunpack.c.l.b16 %v71
    %v275 = vunpack.c.h.b16 %v71
    %v276 = vunpack.c.l.b16 %v72
    %v277 = vunpack.c.h.b16 %v72
    %v278 = vunpack.c.l.b16 %v73
    %v279 = vunpack.c.h.b16 %v73
    %v280 = vunpack.c.l.b16 %v74
    %v281 = vunpack.c.h.b16 %v74
    %v282 = vunpack.c.l.b16 %v75
    %v283 = vunpack.c.h.b16 %v75
    %v284 = vunpack.c.l.b16 %v76
    %v285 = vunpack.c.h.b16 %v76
    %v286 = vunpack.c.l.b16 %v77
    %v287 = vunpack.c.h.b16 %v77
    %v288 = vunpack.c.l.b16 %v78
    %v289 = vunpack.c.h.b16 %v78
    %v290 = vunpack.c.l.b16 %v79
    %v291 = vunpack.c.h.b16 %v79
    %v292 = vunpack.c.l.b16 %v80
    %v293 = vunpack.c.h.b16 %v80
    %v294 = vunpack.c.l.b16 %v81
    %v295 = vunpack.c.h.b16 %v81
    %v296 = vunpack.c.l.b16 %v82
    %v297 = vunpack.c.h.b16 %v82
    %v298 = vunpack.c.l.b16 %v83
    %v299 = vunpack.c.h.b16 %v83
    %v300 = vunpack.c.l.b16 %v84
    %v301 = vunpack.c.h.b16 %v84
    %v302 = vunpack.c.l.b16 %v85
    %v303 = vunpack.c.h.b16 %v85
    %v304 = vunpack.c.l.b16 %v86
    %v305 = vunpack.c.h.b16 %v86
    %v306 = vunpack.c.l.b16 %v87
    %v307 = vunpack.c.h.b16 %v87
    %v308 = vunpack.c.l.b16 %v88
    %v309 = vunpack.c.h.b16 %v88
    %v310 = vunpack.c.l.b16 %v89
    %v311 = vunpack.c.h.b16 %v89
    %v312 = vunpack.c.l.b16 %v90
    %v313 = vunpack.c.h.b16 %v90
    %v314 = vunpack.c.l.b16 %v91
    %v315 = vunpack.c.h.b16 %v91
    %v316 = vunpack.c.l.b16 %v92
    %v317 = vunpack.c.h.b16 %v92
    %v318 = vunpack.c.l.b16 %v93
    %v319 = vunpack.c.h.b16 %v93
    %v320 = vunpack.c.l.b16 %v94
    %v321 = vunpack.c.h.b16 %v94
    %v322 = vunpack.c.l.b16 %v95
    %v323 = vunpack.c.h.b16 %v95
    %v324 = vunpack.c.l.b16 %v96
    %v325 = vunpack.c.h.b16 %v96
    %v326 = vunpack.c.l.b16 %v97
    %v327 = vunpack.c.h.b16 %v97
    %v328 = vunpack.c.l.b16 %v98
    %v329 = vunpack.c.h.b16 %v98
    %v330 = vunpack.c.l.b16 %v99
    %v331 = vunpack.c.h.b16 %v99
    %v332 = vunpack.c.l.b16 %v100
    %v333 = vunpack.c.h.b16 %v100
    %v334 = vunpack.c.l.b16 %v101
    %v335 = vunpack.c.h.b16 %v101
    %v336 = vunpack.c.l.b16 %v102
    %v337 = vunpack.c.h.b16 %v102
    %v338 = vunpack.c.l.b16 %v103
    %v339 = vunpack.c.h.b16 %v103
    %v340 = vunpack.c.l.b16 %v104
    %v341 = vunpack.c.h.b16 %v104
    %v342 = vunpack.c.l.b16 %v105
    %v343 = vunpack.c.h.b16 %v105
    %v344 = vunpack.c.l.b16 %v106
    %v345 = vunpack.c.h.b16 %v106
    %v346 = vunpack.c.l.b16 %v107
    %v347 = vunpack.c.h.b16 %v107
    %v348 = vunpack.c.l.b16 %v108
    %v349 = vunpack.c.h.b16 %v108
    %v350 = vunpack.c.l.b16 %v109
    %v351 = vunpack.c.h.b16 %v109
    %v352 = vunpack.c.l.b16 %v110
    %v353 = vunpack.c.h.b16 %v110
    %v354 = vunpack.c.l.b16 %v111
    %v355 = vunpack.c.h.b16 %v111
    %v356 = vunpack.c.l.b16 %v112
    %v357 = vunpack.c.h.b16 %v112
    %v358 = vunpack.c.l.b16 %v113
    %v359 = vunpack.c.h.b16 %v113
    %v360 = vunpack.c.l.b16 %v114
    %v361 = vunpack.c.h.b16 %v114
    %v362 = vunpack.c.l.b16 %v115
    %v363 = vunpack.c.h.b16 %v115
    %v364 = vunpack.c.l.b16 %v116
    %v365 = vunpack.c.h.b16 %v116
    %v366 = vunpack.c.l.b16 %v117
    %v367 = vunpack.c.h.b16 %v117
    %v368 = vunpack.c.l.b16 %v118
    %v369 = vunpack.c.h.b16 %v118
    %v370 = vunpack.c.l.b16 %v119
    %v371 = vunpack.c.h.b16 %v119
    %v372 = vunpack.c.l.b16 %v120
    %v373 = vunpack.c.h.b16 %v120
    %v374 = vunpack.c.l.b16 %v121
    %v375 = vunpack.c.h.b16 %v121
    %v376 = vunpack.c.l.b16 %v122
    %v377 = vunpack.c.h.b16 %v122
    %v378 = vunpack.c.l.b16 %v123
    %v379 = vunpack.c.h.b16 %v123
    %v380 = vunpack.c.l.b16 %v124
    %v381 = vunpack.c.h.b16 %v124
    %v382 = vunpack.c.l.b16 %v125
    %v383 = vunpack.c.h.b16 %v125
    %v384 = vunpack.c.l.b16 %v126
    %v385 = vunpack.c.h.b16 %v126
    %v386 = vunpack.c.l.b16 %v127
    %v387 = vunpack.c.h.b16 %v127
    %v388 = vunpack.c.l.b16 %v128
    %v389 = vunpack.c.h.b16 %v128
    %v390 = vunpack.c.l.b16 %v129
    %v391 = vunpack.c.h.b16 %v129
    %v392 = vunpack.c.l.b16 %v130
    %v393 = vunpack.c.h.b16 %v130
    %v394 = vunpack.c.l.b16 %v131
    %v395 = vunpack.c.h.b16 %v131
    %v396 = vunpack.c.l.b16 %v132
    %v397 = vunpack.c.h.b16 %v132
    %v398 = vunpack.c.l.b16 %v133
    %v399 = vunpack.c.h.b16 %v133
    %v400 = vunpack.c.l.b16 %v134
    %v401 = vunpack.c.h.b16 %v134
    %v402 = vunpack.c.l.b16 %v135
    %v403 = vunpack.c.h.b16 %v135
    %v404 = vunpack.c.l.b16 %v136
    %v405 = vunpack.c.h.b16 %v136
    %v406 = vunpack.c.l.b16 %v137
    %v407 = vunpack.c.h.b16 %v137
    %v408 = vunpack.c.l.b16 %v138
    %v409 = vunpack.c.h.b16 %v138
    %v410 = vunpack.c.l.b16 %v139
    %v411 = vunpack.c.h.b16 %v139
    %v412 = vunpack.c.l.b16 %v140
    %v413 = vunpack.c.h.b16 %v140
    %v414 = vunpack.c.l.b16 %v141
    %v415 = vunpack.c.h.b16 %v141
    %v416 = vunpack.c.l.b16 %v142
    %v417 = vunpack.c.h.b16 %v142
    %v418 = vunpack.c.l.b16 %v143
    %v419 = vunpack.c.h.b16 %v143
    %v420 = vunpack.c.l.b16 %v144
    %v421 = vunpack.c.h.b16 %v144
    %v422 = vunpack.c.l.b16 %v145
    %v423 = vunpack.c.h.b16 %v145
    %v424 = vunpack.c.l.b16 %v146
    %v425 = vunpack.c.h.b16 %v146
    %v426 = vunpack.c.l.b16 %v147
    %v427 = vunpack.c.h.b16 %v147
    %v428 = vunpack.c.l.b16 %v148
    %v429 = vunpack.c.h.b16 %v148
    %v430 = vunpack.c.l.b16 %v149
    %v431 = vunpack.c.h.b16 %v149
    %v432 = vunpack.c.l.b16 %v150
    %v433 = vunpack.c.h.b16 %v150
    %v434 = vunpack.c.l.b16 %v151
    %v435 = vunpack.c.h.b16 %v151
    %v436 = vunpack.c.l.b16 %v152
    %v437 = vunpack.c.h.b16 %v152
    %v438 = vunpack.c.l.b16 %v153
    %v439 = vunpack.c.h.b16 %v153
    %v440 = vunpack.c.l.b16 %v154
    %v441 = vunpack.c.h.b16 %v154
    %v442 = vunpack.c.l.b16 %v155
    %v443 = vunpack.c.h.b16 %v155
    %v444 = vpack.c.b16 %v258, %v252
    %v445 = vpack.c.b16 %v259, %v253
    %v446 = vpack.c.b16 %v260, %v254
    %v447 = vpack.c.b16 %v261, %v255
    %v448 = vpack.c.b16 %v262, %v256
    %v449 = vpack.c.b16 %v263, %v257
    %v450 = vpack.c.b16 %v270, %v264
    %v451 = vpack.c.b16 %v271, %v265
    %v452 = vpack.c.b16 %v272, %v266
    %v453 = vpack.c.b16 %v273, %v267
    %v454 = vpack.c.b16 %v274, %v268
    %v455 = vpack.c.b16 %v275, %v269
    %v456 = vpack.c.b16 %v282, %v276
    %v457 = vpack.c.b16 %v283, %v277
    %v458 = vpack.c.b16 %v284, %v278
    %v459 = vpack.c.b16 %v285, %v279
    %v460 = vpack.c.b16 %v286, %v280
    %v461 = vpack.c.b16 %v287, %v281
    %v462 = vpack.c.b16 %v294, %v288
    %v463 = vpack.c.b16 %v295, %v289
    %v464 = vpack.c.b16 %v296, %v290
    %v465 = vpack.c.b16 %v297, %v291
    %v466 = vpack.c.b16 %v298, %v292
    %v467 = vpack.c.b16 %v299, %v293
    %v468 = vpack.c.b16 %v306, %v300
    %v469 = vpack.c.b16 %v307, %v301
    %v470 = vpack.c.b16 %v308, %v302
    %v471 = vpack.c.b16 %v309, %v303
    %v472 = vpack.c.b16 %v310, %v304
    %v473 = vpack.c.b16 %v311, %v305
    %v474 = vpack.c.b16 %v318, %v312
    %v475 = vpack.c.b16 %v319, %v313
    %v476 = vpack.c.b16 %v320, %v314
    %v477 = vpack.c.b16 %v321, %v315
    %v478 = vpack.c.b16 %v322, %v316
    %v479 = vpack.c.b16 %v323, %v317
    %v480 = vpack.c.b16 %v330, %v324
    %v481 = vpack.c.b16 %v331, %v325
    %v482 = vpack.c.b16 %v332, %v326
    %v483 = vpack.c.b16 %v333, %v327
    %v484 = vpack.c.b16 %v334, %v328
    %v485 = vpack.c.b16 %v335, %v329
    %v486 = vpack.c.b16 %v342, %v336
    %v487 = vpack.c.b16 %v343, %v337
    %v488 = vpack.c.b16 %v344, %v338
    %v489 = vpack.c.b16 %v345, %v339
    %v490 = vpack.c.b16 %v346, %v340
    %v491 = vpack.c.b16 %v347, %v341
    %v492 = vpack.c.b16 %v354, %v348
    %v493 = vpack.c.b16 %v355, %v349
    %v494 = vpack.c.b16 %v356, %v350
    %v495 = vpack.c.b16 %v357, %v351
    %v496 = vpack.c.b16 %v358, %v352
    %v497 = vpack.c.b16 %v359, %v353
    %v498 = vpack.c.b16 %v366, %v360
    %v499 = vpack.c.b16 %v367, %v361
    %v500 = vpack.c.b16 %v368, %v362
    %v501 = vpack.c.b16 %v369, %v363
    %v502 = vpack.c.b16 %v370, %v364
    %v503 = vpack.c.b16 %v371, %v365
    %v504 = vpack.c.b16 %v378, %v372
    %v505 = vpack.c.b16 %v379, %v373
    %v506 = vpack.c.b16 %v380, %v374
    %v507 = vpack.c.b16 %v381, %v375
    %v508 = vpack.c.b16 %v382, %v376
    %v509 = vpack.c.b16 %v383, %v377
    %v510 = vpack.c.b16 %v390, %v384
    %v511 = vpack.c.b16 %v391, %v385
    %v512 = vpack.c.b16 %v392, %v386
    %v513 = vpack.c.b16 %v393, %v387
    %v514 = vpack.c.b16 %v394, %v388
    %v515 = vpack.c.b16 %v395, %v389
    %v516 = vpack.c.b16 %v402, %v396
    %v517 = vpack.c.b16 %v403, %v397
    %v518 = vpack.c.b16 %v404, %v398
    %v519 = vpack.c.b16 %v405, %v399
    %v520 = vpack.c.b16 %v406, %v400
    %v521 = vpack.c.b16 %v407, %v401
    %v522 = vpack.c.b16 %v414, %v408
    %v523 = vpack.c.b16 %v415, %v409
    %v524 = vpack.c.b16 %v416, %v410
    %v525 = vpack.c.b16 %v417, %v411
    %v526 = vpack.c.b16 %v418, %v412
    %v527 = vpack.c.b16 %v419, %v413
    %v528 = vpack.c.b16 %v426, %v420
    %v529 = vpack.c.b16 %v427, %v421
    %v530 = vpack.c.b16 %v428, %v422
    %v531 = vpack.c.b16 %v429, %v423
    %v532 = vpack.c.b16 %v430, %v424
    %v533 = vpack.c.b16 %v431, %v425
    %v534 = vpack.c.b16 %v438, %v432
    %v535 = vpack.c.b16 %v439, %v433
    %v536 = vpack.c.b16 %v440, %v434
    %v537 = vpack.c.b16 %v441, %v435
    %v538 = vpack.c.b16 %v442, %v436
    %v539 = vpack.c.b16 %v443, %v437
    %636 = vmatprep.subr.bf16.mxu0 %v445
    %637 = vmatpush1.bf16.msra.mxu0 %v444
    %638 = vmatprep.subr.bf16.mxu0 %v451
    %639 = vmatpush1.bf16.msra.mxu0 %v450
    %640 = vmatprep.subr.bf16.mxu0 %v457
    %641 = vmatpush1.bf16.msra.mxu0 %v456
    %642 = vmatprep.subr.bf16.mxu0 %v463
    %643 = vmatpush1.bf16.msra.mxu0 %v462
    %644 = vmatprep.subr.bf16.mxu0 %v469
    %645 = vmatpush1.bf16.msra.mxu0 %v468
    %646 = vmatprep.subr.bf16.mxu0 %v475
    %647 = vmatpush1.bf16.msra.mxu0 %v474
    %648 = vmatprep.subr.bf16.mxu0 %v481
    %649 = vmatpush1.bf16.msra.mxu0 %v480
    %650 = vmatprep.subr.bf16.mxu0 %v487
    %651 = vmatpush1.bf16.msra.mxu0 %v486
    %652 = vmatprep.subr.bf16.mxu0 %v493
    %653 = vmatpush1.bf16.msra.mxu0 %v492
    %654 = vmatprep.subr.bf16.mxu0 %v499
    %655 = vmatpush1.bf16.msra.mxu0 %v498
    %656 = vmatprep.subr.bf16.mxu0 %v505
    %657 = vmatpush1.bf16.msra.mxu0 %v504
    %658 = vmatprep.subr.bf16.mxu0 %v511
    %659 = vmatpush1.bf16.msra.mxu0 %v510
    %660 = vmatprep.subr.bf16.mxu0 %v517
    %661 = vmatpush1.bf16.msra.mxu0 %v516
    %662 = vmatprep.subr.bf16.mxu0 %v523
    %663 = vmatpush1.bf16.msra.mxu0 %v522
    %664 = vmatprep.subr.bf16.mxu0 %v529
    %665 = vmatpush1.bf16.msra.mxu0 %v528
    %666 = vmatprep.subr.bf16.mxu0 %v535
    %667 = vmatpush1.bf16.msra.mxu0 %v534
    %668 = vmatprep.mubr.bf16.mxu0 %v59
    %669 = vmatmul.mubr.bf16.gmra.mrb[0].mxu0 %v58
    %v670 = vpop.f32.mrb[0].mxu0
    %v671 = vadd.f32 0.0, %v670
    %v672 = vpop.f32.mrb[0].mxu0
    %v673 = vadd.f32 0.0, %v672
    %v674 = vpop.f32.mrb[0].mxu0
    %v675 = vadd.f32 0.0, %v674
    %v676 = vpop.f32.mrb[0].mxu0
    %v677 = vadd.f32 0.0, %v676
    %678 = vdwg.mxu0
    %679 = vmatprep.subr.bf16.mxu0 %v447
    %680 = vmatpush1.bf16.msra.mxu0 %v446
    %681 = vmatprep.subr.bf16.mxu0 %v453
    %682 = vmatpush1.bf16.msra.mxu0 %v452
    %683 = vmatprep.subr.bf16.mxu0 %v459
    %684 = vmatpush1.bf16.msra.mxu0 %v458
    %685 = vmatprep.subr.bf16.mxu0 %v465
    %686 = vmatpush1.bf16.msra.mxu0 %v464
    %687 = vmatprep.subr.bf16.mxu0 %v471
    %688 = vmatpush1.bf16.msra.mxu0 %v470
    %689 = vmatprep.subr.bf16.mxu0 %v477
    %690 = vmatpush1.bf16.msra.mxu0 %v476
    %691 = vmatprep.subr.bf16.mxu0 %v483
    %692 = vmatpush1.bf16.msra.mxu0 %v482
    %693 = vmatprep.subr.bf16.mxu0 %v489
    %694 = vmatpush1.bf16.msra.mxu0 %v488
    %695 = vmatprep.subr.bf16.mxu0 %v495
    %696 = vmatpush1.bf16.msra.mxu0 %v494
    %697 = vmatprep.subr.bf16.mxu0 %v501
    %698 = vmatpush1.bf16.msra.mxu0 %v500
    %699 = vmatprep.subr.bf16.mxu0 %v507
    %700 = vmatpush1.bf16.msra.mxu0 %v506
    %701 = vmatprep.subr.bf16.mxu0 %v513
    %702 = vmatpush1.bf16.msra.mxu0 %v512
    %703 = vmatprep.subr.bf16.mxu0 %v519
    %704 = vmatpush1.bf16.msra.mxu0 %v518
    %705 = vmatprep.subr.bf16.mxu0 %v525
    %706 = vmatpush1.bf16.msra.mxu0 %v524
    %707 = vmatprep.subr.bf16.mxu0 %v531
    %708 = vmatpush1.bf16.msra.mxu0 %v530
    %709 = vmatprep.subr.bf16.mxu0 %v537
    %710 = vmatpush1.bf16.msra.mxu0 %v536
    %711 = vmatprep.mubr.bf16.mxu0 %v59
    %712 = vmatmul.mubr.bf16.gmra.mrb[0].mxu0 %v58
    %v713 = vpop.f32.mrb[0].mxu0
    %v714 = vadd.f32 0.0, %v713
    %v715 = vpop.f32.mrb[0].mxu0
    %v716 = vadd.f32 0.0, %v715
    %v717 = vpop.f32.mrb[0].mxu0
    %v718 = vadd.f32 0.0, %v717
    %v719 = vpop.f32.mrb[0].mxu0
    %v720 = vadd.f32 0.0, %v719
    %721 = vdwg.mxu0
    %722 = vmatprep.subr.bf16.mxu0 %v449
    %723 = vmatpush1.bf16.msra.mxu0 %v448
    %724 = vmatprep.subr.bf16.mxu0 %v455
    %725 = vmatpush1.bf16.msra.mxu0 %v454
    %726 = vmatprep.subr.bf16.mxu0 %v461
    %727 = vmatpush1.bf16.msra.mxu0 %v460
    %728 = vmatprep.subr.bf16.mxu0 %v467
    %729 = vmatpush1.bf16.msra.mxu0 %v466
    %730 = vmatprep.subr.bf16.mxu0 %v473
    %731 = vmatpush1.bf16.msra.mxu0 %v472
    %732 = vmatprep.subr.bf16.mxu0 %v479
    %733 = vmatpush1.bf16.msra.mxu0 %v478
    %734 = vmatprep.subr.bf16.mxu0 %v485
    %735 = vmatpush1.bf16.msra.mxu0 %v484
    %736 = vmatprep.subr.bf16.mxu0 %v491
    %737 = vmatpush1.bf16.msra.mxu0 %v490
    %738 = vmatprep.subr.bf16.mxu0 %v497
    %739 = vmatpush1.bf16.msra.mxu0 %v496
    %740 = vmatprep.subr.bf16.mxu0 %v503
    %741 = vmatpush1.bf16.msra.mxu0 %v502
    %742 = vmatprep.subr.bf16.mxu0 %v509
    %743 = vmatpush1.bf16.msra.mxu0 %v508
    %744 = vmatprep.subr.bf16.mxu0 %v515
    %745 = vmatpush1.bf16.msra.mxu0 %v514
    %746 = vmatprep.subr.bf16.mxu0 %v521
    %747 = vmatpush1.bf16.msra.mxu0 %v520
    %748 = vmatprep.subr.bf16.mxu0 %v527
    %749 = vmatpush1.bf16.msra.mxu0 %v526
    %750 = vmatprep.subr.bf16.mxu0 %v533
    %751 = vmatpush1.bf16.msra.mxu0 %v532
    %752 = vmatprep.subr.bf16.mxu0 %v539
    %753 = vmatpush1.bf16.msra.mxu0 %v538
    %754 = vmatprep.mubr.bf16.mxu0 %v59
    %755 = vmatmul.mubr.bf16.gmra.mrb[0].mxu0 %v58
    %v756 = vpop.f32.mrb[0].mxu0
    %v757 = vadd.f32 0.0, %v756
    %v758 = vpop.f32.mrb[0].mxu0
    %v759 = vadd.f32 0.0, %v758
    %v760 = vpop.f32.mrb[0].mxu0
    %v761 = vadd.f32 0.0, %v760
    %v762 = vpop.f32.mrb[0].mxu0
    %v763 = vadd.f32 0.0, %v762
    %764 = vdwg.mxu0
    %v765 = vld [vmem:[%s6] sm:$0x77]
    %v766 = vld [vmem:[%s6 + $0x8] sm:$0x77]
    %v767 = vld [vmem:[%s6 + $0x10] sm:$0x77]
    %v771 = vcombine.high %v765, %v765
    %v772 = vcombine.high %v766, %v766
    %v773 = vcombine.high %v767, %v767
    %777 = vmatprep.subr.mxu0 %v771
    %778 = vmatpush1.xpose.msra.mxu0 %v765
    %779 = vmatprep.subr.mxu0 0.0
    %780 = vmatpush1.xpose.msra.mxu0 0.0
    %781 = vmatprep.subr.mxu0 0.0
    %782 = vmatpush1.xpose.msra.mxu0 0.0
    %783 = vmatprep.subr.mxu0 0.0
    %784 = vmatpush1.xpose.msra.mxu0 0.0
    %785 = vmatprep.subr.mxu0 0.0
    %786 = vmatpush1.xpose.msra.mxu0 0.0
    %787 = vmatprep.subr.mxu0 0.0
    %788 = vmatpush1.xpose.msra.mxu0 0.0
    %789 = vmatprep.subr.mxu0 0.0
    %790 = vmatpush1.xpose.msra.mxu0 0.0
    %791 = vmatprep.subr.mxu0 0.0
    %792 = vmatpush1.xpose.msra.mxu0 0.0
    %793 = vmatprep.subr.mxu0 0.0
    %794 = vmatpush1.xpose.msra.mxu0 0.0
    %795 = vmatprep.subr.mxu0 0.0
    %796 = vmatpush1.xpose.msra.mxu0 0.0
    %797 = vmatprep.subr.mxu0 0.0
    %798 = vmatpush1.xpose.msra.mxu0 0.0
    %799 = vmatprep.subr.mxu0 0.0
    %800 = vmatpush1.xpose.msra.mxu0 0.0
    %801 = vmatprep.subr.mxu0 0.0
    %802 = vmatpush1.xpose.msra.mxu0 0.0
    %803 = vmatprep.subr.mxu0 0.0
    %804 = vmatpush1.xpose.msra.mxu0 0.0
    %805 = vmatprep.subr.mxu0 0.0
    %806 = vmatpush1.xpose.msra.mxu0 0.0
    %807 = vmatprep.subr.mxu0 0.0
    %808 = vmatpush1.xpose.msra.mxu0 0.0
    %809 = vmatprep.subr.mxu0 0.0
    %810 = vmatpush1.xpose.msra.mxu0 0.0
    %811 = vmatprep.subr.mxu0 0.0
    %812 = vmatpush1.xpose.msra.mxu0 0.0
    %813 = vmatprep.subr.mxu0 0.0
    %814 = vmatpush1.xpose.msra.mxu0 0.0
    %815 = vmatprep.subr.mxu0 0.0
    %816 = vmatpush1.xpose.msra.mxu0 0.0
    %817 = vmatprep.subr.mxu0 0.0
    %818 = vmatpush1.xpose.msra.mxu0 0.0
    %819 = vmatprep.subr.mxu0 0.0
    %820 = vmatpush1.xpose.msra.mxu0 0.0
    %821 = vmatprep.subr.mxu0 0.0
    %822 = vmatpush1.xpose.msra.mxu0 0.0
    %823 = vmatprep.subr.mxu0 0.0
    %824 = vmatpush1.xpose.msra.mxu0 0.0
    %825 = vmatprep.subr.mxu0 0.0
    %826 = vmatpush1.xpose.msra.mxu0 0.0
    %827 = vmatprep.subr.mxu0 0.0
    %828 = vmatpush1.xpose.msra.mxu0 0.0
    %829 = vmatprep.subr.mxu0 0.0
    %830 = vmatpush1.xpose.msra.mxu0 0.0
    %831 = vmatprep.subr.mxu0 0.0
    %832 = vmatpush1.xpose.msra.mxu0 0.0
    %833 = vmatprep.subr.mxu0 0.0
    %834 = vmatpush1.xpose.msra.mxu0 0.0
    %835 = vmatprep.subr.mxu0 0.0
    %836 = vmatpush1.xpose.msra.mxu0 0.0
    %837 = vmatprep.subr.mxu0 0.0
    %838 = vmatpush1.xpose.msra.mxu0 0.0
    %839 = vmatprep.subr.mxu0 0.0
    %840 = vmatpush1.xpose.msra.mxu0 0.0
    %841 = vmatprep.mubr.f32.mxu0 %v673
    %842 = vmatmul.mubr.f32.gmra.mrb[0].mxu0 %v671
    %v843 = vpop.f32.mrb[0].mxu0
    %v844 = vadd.f32 0.0, %v843
    %v845 = vpop.f32.mrb[0].mxu0
    %846 = vmatprep.mubr.f32.mxu0 %v677
    %847 = vmatmul.mubr.f32.gmra.mrb[0].mxu0 %v675
    %v848 = vpop.f32.mrb[0].mxu0
    %v849 = vadd.f32 0.0, %v848
    %v850 = vpop.f32.mrb[0].mxu0
    %851 = vdwg.mxu0
    %852 = vmatprep.subr.mxu0 %v772
    %853 = vmatpush1.xpose.msra.mxu0 %v766
    %854 = vmatprep.subr.mxu0 0.0
    %855 = vmatpush1.xpose.msra.mxu0 0.0
    %856 = vmatprep.subr.mxu0 0.0
    %857 = vmatpush1.xpose.msra.mxu0 0.0
    %858 = vmatprep.subr.mxu0 0.0
    %859 = vmatpush1.xpose.msra.mxu0 0.0
    %860 = vmatprep.subr.mxu0 0.0
    %861 = vmatpush1.xpose.msra.mxu0 0.0
    %862 = vmatprep.subr.mxu0 0.0
    %863 = vmatpush1.xpose.msra.mxu0 0.0
    %864 = vmatprep.subr.mxu0 0.0
    %865 = vmatpush1.xpose.msra.mxu0 0.0
    %866 = vmatprep.subr.mxu0 0.0
    %867 = vmatpush1.xpose.msra.mxu0 0.0
    %868 = vmatprep.subr.mxu0 0.0
    %869 = vmatpush1.xpose.msra.mxu0 0.0
    %870 = vmatprep.subr.mxu0 0.0
    %871 = vmatpush1.xpose.msra.mxu0 0.0
    %872 = vmatprep.subr.mxu0 0.0
    %873 = vmatpush1.xpose.msra.mxu0 0.0
    %874 = vmatprep.subr.mxu0 0.0
    %875 = vmatpush1.xpose.msra.mxu0 0.0
    %876 = vmatprep.subr.mxu0 0.0
    %877 = vmatpush1.xpose.msra.mxu0 0.0
    %878 = vmatprep.subr.mxu0 0.0
    %879 = vmatpush1.xpose.msra.mxu0 0.0
    %880 = vmatprep.subr.mxu0 0.0
    %881 = vmatpush1.xpose.msra.mxu0 0.0
    %882 = vmatprep.subr.mxu0 0.0
    %883 = vmatpush1.xpose.msra.mxu0 0.0
    %884 = vmatprep.subr.mxu0 0.0
    %885 = vmatpush1.xpose.msra.mxu0 0.0
    %886 = vmatprep.subr.mxu0 0.0
    %887 = vmatpush1.xpose.msra.mxu0 0.0
    %888 = vmatprep.subr.mxu0 0.0
    %889 = vmatpush1.xpose.msra.mxu0 0.0
    %890 = vmatprep.subr.mxu0 0.0
    %891 = vmatpush1.xpose.msra.mxu0 0.0
    %892 = vmatprep.subr.mxu0 0.0
    %893 = vmatpush1.xpose.msra.mxu0 0.0
    %894 = vmatprep.subr.mxu0 0.0
    %895 = vmatpush1.xpose.msra.mxu0 0.0
    %896 = vmatprep.subr.mxu0 0.0
    %897 = vmatpush1.xpose.msra.mxu0 0.0
    %898 = vmatprep.subr.mxu0 0.0
    %899 = vmatpush1.xpose.msra.mxu0 0.0
    %900 = vmatprep.subr.mxu0 0.0
    %901 = vmatpush1.xpose.msra.mxu0 0.0
    %902 = vmatprep.subr.mxu0 0.0
    %903 = vmatpush1.xpose.msra.mxu0 0.0
    %904 = vmatprep.subr.mxu0 0.0
    %905 = vmatpush1.xpose.msra.mxu0 0.0
    %906 = vmatprep.subr.mxu0 0.0
    %907 = vmatpush1.xpose.msra.mxu0 0.0
    %908 = vmatprep.subr.mxu0 0.0
    %909 = vmatpush1.xpose.msra.mxu0 0.0
    %910 = vmatprep.subr.mxu0 0.0
    %911 = vmatpush1.xpose.msra.mxu0 0.0
    %912 = vmatprep.subr.mxu0 0.0
    %913 = vmatpush1.xpose.msra.mxu0 0.0
    %914 = vmatprep.subr.mxu0 0.0
    %915 = vmatpush1.xpose.msra.mxu0 0.0
    %916 = vmatprep.mubr.f32.mxu0 %v716
    %917 = vmatmul.mubr.f32.gmra.mrb[0].mxu0 %v714
    %v918 = vpop.f32.mrb[0].mxu0
    %v919 = vadd.f32 %v844, %v918
    %v920 = vpop.f32.mrb[0].mxu0
    %921 = vmatprep.mubr.f32.mxu0 %v720
    %922 = vmatmul.mubr.f32.gmra.mrb[0].mxu0 %v718
    %v923 = vpop.f32.mrb[0].mxu0
    %v924 = vadd.f32 %v849, %v923
    %v925 = vpop.f32.mrb[0].mxu0
    %926 = vdwg.mxu0
    %927 = vmatprep.subr.mxu0 %v773
    %928 = vmatpush1.xpose.msra.mxu0 %v767
    %929 = vmatprep.subr.mxu0 0.0
    %930 = vmatpush1.xpose.msra.mxu0 0.0
    %931 = vmatprep.subr.mxu0 0.0
    %932 = vmatpush1.xpose.msra.mxu0 0.0
    %933 = vmatprep.subr.mxu0 0.0
    %934 = vmatpush1.xpose.msra.mxu0 0.0
    %935 = vmatprep.subr.mxu0 0.0
    %936 = vmatpush1.xpose.msra.mxu0 0.0
    %937 = vmatprep.subr.mxu0 0.0
    %938 = vmatpush1.xpose.msra.mxu0 0.0
    %939 = vmatprep.subr.mxu0 0.0
    %940 = vmatpush1.xpose.msra.mxu0 0.0
    %941 = vmatprep.subr.mxu0 0.0
    %942 = vmatpush1.xpose.msra.mxu0 0.0
    %943 = vmatprep.subr.mxu0 0.0
    %944 = vmatpush1.xpose.msra.mxu0 0.0
    %945 = vmatprep.subr.mxu0 0.0
    %946 = vmatpush1.xpose.msra.mxu0 0.0
    %947 = vmatprep.subr.mxu0 0.0
    %948 = vmatpush1.xpose.msra.mxu0 0.0
    %949 = vmatprep.subr.mxu0 0.0
    %950 = vmatpush1.xpose.msra.mxu0 0.0
    %951 = vmatprep.subr.mxu0 0.0
    %952 = vmatpush1.xpose.msra.mxu0 0.0
    %953 = vmatprep.subr.mxu0 0.0
    %954 = vmatpush1.xpose.msra.mxu0 0.0
    %955 = vmatprep.subr.mxu0 0.0
    %956 = vmatpush1.xpose.msra.mxu0 0.0
    %957 = vmatprep.subr.mxu0 0.0
    %958 = vmatpush1.xpose.msra.mxu0 0.0
    %959 = vmatprep.subr.mxu0 0.0
    %960 = vmatpush1.xpose.msra.mxu0 0.0
    %961 = vmatprep.subr.mxu0 0.0
    %962 = vmatpush1.xpose.msra.mxu0 0.0
    %963 = vmatprep.subr.mxu0 0.0
    %964 = vmatpush1.xpose.msra.mxu0 0.0
    %965 = vmatprep.subr.mxu0 0.0
    %966 = vmatpush1.xpose.msra.mxu0 0.0
    %967 = vmatprep.subr.mxu0 0.0
    %968 = vmatpush1.xpose.msra.mxu0 0.0
    %969 = vmatprep.subr.mxu0 0.0
    %970 = vmatpush1.xpose.msra.mxu0 0.0
    %971 = vmatprep.subr.mxu0 0.0
    %972 = vmatpush1.xpose.msra.mxu0 0.0
    %973 = vmatprep.subr.mxu0 0.0
    %974 = vmatpush1.xpose.msra.mxu0 0.0
    %975 = vmatprep.subr.mxu0 0.0
    %976 = vmatpush1.xpose.msra.mxu0 0.0
    %977 = vmatprep.subr.mxu0 0.0
    %978 = vmatpush1.xpose.msra.mxu0 0.0
    %979 = vmatprep.subr.mxu0 0.0
    %980 = vmatpush1.xpose.msra.mxu0 0.0
    %981 = vmatprep.subr.mxu0 0.0
    %982 = vmatpush1.xpose.msra.mxu0 0.0
    %983 = vmatprep.subr.mxu0 0.0
    %984 = vmatpush1.xpose.msra.mxu0 0.0
    %985 = vmatprep.subr.mxu0 0.0
    %986 = vmatpush1.xpose.msra.mxu0 0.0
    %987 = vmatprep.subr.mxu0 0.0
    %988 = vmatpush1.xpose.msra.mxu0 0.0
    %989 = vmatprep.subr.mxu0 0.0
    %990 = vmatpush1.xpose.msra.mxu0 0.0
    %991 = vmatprep.mubr.f32.mxu0 %v759
    %992 = vmatmul.mubr.f32.gmra.mrb[0].mxu0 %v757
    %v993 = vpop.f32.mrb[0].mxu0
    %v994 = vadd.f32 %v919, %v993
    %v995 = vpop.f32.mrb[0].mxu0
    %996 = vmatprep.mubr.f32.mxu0 %v763
    %997 = vmatmul.mubr.f32.gmra.mrb[0].mxu0 %v761
    %v998 = vpop.f32.mrb[0].mxu0
    %v999 = vadd.f32 %v924, %v998
    %v1000 = vpop.f32.mrb[0].mxu0
    %1001 = vdwg.mxu0
    %v1002 = vld [vmem:[%s7] sm:$0x77]
    %v1003 = vld [vmem:[%s7 + $0x8] sm:$0x77]
    %v1004 = vld [vmem:[%s7 + $0x10] sm:$0x77]
    %v1008 = vcombine.high %v1002, %v1002
    %v1009 = vcombine.high %v1003, %v1003
    %v1010 = vcombine.high %v1004, %v1004
    %1014 = vmatprep.subr.mxu0 %v673
    %1015 = vmatpush1.xpose.msra.mxu0 %v671
    %1016 = vmatprep.subr.mxu0 %v677
    %1017 = vmatpush1.xpose.msra.mxu0 %v675
    %1018 = vmatprep.subr.mxu0 0.0
    %1019 = vmatpush1.xpose.msra.mxu0 0.0
    %1020 = vmatprep.subr.mxu0 0.0
    %1021 = vmatpush1.xpose.msra.mxu0 0.0
    %1022 = vmatprep.subr.mxu0 0.0
    %1023 = vmatpush1.xpose.msra.mxu0 0.0
    %1024 = vmatprep.subr.mxu0 0.0
    %1025 = vmatpush1.xpose.msra.mxu0 0.0
    %1026 = vmatprep.subr.mxu0 0.0
    %1027 = vmatpush1.xpose.msra.mxu0 0.0
    %1028 = vmatprep.subr.mxu0 0.0
    %1029 = vmatpush1.xpose.msra.mxu0 0.0
    %1030 = vmatprep.subr.mxu0 0.0
    %1031 = vmatpush1.xpose.msra.mxu0 0.0
    %1032 = vmatprep.subr.mxu0 0.0
    %1033 = vmatpush1.xpose.msra.mxu0 0.0
    %1034 = vmatprep.subr.mxu0 0.0
    %1035 = vmatpush1.xpose.msra.mxu0 0.0
    %1036 = vmatprep.subr.mxu0 0.0
    %1037 = vmatpush1.xpose.msra.mxu0 0.0
    %1038 = vmatprep.subr.mxu0 0.0
    %1039 = vmatpush1.xpose.msra.mxu0 0.0
    %1040 = vmatprep.subr.mxu0 0.0
    %1041 = vmatpush1.xpose.msra.mxu0 0.0
    %1042 = vmatprep.subr.mxu0 0.0
    %1043 = vmatpush1.xpose.msra.mxu0 0.0
    %1044 = vmatprep.subr.mxu0 0.0
    %1045 = vmatpush1.xpose.msra.mxu0 0.0
    %1046 = vmatprep.subr.mxu0 0.0
    %1047 = vmatpush1.xpose.msra.mxu0 0.0
    %1048 = vmatprep.subr.mxu0 0.0
    %1049 = vmatpush1.xpose.msra.mxu0 0.0
    %1050 = vmatprep.subr.mxu0 0.0
    %1051 = vmatpush1.xpose.msra.mxu0 0.0
    %1052 = vmatprep.subr.mxu0 0.0
    %1053 = vmatpush1.xpose.msra.mxu0 0.0
    %1054 = vmatprep.subr.mxu0 0.0
    %1055 = vmatpush1.xpose.msra.mxu0 0.0
    %1056 = vmatprep.subr.mxu0 0.0
    %1057 = vmatpush1.xpose.msra.mxu0 0.0
    %1058 = vmatprep.subr.mxu0 0.0
    %1059 = vmatpush1.xpose.msra.mxu0 0.0
    %1060 = vmatprep.subr.mxu0 0.0
    %1061 = vmatpush1.xpose.msra.mxu0 0.0
    %1062 = vmatprep.subr.mxu0 0.0
    %1063 = vmatpush1.xpose.msra.mxu0 0.0
    %1064 = vmatprep.subr.mxu0 0.0
    %1065 = vmatpush1.xpose.msra.mxu0 0.0
    %1066 = vmatprep.subr.mxu0 0.0
    %1067 = vmatpush1.xpose.msra.mxu0 0.0
    %1068 = vmatprep.subr.mxu0 0.0
    %1069 = vmatpush1.xpose.msra.mxu0 0.0
    %1070 = vmatprep.subr.mxu0 0.0
    %1071 = vmatpush1.xpose.msra.mxu0 0.0
    %1072 = vmatprep.subr.mxu0 0.0
    %1073 = vmatpush1.xpose.msra.mxu0 0.0
    %1074 = vmatprep.subr.mxu0 0.0
    %1075 = vmatpush1.xpose.msra.mxu0 0.0
    %1076 = vmatprep.subr.mxu0 0.0
    %1077 = vmatpush1.xpose.msra.mxu0 0.0
    %1078 = vmatprep.mubr.f32.mxu0 %v1008
    %1079 = vmatmul.mubr.f32.gmra.mrb[0].mxu0 %v1002
    %v1080 = vpop.f32.mrb[0].mxu0
    %v1081 = vadd.f32 0.0, %v1080
    %v1082 = vpop.f32.mrb[0].mxu0
    %1083 = vdwg.mxu0
    %1084 = vmatprep.subr.mxu0 %v716
    %1085 = vmatpush1.xpose.msra.mxu0 %v714
    %1086 = vmatprep.subr.mxu0 %v720
    %1087 = vmatpush1.xpose.msra.mxu0 %v718
    %1088 = vmatprep.subr.mxu0 0.0
    %1089 = vmatpush1.xpose.msra.mxu0 0.0
    %1090 = vmatprep.subr.mxu0 0.0
    %1091 = vmatpush1.xpose.msra.mxu0 0.0
    %1092 = vmatprep.subr.mxu0 0.0
    %1093 = vmatpush1.xpose.msra.mxu0 0.0
    %1094 = vmatprep.subr.mxu0 0.0
    %1095 = vmatpush1.xpose.msra.mxu0 0.0
    %1096 = vmatprep.subr.mxu0 0.0
    %1097 = vmatpush1.xpose.msra.mxu0 0.0
    %1098 = vmatprep.subr.mxu0 0.0
    %1099 = vmatpush1.xpose.msra.mxu0 0.0
    %1100 = vmatprep.subr.mxu0 0.0
    %1101 = vmatpush1.xpose.msra.mxu0 0.0
    %1102 = vmatprep.subr.mxu0 0.0
    %1103 = vmatpush1.xpose.msra.mxu0 0.0
    %1104 = vmatprep.subr.mxu0 0.0
    %1105 = vmatpush1.xpose.msra.mxu0 0.0
    %1106 = vmatprep.subr.mxu0 0.0
    %1107 = vmatpush1.xpose.msra.mxu0 0.0
    %1108 = vmatprep.subr.mxu0 0.0
    %1109 = vmatpush1.xpose.msra.mxu0 0.0
    %1110 = vmatprep.subr.mxu0 0.0
    %1111 = vmatpush1.xpose.msra.mxu0 0.0
    %1112 = vmatprep.subr.mxu0 0.0
    %1113 = vmatpush1.xpose.msra.mxu0 0.0
    %1114 = vmatprep.subr.mxu0 0.0
    %1115 = vmatpush1.xpose.msra.mxu0 0.0
    %1116 = vmatprep.subr.mxu0 0.0
    %1117 = vmatpush1.xpose.msra.mxu0 0.0
    %1118 = vmatprep.subr.mxu0 0.0
    %1119 = vmatpush1.xpose.msra.mxu0 0.0
    %1120 = vmatprep.subr.mxu0 0.0
    %1121 = vmatpush1.xpose.msra.mxu0 0.0
    %1122 = vmatprep.subr.mxu0 0.0
    %1123 = vmatpush1.xpose.msra.mxu0 0.0
    %1124 = vmatprep.subr.mxu0 0.0
    %1125 = vmatpush1.xpose.msra.mxu0 0.0
    %1126 = vmatprep.subr.mxu0 0.0
    %1127 = vmatpush1.xpose.msra.mxu0 0.0
    %1128 = vmatprep.subr.mxu0 0.0
    %1129 = vmatpush1.xpose.msra.mxu0 0.0
    %1130 = vmatprep.subr.mxu0 0.0
    %1131 = vmatpush1.xpose.msra.mxu0 0.0
    %1132 = vmatprep.subr.mxu0 0.0
    %1133 = vmatpush1.xpose.msra.mxu0 0.0
    %1134 = vmatprep.subr.mxu0 0.0
    %1135 = vmatpush1.xpose.msra.mxu0 0.0
    %1136 = vmatprep.subr.mxu0 0.0
    %1137 = vmatpush1.xpose.msra.mxu0 0.0
    %1138 = vmatprep.subr.mxu0 0.0
    %1139 = vmatpush1.xpose.msra.mxu0 0.0
    %1140 = vmatprep.subr.mxu0 0.0
    %1141 = vmatpush1.xpose.msra.mxu0 0.0
    %1142 = vmatprep.subr.mxu0 0.0
    %1143 = vmatpush1.xpose.msra.mxu0 0.0
    %1144 = vmatprep.subr.mxu0 0.0
    %1145 = vmatpush1.xpose.msra.mxu0 0.0
    %1146 = vmatprep.subr.mxu0 0.0
    %1147 = vmatpush1.xpose.msra.mxu0 0.0
    %1148 = vmatprep.mubr.f32.mxu0 %v1009
    %1149 = vmatmul.mubr.f32.gmra.mrb[0].mxu0 %v1003
    %v1150 = vpop.f32.mrb[0].mxu0
    %v1151 = vadd.f32 %v1081, %v1150
    %v1152 = vpop.f32.mrb[0].mxu0
    %1153 = vdwg.mxu0
    %1154 = vmatprep.subr.mxu0 %v759
    %1155 = vmatpush1.xpose.msra.mxu0 %v757
    %1156 = vmatprep.subr.mxu0 %v763
    %1157 = vmatpush1.xpose.msra.mxu0 %v761
    %1158 = vmatprep.subr.mxu0 0.0
    %1159 = vmatpush1.xpose.msra.mxu0 0.0
    %1160 = vmatprep.subr.mxu0 0.0
    %1161 = vmatpush1.xpose.msra.mxu0 0.0
    %1162 = vmatprep.subr.mxu0 0.0
    %1163 = vmatpush1.xpose.msra.mxu0 0.0
    %1164 = vmatprep.subr.mxu0 0.0
    %1165 = vmatpush1.xpose.msra.mxu0 0.0
    %1166 = vmatprep.subr.mxu0 0.0
    %1167 = vmatpush1.xpose.msra.mxu0 0.0
    %1168 = vmatprep.subr.mxu0 0.0
    %1169 = vmatpush1.xpose.msra.mxu0 0.0
    %1170 = vmatprep.subr.mxu0 0.0
    %1171 = vmatpush1.xpose.msra.mxu0 0.0
    %1172 = vmatprep.subr.mxu0 0.0
    %1173 = vmatpush1.xpose.msra.mxu0 0.0
    %1174 = vmatprep.subr.mxu0 0.0
    %1175 = vmatpush1.xpose.msra.mxu0 0.0
    %1176 = vmatprep.subr.mxu0 0.0
    %1177 = vmatpush1.xpose.msra.mxu0 0.0
    %1178 = vmatprep.subr.mxu0 0.0
    %1179 = vmatpush1.xpose.msra.mxu0 0.0
    %1180 = vmatprep.subr.mxu0 0.0
    %1181 = vmatpush1.xpose.msra.mxu0 0.0
    %1182 = vmatprep.subr.mxu0 0.0
    %1183 = vmatpush1.xpose.msra.mxu0 0.0
    %1184 = vmatprep.subr.mxu0 0.0
    %1185 = vmatpush1.xpose.msra.mxu0 0.0
    %1186 = vmatprep.subr.mxu0 0.0
    %1187 = vmatpush1.xpose.msra.mxu0 0.0
    %1188 = vmatprep.subr.mxu0 0.0
    %1189 = vmatpush1.xpose.msra.mxu0 0.0
    %1190 = vmatprep.subr.mxu0 0.0
    %1191 = vmatpush1.xpose.msra.mxu0 0.0
    %1192 = vmatprep.subr.mxu0 0.0
    %1193 = vmatpush1.xpose.msra.mxu0 0.0
    %1194 = vmatprep.subr.mxu0 0.0
    %1195 = vmatpush1.xpose.msra.mxu0 0.0
    %1196 = vmatprep.subr.mxu0 0.0
    %1197 = vmatpush1.xpose.msra.mxu0 0.0
    %1198 = vmatprep.subr.mxu0 0.0
    %1199 = vmatpush1.xpose.msra.mxu0 0.0
    %1200 = vmatprep.subr.mxu0 0.0
    %1201 = vmatpush1.xpose.msra.mxu0 0.0
    %1202 = vmatprep.subr.mxu0 0.0
    %1203 = vmatpush1.xpose.msra.mxu0 0.0
    %1204 = vmatprep.subr.mxu0 0.0
    %1205 = vmatpush1.xpose.msra.mxu0 0.0
    %1206 = vmatprep.subr.mxu0 0.0
    %1207 = vmatpush1.xpose.msra.mxu0 0.0
    %1208 = vmatprep.subr.mxu0 0.0
    %1209 = vmatpush1.xpose.msra.mxu0 0.0
    %1210 = vmatprep.subr.mxu0 0.0
    %1211 = vmatpush1.xpose.msra.mxu0 0.0
    %1212 = vmatprep.subr.mxu0 0.0
    %1213 = vmatpush1.xpose.msra.mxu0 0.0
    %1214 = vmatprep.subr.mxu0 0.0
    %1215 = vmatpush1.xpose.msra.mxu0 0.0
    %1216 = vmatprep.subr.mxu0 0.0
    %1217 = vmatpush1.xpose.msra.mxu0 0.0
    %1218 = vmatprep.mubr.f32.mxu0 %v1010
    %1219 = vmatmul.mubr.f32.gmra.mrb[0].mxu0 %v1004
    %v1220 = vpop.f32.mrb[0].mxu0
    %v1221 = vadd.f32 %v1151, %v1220
    %v1222 = vpop.f32.mrb[0].mxu0
    %1223 = vdwg.mxu0
    %v1224 = vlaneseq
    %v1225 = vshrl.u32 %v1224, 7
    %v1226 = vadd.s32 %v1225, 8
    %v1227 = vlaneseq
    %v1228 = vand.u32 %v1227, 127
    %vm1229 = vcmp.eq.s32.totalorder %v1225, %v1228
    %vm1230 = vcmp.eq.s32.totalorder %v1226, %v1228
    %v1231 = vsel %vm1229, 1.0, 0.0
    %v1232 = vsel %vm1230, 1.0, 0.0
    %v1233 = vmax.f32 %v51, %v1231
    %v1234 = vmax.f32 %v52, %v1232
    %1236 = vset.pattern.permute.xlu0 0
    %1237 = vperm.xlu0 %1236, %v994
    %v1238 = vpop.permute.xlu0 %1237
    %1241 = vset.pattern.permute.xlu0 0
    %1242 = vperm.xlu0 %1241, %v999
    %v1243 = vpop.permute.xlu0 %1242
    %v1245 = vlaneseq
    %v1246 = vshrl.u32 %v1245, 7
    %v1247 = vsub.s32 0, %v1246
    %v1248 = vrot.slane %v1221, %v1247
    %v1249 = vadd.f32 %v1238, %v1248
    %v1250 = vadd.f32 %v1243, %v1248
    %vm1251 = vcmp.ge.f32.partialorder %v1249, 0.0
    %vm1252 = vcmp.ge.f32.partialorder %v1250, 0.0
    %v1253 = vmul.f32 %v1249, 0.2
    %v1254 = vmul.f32 %v1250, 0.2
    %v1255 = vsel %vm1251, %v1249, %v1253
    %v1256 = vsel %vm1252, %v1250, %v1254
    %vm1257 = vcmp.gt.f32.partialorder %v1233, 0.0
    %vm1258 = vcmp.gt.f32.partialorder %v1234, 0.0
    %v1259 = vsel %vm1257, %v1255, -1e+30
    %v1260 = vsel %vm1258, %v1256, -1e+30
    %vm1261 = vcmask 97280
    %v1262 = vsel %vm1261, %v1259, -inf
    %1263 = vmax.xlane.f32.xlu0 %v1262
    %v1264 = vpop.xlane.xlu0 %1263
    %vm1265 = vcmask 93184
    %v1266 = vsel %vm1265, %v1260, -inf
    %1267 = vmax.xlane.f32.xlu0 %v1266
    %v1268 = vpop.xlane.xlu0 %1267
    %v1269 = vsub.f32 %v1259, %v1264
    %v1270 = vsub.f32 %v1260, %v1268
    %v1271 = vmul.f32 %v1269, 1.442695
    %v1272 = vpow.pop %v1271
    %v1273 = vmul.f32 %v1270, 1.442695
    %v1274 = vpow.pop %v1273
    %v1275 = vsel %vm1261, %v1272, 0.0
    %1276 = vadd.xlane.f32.xlu0 %v1275
    %v1277 = vpop.xlane.xlu0 %1276
    %v1278 = vsel %vm1265, %v1274, 0.0
    %1279 = vadd.xlane.f32.xlu0 %v1278
    %v1280 = vpop.xlane.xlu0 %1279
    %v1281 = vrcp.pop %v1277
    %v1282 = vrcp.pop %v1280
    %v1283 = vmul.f32 %v1272, %v1281
    %v1284 = vmul.f32 %v1274, %v1282
    %v1286 = vsel %vm1261, %v1283, 0
    %v1289 = vsel %vm1261, %v1284, 0
    %vm1291 = vcmask 1043456
    %v1293 = vsel %vm1291, %v675, 0
    %v1296 = vsel %vm1291, %v677, 0
    %1298 = vmatprep.subr.mxu0 %v673
    %1299 = vmatpush1.msra.mxu0 %v671
    %1300 = vmatprep.subr.mxu0 %v1296
    %1301 = vmatpush1.msra.mxu0 %v1293
    %1302 = vmatprep.subr.mxu0 0.0
    %1303 = vmatpush1.msra.mxu0 0.0
    %1304 = vmatprep.subr.mxu0 0.0
    %1305 = vmatpush1.msra.mxu0 0.0
    %1306 = vmatprep.subr.mxu0 0.0
    %1307 = vmatpush1.msra.mxu0 0.0
    %1308 = vmatprep.subr.mxu0 0.0
    %1309 = vmatpush1.msra.mxu0 0.0
    %1310 = vmatprep.subr.mxu0 0.0
    %1311 = vmatpush1.msra.mxu0 0.0
    %1312 = vmatprep.subr.mxu0 0.0
    %1313 = vmatpush1.msra.mxu0 0.0
    %1314 = vmatprep.subr.mxu0 0.0
    %1315 = vmatpush1.msra.mxu0 0.0
    %1316 = vmatprep.subr.mxu0 0.0
    %1317 = vmatpush1.msra.mxu0 0.0
    %1318 = vmatprep.subr.mxu0 0.0
    %1319 = vmatpush1.msra.mxu0 0.0
    %1320 = vmatprep.subr.mxu0 0.0
    %1321 = vmatpush1.msra.mxu0 0.0
    %1322 = vmatprep.subr.mxu0 0.0
    %1323 = vmatpush1.msra.mxu0 0.0
    %1324 = vmatprep.subr.mxu0 0.0
    %1325 = vmatpush1.msra.mxu0 0.0
    %1326 = vmatprep.subr.mxu0 0.0
    %1327 = vmatpush1.msra.mxu0 0.0
    %1328 = vmatprep.subr.mxu0 0.0
    %1329 = vmatpush1.msra.mxu0 0.0
    %1330 = vmatprep.subr.mxu0 0.0
    %1331 = vmatpush1.msra.mxu0 0.0
    %1332 = vmatprep.subr.mxu0 0.0
    %1333 = vmatpush1.msra.mxu0 0.0
    %1334 = vmatprep.subr.mxu0 0.0
    %1335 = vmatpush1.msra.mxu0 0.0
    %1336 = vmatprep.subr.mxu0 0.0
    %1337 = vmatpush1.msra.mxu0 0.0
    %1338 = vmatprep.subr.mxu0 0.0
    %1339 = vmatpush1.msra.mxu0 0.0
    %1340 = vmatprep.subr.mxu0 0.0
    %1341 = vmatpush1.msra.mxu0 0.0
    %1342 = vmatprep.subr.mxu0 0.0
    %1343 = vmatpush1.msra.mxu0 0.0
    %1344 = vmatprep.subr.mxu0 0.0
    %1345 = vmatpush1.msra.mxu0 0.0
    %1346 = vmatprep.subr.mxu0 0.0
    %1347 = vmatpush1.msra.mxu0 0.0
    %1348 = vmatprep.subr.mxu0 0.0
    %1349 = vmatpush1.msra.mxu0 0.0
    %1350 = vmatprep.subr.mxu0 0.0
    %1351 = vmatpush1.msra.mxu0 0.0
    %1352 = vmatprep.subr.mxu0 0.0
    %1353 = vmatpush1.msra.mxu0 0.0
    %1354 = vmatprep.subr.mxu0 0.0
    %1355 = vmatpush1.msra.mxu0 0.0
    %1356 = vmatprep.subr.mxu0 0.0
    %1357 = vmatpush1.msra.mxu0 0.0
    %1358 = vmatprep.subr.mxu0 0.0
    %1359 = vmatpush1.msra.mxu0 0.0
    %1360 = vmatprep.subr.mxu0 0.0
    %1361 = vmatpush1.msra.mxu0 0.0
    %1362 = vmatprep.mubr.f32.mxu0 0.0
    %1363 = vmatmul.mubr.f32.gmra.mrb[0].mxu0 %v1286
    %v1364 = vpop.f32.mrb[0].mxu0
    %v1365 = vadd.f32 0.0, %v1364
    %v1366 = vpop.f32.mrb[0].mxu0
    %v1367 = vadd.f32 0.0, %v1366
    %1368 = vmatprep.mubr.f32.mxu0 0.0
    %1369 = vmatmul.mubr.f32.gmra.mrb[0].mxu0 %v1289
    %v1370 = vpop.f32.mrb[0].mxu0
    %v1371 = vadd.f32 0.0, %v1370
    %v1372 = vpop.f32.mrb[0].mxu0
    %v1373 = vadd.f32 0.0, %v1372
    %1374 = vdwg.mxu0
    %1375 = vset.pattern.permute.xlu0 1
    %1376 = vperm.xlu0 %1375, %v994
    %v1377 = vpop.permute.xlu0 %1376
    %1379 = vset.pattern.permute.xlu0 1
    %1380 = vperm.xlu0 %1379, %v999
    %v1381 = vpop.permute.xlu0 %1380
    %v1383 = vlaneseq
    %v1384 = vshrl.u32 %v1383, 7
    %v1385 = vsub.s32 1, %v1384
    %v1386 = vrot.slane %v1221, %v1385
    %v1387 = vadd.f32 %v1377, %v1386
    %v1388 = vadd.f32 %v1381, %v1386
    %vm1389 = vcmp.ge.f32.partialorder %v1387, 0.0
    %vm1390 = vcmp.ge.f32.partialorder %v1388, 0.0
    %v1391 = vmul.f32 %v1387, 0.2
    %v1392 = vmul.f32 %v1388, 0.2
    %v1393 = vsel %vm1389, %v1387, %v1391
    %v1394 = vsel %vm1390, %v1388, %v1392
    %v1395 = vsel %vm1257, %v1393, -1e+30
    %v1396 = vsel %vm1258, %v1394, -1e+30
    %v1397 = vsel %vm1261, %v1395, -inf
    %1398 = vmax.xlane.f32.xlu0 %v1397
    %v1399 = vpop.xlane.xlu0 %1398
    %v1400 = vsel %vm1265, %v1396, -inf
    %1401 = vmax.xlane.f32.xlu0 %v1400
    %v1402 = vpop.xlane.xlu0 %1401
    %v1403 = vsub.f32 %v1395, %v1399
    %v1404 = vsub.f32 %v1396, %v1402
    %v1405 = vmul.f32 %v1403, 1.442695
    %v1406 = vpow.pop %v1405
    %v1407 = vmul.f32 %v1404, 1.442695
    %v1408 = vpow.pop %v1407
    %v1409 = vsel %vm1261, %v1406, 0.0
    %1410 = vadd.xlane.f32.xlu0 %v1409
    %v1411 = vpop.xlane.xlu0 %1410
    %v1412 = vsel %vm1265, %v1408, 0.0
    %1413 = vadd.xlane.f32.xlu0 %v1412
    %v1414 = vpop.xlane.xlu0 %1413
    %v1415 = vrcp.pop %v1411
    %v1416 = vrcp.pop %v1414
    %v1417 = vmul.f32 %v1406, %v1415
    %v1418 = vmul.f32 %v1408, %v1416
    %v1420 = vsel %vm1261, %v1417, 0
    %v1423 = vsel %vm1261, %v1418, 0
    %v1426 = vsel %vm1291, %v718, 0
    %v1429 = vsel %vm1291, %v720, 0
    %1431 = vmatprep.subr.mxu0 %v716
    %1432 = vmatpush1.msra.mxu0 %v714
    %1433 = vmatprep.subr.mxu0 %v1429
    %1434 = vmatpush1.msra.mxu0 %v1426
    %1435 = vmatprep.subr.mxu0 0.0
    %1436 = vmatpush1.msra.mxu0 0.0
    %1437 = vmatprep.subr.mxu0 0.0
    %1438 = vmatpush1.msra.mxu0 0.0
    %1439 = vmatprep.subr.mxu0 0.0
    %1440 = vmatpush1.msra.mxu0 0.0
    %1441 = vmatprep.subr.mxu0 0.0
    %1442 = vmatpush1.msra.mxu0 0.0
    %1443 = vmatprep.subr.mxu0 0.0
    %1444 = vmatpush1.msra.mxu0 0.0
    %1445 = vmatprep.subr.mxu0 0.0
    %1446 = vmatpush1.msra.mxu0 0.0
    %1447 = vmatprep.subr.mxu0 0.0
    %1448 = vmatpush1.msra.mxu0 0.0
    %1449 = vmatprep.subr.mxu0 0.0
    %1450 = vmatpush1.msra.mxu0 0.0
    %1451 = vmatprep.subr.mxu0 0.0
    %1452 = vmatpush1.msra.mxu0 0.0
    %1453 = vmatprep.subr.mxu0 0.0
    %1454 = vmatpush1.msra.mxu0 0.0
    %1455 = vmatprep.subr.mxu0 0.0
    %1456 = vmatpush1.msra.mxu0 0.0
    %1457 = vmatprep.subr.mxu0 0.0
    %1458 = vmatpush1.msra.mxu0 0.0
    %1459 = vmatprep.subr.mxu0 0.0
    %1460 = vmatpush1.msra.mxu0 0.0
    %1461 = vmatprep.subr.mxu0 0.0
    %1462 = vmatpush1.msra.mxu0 0.0
    %1463 = vmatprep.subr.mxu0 0.0
    %1464 = vmatpush1.msra.mxu0 0.0
    %1465 = vmatprep.subr.mxu0 0.0
    %1466 = vmatpush1.msra.mxu0 0.0
    %1467 = vmatprep.subr.mxu0 0.0
    %1468 = vmatpush1.msra.mxu0 0.0
    %1469 = vmatprep.subr.mxu0 0.0
    %1470 = vmatpush1.msra.mxu0 0.0
    %1471 = vmatprep.subr.mxu0 0.0
    %1472 = vmatpush1.msra.mxu0 0.0
    %1473 = vmatprep.subr.mxu0 0.0
    %1474 = vmatpush1.msra.mxu0 0.0
    %1475 = vmatprep.subr.mxu0 0.0
    %1476 = vmatpush1.msra.mxu0 0.0
    %1477 = vmatprep.subr.mxu0 0.0
    %1478 = vmatpush1.msra.mxu0 0.0
    %1479 = vmatprep.subr.mxu0 0.0
    %1480 = vmatpush1.msra.mxu0 0.0
    %1481 = vmatprep.subr.mxu0 0.0
    %1482 = vmatpush1.msra.mxu0 0.0
    %1483 = vmatprep.subr.mxu0 0.0
    %1484 = vmatpush1.msra.mxu0 0.0
    %1485 = vmatprep.subr.mxu0 0.0
    %1486 = vmatpush1.msra.mxu0 0.0
    %1487 = vmatprep.subr.mxu0 0.0
    %1488 = vmatpush1.msra.mxu0 0.0
    %1489 = vmatprep.subr.mxu0 0.0
    %1490 = vmatpush1.msra.mxu0 0.0
    %1491 = vmatprep.subr.mxu0 0.0
    %1492 = vmatpush1.msra.mxu0 0.0
    %1493 = vmatprep.subr.mxu0 0.0
    %1494 = vmatpush1.msra.mxu0 0.0
    %1495 = vmatprep.mubr.f32.mxu0 0.0
    %1496 = vmatmul.mubr.f32.gmra.mrb[0].mxu0 %v1420
    %v1497 = vpop.f32.mrb[0].mxu0
    %v1498 = vadd.f32 0.0, %v1497
    %v1499 = vpop.f32.mrb[0].mxu0
    %v1500 = vadd.f32 0.0, %v1499
    %1501 = vmatprep.mubr.f32.mxu0 0.0
    %1502 = vmatmul.mubr.f32.gmra.mrb[0].mxu0 %v1423
    %v1503 = vpop.f32.mrb[0].mxu0
    %v1504 = vadd.f32 0.0, %v1503
    %v1505 = vpop.f32.mrb[0].mxu0
    %v1506 = vadd.f32 0.0, %v1505
    %1507 = vdwg.mxu0
    %1508 = vset.pattern.permute.xlu0 2
    %1509 = vperm.xlu0 %1508, %v994
    %v1510 = vpop.permute.xlu0 %1509
    %1512 = vset.pattern.permute.xlu0 2
    %1513 = vperm.xlu0 %1512, %v999
    %v1514 = vpop.permute.xlu0 %1513
    %v1516 = vlaneseq
    %v1517 = vshrl.u32 %v1516, 7
    %v1518 = vsub.s32 2, %v1517
    %v1519 = vrot.slane %v1221, %v1518
    %v1520 = vadd.f32 %v1510, %v1519
    %v1521 = vadd.f32 %v1514, %v1519
    %vm1522 = vcmp.ge.f32.partialorder %v1520, 0.0
    %vm1523 = vcmp.ge.f32.partialorder %v1521, 0.0
    %v1524 = vmul.f32 %v1520, 0.2
    %v1525 = vmul.f32 %v1521, 0.2
    %v1526 = vsel %vm1522, %v1520, %v1524
    %v1527 = vsel %vm1523, %v1521, %v1525
    %v1528 = vsel %vm1257, %v1526, -1e+30
    %v1529 = vsel %vm1258, %v1527, -1e+30
    %v1530 = vsel %vm1261, %v1528, -inf
    %1531 = vmax.xlane.f32.xlu0 %v1530
    %v1532 = vpop.xlane.xlu0 %1531
    %v1533 = vsel %vm1265, %v1529, -inf
    %1534 = vmax.xlane.f32.xlu0 %v1533
    %v1535 = vpop.xlane.xlu0 %1534
    %v1536 = vsub.f32 %v1528, %v1532
    %v1537 = vsub.f32 %v1529, %v1535
    %v1538 = vmul.f32 %v1536, 1.442695
    %v1539 = vpow.pop %v1538
    %v1540 = vmul.f32 %v1537, 1.442695
    %v1541 = vpow.pop %v1540
    %v1542 = vsel %vm1261, %v1539, 0.0
    %1543 = vadd.xlane.f32.xlu0 %v1542
    %v1544 = vpop.xlane.xlu0 %1543
    %v1545 = vsel %vm1265, %v1541, 0.0
    %1546 = vadd.xlane.f32.xlu0 %v1545
    %v1547 = vpop.xlane.xlu0 %1546
    %v1548 = vrcp.pop %v1544
    %v1549 = vrcp.pop %v1547
    %v1550 = vmul.f32 %v1539, %v1548
    %v1551 = vmul.f32 %v1541, %v1549
    %v1553 = vsel %vm1261, %v1550, 0
    %v1556 = vsel %vm1261, %v1551, 0
    %v1559 = vsel %vm1291, %v761, 0
    %v1562 = vsel %vm1291, %v763, 0
    %1564 = vmatprep.subr.mxu0 %v759
    %1565 = vmatpush1.msra.mxu0 %v757
    %1566 = vmatprep.subr.mxu0 %v1562
    %1567 = vmatpush1.msra.mxu0 %v1559
    %1568 = vmatprep.subr.mxu0 0.0
    %1569 = vmatpush1.msra.mxu0 0.0
    %1570 = vmatprep.subr.mxu0 0.0
    %1571 = vmatpush1.msra.mxu0 0.0
    %1572 = vmatprep.subr.mxu0 0.0
    %1573 = vmatpush1.msra.mxu0 0.0
    %1574 = vmatprep.subr.mxu0 0.0
    %1575 = vmatpush1.msra.mxu0 0.0
    %1576 = vmatprep.subr.mxu0 0.0
    %1577 = vmatpush1.msra.mxu0 0.0
    %1578 = vmatprep.subr.mxu0 0.0
    %1579 = vmatpush1.msra.mxu0 0.0
    %1580 = vmatprep.subr.mxu0 0.0
    %1581 = vmatpush1.msra.mxu0 0.0
    %1582 = vmatprep.subr.mxu0 0.0
    %1583 = vmatpush1.msra.mxu0 0.0
    %1584 = vmatprep.subr.mxu0 0.0
    %1585 = vmatpush1.msra.mxu0 0.0
    %1586 = vmatprep.subr.mxu0 0.0
    %1587 = vmatpush1.msra.mxu0 0.0
    %1588 = vmatprep.subr.mxu0 0.0
    %1589 = vmatpush1.msra.mxu0 0.0
    %1590 = vmatprep.subr.mxu0 0.0
    %1591 = vmatpush1.msra.mxu0 0.0
    %1592 = vmatprep.subr.mxu0 0.0
    %1593 = vmatpush1.msra.mxu0 0.0
    %1594 = vmatprep.subr.mxu0 0.0
    %1595 = vmatpush1.msra.mxu0 0.0
    %1596 = vmatprep.subr.mxu0 0.0
    %1597 = vmatpush1.msra.mxu0 0.0
    %1598 = vmatprep.subr.mxu0 0.0
    %1599 = vmatpush1.msra.mxu0 0.0
    %1600 = vmatprep.subr.mxu0 0.0
    %1601 = vmatpush1.msra.mxu0 0.0
    %1602 = vmatprep.subr.mxu0 0.0
    %1603 = vmatpush1.msra.mxu0 0.0
    %1604 = vmatprep.subr.mxu0 0.0
    %1605 = vmatpush1.msra.mxu0 0.0
    %1606 = vmatprep.subr.mxu0 0.0
    %1607 = vmatpush1.msra.mxu0 0.0
    %1608 = vmatprep.subr.mxu0 0.0
    %1609 = vmatpush1.msra.mxu0 0.0
    %1610 = vmatprep.subr.mxu0 0.0
    %1611 = vmatpush1.msra.mxu0 0.0
    %1612 = vmatprep.subr.mxu0 0.0
    %1613 = vmatpush1.msra.mxu0 0.0
    %1614 = vmatprep.subr.mxu0 0.0
    %1615 = vmatpush1.msra.mxu0 0.0
    %1616 = vmatprep.subr.mxu0 0.0
    %1617 = vmatpush1.msra.mxu0 0.0
    %1618 = vmatprep.subr.mxu0 0.0
    %1619 = vmatpush1.msra.mxu0 0.0
    %1620 = vmatprep.subr.mxu0 0.0
    %1621 = vmatpush1.msra.mxu0 0.0
    %1622 = vmatprep.subr.mxu0 0.0
    %1623 = vmatpush1.msra.mxu0 0.0
    %1624 = vmatprep.subr.mxu0 0.0
    %1625 = vmatpush1.msra.mxu0 0.0
    %1626 = vmatprep.subr.mxu0 0.0
    %1627 = vmatpush1.msra.mxu0 0.0
    %1628 = vmatprep.mubr.f32.mxu0 0.0
    %1629 = vmatmul.mubr.f32.gmra.mrb[0].mxu0 %v1553
    %v1630 = vpop.f32.mrb[0].mxu0
    %v1631 = vadd.f32 0.0, %v1630
    %v1632 = vpop.f32.mrb[0].mxu0
    %v1633 = vadd.f32 0.0, %v1632
    %1634 = vmatprep.mubr.f32.mxu0 0.0
    %1635 = vmatmul.mubr.f32.gmra.mrb[0].mxu0 %v1556
    %v1636 = vpop.f32.mrb[0].mxu0
    %v1637 = vadd.f32 0.0, %v1636
    %v1638 = vpop.f32.mrb[0].mxu0
    %v1639 = vadd.f32 0.0, %v1638
    %1640 = vdwg.mxu0
    %v1641 = vld [vmem:[%s8] sm:$0x3f]
    %v1643 = vlaneseq
    %v1644 = vshrl.u32 %v1643, 7
    %v1645 = vsub.s32 0, %v1644
    %v1646 = vrot.slane %v1641, %v1645
    %v1647 = vlaneseq
    %v1648 = vshrl.u32 %v1647, 7
    %v1649 = vsub.s32 1, %v1648
    %v1650 = vrot.slane %v1641, %v1649
    %v1651 = vlaneseq
    %v1652 = vshrl.u32 %v1651, 7
    %v1653 = vsub.s32 2, %v1652
    %v1654 = vrot.slane %v1641, %v1653
    %v1655 = vlaneseq
    %v1656 = vshrl.u32 %v1655, 7
    %v1657 = vsub.s32 3, %v1656
    %v1658 = vrot.slane %v1641, %v1657
    %v1659 = vlaneseq
    %v1660 = vshrl.u32 %v1659, 7
    %v1661 = vsub.s32 4, %v1660
    %v1662 = vrot.slane %v1641, %v1661
    %v1663 = vlaneseq
    %v1664 = vshrl.u32 %v1663, 7
    %v1665 = vsub.s32 5, %v1664
    %v1666 = vrot.slane %v1641, %v1665
    %v1673 = vadd.f32 %v1365, %v1646
    %v1674 = vadd.f32 %v1367, %v1650
    %v1675 = vadd.f32 %v1498, %v1654
    %v1676 = vadd.f32 %v1500, %v1658
    %v1677 = vadd.f32 %v1631, %v1662
    %v1678 = vadd.f32 %v1633, %v1666
    %v1679 = vadd.f32 %v1371, %v1646
    %v1680 = vadd.f32 %v1373, %v1650
    %v1681 = vadd.f32 %v1504, %v1654
    %v1682 = vadd.f32 %v1506, %v1658
    %v1683 = vadd.f32 %v1637, %v1662
    %v1684 = vadd.f32 %v1639, %v1666
    %v1685 = vld [vmem:[%s9] sm:$0x3f]
    %v1687 = vlaneseq
    %v1688 = vshrl.u32 %v1687, 7
    %v1689 = vsub.s32 0, %v1688
    %v1690 = vrot.slane %v1685, %v1689
    %v1691 = vlaneseq
    %v1692 = vshrl.u32 %v1691, 7
    %v1693 = vsub.s32 1, %v1692
    %v1694 = vrot.slane %v1685, %v1693
    %v1695 = vlaneseq
    %v1696 = vshrl.u32 %v1695, 7
    %v1697 = vsub.s32 2, %v1696
    %v1698 = vrot.slane %v1685, %v1697
    %v1699 = vlaneseq
    %v1700 = vshrl.u32 %v1699, 7
    %v1701 = vsub.s32 3, %v1700
    %v1702 = vrot.slane %v1685, %v1701
    %v1703 = vlaneseq
    %v1704 = vshrl.u32 %v1703, 7
    %v1705 = vsub.s32 4, %v1704
    %v1706 = vrot.slane %v1685, %v1705
    %v1707 = vlaneseq
    %v1708 = vshrl.u32 %v1707, 7
    %v1709 = vsub.s32 5, %v1708
    %v1710 = vrot.slane %v1685, %v1709
    %v1717 = vmul.f32 %v1673, %v1690
    %v1718 = vmul.f32 %v1674, %v1694
    %v1719 = vmul.f32 %v1675, %v1698
    %v1720 = vmul.f32 %v1676, %v1702
    %v1721 = vmul.f32 %v1677, %v1706
    %v1722 = vmul.f32 %v1678, %v1710
    %v1723 = vmul.f32 %v1679, %v1690
    %v1724 = vmul.f32 %v1680, %v1694
    %v1725 = vmul.f32 %v1681, %v1698
    %v1726 = vmul.f32 %v1682, %v1702
    %v1727 = vmul.f32 %v1683, %v1706
    %v1728 = vmul.f32 %v1684, %v1710
    %v1729 = vadd.f32 %v1717, %v1718
    %v1730 = vadd.f32 %v1729, %v1719
    %v1731 = vadd.f32 %v1730, %v1720
    %v1732 = vadd.f32 %v1731, %v1721
    %v1733 = vadd.f32 %v1732, %v1722
    %1734 = vadd.xlane.f32.xlu0 %v1733
    %v1735 = vpop.xlane.xlu0 %1734
    %v1736 = vsel %vm1291, %v1723, 0.0
    %v1737 = vsel %vm1291, %v1724, 0.0
    %v1738 = vadd.f32 %v1736, %v1737
    %v1739 = vsel %vm1291, %v1725, 0.0
    %v1740 = vadd.f32 %v1738, %v1739
    %v1741 = vsel %vm1291, %v1726, 0.0
    %v1742 = vadd.f32 %v1740, %v1741
    %v1743 = vsel %vm1291, %v1727, 0.0
    %v1744 = vadd.f32 %v1742, %v1743
    %v1745 = vsel %vm1291, %v1728, 0.0
    %v1746 = vadd.f32 %v1744, %v1745
    %1747 = vadd.xlane.f32.xlu0 %v1746
    %v1748 = vpop.xlane.xlu0 %1747
    %v1749 = vtanh.pop %v1735
    %v1750 = vtanh.pop %v1748
    %v1751 = vmul.f32 %v1231, %v1749
    %v1752 = vmul.f32 %v1232, %v1750
    %v1754 = vsel %vm1261, 1.0, 0
    %v1757 = vsel %vm1291, %v1752, 0
    %1759 = vmatprep.subr.mxu0 0.0
    %1760 = vmatpush1.msra.mxu0 %v1751
    %1761 = vmatprep.subr.mxu0 0.0
    %1762 = vmatpush1.msra.mxu0 %v1757
    %1763 = vmatprep.subr.mxu0 0.0
    %1764 = vmatpush1.msra.mxu0 0.0
    %1765 = vmatprep.subr.mxu0 0.0
    %1766 = vmatpush1.msra.mxu0 0.0
    %1767 = vmatprep.subr.mxu0 0.0
    %1768 = vmatpush1.msra.mxu0 0.0
    %1769 = vmatprep.subr.mxu0 0.0
    %1770 = vmatpush1.msra.mxu0 0.0
    %1771 = vmatprep.subr.mxu0 0.0
    %1772 = vmatpush1.msra.mxu0 0.0
    %1773 = vmatprep.subr.mxu0 0.0
    %1774 = vmatpush1.msra.mxu0 0.0
    %1775 = vmatprep.subr.mxu0 0.0
    %1776 = vmatpush1.msra.mxu0 0.0
    %1777 = vmatprep.subr.mxu0 0.0
    %1778 = vmatpush1.msra.mxu0 0.0
    %1779 = vmatprep.subr.mxu0 0.0
    %1780 = vmatpush1.msra.mxu0 0.0
    %1781 = vmatprep.subr.mxu0 0.0
    %1782 = vmatpush1.msra.mxu0 0.0
    %1783 = vmatprep.subr.mxu0 0.0
    %1784 = vmatpush1.msra.mxu0 0.0
    %1785 = vmatprep.subr.mxu0 0.0
    %1786 = vmatpush1.msra.mxu0 0.0
    %1787 = vmatprep.subr.mxu0 0.0
    %1788 = vmatpush1.msra.mxu0 0.0
    %1789 = vmatprep.subr.mxu0 0.0
    %1790 = vmatpush1.msra.mxu0 0.0
    %1791 = vmatprep.subr.mxu0 0.0
    %1792 = vmatpush1.msra.mxu0 0.0
    %1793 = vmatprep.subr.mxu0 0.0
    %1794 = vmatpush1.msra.mxu0 0.0
    %1795 = vmatprep.subr.mxu0 0.0
    %1796 = vmatpush1.msra.mxu0 0.0
    %1797 = vmatprep.subr.mxu0 0.0
    %1798 = vmatpush1.msra.mxu0 0.0
    %1799 = vmatprep.subr.mxu0 0.0
    %1800 = vmatpush1.msra.mxu0 0.0
    %1801 = vmatprep.subr.mxu0 0.0
    %1802 = vmatpush1.msra.mxu0 0.0
    %1803 = vmatprep.subr.mxu0 0.0
    %1804 = vmatpush1.msra.mxu0 0.0
    %1805 = vmatprep.subr.mxu0 0.0
    %1806 = vmatpush1.msra.mxu0 0.0
    %1807 = vmatprep.subr.mxu0 0.0
    %1808 = vmatpush1.msra.mxu0 0.0
    %1809 = vmatprep.subr.mxu0 0.0
    %1810 = vmatpush1.msra.mxu0 0.0
    %1811 = vmatprep.subr.mxu0 0.0
    %1812 = vmatpush1.msra.mxu0 0.0
    %1813 = vmatprep.subr.mxu0 0.0
    %1814 = vmatpush1.msra.mxu0 0.0
    %1815 = vmatprep.subr.mxu0 0.0
    %1816 = vmatpush1.msra.mxu0 0.0
    %1817 = vmatprep.subr.mxu0 0.0
    %1818 = vmatpush1.msra.mxu0 0.0
    %1819 = vmatprep.subr.mxu0 0.0
    %1820 = vmatpush1.msra.mxu0 0.0
    %1821 = vmatprep.subr.mxu0 0.0
    %1822 = vmatpush1.msra.mxu0 0.0
    %1823 = vmatprep.mubr.f32.mxu0 0.0
    %1824 = vmatmul.mubr.f32.gmra.mrb[0].mxu0 %v1754
    %v1825 = vpop.f32.mrb[0].mxu0
    %v1826 = vadd.f32 0.0, %v1825
    %v1827 = vpop.f32.mrb[0].mxu0
    %1828 = vmatprep.mubr.f32.mxu0 0.0
    %1829 = vmatmul.mubr.f32.gmra.mrb[0].mxu0 %v1754
    %v1830 = vpop.f32.mrb[0].mxu0
    %v1831 = vadd.f32 0.0, %v1830
    %v1832 = vpop.f32.mrb[0].mxu0
    %1833 = vdwg.mxu0
    %v1835 = vsel %vm1261, %v57, 0
    %v1838 = vsel %vm1291, %v54, 0
    %1840 = vmatprep.subr.mxu0 0.0
    %1841 = vmatpush1.msra.mxu0 %v53
    %1842 = vmatprep.subr.mxu0 0.0
    %1843 = vmatpush1.msra.mxu0 %v1838
    %1844 = vmatprep.subr.mxu0 0.0
    %1845 = vmatpush1.msra.mxu0 0.0
    %1846 = vmatprep.subr.mxu0 0.0
    %1847 = vmatpush1.msra.mxu0 0.0
    %1848 = vmatprep.subr.mxu0 0.0
    %1849 = vmatpush1.msra.mxu0 0.0
    %1850 = vmatprep.subr.mxu0 0.0
    %1851 = vmatpush1.msra.mxu0 0.0
    %1852 = vmatprep.subr.mxu0 0.0
    %1853 = vmatpush1.msra.mxu0 0.0
    %1854 = vmatprep.subr.mxu0 0.0
    %1855 = vmatpush1.msra.mxu0 0.0
    %1856 = vmatprep.subr.mxu0 0.0
    %1857 = vmatpush1.msra.mxu0 0.0
    %1858 = vmatprep.subr.mxu0 0.0
    %1859 = vmatpush1.msra.mxu0 0.0
    %1860 = vmatprep.subr.mxu0 0.0
    %1861 = vmatpush1.msra.mxu0 0.0
    %1862 = vmatprep.subr.mxu0 0.0
    %1863 = vmatpush1.msra.mxu0 0.0
    %1864 = vmatprep.subr.mxu0 0.0
    %1865 = vmatpush1.msra.mxu0 0.0
    %1866 = vmatprep.subr.mxu0 0.0
    %1867 = vmatpush1.msra.mxu0 0.0
    %1868 = vmatprep.subr.mxu0 0.0
    %1869 = vmatpush1.msra.mxu0 0.0
    %1870 = vmatprep.subr.mxu0 0.0
    %1871 = vmatpush1.msra.mxu0 0.0
    %1872 = vmatprep.subr.mxu0 0.0
    %1873 = vmatpush1.msra.mxu0 0.0
    %1874 = vmatprep.subr.mxu0 0.0
    %1875 = vmatpush1.msra.mxu0 0.0
    %1876 = vmatprep.subr.mxu0 0.0
    %1877 = vmatpush1.msra.mxu0 0.0
    %1878 = vmatprep.subr.mxu0 0.0
    %1879 = vmatpush1.msra.mxu0 0.0
    %1880 = vmatprep.subr.mxu0 0.0
    %1881 = vmatpush1.msra.mxu0 0.0
    %1882 = vmatprep.subr.mxu0 0.0
    %1883 = vmatpush1.msra.mxu0 0.0
    %1884 = vmatprep.subr.mxu0 0.0
    %1885 = vmatpush1.msra.mxu0 0.0
    %1886 = vmatprep.subr.mxu0 0.0
    %1887 = vmatpush1.msra.mxu0 0.0
    %1888 = vmatprep.subr.mxu0 0.0
    %1889 = vmatpush1.msra.mxu0 0.0
    %1890 = vmatprep.subr.mxu0 0.0
    %1891 = vmatpush1.msra.mxu0 0.0
    %1892 = vmatprep.subr.mxu0 0.0
    %1893 = vmatpush1.msra.mxu0 0.0
    %1894 = vmatprep.subr.mxu0 0.0
    %1895 = vmatpush1.msra.mxu0 0.0
    %1896 = vmatprep.subr.mxu0 0.0
    %1897 = vmatpush1.msra.mxu0 0.0
    %1898 = vmatprep.subr.mxu0 0.0
    %1899 = vmatpush1.msra.mxu0 0.0
    %1900 = vmatprep.subr.mxu0 0.0
    %1901 = vmatpush1.msra.mxu0 0.0
    %1902 = vmatprep.subr.mxu0 0.0
    %1903 = vmatpush1.msra.mxu0 0.0
    %1904 = vmatprep.mubr.f32.mxu0 0.0
    %1905 = vmatmul.mubr.f32.gmra.mrb[0].mxu0 %v1835
    %v1906 = vpop.f32.mrb[0].mxu0
    %v1907 = vadd.f32 0.0, %v1906
    %v1908 = vpop.f32.mrb[0].mxu0
    %1909 = vdwg.mxu0
    %v1910 = vmul.f32 %v1907, 4.0
    %v1911 = vadd.f32 %v1910, 4.0
    %v1912 = vrcp.pop 5.0
    %v1913 = vmul.f32 %v1911, %v1912
    %v1914 = vfloor.f32 %v1913
    %vm1915 = vcmask 15360
    %v1917 = vsel %vm1915, %v55, 0
    %v1920 = vsel %vm1915, %v56, 0
    %vm1922 = vcmask 1041408
    %v1924 = vsel %vm1922, %v1914, 0
    %1926 = vmatprep.subr.mxu0 0.0
    %1927 = vmatpush1.msra.mxu0 %v1924
    %1928 = vmatprep.subr.mxu0 0.0
    %1929 = vmatpush1.msra.mxu0 0.0
    %1930 = vmatprep.subr.mxu0 0.0
    %1931 = vmatpush1.msra.mxu0 0.0
    %1932 = vmatprep.subr.mxu0 0.0
    %1933 = vmatpush1.msra.mxu0 0.0
    %1934 = vmatprep.subr.mxu0 0.0
    %1935 = vmatpush1.msra.mxu0 0.0
    %1936 = vmatprep.subr.mxu0 0.0
    %1937 = vmatpush1.msra.mxu0 0.0
    %1938 = vmatprep.subr.mxu0 0.0
    %1939 = vmatpush1.msra.mxu0 0.0
    %1940 = vmatprep.subr.mxu0 0.0
    %1941 = vmatpush1.msra.mxu0 0.0
    %1942 = vmatprep.subr.mxu0 0.0
    %1943 = vmatpush1.msra.mxu0 0.0
    %1944 = vmatprep.subr.mxu0 0.0
    %1945 = vmatpush1.msra.mxu0 0.0
    %1946 = vmatprep.subr.mxu0 0.0
    %1947 = vmatpush1.msra.mxu0 0.0
    %1948 = vmatprep.subr.mxu0 0.0
    %1949 = vmatpush1.msra.mxu0 0.0
    %1950 = vmatprep.subr.mxu0 0.0
    %1951 = vmatpush1.msra.mxu0 0.0
    %1952 = vmatprep.subr.mxu0 0.0
    %1953 = vmatpush1.msra.mxu0 0.0
    %1954 = vmatprep.subr.mxu0 0.0
    %1955 = vmatpush1.msra.mxu0 0.0
    %1956 = vmatprep.subr.mxu0 0.0
    %1957 = vmatpush1.msra.mxu0 0.0
    %1958 = vmatprep.subr.mxu0 0.0
    %1959 = vmatpush1.msra.mxu0 0.0
    %1960 = vmatprep.subr.mxu0 0.0
    %1961 = vmatpush1.msra.mxu0 0.0
    %1962 = vmatprep.subr.mxu0 0.0
    %1963 = vmatpush1.msra.mxu0 0.0
    %1964 = vmatprep.subr.mxu0 0.0
    %1965 = vmatpush1.msra.mxu0 0.0
    %1966 = vmatprep.subr.mxu0 0.0
    %1967 = vmatpush1.msra.mxu0 0.0
    %1968 = vmatprep.subr.mxu0 0.0
    %1969 = vmatpush1.msra.mxu0 0.0
    %1970 = vmatprep.subr.mxu0 0.0
    %1971 = vmatpush1.msra.mxu0 0.0
    %1972 = vmatprep.subr.mxu0 0.0
    %1973 = vmatpush1.msra.mxu0 0.0
    %1974 = vmatprep.subr.mxu0 0.0
    %1975 = vmatpush1.msra.mxu0 0.0
    %1976 = vmatprep.subr.mxu0 0.0
    %1977 = vmatpush1.msra.mxu0 0.0
    %1978 = vmatprep.subr.mxu0 0.0
    %1979 = vmatpush1.msra.mxu0 0.0
    %1980 = vmatprep.subr.mxu0 0.0
    %1981 = vmatpush1.msra.mxu0 0.0
    %1982 = vmatprep.subr.mxu0 0.0
    %1983 = vmatpush1.msra.mxu0 0.0
    %1984 = vmatprep.subr.mxu0 0.0
    %1985 = vmatpush1.msra.mxu0 0.0
    %1986 = vmatprep.subr.mxu0 0.0
    %1987 = vmatpush1.msra.mxu0 0.0
    %1988 = vmatprep.subr.mxu0 0.0
    %1989 = vmatpush1.msra.mxu0 0.0
    %1990 = vmatprep.mubr.f32.mxu0 0.0
    %1991 = vmatmul.mubr.f32.gmra.mrb[0].mxu0 %v1917
    %v1992 = vpop.f32.mrb[0].mxu0
    %v1993 = vadd.f32 0.0, %v1992
    %v1994 = vpop.f32.mrb[0].mxu0
    %1995 = vmatprep.mubr.f32.mxu0 0.0
    %1996 = vmatmul.mubr.f32.gmra.mrb[0].mxu0 %v1920
    %v1997 = vpop.f32.mrb[0].mxu0
    %v1998 = vadd.f32 0.0, %v1997
    %v1999 = vpop.f32.mrb[0].mxu0
    %2000 = vdwg.mxu0
    %v2001 = vsel %vm1922, %v57, 0
    %2003 = vmatprep.subr.mxu0 0.0
    %2004 = vmatpush1.msra.mxu0 %v2001
    %2005 = vmatprep.subr.mxu0 0.0
    %2006 = vmatpush1.msra.mxu0 0.0
    %2007 = vmatprep.subr.mxu0 0.0
    %2008 = vmatpush1.msra.mxu0 0.0
    %2009 = vmatprep.subr.mxu0 0.0
    %2010 = vmatpush1.msra.mxu0 0.0
    %2011 = vmatprep.subr.mxu0 0.0
    %2012 = vmatpush1.msra.mxu0 0.0
    %2013 = vmatprep.subr.mxu0 0.0
    %2014 = vmatpush1.msra.mxu0 0.0
    %2015 = vmatprep.subr.mxu0 0.0
    %2016 = vmatpush1.msra.mxu0 0.0
    %2017 = vmatprep.subr.mxu0 0.0
    %2018 = vmatpush1.msra.mxu0 0.0
    %2019 = vmatprep.subr.mxu0 0.0
    %2020 = vmatpush1.msra.mxu0 0.0
    %2021 = vmatprep.subr.mxu0 0.0
    %2022 = vmatpush1.msra.mxu0 0.0
    %2023 = vmatprep.subr.mxu0 0.0
    %2024 = vmatpush1.msra.mxu0 0.0
    %2025 = vmatprep.subr.mxu0 0.0
    %2026 = vmatpush1.msra.mxu0 0.0
    %2027 = vmatprep.subr.mxu0 0.0
    %2028 = vmatpush1.msra.mxu0 0.0
    %2029 = vmatprep.subr.mxu0 0.0
    %2030 = vmatpush1.msra.mxu0 0.0
    %2031 = vmatprep.subr.mxu0 0.0
    %2032 = vmatpush1.msra.mxu0 0.0
    %2033 = vmatprep.subr.mxu0 0.0
    %2034 = vmatpush1.msra.mxu0 0.0
    %2035 = vmatprep.subr.mxu0 0.0
    %2036 = vmatpush1.msra.mxu0 0.0
    %2037 = vmatprep.subr.mxu0 0.0
    %2038 = vmatpush1.msra.mxu0 0.0
    %2039 = vmatprep.subr.mxu0 0.0
    %2040 = vmatpush1.msra.mxu0 0.0
    %2041 = vmatprep.subr.mxu0 0.0
    %2042 = vmatpush1.msra.mxu0 0.0
    %2043 = vmatprep.subr.mxu0 0.0
    %2044 = vmatpush1.msra.mxu0 0.0
    %2045 = vmatprep.subr.mxu0 0.0
    %2046 = vmatpush1.msra.mxu0 0.0
    %2047 = vmatprep.subr.mxu0 0.0
    %2048 = vmatpush1.msra.mxu0 0.0
    %2049 = vmatprep.subr.mxu0 0.0
    %2050 = vmatpush1.msra.mxu0 0.0
    %2051 = vmatprep.subr.mxu0 0.0
    %2052 = vmatpush1.msra.mxu0 0.0
    %2053 = vmatprep.subr.mxu0 0.0
    %2054 = vmatpush1.msra.mxu0 0.0
    %2055 = vmatprep.subr.mxu0 0.0
    %2056 = vmatpush1.msra.mxu0 0.0
    %2057 = vmatprep.subr.mxu0 0.0
    %2058 = vmatpush1.msra.mxu0 0.0
    %2059 = vmatprep.subr.mxu0 0.0
    %2060 = vmatpush1.msra.mxu0 0.0
    %2061 = vmatprep.subr.mxu0 0.0
    %2062 = vmatpush1.msra.mxu0 0.0
    %2063 = vmatprep.subr.mxu0 0.0
    %2064 = vmatpush1.msra.mxu0 0.0
    %2065 = vmatprep.subr.mxu0 0.0
    %2066 = vmatpush1.msra.mxu0 0.0
    %2067 = vmatprep.mubr.f32.mxu0 0.0
    %2068 = vmatmul.mubr.f32.gmra.mrb[0].mxu0 %v1917
    %v2069 = vpop.f32.mrb[0].mxu0
    %v2070 = vadd.f32 0.0, %v2069
    %v2071 = vpop.f32.mrb[0].mxu0
    %2072 = vmatprep.mubr.f32.mxu0 0.0
    %2073 = vmatmul.mubr.f32.gmra.mrb[0].mxu0 %v1920
    %v2074 = vpop.f32.mrb[0].mxu0
    %v2075 = vadd.f32 0.0, %v2074
    %v2076 = vpop.f32.mrb[0].mxu0
    %2077 = vdwg.mxu0
    %vm2078 = vcmp.gt.f32.partialorder %v1826, %v1749
    %vm2079 = vcmp.gt.f32.partialorder %v1831, %v1750
    %vm2080 = vcmp.eq.f32.partialorder %v1826, %v1749
    %vm2081 = vcmp.eq.f32.partialorder %v1831, %v1750
    %vm2082 = vcmp.lt.s32.totalorder %v1228, %v1225
    %vm2083 = vcmp.lt.s32.totalorder %v1228, %v1226
    %vm2084 = vmand %vm2080, %vm2082
    %vm2085 = vmand %vm2081, %vm2083
    %vm2086 = vmor %vm2078, %vm2084
    %vm2087 = vmor %vm2079, %vm2085
    %v2088 = vsel %vm2086, %v2070, 0.0
    %v2089 = vsel %vm2087, %v2075, 0.0
    %v2090 = vsub.f32 1.0, %v1231
    %v2091 = vsub.f32 1.0, %v1232
    %v2092 = vmul.f32 %v2088, %v2090
    %v2093 = vmul.f32 %v2089, %v2091
    %v2095 = vsel %vm1261, %v2092, 0
    %v2098 = vsel %vm1261, %v2093, 0
    %2100 = vmatprep.subr.mxu0 0.0
    %2101 = vmatpush1.msra.mxu0 %v53
    %2102 = vmatprep.subr.mxu0 0.0
    %2103 = vmatpush1.msra.mxu0 %v1838
    %2104 = vmatprep.subr.mxu0 0.0
    %2105 = vmatpush1.msra.mxu0 0.0
    %2106 = vmatprep.subr.mxu0 0.0
    %2107 = vmatpush1.msra.mxu0 0.0
    %2108 = vmatprep.subr.mxu0 0.0
    %2109 = vmatpush1.msra.mxu0 0.0
    %2110 = vmatprep.subr.mxu0 0.0
    %2111 = vmatpush1.msra.mxu0 0.0
    %2112 = vmatprep.subr.mxu0 0.0
    %2113 = vmatpush1.msra.mxu0 0.0
    %2114 = vmatprep.subr.mxu0 0.0
    %2115 = vmatpush1.msra.mxu0 0.0
    %2116 = vmatprep.subr.mxu0 0.0
    %2117 = vmatpush1.msra.mxu0 0.0
    %2118 = vmatprep.subr.mxu0 0.0
    %2119 = vmatpush1.msra.mxu0 0.0
    %2120 = vmatprep.subr.mxu0 0.0
    %2121 = vmatpush1.msra.mxu0 0.0
    %2122 = vmatprep.subr.mxu0 0.0
    %2123 = vmatpush1.msra.mxu0 0.0
    %2124 = vmatprep.subr.mxu0 0.0
    %2125 = vmatpush1.msra.mxu0 0.0
    %2126 = vmatprep.subr.mxu0 0.0
    %2127 = vmatpush1.msra.mxu0 0.0
    %2128 = vmatprep.subr.mxu0 0.0
    %2129 = vmatpush1.msra.mxu0 0.0
    %2130 = vmatprep.subr.mxu0 0.0
    %2131 = vmatpush1.msra.mxu0 0.0
    %2132 = vmatprep.subr.mxu0 0.0
    %2133 = vmatpush1.msra.mxu0 0.0
    %2134 = vmatprep.subr.mxu0 0.0
    %2135 = vmatpush1.msra.mxu0 0.0
    %2136 = vmatprep.subr.mxu0 0.0
    %2137 = vmatpush1.msra.mxu0 0.0
    %2138 = vmatprep.subr.mxu0 0.0
    %2139 = vmatpush1.msra.mxu0 0.0
    %2140 = vmatprep.subr.mxu0 0.0
    %2141 = vmatpush1.msra.mxu0 0.0
    %2142 = vmatprep.subr.mxu0 0.0
    %2143 = vmatpush1.msra.mxu0 0.0
    %2144 = vmatprep.subr.mxu0 0.0
    %2145 = vmatpush1.msra.mxu0 0.0
    %2146 = vmatprep.subr.mxu0 0.0
    %2147 = vmatpush1.msra.mxu0 0.0
    %2148 = vmatprep.subr.mxu0 0.0
    %2149 = vmatpush1.msra.mxu0 0.0
    %2150 = vmatprep.subr.mxu0 0.0
    %2151 = vmatpush1.msra.mxu0 0.0
    %2152 = vmatprep.subr.mxu0 0.0
    %2153 = vmatpush1.msra.mxu0 0.0
    %2154 = vmatprep.subr.mxu0 0.0
    %2155 = vmatpush1.msra.mxu0 0.0
    %2156 = vmatprep.subr.mxu0 0.0
    %2157 = vmatpush1.msra.mxu0 0.0
    %2158 = vmatprep.subr.mxu0 0.0
    %2159 = vmatpush1.msra.mxu0 0.0
    %2160 = vmatprep.subr.mxu0 0.0
    %2161 = vmatpush1.msra.mxu0 0.0
    %2162 = vmatprep.subr.mxu0 0.0
    %2163 = vmatpush1.msra.mxu0 0.0
    %2164 = vmatprep.mubr.f32.mxu0 0.0
    %2165 = vmatmul.mubr.f32.gmra.mrb[0].mxu0 %v2095
    %v2166 = vpop.f32.mrb[0].mxu0
    %v2167 = vadd.f32 0.0, %v2166
    %v2168 = vpop.f32.mrb[0].mxu0
    %2169 = vmatprep.mubr.f32.mxu0 0.0
    %2170 = vmatmul.mubr.f32.gmra.mrb[0].mxu0 %v2098
    %v2171 = vpop.f32.mrb[0].mxu0
    %v2172 = vadd.f32 0.0, %v2171
    %v2173 = vpop.f32.mrb[0].mxu0
    %2174 = vdwg.mxu0
    %vm2175 = vcmp.lt.f32.partialorder %v2167, %v1993
    %vm2176 = vcmp.lt.f32.partialorder %v2172, %v1998
    %v2177 = vsel %vm2175, 1.0, 0.0
    %v2178 = vsel %vm2176, 1.0, 0.0
    %v2179 = vmul.f32 %v53, %v2177
    %v2180 = vmul.f32 %v54, %v2178
    %v2181 = vmul.f32 %v1749, %v2179
    %v2182 = vmul.f32 %v1750, %v2180
    %2184 = vset.pattern.permute.xlu0 0
    %2185 = vperm.xlu0 %2184, %v2181
    %v2186 = vpop.permute.xlu0 %2185
    %2189 = vset.pattern.permute.xlu0 0
    %2190 = vperm.xlu0 %2189, %v2182
    %v2191 = vpop.permute.xlu0 %2190
    %v2193 = vmul.f32 %v1673, %v2186
    %v2194 = vmul.f32 %v1674, %v2186
    %v2195 = vmul.f32 %v1675, %v2186
    %v2196 = vmul.f32 %v1676, %v2186
    %v2197 = vmul.f32 %v1677, %v2186
    %v2198 = vmul.f32 %v1678, %v2186
    %v2199 = vmul.f32 %v1679, %v2191
    %v2200 = vmul.f32 %v1680, %v2191
    %v2201 = vmul.f32 %v1681, %v2191
    %v2202 = vmul.f32 %v1682, %v2191
    %v2203 = vmul.f32 %v1683, %v2191
    %v2204 = vmul.f32 %v1684, %v2191
    %v2205 = vpack.c.bf16 %v2199, %v2193
    %v2206 = vpack.c.bf16 %v2200, %v2194
    %v2207 = vpack.c.bf16 %v2201, %v2195
    %v2208 = vpack.c.bf16 %v2202, %v2196
    %v2209 = vpack.c.bf16 %v2203, %v2197
    %v2210 = vpack.c.bf16 %v2204, %v2198
    %v2211 = vld [vmem:[%s10] sm:$0xff]
    %v2212 = vld [vmem:[%s10 + $0x8] sm:$0xff]
    %v2213 = vld [vmem:[%s10 + $0x10] sm:$0xff]
    %v2214 = vld [vmem:[%s10 + $0x18] sm:$0xff]
    %v2215 = vld [vmem:[%s10 + $0x20] sm:$0xff]
    %v2216 = vld [vmem:[%s10 + $0x28] sm:$0xff]
    %v2217 = vld [vmem:[%s10 + $0x30] sm:$0xff]
    %v2218 = vld [vmem:[%s10 + $0x38] sm:$0xff]
    %v2219 = vld [vmem:[%s10 + $0x40] sm:$0xff]
    %v2220 = vld [vmem:[%s10 + $0x48] sm:$0xff]
    %v2221 = vld [vmem:[%s10 + $0x50] sm:$0xff]
    %v2222 = vld [vmem:[%s10 + $0x58] sm:$0xff]
    %v2223 = vld [vmem:[%s10 + $0x60] sm:$0xff]
    %v2224 = vld [vmem:[%s10 + $0x68] sm:$0xff]
    %v2225 = vld [vmem:[%s10 + $0x70] sm:$0xff]
    %v2226 = vld [vmem:[%s10 + $0x78] sm:$0xff]
    %v2227 = vld [vmem:[%s10 + $0x80] sm:$0xff]
    %v2228 = vld [vmem:[%s10 + $0x88] sm:$0xff]
    %v2229 = vld [vmem:[%s10 + $0x90] sm:$0xff]
    %v2230 = vld [vmem:[%s10 + $0x98] sm:$0xff]
    %v2231 = vld [vmem:[%s10 + $0xa0] sm:$0xff]
    %v2232 = vld [vmem:[%s10 + $0xa8] sm:$0xff]
    %v2233 = vld [vmem:[%s10 + $0xb0] sm:$0xff]
    %v2234 = vld [vmem:[%s10 + $0xb8] sm:$0xff]
    %v2235 = vld [vmem:[%s10 + $0xc0] sm:$0xff]
    %v2236 = vld [vmem:[%s10 + $0xc8] sm:$0xff]
    %v2237 = vld [vmem:[%s10 + $0xd0] sm:$0xff]
    %v2238 = vld [vmem:[%s10 + $0xd8] sm:$0xff]
    %v2239 = vld [vmem:[%s10 + $0xe0] sm:$0xff]
    %v2240 = vld [vmem:[%s10 + $0xe8] sm:$0xff]
    %v2241 = vld [vmem:[%s10 + $0xf0] sm:$0xff]
    %v2242 = vld [vmem:[%s10 + $0xf8] sm:$0xff]
    %v2243 = vld [vmem:[%s10 + $0x100] sm:$0xff]
    %v2244 = vld [vmem:[%s10 + $0x108] sm:$0xff]
    %v2245 = vld [vmem:[%s10 + $0x110] sm:$0xff]
    %v2246 = vld [vmem:[%s10 + $0x118] sm:$0xff]
    %v2247 = vld [vmem:[%s10 + $0x120] sm:$0xff]
    %v2248 = vld [vmem:[%s10 + $0x128] sm:$0xff]
    %v2249 = vld [vmem:[%s10 + $0x130] sm:$0xff]
    %v2250 = vld [vmem:[%s10 + $0x138] sm:$0xff]
    %v2251 = vld [vmem:[%s10 + $0x140] sm:$0xff]
    %v2252 = vld [vmem:[%s10 + $0x148] sm:$0xff]
    %v2253 = vld [vmem:[%s10 + $0x150] sm:$0xff]
    %v2254 = vld [vmem:[%s10 + $0x158] sm:$0xff]
    %v2255 = vld [vmem:[%s10 + $0x160] sm:$0xff]
    %v2256 = vld [vmem:[%s10 + $0x168] sm:$0xff]
    %v2257 = vld [vmem:[%s10 + $0x170] sm:$0xff]
    %v2258 = vld [vmem:[%s10 + $0x178] sm:$0xff]
    %v2259 = vld [vmem:[%s10 + $0x180] sm:$0xff]
    %v2260 = vld [vmem:[%s10 + $0x188] sm:$0xff]
    %v2261 = vld [vmem:[%s10 + $0x190] sm:$0xff]
    %v2262 = vld [vmem:[%s10 + $0x198] sm:$0xff]
    %v2263 = vld [vmem:[%s10 + $0x1a0] sm:$0xff]
    %v2264 = vld [vmem:[%s10 + $0x1a8] sm:$0xff]
    %v2265 = vld [vmem:[%s10 + $0x1b0] sm:$0xff]
    %v2266 = vld [vmem:[%s10 + $0x1b8] sm:$0xff]
    %v2267 = vld [vmem:[%s10 + $0x1c0] sm:$0xff]
    %v2268 = vld [vmem:[%s10 + $0x1c8] sm:$0xff]
    %v2269 = vld [vmem:[%s10 + $0x1d0] sm:$0xff]
    %v2270 = vld [vmem:[%s10 + $0x1d8] sm:$0xff]
    %v2271 = vld [vmem:[%s10 + $0x1e0] sm:$0xff]
    %v2272 = vld [vmem:[%s10 + $0x1e8] sm:$0xff]
    %v2273 = vld [vmem:[%s10 + $0x1f0] sm:$0xff]
    %v2274 = vld [vmem:[%s10 + $0x1f8] sm:$0xff]
    %v2275 = vld [vmem:[%s10 + $0x200] sm:$0xff]
    %v2276 = vld [vmem:[%s10 + $0x208] sm:$0xff]
    %v2277 = vld [vmem:[%s10 + $0x210] sm:$0xff]
    %v2278 = vld [vmem:[%s10 + $0x218] sm:$0xff]
    %v2279 = vld [vmem:[%s10 + $0x220] sm:$0xff]
    %v2280 = vld [vmem:[%s10 + $0x228] sm:$0xff]
    %v2281 = vld [vmem:[%s10 + $0x230] sm:$0xff]
    %v2282 = vld [vmem:[%s10 + $0x238] sm:$0xff]
    %v2283 = vld [vmem:[%s10 + $0x240] sm:$0xff]
    %v2284 = vld [vmem:[%s10 + $0x248] sm:$0xff]
    %v2285 = vld [vmem:[%s10 + $0x250] sm:$0xff]
    %v2286 = vld [vmem:[%s10 + $0x258] sm:$0xff]
    %v2287 = vld [vmem:[%s10 + $0x260] sm:$0xff]
    %v2288 = vld [vmem:[%s10 + $0x268] sm:$0xff]
    %v2289 = vld [vmem:[%s10 + $0x270] sm:$0xff]
    %v2290 = vld [vmem:[%s10 + $0x278] sm:$0xff]
    %v2291 = vld [vmem:[%s10 + $0x280] sm:$0xff]
    %v2292 = vld [vmem:[%s10 + $0x288] sm:$0xff]
    %v2293 = vld [vmem:[%s10 + $0x290] sm:$0xff]
    %v2294 = vld [vmem:[%s10 + $0x298] sm:$0xff]
    %v2295 = vld [vmem:[%s10 + $0x2a0] sm:$0xff]
    %v2296 = vld [vmem:[%s10 + $0x2a8] sm:$0xff]
    %v2297 = vld [vmem:[%s10 + $0x2b0] sm:$0xff]
    %v2298 = vld [vmem:[%s10 + $0x2b8] sm:$0xff]
    %v2299 = vld [vmem:[%s10 + $0x2c0] sm:$0xff]
    %v2300 = vld [vmem:[%s10 + $0x2c8] sm:$0xff]
    %v2301 = vld [vmem:[%s10 + $0x2d0] sm:$0xff]
    %v2302 = vld [vmem:[%s10 + $0x2d8] sm:$0xff]
    %v2303 = vld [vmem:[%s10 + $0x2e0] sm:$0xff]
    %v2304 = vld [vmem:[%s10 + $0x2e8] sm:$0xff]
    %v2305 = vld [vmem:[%s10 + $0x2f0] sm:$0xff]
    %v2306 = vld [vmem:[%s10 + $0x2f8] sm:$0xff]
    %v2307 = vld [vmem:[%s11] sm:$0x3]
    %v2309 = vlaneseq
    %v2310 = vshrl.u32 %v2309, 7
    %v2311 = vsub.s32 0, %v2310
    %v2312 = vrot.slane %v2307, %v2311
    %v2313 = vlaneseq
    %v2314 = vshrl.u32 %v2313, 7
    %v2315 = vsub.s32 1, %v2314
    %v2316 = vrot.slane %v2307, %v2315
    %v2415 = vunpack.c.l.b16 %v2211
    %v2416 = vunpack.c.h.b16 %v2211
    %v2417 = vunpack.c.l.b16 %v2212
    %v2418 = vunpack.c.h.b16 %v2212
    %v2419 = vunpack.c.l.b16 %v2213
    %v2420 = vunpack.c.h.b16 %v2213
    %v2421 = vunpack.c.l.b16 %v2214
    %v2422 = vunpack.c.h.b16 %v2214
    %v2423 = vunpack.c.l.b16 %v2215
    %v2424 = vunpack.c.h.b16 %v2215
    %v2425 = vunpack.c.l.b16 %v2216
    %v2426 = vunpack.c.h.b16 %v2216
    %v2427 = vunpack.c.l.b16 %v2217
    %v2428 = vunpack.c.h.b16 %v2217
    %v2429 = vunpack.c.l.b16 %v2218
    %v2430 = vunpack.c.h.b16 %v2218
    %v2431 = vunpack.c.l.b16 %v2219
    %v2432 = vunpack.c.h.b16 %v2219
    %v2433 = vunpack.c.l.b16 %v2220
    %v2434 = vunpack.c.h.b16 %v2220
    %v2435 = vunpack.c.l.b16 %v2221
    %v2436 = vunpack.c.h.b16 %v2221
    %v2437 = vunpack.c.l.b16 %v2222
    %v2438 = vunpack.c.h.b16 %v2222
    %v2439 = vunpack.c.l.b16 %v2223
    %v2440 = vunpack.c.h.b16 %v2223
    %v2441 = vunpack.c.l.b16 %v2224
    %v2442 = vunpack.c.h.b16 %v2224
    %v2443 = vunpack.c.l.b16 %v2225
    %v2444 = vunpack.c.h.b16 %v2225
    %v2445 = vunpack.c.l.b16 %v2226
    %v2446 = vunpack.c.h.b16 %v2226
    %v2447 = vunpack.c.l.b16 %v2227
    %v2448 = vunpack.c.h.b16 %v2227
    %v2449 = vunpack.c.l.b16 %v2228
    %v2450 = vunpack.c.h.b16 %v2228
    %v2451 = vunpack.c.l.b16 %v2229
    %v2452 = vunpack.c.h.b16 %v2229
    %v2453 = vunpack.c.l.b16 %v2230
    %v2454 = vunpack.c.h.b16 %v2230
    %v2455 = vunpack.c.l.b16 %v2231
    %v2456 = vunpack.c.h.b16 %v2231
    %v2457 = vunpack.c.l.b16 %v2232
    %v2458 = vunpack.c.h.b16 %v2232
    %v2459 = vunpack.c.l.b16 %v2233
    %v2460 = vunpack.c.h.b16 %v2233
    %v2461 = vunpack.c.l.b16 %v2234
    %v2462 = vunpack.c.h.b16 %v2234
    %v2463 = vunpack.c.l.b16 %v2235
    %v2464 = vunpack.c.h.b16 %v2235
    %v2465 = vunpack.c.l.b16 %v2236
    %v2466 = vunpack.c.h.b16 %v2236
    %v2467 = vunpack.c.l.b16 %v2237
    %v2468 = vunpack.c.h.b16 %v2237
    %v2469 = vunpack.c.l.b16 %v2238
    %v2470 = vunpack.c.h.b16 %v2238
    %v2471 = vunpack.c.l.b16 %v2239
    %v2472 = vunpack.c.h.b16 %v2239
    %v2473 = vunpack.c.l.b16 %v2240
    %v2474 = vunpack.c.h.b16 %v2240
    %v2475 = vunpack.c.l.b16 %v2241
    %v2476 = vunpack.c.h.b16 %v2241
    %v2477 = vunpack.c.l.b16 %v2242
    %v2478 = vunpack.c.h.b16 %v2242
    %v2479 = vunpack.c.l.b16 %v2243
    %v2480 = vunpack.c.h.b16 %v2243
    %v2481 = vunpack.c.l.b16 %v2244
    %v2482 = vunpack.c.h.b16 %v2244
    %v2483 = vunpack.c.l.b16 %v2245
    %v2484 = vunpack.c.h.b16 %v2245
    %v2485 = vunpack.c.l.b16 %v2246
    %v2486 = vunpack.c.h.b16 %v2246
    %v2487 = vunpack.c.l.b16 %v2247
    %v2488 = vunpack.c.h.b16 %v2247
    %v2489 = vunpack.c.l.b16 %v2248
    %v2490 = vunpack.c.h.b16 %v2248
    %v2491 = vunpack.c.l.b16 %v2249
    %v2492 = vunpack.c.h.b16 %v2249
    %v2493 = vunpack.c.l.b16 %v2250
    %v2494 = vunpack.c.h.b16 %v2250
    %v2495 = vunpack.c.l.b16 %v2251
    %v2496 = vunpack.c.h.b16 %v2251
    %v2497 = vunpack.c.l.b16 %v2252
    %v2498 = vunpack.c.h.b16 %v2252
    %v2499 = vunpack.c.l.b16 %v2253
    %v2500 = vunpack.c.h.b16 %v2253
    %v2501 = vunpack.c.l.b16 %v2254
    %v2502 = vunpack.c.h.b16 %v2254
    %v2503 = vunpack.c.l.b16 %v2255
    %v2504 = vunpack.c.h.b16 %v2255
    %v2505 = vunpack.c.l.b16 %v2256
    %v2506 = vunpack.c.h.b16 %v2256
    %v2507 = vunpack.c.l.b16 %v2257
    %v2508 = vunpack.c.h.b16 %v2257
    %v2509 = vunpack.c.l.b16 %v2258
    %v2510 = vunpack.c.h.b16 %v2258
    %v2511 = vunpack.c.l.b16 %v2259
    %v2512 = vunpack.c.h.b16 %v2259
    %v2513 = vunpack.c.l.b16 %v2260
    %v2514 = vunpack.c.h.b16 %v2260
    %v2515 = vunpack.c.l.b16 %v2261
    %v2516 = vunpack.c.h.b16 %v2261
    %v2517 = vunpack.c.l.b16 %v2262
    %v2518 = vunpack.c.h.b16 %v2262
    %v2519 = vunpack.c.l.b16 %v2263
    %v2520 = vunpack.c.h.b16 %v2263
    %v2521 = vunpack.c.l.b16 %v2264
    %v2522 = vunpack.c.h.b16 %v2264
    %v2523 = vunpack.c.l.b16 %v2265
    %v2524 = vunpack.c.h.b16 %v2265
    %v2525 = vunpack.c.l.b16 %v2266
    %v2526 = vunpack.c.h.b16 %v2266
    %v2527 = vunpack.c.l.b16 %v2267
    %v2528 = vunpack.c.h.b16 %v2267
    %v2529 = vunpack.c.l.b16 %v2268
    %v2530 = vunpack.c.h.b16 %v2268
    %v2531 = vunpack.c.l.b16 %v2269
    %v2532 = vunpack.c.h.b16 %v2269
    %v2533 = vunpack.c.l.b16 %v2270
    %v2534 = vunpack.c.h.b16 %v2270
    %v2535 = vunpack.c.l.b16 %v2271
    %v2536 = vunpack.c.h.b16 %v2271
    %v2537 = vunpack.c.l.b16 %v2272
    %v2538 = vunpack.c.h.b16 %v2272
    %v2539 = vunpack.c.l.b16 %v2273
    %v2540 = vunpack.c.h.b16 %v2273
    %v2541 = vunpack.c.l.b16 %v2274
    %v2542 = vunpack.c.h.b16 %v2274
    %v2543 = vunpack.c.l.b16 %v2275
    %v2544 = vunpack.c.h.b16 %v2275
    %v2545 = vunpack.c.l.b16 %v2276
    %v2546 = vunpack.c.h.b16 %v2276
    %v2547 = vunpack.c.l.b16 %v2277
    %v2548 = vunpack.c.h.b16 %v2277
    %v2549 = vunpack.c.l.b16 %v2278
    %v2550 = vunpack.c.h.b16 %v2278
    %v2551 = vunpack.c.l.b16 %v2279
    %v2552 = vunpack.c.h.b16 %v2279
    %v2553 = vunpack.c.l.b16 %v2280
    %v2554 = vunpack.c.h.b16 %v2280
    %v2555 = vunpack.c.l.b16 %v2281
    %v2556 = vunpack.c.h.b16 %v2281
    %v2557 = vunpack.c.l.b16 %v2282
    %v2558 = vunpack.c.h.b16 %v2282
    %v2559 = vunpack.c.l.b16 %v2283
    %v2560 = vunpack.c.h.b16 %v2283
    %v2561 = vunpack.c.l.b16 %v2284
    %v2562 = vunpack.c.h.b16 %v2284
    %v2563 = vunpack.c.l.b16 %v2285
    %v2564 = vunpack.c.h.b16 %v2285
    %v2565 = vunpack.c.l.b16 %v2286
    %v2566 = vunpack.c.h.b16 %v2286
    %v2567 = vunpack.c.l.b16 %v2287
    %v2568 = vunpack.c.h.b16 %v2287
    %v2569 = vunpack.c.l.b16 %v2288
    %v2570 = vunpack.c.h.b16 %v2288
    %v2571 = vunpack.c.l.b16 %v2289
    %v2572 = vunpack.c.h.b16 %v2289
    %v2573 = vunpack.c.l.b16 %v2290
    %v2574 = vunpack.c.h.b16 %v2290
    %v2575 = vunpack.c.l.b16 %v2291
    %v2576 = vunpack.c.h.b16 %v2291
    %v2577 = vunpack.c.l.b16 %v2292
    %v2578 = vunpack.c.h.b16 %v2292
    %v2579 = vunpack.c.l.b16 %v2293
    %v2580 = vunpack.c.h.b16 %v2293
    %v2581 = vunpack.c.l.b16 %v2294
    %v2582 = vunpack.c.h.b16 %v2294
    %v2583 = vunpack.c.l.b16 %v2295
    %v2584 = vunpack.c.h.b16 %v2295
    %v2585 = vunpack.c.l.b16 %v2296
    %v2586 = vunpack.c.h.b16 %v2296
    %v2587 = vunpack.c.l.b16 %v2297
    %v2588 = vunpack.c.h.b16 %v2297
    %v2589 = vunpack.c.l.b16 %v2298
    %v2590 = vunpack.c.h.b16 %v2298
    %v2591 = vunpack.c.l.b16 %v2299
    %v2592 = vunpack.c.h.b16 %v2299
    %v2593 = vunpack.c.l.b16 %v2300
    %v2594 = vunpack.c.h.b16 %v2300
    %v2595 = vunpack.c.l.b16 %v2301
    %v2596 = vunpack.c.h.b16 %v2301
    %v2597 = vunpack.c.l.b16 %v2302
    %v2598 = vunpack.c.h.b16 %v2302
    %v2599 = vunpack.c.l.b16 %v2303
    %v2600 = vunpack.c.h.b16 %v2303
    %v2601 = vunpack.c.l.b16 %v2304
    %v2602 = vunpack.c.h.b16 %v2304
    %v2603 = vunpack.c.l.b16 %v2305
    %v2604 = vunpack.c.h.b16 %v2305
    %v2605 = vunpack.c.l.b16 %v2306
    %v2606 = vunpack.c.h.b16 %v2306
    %v2607 = vpack.c.b16 %v2417, %v2415
    %v2608 = vpack.c.b16 %v2418, %v2416
    %v2609 = vpack.c.b16 %v2421, %v2419
    %v2610 = vpack.c.b16 %v2422, %v2420
    %v2611 = vpack.c.b16 %v2425, %v2423
    %v2612 = vpack.c.b16 %v2426, %v2424
    %v2613 = vpack.c.b16 %v2429, %v2427
    %v2614 = vpack.c.b16 %v2430, %v2428
    %v2615 = vpack.c.b16 %v2433, %v2431
    %v2616 = vpack.c.b16 %v2434, %v2432
    %v2617 = vpack.c.b16 %v2437, %v2435
    %v2618 = vpack.c.b16 %v2438, %v2436
    %v2619 = vpack.c.b16 %v2441, %v2439
    %v2620 = vpack.c.b16 %v2442, %v2440
    %v2621 = vpack.c.b16 %v2445, %v2443
    %v2622 = vpack.c.b16 %v2446, %v2444
    %v2623 = vpack.c.b16 %v2449, %v2447
    %v2624 = vpack.c.b16 %v2450, %v2448
    %v2625 = vpack.c.b16 %v2453, %v2451
    %v2626 = vpack.c.b16 %v2454, %v2452
    %v2627 = vpack.c.b16 %v2457, %v2455
    %v2628 = vpack.c.b16 %v2458, %v2456
    %v2629 = vpack.c.b16 %v2461, %v2459
    %v2630 = vpack.c.b16 %v2462, %v2460
    %v2631 = vpack.c.b16 %v2465, %v2463
    %v2632 = vpack.c.b16 %v2466, %v2464
    %v2633 = vpack.c.b16 %v2469, %v2467
    %v2634 = vpack.c.b16 %v2470, %v2468
    %v2635 = vpack.c.b16 %v2473, %v2471
    %v2636 = vpack.c.b16 %v2474, %v2472
    %v2637 = vpack.c.b16 %v2477, %v2475
    %v2638 = vpack.c.b16 %v2478, %v2476
    %v2639 = vpack.c.b16 %v2481, %v2479
    %v2640 = vpack.c.b16 %v2482, %v2480
    %v2641 = vpack.c.b16 %v2485, %v2483
    %v2642 = vpack.c.b16 %v2486, %v2484
    %v2643 = vpack.c.b16 %v2489, %v2487
    %v2644 = vpack.c.b16 %v2490, %v2488
    %v2645 = vpack.c.b16 %v2493, %v2491
    %v2646 = vpack.c.b16 %v2494, %v2492
    %v2647 = vpack.c.b16 %v2497, %v2495
    %v2648 = vpack.c.b16 %v2498, %v2496
    %v2649 = vpack.c.b16 %v2501, %v2499
    %v2650 = vpack.c.b16 %v2502, %v2500
    %v2651 = vpack.c.b16 %v2505, %v2503
    %v2652 = vpack.c.b16 %v2506, %v2504
    %v2653 = vpack.c.b16 %v2509, %v2507
    %v2654 = vpack.c.b16 %v2510, %v2508
    %v2655 = vpack.c.b16 %v2513, %v2511
    %v2656 = vpack.c.b16 %v2514, %v2512
    %v2657 = vpack.c.b16 %v2517, %v2515
    %v2658 = vpack.c.b16 %v2518, %v2516
    %v2659 = vpack.c.b16 %v2521, %v2519
    %v2660 = vpack.c.b16 %v2522, %v2520
    %v2661 = vpack.c.b16 %v2525, %v2523
    %v2662 = vpack.c.b16 %v2526, %v2524
    %v2663 = vpack.c.b16 %v2529, %v2527
    %v2664 = vpack.c.b16 %v2530, %v2528
    %v2665 = vpack.c.b16 %v2533, %v2531
    %v2666 = vpack.c.b16 %v2534, %v2532
    %v2667 = vpack.c.b16 %v2537, %v2535
    %v2668 = vpack.c.b16 %v2538, %v2536
    %v2669 = vpack.c.b16 %v2541, %v2539
    %v2670 = vpack.c.b16 %v2542, %v2540
    %v2671 = vpack.c.b16 %v2545, %v2543
    %v2672 = vpack.c.b16 %v2546, %v2544
    %v2673 = vpack.c.b16 %v2549, %v2547
    %v2674 = vpack.c.b16 %v2550, %v2548
    %v2675 = vpack.c.b16 %v2553, %v2551
    %v2676 = vpack.c.b16 %v2554, %v2552
    %v2677 = vpack.c.b16 %v2557, %v2555
    %v2678 = vpack.c.b16 %v2558, %v2556
    %v2679 = vpack.c.b16 %v2561, %v2559
    %v2680 = vpack.c.b16 %v2562, %v2560
    %v2681 = vpack.c.b16 %v2565, %v2563
    %v2682 = vpack.c.b16 %v2566, %v2564
    %v2683 = vpack.c.b16 %v2569, %v2567
    %v2684 = vpack.c.b16 %v2570, %v2568
    %v2685 = vpack.c.b16 %v2573, %v2571
    %v2686 = vpack.c.b16 %v2574, %v2572
    %v2687 = vpack.c.b16 %v2577, %v2575
    %v2688 = vpack.c.b16 %v2578, %v2576
    %v2689 = vpack.c.b16 %v2581, %v2579
    %v2690 = vpack.c.b16 %v2582, %v2580
    %v2691 = vpack.c.b16 %v2585, %v2583
    %v2692 = vpack.c.b16 %v2586, %v2584
    %v2693 = vpack.c.b16 %v2589, %v2587
    %v2694 = vpack.c.b16 %v2590, %v2588
    %v2695 = vpack.c.b16 %v2593, %v2591
    %v2696 = vpack.c.b16 %v2594, %v2592
    %v2697 = vpack.c.b16 %v2597, %v2595
    %v2698 = vpack.c.b16 %v2598, %v2596
    %v2699 = vpack.c.b16 %v2601, %v2599
    %v2700 = vpack.c.b16 %v2602, %v2600
    %v2701 = vpack.c.b16 %v2605, %v2603
    %v2702 = vpack.c.b16 %v2606, %v2604
    %2799 = vmatprep.subr.bf16.mxu0 %v2608
    %2800 = vmatpush1.bf16.msra.mxu0 %v2607
    %2801 = vmatprep.subr.bf16.mxu0 %v2610
    %2802 = vmatpush1.bf16.msra.mxu0 %v2609
    %2803 = vmatprep.subr.bf16.mxu0 %v2612
    %2804 = vmatpush1.bf16.msra.mxu0 %v2611
    %2805 = vmatprep.subr.bf16.mxu0 %v2614
    %2806 = vmatpush1.bf16.msra.mxu0 %v2613
    %2807 = vmatprep.subr.bf16.mxu0 %v2616
    %2808 = vmatpush1.bf16.msra.mxu0 %v2615
    %2809 = vmatprep.subr.bf16.mxu0 %v2618
    %2810 = vmatpush1.bf16.msra.mxu0 %v2617
    %2811 = vmatprep.subr.bf16.mxu0 %v2620
    %2812 = vmatpush1.bf16.msra.mxu0 %v2619
    %2813 = vmatprep.subr.bf16.mxu0 %v2622
    %2814 = vmatpush1.bf16.msra.mxu0 %v2621
    %2815 = vmatprep.subr.bf16.mxu0 %v2624
    %2816 = vmatpush1.bf16.msra.mxu0 %v2623
    %2817 = vmatprep.subr.bf16.mxu0 %v2626
    %2818 = vmatpush1.bf16.msra.mxu0 %v2625
    %2819 = vmatprep.subr.bf16.mxu0 %v2628
    %2820 = vmatpush1.bf16.msra.mxu0 %v2627
    %2821 = vmatprep.subr.bf16.mxu0 %v2630
    %2822 = vmatpush1.bf16.msra.mxu0 %v2629
    %2823 = vmatprep.subr.bf16.mxu0 %v2632
    %2824 = vmatpush1.bf16.msra.mxu0 %v2631
    %2825 = vmatprep.subr.bf16.mxu0 %v2634
    %2826 = vmatpush1.bf16.msra.mxu0 %v2633
    %2827 = vmatprep.subr.bf16.mxu0 %v2636
    %2828 = vmatpush1.bf16.msra.mxu0 %v2635
    %2829 = vmatprep.subr.bf16.mxu0 %v2638
    %2830 = vmatpush1.bf16.msra.mxu0 %v2637
    %2831 = vmatprep.mubr.bf16.mxu0 %v2206
    %2832 = vmatmul.mubr.bf16.gmra.mrb[0].mxu0 %v2205
    %v2833 = vpop.f32.mrb[0].mxu0
    %v2834 = vadd.f32 %v2312, %v2833
    %v2835 = vpop.f32.mrb[0].mxu0
    %v2836 = vadd.f32 %v2316, %v2835
    %v2837 = vpop.f32.mrb[0].mxu0
    %v2838 = vadd.f32 %v2312, %v2837
    %v2839 = vpop.f32.mrb[0].mxu0
    %v2840 = vadd.f32 %v2316, %v2839
    %2841 = vdwg.mxu0
    %2842 = vmatprep.subr.bf16.mxu0 %v2640
    %2843 = vmatpush1.bf16.msra.mxu0 %v2639
    %2844 = vmatprep.subr.bf16.mxu0 %v2642
    %2845 = vmatpush1.bf16.msra.mxu0 %v2641
    %2846 = vmatprep.subr.bf16.mxu0 %v2644
    %2847 = vmatpush1.bf16.msra.mxu0 %v2643
    %2848 = vmatprep.subr.bf16.mxu0 %v2646
    %2849 = vmatpush1.bf16.msra.mxu0 %v2645
    %2850 = vmatprep.subr.bf16.mxu0 %v2648
    %2851 = vmatpush1.bf16.msra.mxu0 %v2647
    %2852 = vmatprep.subr.bf16.mxu0 %v2650
    %2853 = vmatpush1.bf16.msra.mxu0 %v2649
    %2854 = vmatprep.subr.bf16.mxu0 %v2652
    %2855 = vmatpush1.bf16.msra.mxu0 %v2651
    %2856 = vmatprep.subr.bf16.mxu0 %v2654
    %2857 = vmatpush1.bf16.msra.mxu0 %v2653
    %2858 = vmatprep.subr.bf16.mxu0 %v2656
    %2859 = vmatpush1.bf16.msra.mxu0 %v2655
    %2860 = vmatprep.subr.bf16.mxu0 %v2658
    %2861 = vmatpush1.bf16.msra.mxu0 %v2657
    %2862 = vmatprep.subr.bf16.mxu0 %v2660
    %2863 = vmatpush1.bf16.msra.mxu0 %v2659
    %2864 = vmatprep.subr.bf16.mxu0 %v2662
    %2865 = vmatpush1.bf16.msra.mxu0 %v2661
    %2866 = vmatprep.subr.bf16.mxu0 %v2664
    %2867 = vmatpush1.bf16.msra.mxu0 %v2663
    %2868 = vmatprep.subr.bf16.mxu0 %v2666
    %2869 = vmatpush1.bf16.msra.mxu0 %v2665
    %2870 = vmatprep.subr.bf16.mxu0 %v2668
    %2871 = vmatpush1.bf16.msra.mxu0 %v2667
    %2872 = vmatprep.subr.bf16.mxu0 %v2670
    %2873 = vmatpush1.bf16.msra.mxu0 %v2669
    %2874 = vmatprep.mubr.bf16.mxu0 %v2208
    %2875 = vmatmul.mubr.bf16.gmra.mrb[0].mxu0 %v2207
    %v2876 = vpop.f32.mrb[0].mxu0
    %v2877 = vadd.f32 %v2834, %v2876
    %v2878 = vpop.f32.mrb[0].mxu0
    %v2879 = vadd.f32 %v2836, %v2878
    %v2880 = vpop.f32.mrb[0].mxu0
    %v2881 = vadd.f32 %v2838, %v2880
    %v2882 = vpop.f32.mrb[0].mxu0
    %v2883 = vadd.f32 %v2840, %v2882
    %2884 = vdwg.mxu0
    %2885 = vmatprep.subr.bf16.mxu0 %v2672
    %2886 = vmatpush1.bf16.msra.mxu0 %v2671
    %2887 = vmatprep.subr.bf16.mxu0 %v2674
    %2888 = vmatpush1.bf16.msra.mxu0 %v2673
    %2889 = vmatprep.subr.bf16.mxu0 %v2676
    %2890 = vmatpush1.bf16.msra.mxu0 %v2675
    %2891 = vmatprep.subr.bf16.mxu0 %v2678
    %2892 = vmatpush1.bf16.msra.mxu0 %v2677
    %2893 = vmatprep.subr.bf16.mxu0 %v2680
    %2894 = vmatpush1.bf16.msra.mxu0 %v2679
    %2895 = vmatprep.subr.bf16.mxu0 %v2682
    %2896 = vmatpush1.bf16.msra.mxu0 %v2681
    %2897 = vmatprep.subr.bf16.mxu0 %v2684
    %2898 = vmatpush1.bf16.msra.mxu0 %v2683
    %2899 = vmatprep.subr.bf16.mxu0 %v2686
    %2900 = vmatpush1.bf16.msra.mxu0 %v2685
    %2901 = vmatprep.subr.bf16.mxu0 %v2688
    %2902 = vmatpush1.bf16.msra.mxu0 %v2687
    %2903 = vmatprep.subr.bf16.mxu0 %v2690
    %2904 = vmatpush1.bf16.msra.mxu0 %v2689
    %2905 = vmatprep.subr.bf16.mxu0 %v2692
    %2906 = vmatpush1.bf16.msra.mxu0 %v2691
    %2907 = vmatprep.subr.bf16.mxu0 %v2694
    %2908 = vmatpush1.bf16.msra.mxu0 %v2693
    %2909 = vmatprep.subr.bf16.mxu0 %v2696
    %2910 = vmatpush1.bf16.msra.mxu0 %v2695
    %2911 = vmatprep.subr.bf16.mxu0 %v2698
    %2912 = vmatpush1.bf16.msra.mxu0 %v2697
    %2913 = vmatprep.subr.bf16.mxu0 %v2700
    %2914 = vmatpush1.bf16.msra.mxu0 %v2699
    %2915 = vmatprep.subr.bf16.mxu0 %v2702
    %2916 = vmatpush1.bf16.msra.mxu0 %v2701
    %2917 = vmatprep.mubr.bf16.mxu0 %v2210
    %2918 = vmatmul.mubr.bf16.gmra.mrb[0].mxu0 %v2209
    %v2919 = vpop.f32.mrb[0].mxu0
    %v2920 = vadd.f32 %v2877, %v2919
    %v2921 = vpop.f32.mrb[0].mxu0
    %v2922 = vadd.f32 %v2879, %v2921
    %v2923 = vpop.f32.mrb[0].mxu0
    %v2924 = vadd.f32 %v2881, %v2923
    %v2925 = vpop.f32.mrb[0].mxu0
    %v2926 = vadd.f32 %v2883, %v2925
    %2927 = vdwg.mxu0
    %2929 = vset.pattern.permute.xlu0 0
    %2930 = vperm.xlu0 %2929, %v2179
    %v2931 = vpop.permute.xlu0 %2930
    %2934 = vset.pattern.permute.xlu0 0
    %2935 = vperm.xlu0 %2934, %v2180
    %v2936 = vpop.permute.xlu0 %2935
    %v2938 = vmul.f32 %v1231, %v2931
    %v2939 = vmul.f32 %v1232, %v2936
    %v2941 = vsel %vm1291, %v2939, 0
    %2943 = vmatprep.subr.mxu0 0.0
    %2944 = vmatpush1.msra.mxu0 %v2938
    %2945 = vmatprep.subr.mxu0 0.0
    %2946 = vmatpush1.msra.mxu0 %v2941
    %2947 = vmatprep.subr.mxu0 0.0
    %2948 = vmatpush1.msra.mxu0 0.0
    %2949 = vmatprep.subr.mxu0 0.0
    %2950 = vmatpush1.msra.mxu0 0.0
    %2951 = vmatprep.subr.mxu0 0.0
    %2952 = vmatpush1.msra.mxu0 0.0
    %2953 = vmatprep.subr.mxu0 0.0
    %2954 = vmatpush1.msra.mxu0 0.0
    %2955 = vmatprep.subr.mxu0 0.0
    %2956 = vmatpush1.msra.mxu0 0.0
    %2957 = vmatprep.subr.mxu0 0.0
    %2958 = vmatpush1.msra.mxu0 0.0
    %2959 = vmatprep.subr.mxu0 0.0
    %2960 = vmatpush1.msra.mxu0 0.0
    %2961 = vmatprep.subr.mxu0 0.0
    %2962 = vmatpush1.msra.mxu0 0.0
    %2963 = vmatprep.subr.mxu0 0.0
    %2964 = vmatpush1.msra.mxu0 0.0
    %2965 = vmatprep.subr.mxu0 0.0
    %2966 = vmatpush1.msra.mxu0 0.0
    %2967 = vmatprep.subr.mxu0 0.0
    %2968 = vmatpush1.msra.mxu0 0.0
    %2969 = vmatprep.subr.mxu0 0.0
    %2970 = vmatpush1.msra.mxu0 0.0
    %2971 = vmatprep.subr.mxu0 0.0
    %2972 = vmatpush1.msra.mxu0 0.0
    %2973 = vmatprep.subr.mxu0 0.0
    %2974 = vmatpush1.msra.mxu0 0.0
    %2975 = vmatprep.subr.mxu0 0.0
    %2976 = vmatpush1.msra.mxu0 0.0
    %2977 = vmatprep.subr.mxu0 0.0
    %2978 = vmatpush1.msra.mxu0 0.0
    %2979 = vmatprep.subr.mxu0 0.0
    %2980 = vmatpush1.msra.mxu0 0.0
    %2981 = vmatprep.subr.mxu0 0.0
    %2982 = vmatpush1.msra.mxu0 0.0
    %2983 = vmatprep.subr.mxu0 0.0
    %2984 = vmatpush1.msra.mxu0 0.0
    %2985 = vmatprep.subr.mxu0 0.0
    %2986 = vmatpush1.msra.mxu0 0.0
    %2987 = vmatprep.subr.mxu0 0.0
    %2988 = vmatpush1.msra.mxu0 0.0
    %2989 = vmatprep.subr.mxu0 0.0
    %2990 = vmatpush1.msra.mxu0 0.0
    %2991 = vmatprep.subr.mxu0 0.0
    %2992 = vmatpush1.msra.mxu0 0.0
    %2993 = vmatprep.subr.mxu0 0.0
    %2994 = vmatpush1.msra.mxu0 0.0
    %2995 = vmatprep.subr.mxu0 0.0
    %2996 = vmatpush1.msra.mxu0 0.0
    %2997 = vmatprep.subr.mxu0 0.0
    %2998 = vmatpush1.msra.mxu0 0.0
    %2999 = vmatprep.subr.mxu0 0.0
    %3000 = vmatpush1.msra.mxu0 0.0
    %3001 = vmatprep.subr.mxu0 0.0
    %3002 = vmatpush1.msra.mxu0 0.0
    %3003 = vmatprep.subr.mxu0 0.0
    %3004 = vmatpush1.msra.mxu0 0.0
    %3005 = vmatprep.subr.mxu0 0.0
    %3006 = vmatpush1.msra.mxu0 0.0
    %3007 = vmatprep.mubr.f32.mxu0 0.0
    %3008 = vmatmul.mubr.f32.gmra.mrb[0].mxu0 %v1754
    %v3009 = vpop.f32.mrb[0].mxu0
    %v3010 = vadd.f32 0.0, %v3009
    %v3011 = vpop.f32.mrb[0].mxu0
    %3012 = vmatprep.mubr.f32.mxu0 0.0
    %3013 = vmatmul.mubr.f32.gmra.mrb[0].mxu0 %v1754
    %v3014 = vpop.f32.mrb[0].mxu0
    %v3015 = vadd.f32 0.0, %v3014
    %v3016 = vpop.f32.mrb[0].mxu0
    %3017 = vdwg.mxu0
    %v3018 = vmul.f32 %v51, %v2931
    %v3019 = vmul.f32 %v52, %v2936
    %v3020 = vmul.f32 %v3018, %v3010
    %v3021 = vmul.f32 %v3019, %v3015
    %v3022 = vmul.f32 %v2920, %v2931
    %v3023 = vmul.f32 %v2922, %v2931
    %v3024 = vmul.f32 %v2924, %v2936
    %v3025 = vmul.f32 %v2926, %v2936
    %v3026 = vsel %vm1291, %v2180, 0
    %3028 = vmatprep.subr.mxu0 0.0
    %3029 = vmatpush1.msra.mxu0 %v2179
    %3030 = vmatprep.subr.mxu0 0.0
    %3031 = vmatpush1.msra.mxu0 %v3026
    %3032 = vmatprep.subr.mxu0 0.0
    %3033 = vmatpush1.msra.mxu0 0.0
    %3034 = vmatprep.subr.mxu0 0.0
    %3035 = vmatpush1.msra.mxu0 0.0
    %3036 = vmatprep.subr.mxu0 0.0
    %3037 = vmatpush1.msra.mxu0 0.0
    %3038 = vmatprep.subr.mxu0 0.0
    %3039 = vmatpush1.msra.mxu0 0.0
    %3040 = vmatprep.subr.mxu0 0.0
    %3041 = vmatpush1.msra.mxu0 0.0
    %3042 = vmatprep.subr.mxu0 0.0
    %3043 = vmatpush1.msra.mxu0 0.0
    %3044 = vmatprep.subr.mxu0 0.0
    %3045 = vmatpush1.msra.mxu0 0.0
    %3046 = vmatprep.subr.mxu0 0.0
    %3047 = vmatpush1.msra.mxu0 0.0
    %3048 = vmatprep.subr.mxu0 0.0
    %3049 = vmatpush1.msra.mxu0 0.0
    %3050 = vmatprep.subr.mxu0 0.0
    %3051 = vmatpush1.msra.mxu0 0.0
    %3052 = vmatprep.subr.mxu0 0.0
    %3053 = vmatpush1.msra.mxu0 0.0
    %3054 = vmatprep.subr.mxu0 0.0
    %3055 = vmatpush1.msra.mxu0 0.0
    %3056 = vmatprep.subr.mxu0 0.0
    %3057 = vmatpush1.msra.mxu0 0.0
    %3058 = vmatprep.subr.mxu0 0.0
    %3059 = vmatpush1.msra.mxu0 0.0
    %3060 = vmatprep.subr.mxu0 0.0
    %3061 = vmatpush1.msra.mxu0 0.0
    %3062 = vmatprep.subr.mxu0 0.0
    %3063 = vmatpush1.msra.mxu0 0.0
    %3064 = vmatprep.subr.mxu0 0.0
    %3065 = vmatpush1.msra.mxu0 0.0
    %3066 = vmatprep.subr.mxu0 0.0
    %3067 = vmatpush1.msra.mxu0 0.0
    %3068 = vmatprep.subr.mxu0 0.0
    %3069 = vmatpush1.msra.mxu0 0.0
    %3070 = vmatprep.subr.mxu0 0.0
    %3071 = vmatpush1.msra.mxu0 0.0
    %3072 = vmatprep.subr.mxu0 0.0
    %3073 = vmatpush1.msra.mxu0 0.0
    %3074 = vmatprep.subr.mxu0 0.0
    %3075 = vmatpush1.msra.mxu0 0.0
    %3076 = vmatprep.subr.mxu0 0.0
    %3077 = vmatpush1.msra.mxu0 0.0
    %3078 = vmatprep.subr.mxu0 0.0
    %3079 = vmatpush1.msra.mxu0 0.0
    %3080 = vmatprep.subr.mxu0 0.0
    %3081 = vmatpush1.msra.mxu0 0.0
    %3082 = vmatprep.subr.mxu0 0.0
    %3083 = vmatpush1.msra.mxu0 0.0
    %3084 = vmatprep.subr.mxu0 0.0
    %3085 = vmatpush1.msra.mxu0 0.0
    %3086 = vmatprep.subr.mxu0 0.0
    %3087 = vmatpush1.msra.mxu0 0.0
    %3088 = vmatprep.subr.mxu0 0.0
    %3089 = vmatpush1.msra.mxu0 0.0
    %3090 = vmatprep.subr.mxu0 0.0
    %3091 = vmatpush1.msra.mxu0 0.0
    %3092 = vmatprep.mubr.f32.mxu0 0.0
    %3093 = vmatmul.mubr.f32.gmra.mrb[0].mxu0 %v1835
    %v3094 = vpop.f32.mrb[0].mxu0
    %v3095 = vadd.f32 0.0, %v3094
    %v3096 = vpop.f32.mrb[0].mxu0
    %3097 = vdwg.mxu0
    %v3099 = vsel %vm1291, %v3024, 0
    %v3102 = vsel %vm1291, %v3025, 0
    %3104 = vmatprep.subr.mxu0 %v3023
    %3105 = vmatpush1.msra.mxu0 %v3022
    %3106 = vmatprep.subr.mxu0 %v3102
    %3107 = vmatpush1.msra.mxu0 %v3099
    %3108 = vmatprep.subr.mxu0 0.0
    %3109 = vmatpush1.msra.mxu0 0.0
    %3110 = vmatprep.subr.mxu0 0.0
    %3111 = vmatpush1.msra.mxu0 0.0
    %3112 = vmatprep.subr.mxu0 0.0
    %3113 = vmatpush1.msra.mxu0 0.0
    %3114 = vmatprep.subr.mxu0 0.0
    %3115 = vmatpush1.msra.mxu0 0.0
    %3116 = vmatprep.subr.mxu0 0.0
    %3117 = vmatpush1.msra.mxu0 0.0
    %3118 = vmatprep.subr.mxu0 0.0
    %3119 = vmatpush1.msra.mxu0 0.0
    %3120 = vmatprep.subr.mxu0 0.0
    %3121 = vmatpush1.msra.mxu0 0.0
    %3122 = vmatprep.subr.mxu0 0.0
    %3123 = vmatpush1.msra.mxu0 0.0
    %3124 = vmatprep.subr.mxu0 0.0
    %3125 = vmatpush1.msra.mxu0 0.0
    %3126 = vmatprep.subr.mxu0 0.0
    %3127 = vmatpush1.msra.mxu0 0.0
    %3128 = vmatprep.subr.mxu0 0.0
    %3129 = vmatpush1.msra.mxu0 0.0
    %3130 = vmatprep.subr.mxu0 0.0
    %3131 = vmatpush1.msra.mxu0 0.0
    %3132 = vmatprep.subr.mxu0 0.0
    %3133 = vmatpush1.msra.mxu0 0.0
    %3134 = vmatprep.subr.mxu0 0.0
    %3135 = vmatpush1.msra.mxu0 0.0
    %3136 = vmatprep.subr.mxu0 0.0
    %3137 = vmatpush1.msra.mxu0 0.0
    %3138 = vmatprep.subr.mxu0 0.0
    %3139 = vmatpush1.msra.mxu0 0.0
    %3140 = vmatprep.subr.mxu0 0.0
    %3141 = vmatpush1.msra.mxu0 0.0
    %3142 = vmatprep.subr.mxu0 0.0
    %3143 = vmatpush1.msra.mxu0 0.0
    %3144 = vmatprep.subr.mxu0 0.0
    %3145 = vmatpush1.msra.mxu0 0.0
    %3146 = vmatprep.subr.mxu0 0.0
    %3147 = vmatpush1.msra.mxu0 0.0
    %3148 = vmatprep.subr.mxu0 0.0
    %3149 = vmatpush1.msra.mxu0 0.0
    %3150 = vmatprep.subr.mxu0 0.0
    %3151 = vmatpush1.msra.mxu0 0.0
    %3152 = vmatprep.subr.mxu0 0.0
    %3153 = vmatpush1.msra.mxu0 0.0
    %3154 = vmatprep.subr.mxu0 0.0
    %3155 = vmatpush1.msra.mxu0 0.0
    %3156 = vmatprep.subr.mxu0 0.0
    %3157 = vmatpush1.msra.mxu0 0.0
    %3158 = vmatprep.subr.mxu0 0.0
    %3159 = vmatpush1.msra.mxu0 0.0
    %3160 = vmatprep.subr.mxu0 0.0
    %3161 = vmatpush1.msra.mxu0 0.0
    %3162 = vmatprep.subr.mxu0 0.0
    %3163 = vmatpush1.msra.mxu0 0.0
    %3164 = vmatprep.subr.mxu0 0.0
    %3165 = vmatpush1.msra.mxu0 0.0
    %3166 = vmatprep.subr.mxu0 0.0
    %3167 = vmatpush1.msra.mxu0 0.0
    %3168 = vmatprep.mubr.f32.mxu0 0.0
    %3169 = vmatmul.mubr.f32.gmra.mrb[0].mxu0 %v1835
    %v3170 = vpop.f32.mrb[0].mxu0
    %v3171 = vadd.f32 0.0, %v3170
    %v3172 = vpop.f32.mrb[0].mxu0
    %v3173 = vadd.f32 0.0, %v3172
    %3174 = vdwg.mxu0
    %v3175 = vrcp.pop %v3095
    %3177 = vset.pattern.permute.xlu0 0
    %3178 = vperm.xlu0 %3177, %v3175
    %v3179 = vpop.permute.xlu0 %3178
    %v3181 = vmul.f32 %v3171, %v3179
    %v3182 = vmul.f32 %v3173, %v3179
    %v3183 = vmul.f32 %v55, %v2931
    %v3184 = vmul.f32 %v56, %v2936
    %vm3185 = vcmp.gt.f32.partialorder %v3183, 0.0
    %vm3186 = vcmp.gt.f32.partialorder %v3184, 0.0
    %v3187 = vsel %vm3185, 1, 0
    %v3188 = vsel %vm3186, 1, 0
    %3189 = vset.pattern.permute.xlu0 0
    %3190 = vperm.xlu0 %3189, %v3187
    %v3191 = vpop.permute.xlu0 %3190
    %3192 = vset.pattern.permute.xlu0 0
    %3193 = vperm.xlu0 %3192, %v3188
    %v3194 = vpop.permute.xlu0 %3193
    %vm3195 = vcmp.eq.s32.totalorder %v3191, 1
    %vm3196 = vcmp.eq.s32.totalorder %v3194, 1
    %v3197 = vsel %vm3195, %v2920, -1e+30
    %v3198 = vsel %vm3195, %v2922, -1e+30
    %v3199 = vsel %vm3196, %v2924, -1e+30
    %v3200 = vsel %vm3196, %v2926, -1e+30
    %v3201 = vsel %vm1291, %v3199, -inf
    %v3202 = vmax.f32 %v3197, %v3201
    %v3203 = vrot.slane %v3202, 4
    %v3204 = vmax.f32 %v3202, %v3203
    %v3205 = vrot.slane %v3204, 2
    %v3206 = vmax.f32 %v3204, %v3205
    %v3207 = vrot.slane %v3206, 1
    %v3208 = vmax.f32 %v3206, %v3207
    %v3209 = vsel %vm1291, %v3200, -inf
    %v3210 = vmax.f32 %v3198, %v3209
    %v3211 = vrot.slane %v3210, 4
    %v3212 = vmax.f32 %v3210, %v3211
    %v3213 = vrot.slane %v3212, 2
    %v3214 = vmax.f32 %v3212, %v3213
    %v3215 = vrot.slane %v3214, 1
    %v3216 = vmax.f32 %v3214, %v3215
    %vm3217 = vcmp.eq.s32.totalorder %v1225, 0
    %v3218 = vsel %vm3217, 1.0, 0.0
    %v3219 = vmul.f32 %v3218, %v3208
    %v3220 = vmul.f32 %v3218, %v3216
    %v3221 = vadd.f32 %v3219, 0.0
    %v3222 = vadd.f32 %v3220, 0.0
    %3223 = vset.pattern.permute.xlu0 1
    %3224 = vperm.xlu0 %3223, %v3187
    %v3225 = vpop.permute.xlu0 %3224
    %3226 = vset.pattern.permute.xlu0 1
    %3227 = vperm.xlu0 %3226, %v3188
    %v3228 = vpop.permute.xlu0 %3227
    %vm3229 = vcmp.eq.s32.totalorder %v3225, 1
    %vm3230 = vcmp.eq.s32.totalorder %v3228, 1
    %v3231 = vsel %vm3229, %v2920, -1e+30
    %v3232 = vsel %vm3229, %v2922, -1e+30
    %v3233 = vsel %vm3230, %v2924, -1e+30
    %v3234 = vsel %vm3230, %v2926, -1e+30
    %v3235 = vsel %vm1291, %v3233, -inf
    %v3236 = vmax.f32 %v3231, %v3235
    %v3237 = vrot.slane %v3236, 4
    %v3238 = vmax.f32 %v3236, %v3237
    %v3239 = vrot.slane %v3238, 2
    %v3240 = vmax.f32 %v3238, %v3239
    %v3241 = vrot.slane %v3240, 1
    %v3242 = vmax.f32 %v3240, %v3241
    %v3243 = vsel %vm1291, %v3234, -inf
    %v3244 = vmax.f32 %v3232, %v3243
    %v3245 = vrot.slane %v3244, 4
    %v3246 = vmax.f32 %v3244, %v3245
    %v3247 = vrot.slane %v3246, 2
    %v3248 = vmax.f32 %v3246, %v3247
    %v3249 = vrot.slane %v3248, 1
    %v3250 = vmax.f32 %v3248, %v3249
    %vm3251 = vcmp.eq.s32.totalorder %v1225, 1
    %v3252 = vsel %vm3251, 1.0, 0.0
    %v3253 = vmul.f32 %v3252, %v3242
    %v3254 = vmul.f32 %v3252, %v3250
    %v3255 = vadd.f32 %v3221, %v3253
    %v3256 = vadd.f32 %v3222, %v3254
    %3257 = vst [vmem:[#allocation2] sm:$0xff] %v2920
    %3258 = vst [vmem:[#allocation2 + $0x8] sm:$0xff] %v2922
    %3259 = vst [vmem:[#allocation2 + $0x10] sm:$0xf] %v2924
    %3260 = vst [vmem:[#allocation2 + $0x18] sm:$0xf] %v2926
    %vm3261 = vcmask 7168
    %3262 = vst.msk [vmem:[#allocation4] sm:$0xff] %vm3261, %v2179
    %vm3263 = vcmask 3072
    %3264 = vst.msk [vmem:[#allocation4 + $0x8] sm:$0xf] %vm3263, %v2180
    %3265 = vst.msk [vmem:[#allocation6] sm:$0xff] %vm1261, %v3020
    %3266 = vst.msk [vmem:[#allocation6 + $0x8] sm:$0xf] %vm1265, %v3021
    %v3271 = vcombine.low %v3255, %v3256
    %v3272 = vcombine.low %v3181, %v3182
    %v3274 = vunpack.c.l.s4 1983009808
    %v3275 = vunpack.c.0.s8 %v3274
    %v3276 = vlaneseq
    %v3277 = vshrl.u32 %v3276, 7
    %v3278 = vsub.s32 %v3275, %v3277
    %v3279 = vrot.slane %v3271, %v3278
    %v3281 = vunpack.c.l.s4 1983009808
    %v3282 = vunpack.c.0.s8 %v3281
    %v3283 = vlaneseq
    %v3284 = vshrl.u32 %v3283, 7
    %v3285 = vsub.s32 %v3282, %v3284
    %v3286 = vrot.slane %v3272, %v3285
    %v3287 = vcombine.low %v3279, %v3286
    %3289 = vst [vmem:[%s15] sm:$0xff] %v3287
    // Predicated region
    $region50: #{_forward_device.6} parent=1 // pred_check
      _
    $region51: #{_forward_device.6} parent=1 // pred_check_branch
      %3291 = sbr.rel (0) target = $region53
    $region52: #{_forward_device.6} parent=1 // pred_region
      %s3293 = ssub.s32 512, 512
      %3294 = vsyncadd [#allocation3], %s3293
      %s3295 = sshll.u32 [#allocation2], 4
      %s3296 = int_to_ptr.vmem [resolvable:$true] %s3295
      %3301 = dma.vmem_to_hbm [thread:$0]  %s3296, 512, %s12, [#allocation3], 256, 256, 16
    $region53: #{_forward_device.6} parent=1 // pred_fallthru
      _
    // Predicated region
    $region54: #{_forward_device.6} parent=1 // pred_check
      _
    $region55: #{_forward_device.6} parent=1 // pred_check_branch
      %3303 = sbr.rel (0) target = $region57
    $region56: #{_forward_device.6} parent=1 // pred_region
      %s3305 = ssub.s32 256, 256
      %3306 = vsyncadd [#allocation5], %s3305
      %s3307 = sshll.u32 [#allocation4], 4
      %s3308 = int_to_ptr.vmem [resolvable:$true] %s3307
      %3313 = dma.vmem_to_hbm [thread:$0]  %s3308, 256, %s13, [#allocation5], 128, 128, 8
    $region57: #{_forward_device.6} parent=1 // pred_fallthru
      _
    // Predicated region
    $region58: #{_forward_device.6} parent=1 // pred_check
      _
    $region59: #{_forward_device.6} parent=1 // pred_check_branch
      %3315 = sbr.rel (0) target = $region61
    $region60: #{_forward_device.6} parent=1 // pred_region
      %s3317 = ssub.s32 256, 256
      %3318 = vsyncadd [#allocation5], %s3317
      %s3319 = sshll.u32 [#allocation6], 4
      %s3320 = int_to_ptr.vmem [resolvable:$true] %s3319
      %3325 = dma.vmem_to_hbm [thread:$0]  %s3320, 256, %s14, [#allocation5], 128, 128, 8
    $region61: #{_forward_device.6} parent=1 // pred_fallthru
      _
    // Predicated region
    $region62: #{_forward_device.6} parent=1 // pred_check
      _
    $region63: #{_forward_device.6} parent=1 // pred_check_branch
      %3327 = sbr.rel (0) target = $region65
    $region64: #{_forward_device.6} parent=1 // pred_region
      _
    $region65: #{_forward_device.6} parent=1 // pred_fallthru
      _
    // Predicated region
    $region66: #{_forward_device.6} parent=1 // pred_check
      _
    $region67: #{_forward_device.6} parent=1 // pred_check_branch
      %3329 = sbr.rel (0) target = $region69
    $region68: #{_forward_device.6} parent=1 // pred_region
      %3330 = dma.done [#allocation3], 512
    $region69: #{_forward_device.6} parent=1 // pred_fallthru
      _
    // Predicated region
    $region70: #{_forward_device.6} parent=1 // pred_check
      _
    $region71: #{_forward_device.6} parent=1 // pred_check_branch
      %3332 = sbr.rel (0) target = $region73
    $region72: #{_forward_device.6} parent=1 // pred_region
      %3333 = dma.done [#allocation5], 256
    $region73: #{_forward_device.6} parent=1 // pred_fallthru
      _
    // Predicated region
    $region74: #{_forward_device.6} parent=1 // pred_check
      _
    $region75: #{_forward_device.6} parent=1 // pred_check_branch
      %3335 = sbr.rel (0) target = $region77
    $region76: #{_forward_device.6} parent=1 // pred_region
      %3336 = dma.done [#allocation5], 256
    $region77: #{_forward_device.6} parent=1 // pred_fallthru
      _
    // Predicated region
    $region78: #{_forward_device.6} parent=1 // pred_check
      _
    $region79: #{_forward_device.6} parent=1 // pred_check_branch
      %3338 = sbr.rel (0) target = $region81
    $region80: #{_forward_device.6} parent=1 // pred_region
      _
    $region81: #{_forward_device.6} parent=1 // pred_fallthru
      _
    %3339 = vsyncpa [#allocation3], 1
    %3340 = vsyncpa [#allocation5], 1

// kernel: _forward_device.5
$region0: #{_forward_device.5}
  #allocation0 [shape = 'u32[]', space=smem, size = 0x4, offset = 0x4, fixed_abs, tag = 'smem constant byte address 0x4 - core index']
  #allocation1 [shape = 'u32[144,128]{1,0:T(1,128)}', space=vmem, size = 0x12000, scoped, tag = 'internal scratch']
  %s0 = inlined_call_operand.vmem [shape: f32[12,256], index: 0, kind: input, shape index: {}]
  %s1 = inlined_call_operand.vmem [shape: f32[12,12], index: 1, kind: input, shape index: {}]
  %s2 = inlined_call_operand.vmem [shape: f32[12,1], index: 2, kind: input, shape index: {}]
  %s3 = inlined_call_operand.vmem [shape: f32[12,2], index: 3, kind: input, shape index: {}]
  %s4 = inlined_call_operand.vmem [shape: f32[2,12], index: 4, kind: input, shape index: {}]
  %s5 = inlined_call_operand.vmem [shape: bf16[256,768], index: 5, kind: input, shape index: {}]
  %s6 = inlined_call_operand.vmem [shape: f32[3,768], index: 6, kind: input, shape index: {}]
  %s7 = inlined_call_operand.vmem [shape: f32[3,768], index: 7, kind: input, shape index: {}]
  %s8 = inlined_call_operand.vmem [shape: f32[1,768], index: 8, kind: input, shape index: {}]
  %s9 = inlined_call_operand.vmem [shape: f32[1,768], index: 9, kind: input, shape index: {}]
  %s10 = inlined_call_operand.vmem [shape: bf16[768,256], index: 10, kind: input, shape index: {}]
  %s11 = inlined_call_operand.vmem [shape: f32[1,256], index: 11, kind: input, shape index: {}]
  %s12 = inlined_call_operand.vmem [shape: f32[12,256], index: 12, kind: output, shape index: {0}]
  %s13 = inlined_call_operand.vmem [shape: f32[12,1], index: 13, kind: output, shape index: {1}]
  %s14 = inlined_call_operand.vmem [shape: f32[12,12], index: 14, kind: output, shape index: {2}]
  %s15 = inlined_call_operand.vmem [shape: f32[2,512], index: 15, kind: output, shape index: {3}]
  %16 = xla_tuple %s12, %s13, %s14, %s15
  %s17 = sld [smem:[#allocation0]]
  $region82: #{_forward_device.5} parent=0
    _
  %s19 = ssub.s32 1, %s17
  %s20 = scalar_select 0, %s19, %s17
  // Predicated region
  $region2: #{_forward_device.5} parent=0 // pred_check
    _
  $region3: #{_forward_device.5} parent=0 // pred_check_branch
    %22 = sbr.rel (0) target = $region5
  $region4: #{_forward_device.5} parent=0 // pred_region
    _
  $region5: #{_forward_device.5} parent=0 // pred_fallthru
    _
  // Predicated region
  $region6: #{_forward_device.5} parent=0 // pred_check
    _
  $region7: #{_forward_device.5} parent=0 // pred_check_branch
    %24 = sbr.rel (0) target = $region9
  $region8: #{_forward_device.5} parent=0 // pred_region
    _
  $region9: #{_forward_device.5} parent=0 // pred_fallthru
    _
  // Predicated region
  $region10: #{_forward_device.5} parent=0 // pred_check
    _
  $region11: #{_forward_device.5} parent=0 // pred_check_branch
    %26 = sbr.rel (0) target = $region13
  $region12: #{_forward_device.5} parent=0 // pred_region
    _
  $region13: #{_forward_device.5} parent=0 // pred_fallthru
    _
  // Predicated region
  $region14: #{_forward_device.5} parent=0 // pred_check
    _
  $region15: #{_forward_device.5} parent=0 // pred_check_branch
    %28 = sbr.rel (0) target = $region17
  $region16: #{_forward_device.5} parent=0 // pred_region
    _
  $region17: #{_forward_device.5} parent=0 // pred_fallthru
    _
  // Predicated region
  $region18: #{_forward_device.5} parent=0 // pred_check
    _
  $region19: #{_forward_device.5} parent=0 // pred_check_branch
    %30 = sbr.rel (0) target = $region21
  $region20: #{_forward_device.5} parent=0 // pred_region
    _
  $region21: #{_forward_device.5} parent=0 // pred_fallthru
    _
  // Predicated region
  $region22: #{_forward_device.5} parent=0 // pred_check
    _
  $region23: #{_forward_device.5} parent=0 // pred_check_branch
    %32 = sbr.rel (0) target = $region25
  $region24: #{_forward_device.5} parent=0 // pred_region
    _
  $region25: #{_forward_device.5} parent=0 // pred_fallthru
    _
  // Predicated region
  $region26: #{_forward_device.5} parent=0 // pred_check
    _
  $region27: #{_forward_device.5} parent=0 // pred_check_branch
    %34 = sbr.rel (0) target = $region29
  $region28: #{_forward_device.5} parent=0 // pred_region
    _
  $region29: #{_forward_device.5} parent=0 // pred_fallthru
    _
  // Predicated region
  $region30: #{_forward_device.5} parent=0 // pred_check
    _
  $region31: #{_forward_device.5} parent=0 // pred_check_branch
    %36 = sbr.rel (0) target = $region33
  $region32: #{_forward_device.5} parent=0 // pred_region
    _
  $region33: #{_forward_device.5} parent=0 // pred_fallthru
    _
  // Predicated region
  $region34: #{_forward_device.5} parent=0 // pred_check
    _
  $region35: #{_forward_device.5} parent=0 // pred_check_branch
    %38 = sbr.rel (0) target = $region37
  $region36: #{_forward_device.5} parent=0 // pred_region
    _
  $region37: #{_forward_device.5} parent=0 // pred_fallthru
    _
  // Predicated region
  $region38: #{_forward_device.5} parent=0 // pred_check
    _
  $region39: #{_forward_device.5} parent=0 // pred_check_branch
    %40 = sbr.rel (0) target = $region41
  $region40: #{_forward_device.5} parent=0 // pred_region
    _
  $region41: #{_forward_device.5} parent=0 // pred_fallthru
    _
  // Predicated region
  $region42: #{_forward_device.5} parent=0 // pred_check
    _
  $region43: #{_forward_device.5} parent=0 // pred_check_branch
    %42 = sbr.rel (0) target = $region45
  $region44: #{_forward_device.5} parent=0 // pred_region
    _
  $region45: #{_forward_device.5} parent=0 // pred_fallthru
    _
  // Predicated region
  $region46: #{_forward_device.5} parent=0 // pred_check
    _
  $region47: #{_forward_device.5} parent=0 // pred_check_branch
    %44 = sbr.rel (0) target = $region49
  $region48: #{_forward_device.5} parent=0 // pred_region
    _
  $region49: #{_forward_device.5} parent=0 // pred_fallthru
    _
  %v45 = vld [vmem:[%s0] sm:$0xff]
  %v46 = vld [vmem:[%s0 + $0x8] sm:$0xff]
  %v47 = vld [vmem:[%s0 + $0x10] sm:$0xf]
  %v48 = vld [vmem:[%s0 + $0x18] sm:$0xf]
  %v49 = vld [vmem:[%s1] sm:$0xff]
  %v50 = vld [vmem:[%s1 + $0x8] sm:$0xf]
  %v51 = vld [vmem:[%s2] sm:$0xff]
  %v52 = vld [vmem:[%s2 + $0x8] sm:$0xf]
  %v53 = vld [vmem:[%s3] sm:$0xff]
  %v54 = vld [vmem:[%s3 + $0x8] sm:$0xf]
  %v55 = vld [vmem:[%s4] sm:$0x3]
  %v56 = vpack.c.bf16 %v47, %v45
  %v57 = vpack.c.bf16 %v48, %v46
  %v58 = vld [vmem:[%s5] sm:$0xff]
  %v59 = vld [vmem:[%s5 + $0x8] sm:$0xff]
  %v60 = vld [vmem:[%s5 + $0x10] sm:$0xff]
  %v61 = vld [vmem:[%s5 + $0x18] sm:$0xff]
  %v62 = vld [vmem:[%s5 + $0x20] sm:$0xff]
  %v63 = vld [vmem:[%s5 + $0x28] sm:$0xff]
  %v64 = vld [vmem:[%s5 + $0x30] sm:$0xff]
  %v65 = vld [vmem:[%s5 + $0x38] sm:$0xff]
  %v66 = vld [vmem:[%s5 + $0x40] sm:$0xff]
  %v67 = vld [vmem:[%s5 + $0x48] sm:$0xff]
  %v68 = vld [vmem:[%s5 + $0x50] sm:$0xff]
  %v69 = vld [vmem:[%s5 + $0x58] sm:$0xff]
  %v70 = vld [vmem:[%s5 + $0x60] sm:$0xff]
  %v71 = vld [vmem:[%s5 + $0x68] sm:$0xff]
  %v72 = vld [vmem:[%s5 + $0x70] sm:$0xff]
  %v73 = vld [vmem:[%s5 + $0x78] sm:$0xff]
  %v74 = vld [vmem:[%s5 + $0x80] sm:$0xff]
  %v75 = vld [vmem:[%s5 + $0x88] sm:$0xff]
  %v76 = vld [vmem:[%s5 + $0x90] sm:$0xff]
  %v77 = vld [vmem:[%s5 + $0x98] sm:$0xff]
  %v78 = vld [vmem:[%s5 + $0xa0] sm:$0xff]
  %v79 = vld [vmem:[%s5 + $0xa8] sm:$0xff]
  %v80 = vld [vmem:[%s5 + $0xb0] sm:$0xff]
  %v81 = vld [vmem:[%s5 + $0xb8] sm:$0xff]
  %v82 = vld [vmem:[%s5 + $0xc0] sm:$0xff]
  %v83 = vld [vmem:[%s5 + $0xc8] sm:$0xff]
  %v84 = vld [vmem:[%s5 + $0xd0] sm:$0xff]
  %v85 = vld [vmem:[%s5 + $0xd8] sm:$0xff]
  %v86 = vld [vmem:[%s5 + $0xe0] sm:$0xff]
  %v87 = vld [vmem:[%s5 + $0xe8] sm:$0xff]
  %v88 = vld [vmem:[%s5 + $0xf0] sm:$0xff]
  %v89 = vld [vmem:[%s5 + $0xf8] sm:$0xff]
  %v90 = vld [vmem:[%s5 + $0x100] sm:$0xff]
  %v91 = vld [vmem:[%s5 + $0x108] sm:$0xff]
  %v92 = vld [vmem:[%s5 + $0x110] sm:$0xff]
  %v93 = vld [vmem:[%s5 + $0x118] sm:$0xff]
  %v94 = vld [vmem:[%s5 + $0x120] sm:$0xff]
  %v95 = vld [vmem:[%s5 + $0x128] sm:$0xff]
  %v96 = vld [vmem:[%s5 + $0x130] sm:$0xff]
  %v97 = vld [vmem:[%s5 + $0x138] sm:$0xff]
  %v98 = vld [vmem:[%s5 + $0x140] sm:$0xff]
  %v99 = vld [vmem:[%s5 + $0x148] sm:$0xff]
  %v100 = vld [vmem:[%s5 + $0x150] sm:$0xff]
  %v101 = vld [vmem:[%s5 + $0x158] sm:$0xff]
  %v102 = vld [vmem:[%s5 + $0x160] sm:$0xff]
  %v103 = vld [vmem:[%s5 + $0x168] sm:$0xff]
  %v104 = vld [vmem:[%s5 + $0x170] sm:$0xff]
  %v105 = vld [vmem:[%s5 + $0x178] sm:$0xff]
  %v106 = vld [vmem:[%s5 + $0x180] sm:$0xff]
  %v107 = vld [vmem:[%s5 + $0x188] sm:$0xff]
  %v108 = vld [vmem:[%s5 + $0x190] sm:$0xff]
  %v109 = vld [vmem:[%s5 + $0x198] sm:$0xff]
  %v110 = vld [vmem:[%s5 + $0x1a0] sm:$0xff]
  %v111 = vld [vmem:[%s5 + $0x1a8] sm:$0xff]
  %v112 = vld [vmem:[%s5 + $0x1b0] sm:$0xff]
  %v113 = vld [vmem:[%s5 + $0x1b8] sm:$0xff]
  %v114 = vld [vmem:[%s5 + $0x1c0] sm:$0xff]
  %v115 = vld [vmem:[%s5 + $0x1c8] sm:$0xff]
  %v116 = vld [vmem:[%s5 + $0x1d0] sm:$0xff]
  %v117 = vld [vmem:[%s5 + $0x1d8] sm:$0xff]
  %v118 = vld [vmem:[%s5 + $0x1e0] sm:$0xff]
  %v119 = vld [vmem:[%s5 + $0x1e8] sm:$0xff]
  %v120 = vld [vmem:[%s5 + $0x1f0] sm:$0xff]
  %v121 = vld [vmem:[%s5 + $0x1f8] sm:$0xff]
  %v122 = vld [vmem:[%s5 + $0x200] sm:$0xff]
  %v123 = vld [vmem:[%s5 + $0x208] sm:$0xff]
  %v124 = vld [vmem:[%s5 + $0x210] sm:$0xff]
  %v125 = vld [vmem:[%s5 + $0x218] sm:$0xff]
  %v126 = vld [vmem:[%s5 + $0x220] sm:$0xff]
  %v127 = vld [vmem:[%s5 + $0x228] sm:$0xff]
  %v128 = vld [vmem:[%s5 + $0x230] sm:$0xff]
  %v129 = vld [vmem:[%s5 + $0x238] sm:$0xff]
  %v130 = vld [vmem:[%s5 + $0x240] sm:$0xff]
  %v131 = vld [vmem:[%s5 + $0x248] sm:$0xff]
  %v132 = vld [vmem:[%s5 + $0x250] sm:$0xff]
  %v133 = vld [vmem:[%s5 + $0x258] sm:$0xff]
  %v134 = vld [vmem:[%s5 + $0x260] sm:$0xff]
  %v135 = vld [vmem:[%s5 + $0x268] sm:$0xff]
  %v136 = vld [vmem:[%s5 + $0x270] sm:$0xff]
  %v137 = vld [vmem:[%s5 + $0x278] sm:$0xff]
  %v138 = vld [vmem:[%s5 + $0x280] sm:$0xff]
  %v139 = vld [vmem:[%s5 + $0x288] sm:$0xff]
  %v140 = vld [vmem:[%s5 + $0x290] sm:$0xff]
  %v141 = vld [vmem:[%s5 + $0x298] sm:$0xff]
  %v142 = vld [vmem:[%s5 + $0x2a0] sm:$0xff]
  %v143 = vld [vmem:[%s5 + $0x2a8] sm:$0xff]
  %v144 = vld [vmem:[%s5 + $0x2b0] sm:$0xff]
  %v145 = vld [vmem:[%s5 + $0x2b8] sm:$0xff]
  %v146 = vld [vmem:[%s5 + $0x2c0] sm:$0xff]
  %v147 = vld [vmem:[%s5 + $0x2c8] sm:$0xff]
  %v148 = vld [vmem:[%s5 + $0x2d0] sm:$0xff]
  %v149 = vld [vmem:[%s5 + $0x2d8] sm:$0xff]
  %v150 = vld [vmem:[%s5 + $0x2e0] sm:$0xff]
  %v151 = vld [vmem:[%s5 + $0x2e8] sm:$0xff]
  %v152 = vld [vmem:[%s5 + $0x2f0] sm:$0xff]
  %v153 = vld [vmem:[%s5 + $0x2f8] sm:$0xff]
  %v250 = vunpack.c.l.b16 %v58
  %v251 = vunpack.c.h.b16 %v58
  %v252 = vunpack.c.l.b16 %v59
  %v253 = vunpack.c.h.b16 %v59
  %v254 = vunpack.c.l.b16 %v60
  %v255 = vunpack.c.h.b16 %v60
  %v256 = vunpack.c.l.b16 %v61
  %v257 = vunpack.c.h.b16 %v61
  %v258 = vunpack.c.l.b16 %v62
  %v259 = vunpack.c.h.b16 %v62
  %v260 = vunpack.c.l.b16 %v63
  %v261 = vunpack.c.h.b16 %v63
  %v262 = vunpack.c.l.b16 %v64
  %v263 = vunpack.c.h.b16 %v64
  %v264 = vunpack.c.l.b16 %v65
  %v265 = vunpack.c.h.b16 %v65
  %v266 = vunpack.c.l.b16 %v66
  %v267 = vunpack.c.h.b16 %v66
  %v268 = vunpack.c.l.b16 %v67
  %v269 = vunpack.c.h.b16 %v67
  %v270 = vunpack.c.l.b16 %v68
  %v271 = vunpack.c.h.b16 %v68
  %v272 = vunpack.c.l.b16 %v69
  %v273 = vunpack.c.h.b16 %v69
  %v274 = vunpack.c.l.b16 %v70
  %v275 = vunpack.c.h.b16 %v70
  %v276 = vunpack.c.l.b16 %v71
  %v277 = vunpack.c.h.b16 %v71
  %v278 = vunpack.c.l.b16 %v72
  %v279 = vunpack.c.h.b16 %v72
  %v280 = vunpack.c.l.b16 %v73
  %v281 = vunpack.c.h.b16 %v73
  %v282 = vunpack.c.l.b16 %v74
  %v283 = vunpack.c.h.b16 %v74
  %v284 = vunpack.c.l.b16 %v75
  %v285 = vunpack.c.h.b16 %v75
  %v286 = vunpack.c.l.b16 %v76
  %v287 = vunpack.c.h.b16 %v76
  %v288 = vunpack.c.l.b16 %v77
  %v289 = vunpack.c.h.b16 %v77
  %v290 = vunpack.c.l.b16 %v78
  %v291 = vunpack.c.h.b16 %v78
  %v292 = vunpack.c.l.b16 %v79
  %v293 = vunpack.c.h.b16 %v79
  %v294 = vunpack.c.l.b16 %v80
  %v295 = vunpack.c.h.b16 %v80
  %v296 = vunpack.c.l.b16 %v81
  %v297 = vunpack.c.h.b16 %v81
  %v298 = vunpack.c.l.b16 %v82
  %v299 = vunpack.c.h.b16 %v82
  %v300 = vunpack.c.l.b16 %v83
  %v301 = vunpack.c.h.b16 %v83
  %v302 = vunpack.c.l.b16 %v84
  %v303 = vunpack.c.h.b16 %v84
  %v304 = vunpack.c.l.b16 %v85
  %v305 = vunpack.c.h.b16 %v85
  %v306 = vunpack.c.l.b16 %v86
  %v307 = vunpack.c.h.b16 %v86
  %v308 = vunpack.c.l.b16 %v87
  %v309 = vunpack.c.h.b16 %v87
  %v310 = vunpack.c.l.b16 %v88
  %v311 = vunpack.c.h.b16 %v88
  %v312 = vunpack.c.l.b16 %v89
  %v313 = vunpack.c.h.b16 %v89
  %v314 = vunpack.c.l.b16 %v90
  %v315 = vunpack.c.h.b16 %v90
  %v316 = vunpack.c.l.b16 %v91
  %v317 = vunpack.c.h.b16 %v91
  %v318 = vunpack.c.l.b16 %v92
  %v319 = vunpack.c.h.b16 %v92
  %v320 = vunpack.c.l.b16 %v93
  %v321 = vunpack.c.h.b16 %v93
  %v322 = vunpack.c.l.b16 %v94
  %v323 = vunpack.c.h.b16 %v94
  %v324 = vunpack.c.l.b16 %v95
  %v325 = vunpack.c.h.b16 %v95
  %v326 = vunpack.c.l.b16 %v96
  %v327 = vunpack.c.h.b16 %v96
  %v328 = vunpack.c.l.b16 %v97
  %v329 = vunpack.c.h.b16 %v97
  %v330 = vunpack.c.l.b16 %v98
  %v331 = vunpack.c.h.b16 %v98
  %v332 = vunpack.c.l.b16 %v99
  %v333 = vunpack.c.h.b16 %v99
  %v334 = vunpack.c.l.b16 %v100
  %v335 = vunpack.c.h.b16 %v100
  %v336 = vunpack.c.l.b16 %v101
  %v337 = vunpack.c.h.b16 %v101
  %v338 = vunpack.c.l.b16 %v102
  %v339 = vunpack.c.h.b16 %v102
  %v340 = vunpack.c.l.b16 %v103
  %v341 = vunpack.c.h.b16 %v103
  %v342 = vunpack.c.l.b16 %v104
  %v343 = vunpack.c.h.b16 %v104
  %v344 = vunpack.c.l.b16 %v105
  %v345 = vunpack.c.h.b16 %v105
  %v346 = vunpack.c.l.b16 %v106
  %v347 = vunpack.c.h.b16 %v106
  %v348 = vunpack.c.l.b16 %v107
  %v349 = vunpack.c.h.b16 %v107
  %v350 = vunpack.c.l.b16 %v108
  %v351 = vunpack.c.h.b16 %v108
  %v352 = vunpack.c.l.b16 %v109
  %v353 = vunpack.c.h.b16 %v109
  %v354 = vunpack.c.l.b16 %v110
  %v355 = vunpack.c.h.b16 %v110
  %v356 = vunpack.c.l.b16 %v111
  %v357 = vunpack.c.h.b16 %v111
  %v358 = vunpack.c.l.b16 %v112
  %v359 = vunpack.c.h.b16 %v112
  %v360 = vunpack.c.l.b16 %v113
  %v361 = vunpack.c.h.b16 %v113
  %v362 = vunpack.c.l.b16 %v114
  %v363 = vunpack.c.h.b16 %v114
  %v364 = vunpack.c.l.b16 %v115
  %v365 = vunpack.c.h.b16 %v115
  %v366 = vunpack.c.l.b16 %v116
  %v367 = vunpack.c.h.b16 %v116
  %v368 = vunpack.c.l.b16 %v117
  %v369 = vunpack.c.h.b16 %v117
  %v370 = vunpack.c.l.b16 %v118
  %v371 = vunpack.c.h.b16 %v118
  %v372 = vunpack.c.l.b16 %v119
  %v373 = vunpack.c.h.b16 %v119
  %v374 = vunpack.c.l.b16 %v120
  %v375 = vunpack.c.h.b16 %v120
  %v376 = vunpack.c.l.b16 %v121
  %v377 = vunpack.c.h.b16 %v121
  %v378 = vunpack.c.l.b16 %v122
  %v379 = vunpack.c.h.b16 %v122
  %v380 = vunpack.c.l.b16 %v123
  %v381 = vunpack.c.h.b16 %v123
  %v382 = vunpack.c.l.b16 %v124
  %v383 = vunpack.c.h.b16 %v124
  %v384 = vunpack.c.l.b16 %v125
  %v385 = vunpack.c.h.b16 %v125
  %v386 = vunpack.c.l.b16 %v126
  %v387 = vunpack.c.h.b16 %v126
  %v388 = vunpack.c.l.b16 %v127
  %v389 = vunpack.c.h.b16 %v127
  %v390 = vunpack.c.l.b16 %v128
  %v391 = vunpack.c.h.b16 %v128
  %v392 = vunpack.c.l.b16 %v129
  %v393 = vunpack.c.h.b16 %v129
  %v394 = vunpack.c.l.b16 %v130
  %v395 = vunpack.c.h.b16 %v130
  %v396 = vunpack.c.l.b16 %v131
  %v397 = vunpack.c.h.b16 %v131
  %v398 = vunpack.c.l.b16 %v132
  %v399 = vunpack.c.h.b16 %v132
  %v400 = vunpack.c.l.b16 %v133
  %v401 = vunpack.c.h.b16 %v133
  %v402 = vunpack.c.l.b16 %v134
  %v403 = vunpack.c.h.b16 %v134
  %v404 = vunpack.c.l.b16 %v135
  %v405 = vunpack.c.h.b16 %v135
  %v406 = vunpack.c.l.b16 %v136
  %v407 = vunpack.c.h.b16 %v136
  %v408 = vunpack.c.l.b16 %v137
  %v409 = vunpack.c.h.b16 %v137
  %v410 = vunpack.c.l.b16 %v138
  %v411 = vunpack.c.h.b16 %v138
  %v412 = vunpack.c.l.b16 %v139
  %v413 = vunpack.c.h.b16 %v139
  %v414 = vunpack.c.l.b16 %v140
  %v415 = vunpack.c.h.b16 %v140
  %v416 = vunpack.c.l.b16 %v141
  %v417 = vunpack.c.h.b16 %v141
  %v418 = vunpack.c.l.b16 %v142
  %v419 = vunpack.c.h.b16 %v142
  %v420 = vunpack.c.l.b16 %v143
  %v421 = vunpack.c.h.b16 %v143
  %v422 = vunpack.c.l.b16 %v144
  %v423 = vunpack.c.h.b16 %v144
  %v424 = vunpack.c.l.b16 %v145
  %v425 = vunpack.c.h.b16 %v145
  %v426 = vunpack.c.l.b16 %v146
  %v427 = vunpack.c.h.b16 %v146
  %v428 = vunpack.c.l.b16 %v147
  %v429 = vunpack.c.h.b16 %v147
  %v430 = vunpack.c.l.b16 %v148
  %v431 = vunpack.c.h.b16 %v148
  %v432 = vunpack.c.l.b16 %v149
  %v433 = vunpack.c.h.b16 %v149
  %v434 = vunpack.c.l.b16 %v150
  %v435 = vunpack.c.h.b16 %v150
  %v436 = vunpack.c.l.b16 %v151
  %v437 = vunpack.c.h.b16 %v151
  %v438 = vunpack.c.l.b16 %v152
  %v439 = vunpack.c.h.b16 %v152
  %v440 = vunpack.c.l.b16 %v153
  %v441 = vunpack.c.h.b16 %v153
  %v442 = vpack.c.b16 %v256, %v250
  %v443 = vpack.c.b16 %v257, %v251
  %v444 = vpack.c.b16 %v258, %v252
  %v445 = vpack.c.b16 %v259, %v253
  %v446 = vpack.c.b16 %v260, %v254
  %v447 = vpack.c.b16 %v261, %v255
  %v448 = vpack.c.b16 %v268, %v262
  %v449 = vpack.c.b16 %v269, %v263
  %v450 = vpack.c.b16 %v270, %v264
  %v451 = vpack.c.b16 %v271, %v265
  %v452 = vpack.c.b16 %v272, %v266
  %v453 = vpack.c.b16 %v273, %v267
  %v454 = vpack.c.b16 %v280, %v274
  %v455 = vpack.c.b16 %v281, %v275
  %v456 = vpack.c.b16 %v282, %v276
  %v457 = vpack.c.b16 %v283, %v277
  %v458 = vpack.c.b16 %v284, %v278
  %v459 = vpack.c.b16 %v285, %v279
  %v460 = vpack.c.b16 %v292, %v286
  %v461 = vpack.c.b16 %v293, %v287
  %v462 = vpack.c.b16 %v294, %v288
  %v463 = vpack.c.b16 %v295, %v289
  %v464 = vpack.c.b16 %v296, %v290
  %v465 = vpack.c.b16 %v297, %v291
  %v466 = vpack.c.b16 %v304, %v298
  %v467 = vpack.c.b16 %v305, %v299
  %v468 = vpack.c.b16 %v306, %v300
  %v469 = vpack.c.b16 %v307, %v301
  %v470 = vpack.c.b16 %v308, %v302
  %v471 = vpack.c.b16 %v309, %v303
  %v472 = vpack.c.b16 %v316, %v310
  %v473 = vpack.c.b16 %v317, %v311
  %v474 = vpack.c.b16 %v318, %v312
  %v475 = vpack.c.b16 %v319, %v313
  %v476 = vpack.c.b16 %v320, %v314
  %v477 = vpack.c.b16 %v321, %v315
  %v478 = vpack.c.b16 %v328, %v322
  %v479 = vpack.c.b16 %v329, %v323
  %v480 = vpack.c.b16 %v330, %v324
  %v481 = vpack.c.b16 %v331, %v325
  %v482 = vpack.c.b16 %v332, %v326
  %v483 = vpack.c.b16 %v333, %v327
  %v484 = vpack.c.b16 %v340, %v334
  %v485 = vpack.c.b16 %v341, %v335
  %v486 = vpack.c.b16 %v342, %v336
  %v487 = vpack.c.b16 %v343, %v337
  %v488 = vpack.c.b16 %v344, %v338
  %v489 = vpack.c.b16 %v345, %v339
  %v490 = vpack.c.b16 %v352, %v346
  %v491 = vpack.c.b16 %v353, %v347
  %v492 = vpack.c.b16 %v354, %v348
  %v493 = vpack.c.b16 %v355, %v349
  %v494 = vpack.c.b16 %v356, %v350
  %v495 = vpack.c.b16 %v357, %v351
  %v496 = vpack.c.b16 %v364, %v358
  %v497 = vpack.c.b16 %v365, %v359
  %v498 = vpack.c.b16 %v366, %v360
  %v499 = vpack.c.b16 %v367, %v361
  %v500 = vpack.c.b16 %v368, %v362
  %v501 = vpack.c.b16 %v369, %v363
  %v502 = vpack.c.b16 %v376, %v370
  %v503 = vpack.c.b16 %v377, %v371
  %v504 = vpack.c.b16 %v378, %v372
  %v505 = vpack.c.b16 %v379, %v373
  %v506 = vpack.c.b16 %v380, %v374
  %v507 = vpack.c.b16 %v381, %v375
  %v508 = vpack.c.b16 %v388, %v382
  %v509 = vpack.c.b16 %v389, %v383
  %v510 = vpack.c.b16 %v390, %v384
  %v511 = vpack.c.b16 %v391, %v385
  %v512 = vpack.c.b16 %v392, %v386
  %v513 = vpack.c.b16 %v393, %v387
  %v514 = vpack.c.b16 %v400, %v394
  %v515 = vpack.c.b16 %v401, %v395
  %v516 = vpack.c.b16 %v402, %v396
  %v517 = vpack.c.b16 %v403, %v397
  %v518 = vpack.c.b16 %v404, %v398
  %v519 = vpack.c.b16 %v405, %v399
  %v520 = vpack.c.b16 %v412, %v406
  %v521 = vpack.c.b16 %v413, %v407
  %v522 = vpack.c.b16 %v414, %v408
  %v523 = vpack.c.b16 %v415, %v409
  %v524 = vpack.c.b16 %v416, %v410
  %v525 = vpack.c.b16 %v417, %v411
  %v526 = vpack.c.b16 %v424, %v418
  %v527 = vpack.c.b16 %v425, %v419
  %v528 = vpack.c.b16 %v426, %v420
  %v529 = vpack.c.b16 %v427, %v421
  %v530 = vpack.c.b16 %v428, %v422
  %v531 = vpack.c.b16 %v429, %v423
  %v532 = vpack.c.b16 %v436, %v430
  %v533 = vpack.c.b16 %v437, %v431
  %v534 = vpack.c.b16 %v438, %v432
  %v535 = vpack.c.b16 %v439, %v433
  %v536 = vpack.c.b16 %v440, %v434
  %v537 = vpack.c.b16 %v441, %v435
  %634 = vmatprep.subr.bf16.mxu0 %v443
  %635 = vmatpush1.bf16.msra.mxu0 %v442
  %636 = vmatprep.subr.bf16.mxu0 %v449
  %637 = vmatpush1.bf16.msra.mxu0 %v448
  %638 = vmatprep.subr.bf16.mxu0 %v455
  %639 = vmatpush1.bf16.msra.mxu0 %v454
  %640 = vmatprep.subr.bf16.mxu0 %v461
  %641 = vmatpush1.bf16.msra.mxu0 %v460
  %642 = vmatprep.subr.bf16.mxu0 %v467
  %643 = vmatpush1.bf16.msra.mxu0 %v466
  %644 = vmatprep.subr.bf16.mxu0 %v473
  %645 = vmatpush1.bf16.msra.mxu0 %v472
  %646 = vmatprep.subr.bf16.mxu0 %v479
  %647 = vmatpush1.bf16.msra.mxu0 %v478
  %648 = vmatprep.subr.bf16.mxu0 %v485
  %649 = vmatpush1.bf16.msra.mxu0 %v484
  %650 = vmatprep.subr.bf16.mxu0 %v491
  %651 = vmatpush1.bf16.msra.mxu0 %v490
  %652 = vmatprep.subr.bf16.mxu0 %v497
  %653 = vmatpush1.bf16.msra.mxu0 %v496
  %654 = vmatprep.subr.bf16.mxu0 %v503
  %655 = vmatpush1.bf16.msra.mxu0 %v502
  %656 = vmatprep.subr.bf16.mxu0 %v509
  %657 = vmatpush1.bf16.msra.mxu0 %v508
  %658 = vmatprep.subr.bf16.mxu0 %v515
  %659 = vmatpush1.bf16.msra.mxu0 %v514
  %660 = vmatprep.subr.bf16.mxu0 %v521
  %661 = vmatpush1.bf16.msra.mxu0 %v520
  %662 = vmatprep.subr.bf16.mxu0 %v527
  %663 = vmatpush1.bf16.msra.mxu0 %v526
  %664 = vmatprep.subr.bf16.mxu0 %v533
  %665 = vmatpush1.bf16.msra.mxu0 %v532
  %666 = vmatprep.mubr.bf16.mxu0 %v57
  %667 = vmatmul.mubr.bf16.gmra.mrb[0].mxu0 %v56
  %v668 = vpop.f32.mrb[0].mxu0
  %v669 = vadd.f32 0.0, %v668
  %v670 = vpop.f32.mrb[0].mxu0
  %v671 = vadd.f32 0.0, %v670
  %v672 = vpop.f32.mrb[0].mxu0
  %v673 = vadd.f32 0.0, %v672
  %v674 = vpop.f32.mrb[0].mxu0
  %v675 = vadd.f32 0.0, %v674
  %676 = vdwg.mxu0
  %677 = vmatprep.subr.bf16.mxu0 %v445
  %678 = vmatpush1.bf16.msra.mxu0 %v444
  %679 = vmatprep.subr.bf16.mxu0 %v451
  %680 = vmatpush1.bf16.msra.mxu0 %v450
  %681 = vmatprep.subr.bf16.mxu0 %v457
  %682 = vmatpush1.bf16.msra.mxu0 %v456
  %683 = vmatprep.subr.bf16.mxu0 %v463
  %684 = vmatpush1.bf16.msra.mxu0 %v462
  %685 = vmatprep.subr.bf16.mxu0 %v469
  %686 = vmatpush1.bf16.msra.mxu0 %v468
  %687 = vmatprep.subr.bf16.mxu0 %v475
  %688 = vmatpush1.bf16.msra.mxu0 %v474
  %689 = vmatprep.subr.bf16.mxu0 %v481
  %690 = vmatpush1.bf16.msra.mxu0 %v480
  %691 = vmatprep.subr.bf16.mxu0 %v487
  %692 = vmatpush1.bf16.msra.mxu0 %v486
  %693 = vmatprep.subr.bf16.mxu0 %v493
  %694 = vmatpush1.bf16.msra.mxu0 %v492
  %695 = vmatprep.subr.bf16.mxu0 %v499
  %696 = vmatpush1.bf16.msra.mxu0 %v498
  %697 = vmatprep.subr.bf16.mxu0 %v505
  %698 = vmatpush1.bf16.msra.mxu0 %v504
  %699 = vmatprep.subr.bf16.mxu0 %v511
  %700 = vmatpush1.bf16.msra.mxu0 %v510
  %701 = vmatprep.subr.bf16.mxu0 %v517
  %702 = vmatpush1.bf16.msra.mxu0 %v516
  %703 = vmatprep.subr.bf16.mxu0 %v523
  %704 = vmatpush1.bf16.msra.mxu0 %v522
  %705 = vmatprep.subr.bf16.mxu0 %v529
  %706 = vmatpush1.bf16.msra.mxu0 %v528
  %707 = vmatprep.subr.bf16.mxu0 %v535
  %708 = vmatpush1.bf16.msra.mxu0 %v534
  %709 = vmatprep.mubr.bf16.mxu0 %v57
  %710 = vmatmul.mubr.bf16.gmra.mrb[0].mxu0 %v56
  %v711 = vpop.f32.mrb[0].mxu0
  %v712 = vadd.f32 0.0, %v711
  %v713 = vpop.f32.mrb[0].mxu0
  %v714 = vadd.f32 0.0, %v713
  %v715 = vpop.f32.mrb[0].mxu0
  %v716 = vadd.f32 0.0, %v715
  %v717 = vpop.f32.mrb[0].mxu0
  %v718 = vadd.f32 0.0, %v717
  %719 = vdwg.mxu0
  %720 = vmatprep.subr.bf16.mxu0 %v447
  %721 = vmatpush1.bf16.msra.mxu0 %v446
  %722 = vmatprep.subr.bf16.mxu0 %v453
  %723 = vmatpush1.bf16.msra.mxu0 %v452
  %724 = vmatprep.subr.bf16.mxu0 %v459
  %725 = vmatpush1.bf16.msra.mxu0 %v458
  %726 = vmatprep.subr.bf16.mxu0 %v465
  %727 = vmatpush1.bf16.msra.mxu0 %v464
  %728 = vmatprep.subr.bf16.mxu0 %v471
  %729 = vmatpush1.bf16.msra.mxu0 %v470
  %730 = vmatprep.subr.bf16.mxu0 %v477
  %731 = vmatpush1.bf16.msra.mxu0 %v476
  %732 = vmatprep.subr.bf16.mxu0 %v483
  %733 = vmatpush1.bf16.msra.mxu0 %v482
  %734 = vmatprep.subr.bf16.mxu0 %v489
  %735 = vmatpush1.bf16.msra.mxu0 %v488
  %736 = vmatprep.subr.bf16.mxu0 %v495
  %737 = vmatpush1.bf16.msra.mxu0 %v494
  %738 = vmatprep.subr.bf16.mxu0 %v501
  %739 = vmatpush1.bf16.msra.mxu0 %v500
  %740 = vmatprep.subr.bf16.mxu0 %v507
  %741 = vmatpush1.bf16.msra.mxu0 %v506
  %742 = vmatprep.subr.bf16.mxu0 %v513
  %743 = vmatpush1.bf16.msra.mxu0 %v512
  %744 = vmatprep.subr.bf16.mxu0 %v519
  %745 = vmatpush1.bf16.msra.mxu0 %v518
  %746 = vmatprep.subr.bf16.mxu0 %v525
  %747 = vmatpush1.bf16.msra.mxu0 %v524
  %748 = vmatprep.subr.bf16.mxu0 %v531
  %749 = vmatpush1.bf16.msra.mxu0 %v530
  %750 = vmatprep.subr.bf16.mxu0 %v537
  %751 = vmatpush1.bf16.msra.mxu0 %v536
  %752 = vmatprep.mubr.bf16.mxu0 %v57
  %753 = vmatmul.mubr.bf16.gmra.mrb[0].mxu0 %v56
  %v754 = vpop.f32.mrb[0].mxu0
  %v755 = vadd.f32 0.0, %v754
  %v756 = vpop.f32.mrb[0].mxu0
  %v757 = vadd.f32 0.0, %v756
  %v758 = vpop.f32.mrb[0].mxu0
  %v759 = vadd.f32 0.0, %v758
  %v760 = vpop.f32.mrb[0].mxu0
  %v761 = vadd.f32 0.0, %v760
  %762 = vdwg.mxu0
  %v763 = vld [vmem:[%s6] sm:$0x77]
  %v764 = vld [vmem:[%s6 + $0x8] sm:$0x77]
  %v765 = vld [vmem:[%s6 + $0x10] sm:$0x77]
  %v769 = vcombine.high %v763, %v763
  %v770 = vcombine.high %v764, %v764
  %v771 = vcombine.high %v765, %v765
  %775 = vmatprep.subr.mxu0 %v769
  %776 = vmatpush1.xpose.msra.mxu0 %v763
  %777 = vmatprep.subr.mxu0 0.0
  %778 = vmatpush1.xpose.msra.mxu0 0.0
  %779 = vmatprep.subr.mxu0 0.0
  %780 = vmatpush1.xpose.msra.mxu0 0.0
  %781 = vmatprep.subr.mxu0 0.0
  %782 = vmatpush1.xpose.msra.mxu0 0.0
  %783 = vmatprep.subr.mxu0 0.0
  %784 = vmatpush1.xpose.msra.mxu0 0.0
  %785 = vmatprep.subr.mxu0 0.0
  %786 = vmatpush1.xpose.msra.mxu0 0.0
  %787 = vmatprep.subr.mxu0 0.0
  %788 = vmatpush1.xpose.msra.mxu0 0.0
  %789 = vmatprep.subr.mxu0 0.0
  %790 = vmatpush1.xpose.msra.mxu0 0.0
  %791 = vmatprep.subr.mxu0 0.0
  %792 = vmatpush1.xpose.msra.mxu0 0.0
  %793 = vmatprep.subr.mxu0 0.0
  %794 = vmatpush1.xpose.msra.mxu0 0.0
  %795 = vmatprep.subr.mxu0 0.0
  %796 = vmatpush1.xpose.msra.mxu0 0.0
  %797 = vmatprep.subr.mxu0 0.0
  %798 = vmatpush1.xpose.msra.mxu0 0.0
  %799 = vmatprep.subr.mxu0 0.0
  %800 = vmatpush1.xpose.msra.mxu0 0.0
  %801 = vmatprep.subr.mxu0 0.0
  %802 = vmatpush1.xpose.msra.mxu0 0.0
  %803 = vmatprep.subr.mxu0 0.0
  %804 = vmatpush1.xpose.msra.mxu0 0.0
  %805 = vmatprep.subr.mxu0 0.0
  %806 = vmatpush1.xpose.msra.mxu0 0.0
  %807 = vmatprep.subr.mxu0 0.0
  %808 = vmatpush1.xpose.msra.mxu0 0.0
  %809 = vmatprep.subr.mxu0 0.0
  %810 = vmatpush1.xpose.msra.mxu0 0.0
  %811 = vmatprep.subr.mxu0 0.0
  %812 = vmatpush1.xpose.msra.mxu0 0.0
  %813 = vmatprep.subr.mxu0 0.0
  %814 = vmatpush1.xpose.msra.mxu0 0.0
  %815 = vmatprep.subr.mxu0 0.0
  %816 = vmatpush1.xpose.msra.mxu0 0.0
  %817 = vmatprep.subr.mxu0 0.0
  %818 = vmatpush1.xpose.msra.mxu0 0.0
  %819 = vmatprep.subr.mxu0 0.0
  %820 = vmatpush1.xpose.msra.mxu0 0.0
  %821 = vmatprep.subr.mxu0 0.0
  %822 = vmatpush1.xpose.msra.mxu0 0.0
  %823 = vmatprep.subr.mxu0 0.0
  %824 = vmatpush1.xpose.msra.mxu0 0.0
  %825 = vmatprep.subr.mxu0 0.0
  %826 = vmatpush1.xpose.msra.mxu0 0.0
  %827 = vmatprep.subr.mxu0 0.0
  %828 = vmatpush1.xpose.msra.mxu0 0.0
  %829 = vmatprep.subr.mxu0 0.0
  %830 = vmatpush1.xpose.msra.mxu0 0.0
  %831 = vmatprep.subr.mxu0 0.0
  %832 = vmatpush1.xpose.msra.mxu0 0.0
  %833 = vmatprep.subr.mxu0 0.0
  %834 = vmatpush1.xpose.msra.mxu0 0.0
  %835 = vmatprep.subr.mxu0 0.0
  %836 = vmatpush1.xpose.msra.mxu0 0.0
  %837 = vmatprep.subr.mxu0 0.0
  %838 = vmatpush1.xpose.msra.mxu0 0.0
  %839 = vmatprep.mubr.f32.mxu0 %v671
  %840 = vmatmul.mubr.f32.gmra.mrb[0].mxu0 %v669
  %v841 = vpop.f32.mrb[0].mxu0
  %v842 = vadd.f32 0.0, %v841
  %v843 = vpop.f32.mrb[0].mxu0
  %844 = vmatprep.mubr.f32.mxu0 %v675
  %845 = vmatmul.mubr.f32.gmra.mrb[0].mxu0 %v673
  %v846 = vpop.f32.mrb[0].mxu0
  %v847 = vadd.f32 0.0, %v846
  %v848 = vpop.f32.mrb[0].mxu0
  %849 = vdwg.mxu0
  %850 = vmatprep.subr.mxu0 %v770
  %851 = vmatpush1.xpose.msra.mxu0 %v764
  %852 = vmatprep.subr.mxu0 0.0
  %853 = vmatpush1.xpose.msra.mxu0 0.0
  %854 = vmatprep.subr.mxu0 0.0
  %855 = vmatpush1.xpose.msra.mxu0 0.0
  %856 = vmatprep.subr.mxu0 0.0
  %857 = vmatpush1.xpose.msra.mxu0 0.0
  %858 = vmatprep.subr.mxu0 0.0
  %859 = vmatpush1.xpose.msra.mxu0 0.0
  %860 = vmatprep.subr.mxu0 0.0
  %861 = vmatpush1.xpose.msra.mxu0 0.0
  %862 = vmatprep.subr.mxu0 0.0
  %863 = vmatpush1.xpose.msra.mxu0 0.0
  %864 = vmatprep.subr.mxu0 0.0
  %865 = vmatpush1.xpose.msra.mxu0 0.0
  %866 = vmatprep.subr.mxu0 0.0
  %867 = vmatpush1.xpose.msra.mxu0 0.0
  %868 = vmatprep.subr.mxu0 0.0
  %869 = vmatpush1.xpose.msra.mxu0 0.0
  %870 = vmatprep.subr.mxu0 0.0
  %871 = vmatpush1.xpose.msra.mxu0 0.0
  %872 = vmatprep.subr.mxu0 0.0
  %873 = vmatpush1.xpose.msra.mxu0 0.0
  %874 = vmatprep.subr.mxu0 0.0
  %875 = vmatpush1.xpose.msra.mxu0 0.0
  %876 = vmatprep.subr.mxu0 0.0
  %877 = vmatpush1.xpose.msra.mxu0 0.0
  %878 = vmatprep.subr.mxu0 0.0
  %879 = vmatpush1.xpose.msra.mxu0 0.0
  %880 = vmatprep.subr.mxu0 0.0
  %881 = vmatpush1.xpose.msra.mxu0 0.0
  %882 = vmatprep.subr.mxu0 0.0
  %883 = vmatpush1.xpose.msra.mxu0 0.0
  %884 = vmatprep.subr.mxu0 0.0
  %885 = vmatpush1.xpose.msra.mxu0 0.0
  %886 = vmatprep.subr.mxu0 0.0
  %887 = vmatpush1.xpose.msra.mxu0 0.0
  %888 = vmatprep.subr.mxu0 0.0
  %889 = vmatpush1.xpose.msra.mxu0 0.0
  %890 = vmatprep.subr.mxu0 0.0
  %891 = vmatpush1.xpose.msra.mxu0 0.0
  %892 = vmatprep.subr.mxu0 0.0
  %893 = vmatpush1.xpose.msra.mxu0 0.0
  %894 = vmatprep.subr.mxu0 0.0
  %895 = vmatpush1.xpose.msra.mxu0 0.0
  %896 = vmatprep.subr.mxu0 0.0
  %897 = vmatpush1.xpose.msra.mxu0 0.0
  %898 = vmatprep.subr.mxu0 0.0
  %899 = vmatpush1.xpose.msra.mxu0 0.0
  %900 = vmatprep.subr.mxu0 0.0
  %901 = vmatpush1.xpose.msra.mxu0 0.0
  %902 = vmatprep.subr.mxu0 0.0
  %903 = vmatpush1.xpose.msra.mxu0 0.0
  %904 = vmatprep.subr.mxu0 0.0
  %905 = vmatpush1.xpose.msra.mxu0 0.0
  %906 = vmatprep.subr.mxu0 0.0
  %907 = vmatpush1.xpose.msra.mxu0 0.0
  %908 = vmatprep.subr.mxu0 0.0
  %909 = vmatpush1.xpose.msra.mxu0 0.0
  %910 = vmatprep.subr.mxu0 0.0
  %911 = vmatpush1.xpose.msra.mxu0 0.0
  %912 = vmatprep.subr.mxu0 0.0
  %913 = vmatpush1.xpose.msra.mxu0 0.0
  %914 = vmatprep.mubr.f32.mxu0 %v714
  %915 = vmatmul.mubr.f32.gmra.mrb[0].mxu0 %v712
  %v916 = vpop.f32.mrb[0].mxu0
  %v917 = vadd.f32 %v842, %v916
  %v918 = vpop.f32.mrb[0].mxu0
  %919 = vmatprep.mubr.f32.mxu0 %v718
  %920 = vmatmul.mubr.f32.gmra.mrb[0].mxu0 %v716
  %v921 = vpop.f32.mrb[0].mxu0
  %v922 = vadd.f32 %v847, %v921
  %v923 = vpop.f32.mrb[0].mxu0
  %924 = vdwg.mxu0
  %925 = vmatprep.subr.mxu0 %v771
  %926 = vmatpush1.xpose.msra.mxu0 %v765
  %927 = vmatprep.subr.mxu0 0.0
  %928 = vmatpush1.xpose.msra.mxu0 0.0
  %929 = vmatprep.subr.mxu0 0.0
  %930 = vmatpush1.xpose.msra.mxu0 0.0
  %931 = vmatprep.subr.mxu0 0.0
  %932 = vmatpush1.xpose.msra.mxu0 0.0
  %933 = vmatprep.subr.mxu0 0.0
  %934 = vmatpush1.xpose.msra.mxu0 0.0
  %935 = vmatprep.subr.mxu0 0.0
  %936 = vmatpush1.xpose.msra.mxu0 0.0
  %937 = vmatprep.subr.mxu0 0.0
  %938 = vmatpush1.xpose.msra.mxu0 0.0
  %939 = vmatprep.subr.mxu0 0.0
  %940 = vmatpush1.xpose.msra.mxu0 0.0
  %941 = vmatprep.subr.mxu0 0.0
  %942 = vmatpush1.xpose.msra.mxu0 0.0
  %943 = vmatprep.subr.mxu0 0.0
  %944 = vmatpush1.xpose.msra.mxu0 0.0
  %945 = vmatprep.subr.mxu0 0.0
  %946 = vmatpush1.xpose.msra.mxu0 0.0
  %947 = vmatprep.subr.mxu0 0.0
  %948 = vmatpush1.xpose.msra.mxu0 0.0
  %949 = vmatprep.subr.mxu0 0.0
  %950 = vmatpush1.xpose.msra.mxu0 0.0
  %951 = vmatprep.subr.mxu0 0.0
  %952 = vmatpush1.xpose.msra.mxu0 0.0
  %953 = vmatprep.subr.mxu0 0.0
  %954 = vmatpush1.xpose.msra.mxu0 0.0
  %955 = vmatprep.subr.mxu0 0.0
  %956 = vmatpush1.xpose.msra.mxu0 0.0
  %957 = vmatprep.subr.mxu0 0.0
  %958 = vmatpush1.xpose.msra.mxu0 0.0
  %959 = vmatprep.subr.mxu0 0.0
  %960 = vmatpush1.xpose.msra.mxu0 0.0
  %961 = vmatprep.subr.mxu0 0.0
  %962 = vmatpush1.xpose.msra.mxu0 0.0
  %963 = vmatprep.subr.mxu0 0.0
  %964 = vmatpush1.xpose.msra.mxu0 0.0
  %965 = vmatprep.subr.mxu0 0.0
  %966 = vmatpush1.xpose.msra.mxu0 0.0
  %967 = vmatprep.subr.mxu0 0.0
  %968 = vmatpush1.xpose.msra.mxu0 0.0
  %969 = vmatprep.subr.mxu0 0.0
  %970 = vmatpush1.xpose.msra.mxu0 0.0
  %971 = vmatprep.subr.mxu0 0.0
  %972 = vmatpush1.xpose.msra.mxu0 0.0
  %973 = vmatprep.subr.mxu0 0.0
  %974 = vmatpush1.xpose.msra.mxu0 0.0
  %975 = vmatprep.subr.mxu0 0.0
  %976 = vmatpush1.xpose.msra.mxu0 0.0
  %977 = vmatprep.subr.mxu0 0.0
  %978 = vmatpush1.xpose.msra.mxu0 0.0
  %979 = vmatprep.subr.mxu0 0.0
  %980 = vmatpush1.xpose.msra.mxu0 0.0
  %981 = vmatprep.subr.mxu0 0.0
  %982 = vmatpush1.xpose.msra.mxu0 0.0
  %983 = vmatprep.subr.mxu0 0.0
  %984 = vmatpush1.xpose.msra.mxu0 0.0
  %985 = vmatprep.subr.mxu0 0.0
  %986 = vmatpush1.xpose.msra.mxu0 0.0
  %987 = vmatprep.subr.mxu0 0.0
  %988 = vmatpush1.xpose.msra.mxu0 0.0
  %989 = vmatprep.mubr.f32.mxu0 %v757
  %990 = vmatmul.mubr.f32.gmra.mrb[0].mxu0 %v755
  %v991 = vpop.f32.mrb[0].mxu0
  %v992 = vadd.f32 %v917, %v991
  %v993 = vpop.f32.mrb[0].mxu0
  %994 = vmatprep.mubr.f32.mxu0 %v761
  %995 = vmatmul.mubr.f32.gmra.mrb[0].mxu0 %v759
  %v996 = vpop.f32.mrb[0].mxu0
  %v997 = vadd.f32 %v922, %v996
  %v998 = vpop.f32.mrb[0].mxu0
  %999 = vdwg.mxu0
  %v1000 = vld [vmem:[%s7] sm:$0x77]
  %v1001 = vld [vmem:[%s7 + $0x8] sm:$0x77]
  %v1002 = vld [vmem:[%s7 + $0x10] sm:$0x77]
  %v1006 = vcombine.high %v1000, %v1000
  %v1007 = vcombine.high %v1001, %v1001
  %v1008 = vcombine.high %v1002, %v1002
  %1012 = vmatprep.subr.mxu0 %v671
  %1013 = vmatpush1.xpose.msra.mxu0 %v669
  %1014 = vmatprep.subr.mxu0 %v675
  %1015 = vmatpush1.xpose.msra.mxu0 %v673
  %1016 = vmatprep.subr.mxu0 0.0
  %1017 = vmatpush1.xpose.msra.mxu0 0.0
  %1018 = vmatprep.subr.mxu0 0.0
  %1019 = vmatpush1.xpose.msra.mxu0 0.0
  %1020 = vmatprep.subr.mxu0 0.0
  %1021 = vmatpush1.xpose.msra.mxu0 0.0
  %1022 = vmatprep.subr.mxu0 0.0
  %1023 = vmatpush1.xpose.msra.mxu0 0.0
  %1024 = vmatprep.subr.mxu0 0.0
  %1025 = vmatpush1.xpose.msra.mxu0 0.0
  %1026 = vmatprep.subr.mxu0 0.0
  %1027 = vmatpush1.xpose.msra.mxu0 0.0
  %1028 = vmatprep.subr.mxu0 0.0
  %1029 = vmatpush1.xpose.msra.mxu0 0.0
  %1030 = vmatprep.subr.mxu0 0.0
  %1031 = vmatpush1.xpose.msra.mxu0 0.0
  %1032 = vmatprep.subr.mxu0 0.0
  %1033 = vmatpush1.xpose.msra.mxu0 0.0
  %1034 = vmatprep.subr.mxu0 0.0
  %1035 = vmatpush1.xpose.msra.mxu0 0.0
  %1036 = vmatprep.subr.mxu0 0.0
  %1037 = vmatpush1.xpose.msra.mxu0 0.0
  %1038 = vmatprep.subr.mxu0 0.0
  %1039 = vmatpush1.xpose.msra.mxu0 0.0
  %1040 = vmatprep.subr.mxu0 0.0
  %1041 = vmatpush1.xpose.msra.mxu0 0.0
  %1042 = vmatprep.subr.mxu0 0.0
  %1043 = vmatpush1.xpose.msra.mxu0 0.0
  %1044 = vmatprep.subr.mxu0 0.0
  %1045 = vmatpush1.xpose.msra.mxu0 0.0
  %1046 = vmatprep.subr.mxu0 0.0
  %1047 = vmatpush1.xpose.msra.mxu0 0.0
  %1048 = vmatprep.subr.mxu0 0.0
  %1049 = vmatpush1.xpose.msra.mxu0 0.0
  %1050 = vmatprep.subr.mxu0 0.0
  %1051 = vmatpush1.xpose.msra.mxu0 0.0
  %1052 = vmatprep.subr.mxu0 0.0
  %1053 = vmatpush1.xpose.msra.mxu0 0.0
  %1054 = vmatprep.subr.mxu0 0.0
  %1055 = vmatpush1.xpose.msra.mxu0 0.0
  %1056 = vmatprep.subr.mxu0 0.0
  %1057 = vmatpush1.xpose.msra.mxu0 0.0
  %1058 = vmatprep.subr.mxu0 0.0
  %1059 = vmatpush1.xpose.msra.mxu0 0.0
  %1060 = vmatprep.subr.mxu0 0.0
  %1061 = vmatpush1.xpose.msra.mxu0 0.0
  %1062 = vmatprep.subr.mxu0 0.0
  %1063 = vmatpush1.xpose.msra.mxu0 0.0
  %1064 = vmatprep.subr.mxu0 0.0
  %1065 = vmatpush1.xpose.msra.mxu0 0.0
  %1066 = vmatprep.subr.mxu0 0.0
  %1067 = vmatpush1.xpose.msra.mxu0 0.0
  %1068 = vmatprep.subr.mxu0 0.0
  %1069 = vmatpush1.xpose.msra.mxu0 0.0
  %1070 = vmatprep.subr.mxu0 0.0
  %1071 = vmatpush1.xpose.msra.mxu0 0.0
  %1072 = vmatprep.subr.mxu0 0.0
  %1073 = vmatpush1.xpose.msra.mxu0 0.0
  %1074 = vmatprep.subr.mxu0 0.0
  %1075 = vmatpush1.xpose.msra.mxu0 0.0
  %1076 = vmatprep.mubr.f32.mxu0 %v1006
  %1077 = vmatmul.mubr.f32.gmra.mrb[0].mxu0 %v1000
  %v1078 = vpop.f32.mrb[0].mxu0
  %v1079 = vadd.f32 0.0, %v1078
  %v1080 = vpop.f32.mrb[0].mxu0
  %1081 = vdwg.mxu0
  %1082 = vmatprep.subr.mxu0 %v714
  %1083 = vmatpush1.xpose.msra.mxu0 %v712
  %1084 = vmatprep.subr.mxu0 %v718
  %1085 = vmatpush1.xpose.msra.mxu0 %v716
  %1086 = vmatprep.subr.mxu0 0.0
  %1087 = vmatpush1.xpose.msra.mxu0 0.0
  %1088 = vmatprep.subr.mxu0 0.0
  %1089 = vmatpush1.xpose.msra.mxu0 0.0
  %1090 = vmatprep.subr.mxu0 0.0
  %1091 = vmatpush1.xpose.msra.mxu0 0.0
  %1092 = vmatprep.subr.mxu0 0.0
  %1093 = vmatpush1.xpose.msra.mxu0 0.0
  %1094 = vmatprep.subr.mxu0 0.0
  %1095 = vmatpush1.xpose.msra.mxu0 0.0
  %1096 = vmatprep.subr.mxu0 0.0
  %1097 = vmatpush1.xpose.msra.mxu0 0.0
  %1098 = vmatprep.subr.mxu0 0.0
  %1099 = vmatpush1.xpose.msra.mxu0 0.0
  %1100 = vmatprep.subr.mxu0 0.0
  %1101 = vmatpush1.xpose.msra.mxu0 0.0
  %1102 = vmatprep.subr.mxu0 0.0
  %1103 = vmatpush1.xpose.msra.mxu0 0.0
  %1104 = vmatprep.subr.mxu0 0.0
  %1105 = vmatpush1.xpose.msra.mxu0 0.0
  %1106 = vmatprep.subr.mxu0 0.0
  %1107 = vmatpush1.xpose.msra.mxu0 0.0
  %1108 = vmatprep.subr.mxu0 0.0
  %1109 = vmatpush1.xpose.msra.mxu0 0.0
  %1110 = vmatprep.subr.mxu0 0.0
  %1111 = vmatpush1.xpose.msra.mxu0 0.0
  %1112 = vmatprep.subr.mxu0 0.0
  %1113 = vmatpush1.xpose.msra.mxu0 0.0
  %1114 = vmatprep.subr.mxu0 0.0
  %1115 = vmatpush1.xpose.msra.mxu0 0.0
  %1116 = vmatprep.subr.mxu0 0.0
  %1117 = vmatpush1.xpose.msra.mxu0 0.0
  %1118 = vmatprep.subr.mxu0 0.0
  %1119 = vmatpush1.xpose.msra.mxu0 0.0
  %1120 = vmatprep.subr.mxu0 0.0
  %1121 = vmatpush1.xpose.msra.mxu0 0.0
  %1122 = vmatprep.subr.mxu0 0.0
  %1123 = vmatpush1.xpose.msra.mxu0 0.0
  %1124 = vmatprep.subr.mxu0 0.0
  %1125 = vmatpush1.xpose.msra.mxu0 0.0
  %1126 = vmatprep.subr.mxu0 0.0
  %1127 = vmatpush1.xpose.msra.mxu0 0.0
  %1128 = vmatprep.subr.mxu0 0.0
  %1129 = vmatpush1.xpose.msra.mxu0 0.0
  %1130 = vmatprep.subr.mxu0 0.0
  %1131 = vmatpush1.xpose.msra.mxu0 0.0
  %1132 = vmatprep.subr.mxu0 0.0
  %1133 = vmatpush1.xpose.msra.mxu0 0.0
  %1134 = vmatprep.subr.mxu0 0.0
  %1135 = vmatpush1.xpose.msra.mxu0 0.0
  %1136 = vmatprep.subr.mxu0 0.0
  %1137 = vmatpush1.xpose.msra.mxu0 0.0
  %1138 = vmatprep.subr.mxu0 0.0
  %1139 = vmatpush1.xpose.msra.mxu0 0.0
  %1140 = vmatprep.subr.mxu0 0.0
  %1141 = vmatpush1.xpose.msra.mxu0 0.0
  %1142 = vmatprep.subr.mxu0 0.0
  %1143 = vmatpush1.xpose.msra.mxu0 0.0
  %1144 = vmatprep.subr.mxu0 0.0
  %1145 = vmatpush1.xpose.msra.mxu0 0.0
  %1146 = vmatprep.mubr.f32.mxu0 %v1007
  %1147 = vmatmul.mubr.f32.gmra.mrb[0].mxu0 %v1001
  %v1148 = vpop.f32.mrb[0].mxu0
  %v1149 = vadd.f32 %v1079, %v1148
  %v1150 = vpop.f32.mrb[0].mxu0
  %1151 = vdwg.mxu0
  %1152 = vmatprep.subr.mxu0 %v757
  %1153 = vmatpush1.xpose.msra.mxu0 %v755
  %1154 = vmatprep.subr.mxu0 %v761
  %1155 = vmatpush1.xpose.msra.mxu0 %v759
  %1156 = vmatprep.subr.mxu0 0.0
  %1157 = vmatpush1.xpose.msra.mxu0 0.0
  %1158 = vmatprep.subr.mxu0 0.0
  %1159 = vmatpush1.xpose.msra.mxu0 0.0
  %1160 = vmatprep.subr.mxu0 0.0
  %1161 = vmatpush1.xpose.msra.mxu0 0.0
  %1162 = vmatprep.subr.mxu0 0.0
  %1163 = vmatpush1.xpose.msra.mxu0 0.0
  %1164 = vmatprep.subr.mxu0 0.0
  %1165 = vmatpush1.xpose.msra.mxu0 0.0
  %1166 = vmatprep.subr.mxu0 0.0
  %1167 = vmatpush1.xpose.msra.mxu0 0.0
  %1168 = vmatprep.subr.mxu0 0.0
  %1169 = vmatpush1.xpose.msra.mxu0 0.0
  %1170 = vmatprep.subr.mxu0 0.0
  %1171 = vmatpush1.xpose.msra.mxu0 0.0
  %1172 = vmatprep.subr.mxu0 0.0
  %1173 = vmatpush1.xpose.msra.mxu0 0.0
  %1174 = vmatprep.subr.mxu0 0.0
  %1175 = vmatpush1.xpose.msra.mxu0 0.0
  %1176 = vmatprep.subr.mxu0 0.0
  %1177 = vmatpush1.xpose.msra.mxu0 0.0
  %1178 = vmatprep.subr.mxu0 0.0
  %1179 = vmatpush1.xpose.msra.mxu0 0.0
  %1180 = vmatprep.subr.mxu0 0.0
  %1181 = vmatpush1.xpose.msra.mxu0 0.0
  %1182 = vmatprep.subr.mxu0 0.0
  %1183 = vmatpush1.xpose.msra.mxu0 0.0
  %1184 = vmatprep.subr.mxu0 0.0
  %1185 = vmatpush1.xpose.msra.mxu0 0.0
  %1186 = vmatprep.subr.mxu0 0.0
  %1187 = vmatpush1.xpose.msra.mxu0 0.0
  %1188 = vmatprep.subr.mxu0 0.0
  %1189 = vmatpush1.xpose.msra.mxu0 0.0
  %1190 = vmatprep.subr.mxu0 0.0
  %1191 = vmatpush1.xpose.msra.mxu0 0.0
  %1192 = vmatprep.subr.mxu0 0.0
  %1193 = vmatpush1.xpose.msra.mxu0 0.0
  %1194 = vmatprep.subr.mxu0 0.0
  %1195 = vmatpush1.xpose.msra.mxu0 0.0
  %1196 = vmatprep.subr.mxu0 0.0
  %1197 = vmatpush1.xpose.msra.mxu0 0.0
  %1198 = vmatprep.subr.mxu0 0.0
  %1199 = vmatpush1.xpose.msra.mxu0 0.0
  %1200 = vmatprep.subr.mxu0 0.0
  %1201 = vmatpush1.xpose.msra.mxu0 0.0
  %1202 = vmatprep.subr.mxu0 0.0
  %1203 = vmatpush1.xpose.msra.mxu0 0.0
  %1204 = vmatprep.subr.mxu0 0.0
  %1205 = vmatpush1.xpose.msra.mxu0 0.0
  %1206 = vmatprep.subr.mxu0 0.0
  %1207 = vmatpush1.xpose.msra.mxu0 0.0
  %1208 = vmatprep.subr.mxu0 0.0
  %1209 = vmatpush1.xpose.msra.mxu0 0.0
  %1210 = vmatprep.subr.mxu0 0.0
  %1211 = vmatpush1.xpose.msra.mxu0 0.0
  %1212 = vmatprep.subr.mxu0 0.0
  %1213 = vmatpush1.xpose.msra.mxu0 0.0
  %1214 = vmatprep.subr.mxu0 0.0
  %1215 = vmatpush1.xpose.msra.mxu0 0.0
  %1216 = vmatprep.mubr.f32.mxu0 %v1008
  %1217 = vmatmul.mubr.f32.gmra.mrb[0].mxu0 %v1002
  %v1218 = vpop.f32.mrb[0].mxu0
  %v1219 = vadd.f32 %v1149, %v1218
  %v1220 = vpop.f32.mrb[0].mxu0
  %1221 = vdwg.mxu0
  %v1222 = vlaneseq
  %v1223 = vshrl.u32 %v1222, 7
  %v1224 = vadd.s32 %v1223, 8
  %v1225 = vlaneseq
  %v1226 = vand.u32 %v1225, 127
  %vm1227 = vcmp.eq.s32.totalorder %v1223, %v1226
  %vm1228 = vcmp.eq.s32.totalorder %v1224, %v1226
  %v1229 = vsel %vm1227, 1.0, 0.0
  %v1230 = vsel %vm1228, 1.0, 0.0
  %v1231 = vmax.f32 %v49, %v1229
  %v1232 = vmax.f32 %v50, %v1230
  %1234 = vset.pattern.permute.xlu0 0
  %1235 = vperm.xlu0 %1234, %v992
  %v1236 = vpop.permute.xlu0 %1235
  %1239 = vset.pattern.permute.xlu0 0
  %1240 = vperm.xlu0 %1239, %v997
  %v1241 = vpop.permute.xlu0 %1240
  %v1243 = vlaneseq
  %v1244 = vshrl.u32 %v1243, 7
  %v1245 = vsub.s32 0, %v1244
  %v1246 = vrot.slane %v1219, %v1245
  %v1247 = vadd.f32 %v1236, %v1246
  %v1248 = vadd.f32 %v1241, %v1246
  %vm1249 = vcmp.ge.f32.partialorder %v1247, 0.0
  %vm1250 = vcmp.ge.f32.partialorder %v1248, 0.0
  %v1251 = vmul.f32 %v1247, 0.2
  %v1252 = vmul.f32 %v1248, 0.2
  %v1253 = vsel %vm1249, %v1247, %v1251
  %v1254 = vsel %vm1250, %v1248, %v1252
  %vm1255 = vcmp.gt.f32.partialorder %v1231, 0.0
  %vm1256 = vcmp.gt.f32.partialorder %v1232, 0.0
  %v1257 = vsel %vm1255, %v1253, -1e+30
  %v1258 = vsel %vm1256, %v1254, -1e+30
  %vm1259 = vcmask 97280
  %v1260 = vsel %vm1259, %v1257, -inf
  %1261 = vmax.xlane.f32.xlu0 %v1260
  %v1262 = vpop.xlane.xlu0 %1261
  %vm1263 = vcmask 93184
  %v1264 = vsel %vm1263, %v1258, -inf
  %1265 = vmax.xlane.f32.xlu0 %v1264
  %v1266 = vpop.xlane.xlu0 %1265
  %v1267 = vsub.f32 %v1257, %v1262
  %v1268 = vsub.f32 %v1258, %v1266
  %v1269 = vmul.f32 %v1267, 1.442695
  %v1270 = vpow.pop %v1269
  %v1271 = vmul.f32 %v1268, 1.442695
  %v1272 = vpow.pop %v1271
  %v1273 = vsel %vm1259, %v1270, 0.0
  %1274 = vadd.xlane.f32.xlu0 %v1273
  %v1275 = vpop.xlane.xlu0 %1274
  %v1276 = vsel %vm1263, %v1272, 0.0
  %1277 = vadd.xlane.f32.xlu0 %v1276
  %v1278 = vpop.xlane.xlu0 %1277
  %v1279 = vrcp.pop %v1275
  %v1280 = vrcp.pop %v1278
  %v1281 = vmul.f32 %v1270, %v1279
  %v1282 = vmul.f32 %v1272, %v1280
  %v1284 = vsel %vm1259, %v1281, 0
  %v1287 = vsel %vm1259, %v1282, 0
  %vm1289 = vcmask 1043456
  %v1291 = vsel %vm1289, %v673, 0
  %v1294 = vsel %vm1289, %v675, 0
  %1296 = vmatprep.subr.mxu0 %v671
  %1297 = vmatpush1.msra.mxu0 %v669
  %1298 = vmatprep.subr.mxu0 %v1294
  %1299 = vmatpush1.msra.mxu0 %v1291
  %1300 = vmatprep.subr.mxu0 0.0
  %1301 = vmatpush1.msra.mxu0 0.0
  %1302 = vmatprep.subr.mxu0 0.0
  %1303 = vmatpush1.msra.mxu0 0.0
  %1304 = vmatprep.subr.mxu0 0.0
  %1305 = vmatpush1.msra.mxu0 0.0
  %1306 = vmatprep.subr.mxu0 0.0
  %1307 = vmatpush1.msra.mxu0 0.0
  %1308 = vmatprep.subr.mxu0 0.0
  %1309 = vmatpush1.msra.mxu0 0.0
  %1310 = vmatprep.subr.mxu0 0.0
  %1311 = vmatpush1.msra.mxu0 0.0
  %1312 = vmatprep.subr.mxu0 0.0
  %1313 = vmatpush1.msra.mxu0 0.0
  %1314 = vmatprep.subr.mxu0 0.0
  %1315 = vmatpush1.msra.mxu0 0.0
  %1316 = vmatprep.subr.mxu0 0.0
  %1317 = vmatpush1.msra.mxu0 0.0
  %1318 = vmatprep.subr.mxu0 0.0
  %1319 = vmatpush1.msra.mxu0 0.0
  %1320 = vmatprep.subr.mxu0 0.0
  %1321 = vmatpush1.msra.mxu0 0.0
  %1322 = vmatprep.subr.mxu0 0.0
  %1323 = vmatpush1.msra.mxu0 0.0
  %1324 = vmatprep.subr.mxu0 0.0
  %1325 = vmatpush1.msra.mxu0 0.0
  %1326 = vmatprep.subr.mxu0 0.0
  %1327 = vmatpush1.msra.mxu0 0.0
  %1328 = vmatprep.subr.mxu0 0.0
  %1329 = vmatpush1.msra.mxu0 0.0
  %1330 = vmatprep.subr.mxu0 0.0
  %1331 = vmatpush1.msra.mxu0 0.0
  %1332 = vmatprep.subr.mxu0 0.0
  %1333 = vmatpush1.msra.mxu0 0.0
  %1334 = vmatprep.subr.mxu0 0.0
  %1335 = vmatpush1.msra.mxu0 0.0
  %1336 = vmatprep.subr.mxu0 0.0
  %1337 = vmatpush1.msra.mxu0 0.0
  %1338 = vmatprep.subr.mxu0 0.0
  %1339 = vmatpush1.msra.mxu0 0.0
  %1340 = vmatprep.subr.mxu0 0.0
  %1341 = vmatpush1.msra.mxu0 0.0
  %1342 = vmatprep.subr.mxu0 0.0
  %1343 = vmatpush1.msra.mxu0 0.0
  %1344 = vmatprep.subr.mxu0 0.0
  %1345 = vmatpush1.msra.mxu0 0.0
  %1346 = vmatprep.subr.mxu0 0.0
  %1347 = vmatpush1.msra.mxu0 0.0
  %1348 = vmatprep.subr.mxu0 0.0
  %1349 = vmatpush1.msra.mxu0 0.0
  %1350 = vmatprep.subr.mxu0 0.0
  %1351 = vmatpush1.msra.mxu0 0.0
  %1352 = vmatprep.subr.mxu0 0.0
  %1353 = vmatpush1.msra.mxu0 0.0
  %1354 = vmatprep.subr.mxu0 0.0
  %1355 = vmatpush1.msra.mxu0 0.0
  %1356 = vmatprep.subr.mxu0 0.0
  %1357 = vmatpush1.msra.mxu0 0.0
  %1358 = vmatprep.subr.mxu0 0.0
  %1359 = vmatpush1.msra.mxu0 0.0
  %1360 = vmatprep.mubr.f32.mxu0 0.0
  %1361 = vmatmul.mubr.f32.gmra.mrb[0].mxu0 %v1284
  %v1362 = vpop.f32.mrb[0].mxu0
  %v1363 = vadd.f32 0.0, %v1362
  %v1364 = vpop.f32.mrb[0].mxu0
  %v1365 = vadd.f32 0.0, %v1364
  %1366 = vmatprep.mubr.f32.mxu0 0.0
  %1367 = vmatmul.mubr.f32.gmra.mrb[0].mxu0 %v1287
  %v1368 = vpop.f32.mrb[0].mxu0
  %v1369 = vadd.f32 0.0, %v1368
  %v1370 = vpop.f32.mrb[0].mxu0
  %v1371 = vadd.f32 0.0, %v1370
  %1372 = vdwg.mxu0
  %1373 = vset.pattern.permute.xlu0 1
  %1374 = vperm.xlu0 %1373, %v992
  %v1375 = vpop.permute.xlu0 %1374
  %1377 = vset.pattern.permute.xlu0 1
  %1378 = vperm.xlu0 %1377, %v997
  %v1379 = vpop.permute.xlu0 %1378
  %v1381 = vlaneseq
  %v1382 = vshrl.u32 %v1381, 7
  %v1383 = vsub.s32 1, %v1382
  %v1384 = vrot.slane %v1219, %v1383
  %v1385 = vadd.f32 %v1375, %v1384
  %v1386 = vadd.f32 %v1379, %v1384
  %vm1387 = vcmp.ge.f32.partialorder %v1385, 0.0
  %vm1388 = vcmp.ge.f32.partialorder %v1386, 0.0
  %v1389 = vmul.f32 %v1385, 0.2
  %v1390 = vmul.f32 %v1386, 0.2
  %v1391 = vsel %vm1387, %v1385, %v1389
  %v1392 = vsel %vm1388, %v1386, %v1390
  %v1393 = vsel %vm1255, %v1391, -1e+30
  %v1394 = vsel %vm1256, %v1392, -1e+30
  %v1395 = vsel %vm1259, %v1393, -inf
  %1396 = vmax.xlane.f32.xlu0 %v1395
  %v1397 = vpop.xlane.xlu0 %1396
  %v1398 = vsel %vm1263, %v1394, -inf
  %1399 = vmax.xlane.f32.xlu0 %v1398
  %v1400 = vpop.xlane.xlu0 %1399
  %v1401 = vsub.f32 %v1393, %v1397
  %v1402 = vsub.f32 %v1394, %v1400
  %v1403 = vmul.f32 %v1401, 1.442695
  %v1404 = vpow.pop %v1403
  %v1405 = vmul.f32 %v1402, 1.442695
  %v1406 = vpow.pop %v1405
  %v1407 = vsel %vm1259, %v1404, 0.0
  %1408 = vadd.xlane.f32.xlu0 %v1407
  %v1409 = vpop.xlane.xlu0 %1408
  %v1410 = vsel %vm1263, %v1406, 0.0
  %1411 = vadd.xlane.f32.xlu0 %v1410
  %v1412 = vpop.xlane.xlu0 %1411
  %v1413 = vrcp.pop %v1409
  %v1414 = vrcp.pop %v1412
  %v1415 = vmul.f32 %v1404, %v1413
  %v1416 = vmul.f32 %v1406, %v1414
  %v1418 = vsel %vm1259, %v1415, 0
  %v1421 = vsel %vm1259, %v1416, 0
  %v1424 = vsel %vm1289, %v716, 0
  %v1427 = vsel %vm1289, %v718, 0
  %1429 = vmatprep.subr.mxu0 %v714
  %1430 = vmatpush1.msra.mxu0 %v712
  %1431 = vmatprep.subr.mxu0 %v1427
  %1432 = vmatpush1.msra.mxu0 %v1424
  %1433 = vmatprep.subr.mxu0 0.0
  %1434 = vmatpush1.msra.mxu0 0.0
  %1435 = vmatprep.subr.mxu0 0.0
  %1436 = vmatpush1.msra.mxu0 0.0
  %1437 = vmatprep.subr.mxu0 0.0
  %1438 = vmatpush1.msra.mxu0 0.0
  %1439 = vmatprep.subr.mxu0 0.0
  %1440 = vmatpush1.msra.mxu0 0.0
  %1441 = vmatprep.subr.mxu0 0.0
  %1442 = vmatpush1.msra.mxu0 0.0
  %1443 = vmatprep.subr.mxu0 0.0
  %1444 = vmatpush1.msra.mxu0 0.0
  %1445 = vmatprep.subr.mxu0 0.0
  %1446 = vmatpush1.msra.mxu0 0.0
  %1447 = vmatprep.subr.mxu0 0.0
  %1448 = vmatpush1.msra.mxu0 0.0
  %1449 = vmatprep.subr.mxu0 0.0
  %1450 = vmatpush1.msra.mxu0 0.0
  %1451 = vmatprep.subr.mxu0 0.0
  %1452 = vmatpush1.msra.mxu0 0.0
  %1453 = vmatprep.subr.mxu0 0.0
  %1454 = vmatpush1.msra.mxu0 0.0
  %1455 = vmatprep.subr.mxu0 0.0
  %1456 = vmatpush1.msra.mxu0 0.0
  %1457 = vmatprep.subr.mxu0 0.0
  %1458 = vmatpush1.msra.mxu0 0.0
  %1459 = vmatprep.subr.mxu0 0.0
  %1460 = vmatpush1.msra.mxu0 0.0
  %1461 = vmatprep.subr.mxu0 0.0
  %1462 = vmatpush1.msra.mxu0 0.0
  %1463 = vmatprep.subr.mxu0 0.0
  %1464 = vmatpush1.msra.mxu0 0.0
  %1465 = vmatprep.subr.mxu0 0.0
  %1466 = vmatpush1.msra.mxu0 0.0
  %1467 = vmatprep.subr.mxu0 0.0
  %1468 = vmatpush1.msra.mxu0 0.0
  %1469 = vmatprep.subr.mxu0 0.0
  %1470 = vmatpush1.msra.mxu0 0.0
  %1471 = vmatprep.subr.mxu0 0.0
  %1472 = vmatpush1.msra.mxu0 0.0
  %1473 = vmatprep.subr.mxu0 0.0
  %1474 = vmatpush1.msra.mxu0 0.0
  %1475 = vmatprep.subr.mxu0 0.0
  %1476 = vmatpush1.msra.mxu0 0.0
  %1477 = vmatprep.subr.mxu0 0.0
  %1478 = vmatpush1.msra.mxu0 0.0
  %1479 = vmatprep.subr.mxu0 0.0
  %1480 = vmatpush1.msra.mxu0 0.0
  %1481 = vmatprep.subr.mxu0 0.0
  %1482 = vmatpush1.msra.mxu0 0.0
  %1483 = vmatprep.subr.mxu0 0.0
  %1484 = vmatpush1.msra.mxu0 0.0
  %1485 = vmatprep.subr.mxu0 0.0
  %1486 = vmatpush1.msra.mxu0 0.0
  %1487 = vmatprep.subr.mxu0 0.0
  %1488 = vmatpush1.msra.mxu0 0.0
  %1489 = vmatprep.subr.mxu0 0.0
  %1490 = vmatpush1.msra.mxu0 0.0
  %1491 = vmatprep.subr.mxu0 0.0
  %1492 = vmatpush1.msra.mxu0 0.0
  %1493 = vmatprep.mubr.f32.mxu0 0.0
  %1494 = vmatmul.mubr.f32.gmra.mrb[0].mxu0 %v1418
  %v1495 = vpop.f32.mrb[0].mxu0
  %v1496 = vadd.f32 0.0, %v1495
  %v1497 = vpop.f32.mrb[0].mxu0
  %v1498 = vadd.f32 0.0, %v1497
  %1499 = vmatprep.mubr.f32.mxu0 0.0
  %1500 = vmatmul.mubr.f32.gmra.mrb[0].mxu0 %v1421
  %v1501 = vpop.f32.mrb[0].mxu0
  %v1502 = vadd.f32 0.0, %v1501
  %v1503 = vpop.f32.mrb[0].mxu0
  %v1504 = vadd.f32 0.0, %v1503
  %1505 = vdwg.mxu0
  %1506 = vset.pattern.permute.xlu0 2
  %1507 = vperm.xlu0 %1506, %v992
  %v1508 = vpop.permute.xlu0 %1507
  %1510 = vset.pattern.permute.xlu0 2
  %1511 = vperm.xlu0 %1510, %v997
  %v1512 = vpop.permute.xlu0 %1511
  %v1514 = vlaneseq
  %v1515 = vshrl.u32 %v1514, 7
  %v1516 = vsub.s32 2, %v1515
  %v1517 = vrot.slane %v1219, %v1516
  %v1518 = vadd.f32 %v1508, %v1517
  %v1519 = vadd.f32 %v1512, %v1517
  %vm1520 = vcmp.ge.f32.partialorder %v1518, 0.0
  %vm1521 = vcmp.ge.f32.partialorder %v1519, 0.0
  %v1522 = vmul.f32 %v1518, 0.2
  %v1523 = vmul.f32 %v1519, 0.2
  %v1524 = vsel %vm1520, %v1518, %v1522
  %v1525 = vsel %vm1521, %v1519, %v1523
  %v1526 = vsel %vm1255, %v1524, -1e+30
  %v1527 = vsel %vm1256, %v1525, -1e+30
  %v1528 = vsel %vm1259, %v1526, -inf
  %1529 = vmax.xlane.f32.xlu0 %v1528
  %v1530 = vpop.xlane.xlu0 %1529
  %v1531 = vsel %vm1263, %v1527, -inf
  %1532 = vmax.xlane.f32.xlu0 %v1531
  %v1533 = vpop.xlane.xlu0 %1532
  %v1534 = vsub.f32 %v1526, %v1530
  %v1535 = vsub.f32 %v1527, %v1533
  %v1536 = vmul.f32 %v1534, 1.442695
  %v1537 = vpow.pop %v1536
  %v1538 = vmul.f32 %v1535, 1.442695
  %v1539 = vpow.pop %v1538
  %v1540 = vsel %vm1259, %v1537, 0.0
  %1541 = vadd.xlane.f32.xlu0 %v1540
  %v1542 = vpop.xlane.xlu0 %1541
  %v1543 = vsel %vm1263, %v1539, 0.0
  %1544 = vadd.xlane.f32.xlu0 %v1543
  %v1545 = vpop.xlane.xlu0 %1544
  %v1546 = vrcp.pop %v1542
  %v1547 = vrcp.pop %v1545
  %v1548 = vmul.f32 %v1537, %v1546
  %v1549 = vmul.f32 %v1539, %v1547
  %v1551 = vsel %vm1259, %v1548, 0
  %v1554 = vsel %vm1259, %v1549, 0
  %v1557 = vsel %vm1289, %v759, 0
  %v1560 = vsel %vm1289, %v761, 0
  %1562 = vmatprep.subr.mxu0 %v757
  %1563 = vmatpush1.msra.mxu0 %v755
  %1564 = vmatprep.subr.mxu0 %v1560
  %1565 = vmatpush1.msra.mxu0 %v1557
  %1566 = vmatprep.subr.mxu0 0.0
  %1567 = vmatpush1.msra.mxu0 0.0
  %1568 = vmatprep.subr.mxu0 0.0
  %1569 = vmatpush1.msra.mxu0 0.0
  %1570 = vmatprep.subr.mxu0 0.0
  %1571 = vmatpush1.msra.mxu0 0.0
  %1572 = vmatprep.subr.mxu0 0.0
  %1573 = vmatpush1.msra.mxu0 0.0
  %1574 = vmatprep.subr.mxu0 0.0
  %1575 = vmatpush1.msra.mxu0 0.0
  %1576 = vmatprep.subr.mxu0 0.0
  %1577 = vmatpush1.msra.mxu0 0.0
  %1578 = vmatprep.subr.mxu0 0.0
  %1579 = vmatpush1.msra.mxu0 0.0
  %1580 = vmatprep.subr.mxu0 0.0
  %1581 = vmatpush1.msra.mxu0 0.0
  %1582 = vmatprep.subr.mxu0 0.0
  %1583 = vmatpush1.msra.mxu0 0.0
  %1584 = vmatprep.subr.mxu0 0.0
  %1585 = vmatpush1.msra.mxu0 0.0
  %1586 = vmatprep.subr.mxu0 0.0
  %1587 = vmatpush1.msra.mxu0 0.0
  %1588 = vmatprep.subr.mxu0 0.0
  %1589 = vmatpush1.msra.mxu0 0.0
  %1590 = vmatprep.subr.mxu0 0.0
  %1591 = vmatpush1.msra.mxu0 0.0
  %1592 = vmatprep.subr.mxu0 0.0
  %1593 = vmatpush1.msra.mxu0 0.0
  %1594 = vmatprep.subr.mxu0 0.0
  %1595 = vmatpush1.msra.mxu0 0.0
  %1596 = vmatprep.subr.mxu0 0.0
  %1597 = vmatpush1.msra.mxu0 0.0
  %1598 = vmatprep.subr.mxu0 0.0
  %1599 = vmatpush1.msra.mxu0 0.0
  %1600 = vmatprep.subr.mxu0 0.0
  %1601 = vmatpush1.msra.mxu0 0.0
  %1602 = vmatprep.subr.mxu0 0.0
  %1603 = vmatpush1.msra.mxu0 0.0
  %1604 = vmatprep.subr.mxu0 0.0
  %1605 = vmatpush1.msra.mxu0 0.0
  %1606 = vmatprep.subr.mxu0 0.0
  %1607 = vmatpush1.msra.mxu0 0.0
  %1608 = vmatprep.subr.mxu0 0.0
  %1609 = vmatpush1.msra.mxu0 0.0
  %1610 = vmatprep.subr.mxu0 0.0
  %1611 = vmatpush1.msra.mxu0 0.0
  %1612 = vmatprep.subr.mxu0 0.0
  %1613 = vmatpush1.msra.mxu0 0.0
  %1614 = vmatprep.subr.mxu0 0.0
  %1615 = vmatpush1.msra.mxu0 0.0
  %1616 = vmatprep.subr.mxu0 0.0
  %1617 = vmatpush1.msra.mxu0 0.0
  %1618 = vmatprep.subr.mxu0 0.0
  %1619 = vmatpush1.msra.mxu0 0.0
  %1620 = vmatprep.subr.mxu0 0.0
  %1621 = vmatpush1.msra.mxu0 0.0
  %1622 = vmatprep.subr.mxu0 0.0
  %1623 = vmatpush1.msra.mxu0 0.0
  %1624 = vmatprep.subr.mxu0 0.0
  %1625 = vmatpush1.msra.mxu0 0.0
  %1626 = vmatprep.mubr.f32.mxu0 0.0
  %1627 = vmatmul.mubr.f32.gmra.mrb[0].mxu0 %v1551
  %v1628 = vpop.f32.mrb[0].mxu0
  %v1629 = vadd.f32 0.0, %v1628
  %v1630 = vpop.f32.mrb[0].mxu0
  %v1631 = vadd.f32 0.0, %v1630
  %1632 = vmatprep.mubr.f32.mxu0 0.0
  %1633 = vmatmul.mubr.f32.gmra.mrb[0].mxu0 %v1554
  %v1634 = vpop.f32.mrb[0].mxu0
  %v1635 = vadd.f32 0.0, %v1634
  %v1636 = vpop.f32.mrb[0].mxu0
  %v1637 = vadd.f32 0.0, %v1636
  %1638 = vdwg.mxu0
  %v1639 = vld [vmem:[%s8] sm:$0x3f]
  %v1641 = vlaneseq
  %v1642 = vshrl.u32 %v1641, 7
  %v1643 = vsub.s32 0, %v1642
  %v1644 = vrot.slane %v1639, %v1643
  %v1645 = vlaneseq
  %v1646 = vshrl.u32 %v1645, 7
  %v1647 = vsub.s32 1, %v1646
  %v1648 = vrot.slane %v1639, %v1647
  %v1649 = vlaneseq
  %v1650 = vshrl.u32 %v1649, 7
  %v1651 = vsub.s32 2, %v1650
  %v1652 = vrot.slane %v1639, %v1651
  %v1653 = vlaneseq
  %v1654 = vshrl.u32 %v1653, 7
  %v1655 = vsub.s32 3, %v1654
  %v1656 = vrot.slane %v1639, %v1655
  %v1657 = vlaneseq
  %v1658 = vshrl.u32 %v1657, 7
  %v1659 = vsub.s32 4, %v1658
  %v1660 = vrot.slane %v1639, %v1659
  %v1661 = vlaneseq
  %v1662 = vshrl.u32 %v1661, 7
  %v1663 = vsub.s32 5, %v1662
  %v1664 = vrot.slane %v1639, %v1663
  %v1671 = vadd.f32 %v1363, %v1644
  %v1672 = vadd.f32 %v1365, %v1648
  %v1673 = vadd.f32 %v1496, %v1652
  %v1674 = vadd.f32 %v1498, %v1656
  %v1675 = vadd.f32 %v1629, %v1660
  %v1676 = vadd.f32 %v1631, %v1664
  %v1677 = vadd.f32 %v1369, %v1644
  %v1678 = vadd.f32 %v1371, %v1648
  %v1679 = vadd.f32 %v1502, %v1652
  %v1680 = vadd.f32 %v1504, %v1656
  %v1681 = vadd.f32 %v1635, %v1660
  %v1682 = vadd.f32 %v1637, %v1664
  %v1683 = vld [vmem:[%s9] sm:$0x3f]
  %v1685 = vlaneseq
  %v1686 = vshrl.u32 %v1685, 7
  %v1687 = vsub.s32 0, %v1686
  %v1688 = vrot.slane %v1683, %v1687
  %v1689 = vlaneseq
  %v1690 = vshrl.u32 %v1689, 7
  %v1691 = vsub.s32 1, %v1690
  %v1692 = vrot.slane %v1683, %v1691
  %v1693 = vlaneseq
  %v1694 = vshrl.u32 %v1693, 7
  %v1695 = vsub.s32 2, %v1694
  %v1696 = vrot.slane %v1683, %v1695
  %v1697 = vlaneseq
  %v1698 = vshrl.u32 %v1697, 7
  %v1699 = vsub.s32 3, %v1698
  %v1700 = vrot.slane %v1683, %v1699
  %v1701 = vlaneseq
  %v1702 = vshrl.u32 %v1701, 7
  %v1703 = vsub.s32 4, %v1702
  %v1704 = vrot.slane %v1683, %v1703
  %v1705 = vlaneseq
  %v1706 = vshrl.u32 %v1705, 7
  %v1707 = vsub.s32 5, %v1706
  %v1708 = vrot.slane %v1683, %v1707
  %v1715 = vmul.f32 %v1671, %v1688
  %v1716 = vmul.f32 %v1672, %v1692
  %v1717 = vmul.f32 %v1673, %v1696
  %v1718 = vmul.f32 %v1674, %v1700
  %v1719 = vmul.f32 %v1675, %v1704
  %v1720 = vmul.f32 %v1676, %v1708
  %v1721 = vmul.f32 %v1677, %v1688
  %v1722 = vmul.f32 %v1678, %v1692
  %v1723 = vmul.f32 %v1679, %v1696
  %v1724 = vmul.f32 %v1680, %v1700
  %v1725 = vmul.f32 %v1681, %v1704
  %v1726 = vmul.f32 %v1682, %v1708
  %v1727 = vadd.f32 %v1715, %v1716
  %v1728 = vadd.f32 %v1727, %v1717
  %v1729 = vadd.f32 %v1728, %v1718
  %v1730 = vadd.f32 %v1729, %v1719
  %v1731 = vadd.f32 %v1730, %v1720
  %1732 = vadd.xlane.f32.xlu0 %v1731
  %v1733 = vpop.xlane.xlu0 %1732
  %v1734 = vsel %vm1289, %v1721, 0.0
  %v1735 = vsel %vm1289, %v1722, 0.0
  %v1736 = vadd.f32 %v1734, %v1735
  %v1737 = vsel %vm1289, %v1723, 0.0
  %v1738 = vadd.f32 %v1736, %v1737
  %v1739 = vsel %vm1289, %v1724, 0.0
  %v1740 = vadd.f32 %v1738, %v1739
  %v1741 = vsel %vm1289, %v1725, 0.0
  %v1742 = vadd.f32 %v1740, %v1741
  %v1743 = vsel %vm1289, %v1726, 0.0
  %v1744 = vadd.f32 %v1742, %v1743
  %1745 = vadd.xlane.f32.xlu0 %v1744
  %v1746 = vpop.xlane.xlu0 %1745
  %v1747 = vtanh.pop %v1733
  %v1748 = vtanh.pop %v1746
  %v1749 = vmul.f32 %v1229, %v1747
  %v1750 = vmul.f32 %v1230, %v1748
  %v1752 = vsel %vm1259, 1.0, 0
  %v1755 = vsel %vm1289, %v1750, 0
  %1757 = vmatprep.subr.mxu0 0.0
  %1758 = vmatpush1.msra.mxu0 %v1749
  %1759 = vmatprep.subr.mxu0 0.0
  %1760 = vmatpush1.msra.mxu0 %v1755
  %1761 = vmatprep.subr.mxu0 0.0
  %1762 = vmatpush1.msra.mxu0 0.0
  %1763 = vmatprep.subr.mxu0 0.0
  %1764 = vmatpush1.msra.mxu0 0.0
  %1765 = vmatprep.subr.mxu0 0.0
  %1766 = vmatpush1.msra.mxu0 0.0
  %1767 = vmatprep.subr.mxu0 0.0
  %1768 = vmatpush1.msra.mxu0 0.0
  %1769 = vmatprep.subr.mxu0 0.0
  %1770 = vmatpush1.msra.mxu0 0.0
  %1771 = vmatprep.subr.mxu0 0.0
  %1772 = vmatpush1.msra.mxu0 0.0
  %1773 = vmatprep.subr.mxu0 0.0
  %1774 = vmatpush1.msra.mxu0 0.0
  %1775 = vmatprep.subr.mxu0 0.0
  %1776 = vmatpush1.msra.mxu0 0.0
  %1777 = vmatprep.subr.mxu0 0.0
  %1778 = vmatpush1.msra.mxu0 0.0
  %1779 = vmatprep.subr.mxu0 0.0
  %1780 = vmatpush1.msra.mxu0 0.0
  %1781 = vmatprep.subr.mxu0 0.0
  %1782 = vmatpush1.msra.mxu0 0.0
  %1783 = vmatprep.subr.mxu0 0.0
  %1784 = vmatpush1.msra.mxu0 0.0
  %1785 = vmatprep.subr.mxu0 0.0
  %1786 = vmatpush1.msra.mxu0 0.0
  %1787 = vmatprep.subr.mxu0 0.0
  %1788 = vmatpush1.msra.mxu0 0.0
  %1789 = vmatprep.subr.mxu0 0.0
  %1790 = vmatpush1.msra.mxu0 0.0
  %1791 = vmatprep.subr.mxu0 0.0
  %1792 = vmatpush1.msra.mxu0 0.0
  %1793 = vmatprep.subr.mxu0 0.0
  %1794 = vmatpush1.msra.mxu0 0.0
  %1795 = vmatprep.subr.mxu0 0.0
  %1796 = vmatpush1.msra.mxu0 0.0
  %1797 = vmatprep.subr.mxu0 0.0
  %1798 = vmatpush1.msra.mxu0 0.0
  %1799 = vmatprep.subr.mxu0 0.0
  %1800 = vmatpush1.msra.mxu0 0.0
  %1801 = vmatprep.subr.mxu0 0.0
  %1802 = vmatpush1.msra.mxu0 0.0
  %1803 = vmatprep.subr.mxu0 0.0
  %1804 = vmatpush1.msra.mxu0 0.0
  %1805 = vmatprep.subr.mxu0 0.0
  %1806 = vmatpush1.msra.mxu0 0.0
  %1807 = vmatprep.subr.mxu0 0.0
  %1808 = vmatpush1.msra.mxu0 0.0
  %1809 = vmatprep.subr.mxu0 0.0
  %1810 = vmatpush1.msra.mxu0 0.0
  %1811 = vmatprep.subr.mxu0 0.0
  %1812 = vmatpush1.msra.mxu0 0.0
  %1813 = vmatprep.subr.mxu0 0.0
  %1814 = vmatpush1.msra.mxu0 0.0
  %1815 = vmatprep.subr.mxu0 0.0
  %1816 = vmatpush1.msra.mxu0 0.0
  %1817 = vmatprep.subr.mxu0 0.0
  %1818 = vmatpush1.msra.mxu0 0.0
  %1819 = vmatprep.subr.mxu0 0.0
  %1820 = vmatpush1.msra.mxu0 0.0
  %1821 = vmatprep.mubr.f32.mxu0 0.0
  %1822 = vmatmul.mubr.f32.gmra.mrb[0].mxu0 %v1752
  %v1823 = vpop.f32.mrb[0].mxu0
  %v1824 = vadd.f32 0.0, %v1823
  %v1825 = vpop.f32.mrb[0].mxu0
  %1826 = vmatprep.mubr.f32.mxu0 0.0
  %1827 = vmatmul.mubr.f32.gmra.mrb[0].mxu0 %v1752
  %v1828 = vpop.f32.mrb[0].mxu0
  %v1829 = vadd.f32 0.0, %v1828
  %v1830 = vpop.f32.mrb[0].mxu0
  %1831 = vdwg.mxu0
  %v1833 = vsel %vm1259, %v55, 0
  %v1836 = vsel %vm1289, %v52, 0
  %1838 = vmatprep.subr.mxu0 0.0
  %1839 = vmatpush1.msra.mxu0 %v51
  %1840 = vmatprep.subr.mxu0 0.0
  %1841 = vmatpush1.msra.mxu0 %v1836
  %1842 = vmatprep.subr.mxu0 0.0
  %1843 = vmatpush1.msra.mxu0 0.0
  %1844 = vmatprep.subr.mxu0 0.0
  %1845 = vmatpush1.msra.mxu0 0.0
  %1846 = vmatprep.subr.mxu0 0.0
  %1847 = vmatpush1.msra.mxu0 0.0
  %1848 = vmatprep.subr.mxu0 0.0
  %1849 = vmatpush1.msra.mxu0 0.0
  %1850 = vmatprep.subr.mxu0 0.0
  %1851 = vmatpush1.msra.mxu0 0.0
  %1852 = vmatprep.subr.mxu0 0.0
  %1853 = vmatpush1.msra.mxu0 0.0
  %1854 = vmatprep.subr.mxu0 0.0
  %1855 = vmatpush1.msra.mxu0 0.0
  %1856 = vmatprep.subr.mxu0 0.0
  %1857 = vmatpush1.msra.mxu0 0.0
  %1858 = vmatprep.subr.mxu0 0.0
  %1859 = vmatpush1.msra.mxu0 0.0
  %1860 = vmatprep.subr.mxu0 0.0
  %1861 = vmatpush1.msra.mxu0 0.0
  %1862 = vmatprep.subr.mxu0 0.0
  %1863 = vmatpush1.msra.mxu0 0.0
  %1864 = vmatprep.subr.mxu0 0.0
  %1865 = vmatpush1.msra.mxu0 0.0
  %1866 = vmatprep.subr.mxu0 0.0
  %1867 = vmatpush1.msra.mxu0 0.0
  %1868 = vmatprep.subr.mxu0 0.0
  %1869 = vmatpush1.msra.mxu0 0.0
  %1870 = vmatprep.subr.mxu0 0.0
  %1871 = vmatpush1.msra.mxu0 0.0
  %1872 = vmatprep.subr.mxu0 0.0
  %1873 = vmatpush1.msra.mxu0 0.0
  %1874 = vmatprep.subr.mxu0 0.0
  %1875 = vmatpush1.msra.mxu0 0.0
  %1876 = vmatprep.subr.mxu0 0.0
  %1877 = vmatpush1.msra.mxu0 0.0
  %1878 = vmatprep.subr.mxu0 0.0
  %1879 = vmatpush1.msra.mxu0 0.0
  %1880 = vmatprep.subr.mxu0 0.0
  %1881 = vmatpush1.msra.mxu0 0.0
  %1882 = vmatprep.subr.mxu0 0.0
  %1883 = vmatpush1.msra.mxu0 0.0
  %1884 = vmatprep.subr.mxu0 0.0
  %1885 = vmatpush1.msra.mxu0 0.0
  %1886 = vmatprep.subr.mxu0 0.0
  %1887 = vmatpush1.msra.mxu0 0.0
  %1888 = vmatprep.subr.mxu0 0.0
  %1889 = vmatpush1.msra.mxu0 0.0
  %1890 = vmatprep.subr.mxu0 0.0
  %1891 = vmatpush1.msra.mxu0 0.0
  %1892 = vmatprep.subr.mxu0 0.0
  %1893 = vmatpush1.msra.mxu0 0.0
  %1894 = vmatprep.subr.mxu0 0.0
  %1895 = vmatpush1.msra.mxu0 0.0
  %1896 = vmatprep.subr.mxu0 0.0
  %1897 = vmatpush1.msra.mxu0 0.0
  %1898 = vmatprep.subr.mxu0 0.0
  %1899 = vmatpush1.msra.mxu0 0.0
  %1900 = vmatprep.subr.mxu0 0.0
  %1901 = vmatpush1.msra.mxu0 0.0
  %1902 = vmatprep.mubr.f32.mxu0 0.0
  %1903 = vmatmul.mubr.f32.gmra.mrb[0].mxu0 %v1833
  %v1904 = vpop.f32.mrb[0].mxu0
  %v1905 = vadd.f32 0.0, %v1904
  %v1906 = vpop.f32.mrb[0].mxu0
  %1907 = vdwg.mxu0
  %v1908 = vmul.f32 %v1905, 4.0
  %v1909 = vadd.f32 %v1908, 4.0
  %v1910 = vrcp.pop 5.0
  %v1911 = vmul.f32 %v1909, %v1910
  %v1912 = vfloor.f32 %v1911
  %vm1913 = vcmask 15360
  %v1915 = vsel %vm1913, %v53, 0
  %v1918 = vsel %vm1913, %v54, 0
  %vm1920 = vcmask 1041408
  %v1922 = vsel %vm1920, %v1912, 0
  %1924 = vmatprep.subr.mxu0 0.0
  %1925 = vmatpush1.msra.mxu0 %v1922
  %1926 = vmatprep.subr.mxu0 0.0
  %1927 = vmatpush1.msra.mxu0 0.0
  %1928 = vmatprep.subr.mxu0 0.0
  %1929 = vmatpush1.msra.mxu0 0.0
  %1930 = vmatprep.subr.mxu0 0.0
  %1931 = vmatpush1.msra.mxu0 0.0
  %1932 = vmatprep.subr.mxu0 0.0
  %1933 = vmatpush1.msra.mxu0 0.0
  %1934 = vmatprep.subr.mxu0 0.0
  %1935 = vmatpush1.msra.mxu0 0.0
  %1936 = vmatprep.subr.mxu0 0.0
  %1937 = vmatpush1.msra.mxu0 0.0
  %1938 = vmatprep.subr.mxu0 0.0
  %1939 = vmatpush1.msra.mxu0 0.0
  %1940 = vmatprep.subr.mxu0 0.0
  %1941 = vmatpush1.msra.mxu0 0.0
  %1942 = vmatprep.subr.mxu0 0.0
  %1943 = vmatpush1.msra.mxu0 0.0
  %1944 = vmatprep.subr.mxu0 0.0
  %1945 = vmatpush1.msra.mxu0 0.0
  %1946 = vmatprep.subr.mxu0 0.0
  %1947 = vmatpush1.msra.mxu0 0.0
  %1948 = vmatprep.subr.mxu0 0.0
  %1949 = vmatpush1.msra.mxu0 0.0
  %1950 = vmatprep.subr.mxu0 0.0
  %1951 = vmatpush1.msra.mxu0 0.0
  %1952 = vmatprep.subr.mxu0 0.0
  %1953 = vmatpush1.msra.mxu0 0.0
  %1954 = vmatprep.subr.mxu0 0.0
  %1955 = vmatpush1.msra.mxu0 0.0
  %1956 = vmatprep.subr.mxu0 0.0
  %1957 = vmatpush1.msra.mxu0 0.0
  %1958 = vmatprep.subr.mxu0 0.0
  %1959 = vmatpush1.msra.mxu0 0.0
  %1960 = vmatprep.subr.mxu0 0.0
  %1961 = vmatpush1.msra.mxu0 0.0
  %1962 = vmatprep.subr.mxu0 0.0
  %1963 = vmatpush1.msra.mxu0 0.0
  %1964 = vmatprep.subr.mxu0 0.0
  %1965 = vmatpush1.msra.mxu0 0.0
  %1966 = vmatprep.subr.mxu0 0.0
  %1967 = vmatpush1.msra.mxu0 0.0
  %1968 = vmatprep.subr.mxu0 0.0
  %1969 = vmatpush1.msra.mxu0 0.0
  %1970 = vmatprep.subr.mxu0 0.0
  %1971 = vmatpush1.msra.mxu0 0.0
  %1972 = vmatprep.subr.mxu0 0.0
  %1973 = vmatpush1.msra.mxu0 0.0
  %1974 = vmatprep.subr.mxu0 0.0
  %1975 = vmatpush1.msra.mxu0 0.0
  %1976 = vmatprep.subr.mxu0 0.0
  %1977 = vmatpush1.msra.mxu0 0.0
  %1978 = vmatprep.subr.mxu0 0.0
  %1979 = vmatpush1.msra.mxu0 0.0
  %1980 = vmatprep.subr.mxu0 0.0
  %1981 = vmatpush1.msra.mxu0 0.0
  %1982 = vmatprep.subr.mxu0 0.0
  %1983 = vmatpush1.msra.mxu0 0.0
  %1984 = vmatprep.subr.mxu0 0.0
  %1985 = vmatpush1.msra.mxu0 0.0
  %1986 = vmatprep.subr.mxu0 0.0
  %1987 = vmatpush1.msra.mxu0 0.0
  %1988 = vmatprep.mubr.f32.mxu0 0.0
  %1989 = vmatmul.mubr.f32.gmra.mrb[0].mxu0 %v1915
  %v1990 = vpop.f32.mrb[0].mxu0
  %v1991 = vadd.f32 0.0, %v1990
  %v1992 = vpop.f32.mrb[0].mxu0
  %1993 = vmatprep.mubr.f32.mxu0 0.0
  %1994 = vmatmul.mubr.f32.gmra.mrb[0].mxu0 %v1918
  %v1995 = vpop.f32.mrb[0].mxu0
  %v1996 = vadd.f32 0.0, %v1995
  %v1997 = vpop.f32.mrb[0].mxu0
  %1998 = vdwg.mxu0
  %v1999 = vsel %vm1920, %v55, 0
  %2001 = vmatprep.subr.mxu0 0.0
  %2002 = vmatpush1.msra.mxu0 %v1999
  %2003 = vmatprep.subr.mxu0 0.0
  %2004 = vmatpush1.msra.mxu0 0.0
  %2005 = vmatprep.subr.mxu0 0.0
  %2006 = vmatpush1.msra.mxu0 0.0
  %2007 = vmatprep.subr.mxu0 0.0
  %2008 = vmatpush1.msra.mxu0 0.0
  %2009 = vmatprep.subr.mxu0 0.0
  %2010 = vmatpush1.msra.mxu0 0.0
  %2011 = vmatprep.subr.mxu0 0.0
  %2012 = vmatpush1.msra.mxu0 0.0
  %2013 = vmatprep.subr.mxu0 0.0
  %2014 = vmatpush1.msra.mxu0 0.0
  %2015 = vmatprep.subr.mxu0 0.0
  %2016 = vmatpush1.msra.mxu0 0.0
  %2017 = vmatprep.subr.mxu0 0.0
  %2018 = vmatpush1.msra.mxu0 0.0
  %2019 = vmatprep.subr.mxu0 0.0
  %2020 = vmatpush1.msra.mxu0 0.0
  %2021 = vmatprep.subr.mxu0 0.0
  %2022 = vmatpush1.msra.mxu0 0.0
  %2023 = vmatprep.subr.mxu0 0.0
  %2024 = vmatpush1.msra.mxu0 0.0
  %2025 = vmatprep.subr.mxu0 0.0
  %2026 = vmatpush1.msra.mxu0 0.0
  %2027 = vmatprep.subr.mxu0 0.0
  %2028 = vmatpush1.msra.mxu0 0.0
  %2029 = vmatprep.subr.mxu0 0.0
  %2030 = vmatpush1.msra.mxu0 0.0
  %2031 = vmatprep.subr.mxu0 0.0
  %2032 = vmatpush1.msra.mxu0 0.0
  %2033 = vmatprep.subr.mxu0 0.0
  %2034 = vmatpush1.msra.mxu0 0.0
  %2035 = vmatprep.subr.mxu0 0.0
  %2036 = vmatpush1.msra.mxu0 0.0
  %2037 = vmatprep.subr.mxu0 0.0
  %2038 = vmatpush1.msra.mxu0 0.0
  %2039 = vmatprep.subr.mxu0 0.0
  %2040 = vmatpush1.msra.mxu0 0.0
  %2041 = vmatprep.subr.mxu0 0.0
  %2042 = vmatpush1.msra.mxu0 0.0
  %2043 = vmatprep.subr.mxu0 0.0
  %2044 = vmatpush1.msra.mxu0 0.0
  %2045 = vmatprep.subr.mxu0 0.0
  %2046 = vmatpush1.msra.mxu0 0.0
  %2047 = vmatprep.subr.mxu0 0.0
  %2048 = vmatpush1.msra.mxu0 0.0
  %2049 = vmatprep.subr.mxu0 0.0
  %2050 = vmatpush1.msra.mxu0 0.0
  %2051 = vmatprep.subr.mxu0 0.0
  %2052 = vmatpush1.msra.mxu0 0.0
  %2053 = vmatprep.subr.mxu0 0.0
  %2054 = vmatpush1.msra.mxu0 0.0
  %2055 = vmatprep.subr.mxu0 0.0
  %2056 = vmatpush1.msra.mxu0 0.0
  %2057 = vmatprep.subr.mxu0 0.0
  %2058 = vmatpush1.msra.mxu0 0.0
  %2059 = vmatprep.subr.mxu0 0.0
  %2060 = vmatpush1.msra.mxu0 0.0
  %2061 = vmatprep.subr.mxu0 0.0
  %2062 = vmatpush1.msra.mxu0 0.0
  %2063 = vmatprep.subr.mxu0 0.0
  %2064 = vmatpush1.msra.mxu0 0.0
  %2065 = vmatprep.mubr.f32.mxu0 0.0
  %2066 = vmatmul.mubr.f32.gmra.mrb[0].mxu0 %v1915
  %v2067 = vpop.f32.mrb[0].mxu0
  %v2068 = vadd.f32 0.0, %v2067
  %v2069 = vpop.f32.mrb[0].mxu0
  %2070 = vmatprep.mubr.f32.mxu0 0.0
  %2071 = vmatmul.mubr.f32.gmra.mrb[0].mxu0 %v1918
  %v2072 = vpop.f32.mrb[0].mxu0
  %v2073 = vadd.f32 0.0, %v2072
  %v2074 = vpop.f32.mrb[0].mxu0
  %2075 = vdwg.mxu0
  %vm2076 = vcmp.gt.f32.partialorder %v1824, %v1747
  %vm2077 = vcmp.gt.f32.partialorder %v1829, %v1748
  %vm2078 = vcmp.eq.f32.partialorder %v1824, %v1747
  %vm2079 = vcmp.eq.f32.partialorder %v1829, %v1748
  %vm2080 = vcmp.lt.s32.totalorder %v1226, %v1223
  %vm2081 = vcmp.lt.s32.totalorder %v1226, %v1224
  %vm2082 = vmand %vm2078, %vm2080
  %vm2083 = vmand %vm2079, %vm2081
  %vm2084 = vmor %vm2076, %vm2082
  %vm2085 = vmor %vm2077, %vm2083
  %v2086 = vsel %vm2084, %v2068, 0.0
  %v2087 = vsel %vm2085, %v2073, 0.0
  %v2088 = vsub.f32 1.0, %v1229
  %v2089 = vsub.f32 1.0, %v1230
  %v2090 = vmul.f32 %v2086, %v2088
  %v2091 = vmul.f32 %v2087, %v2089
  %v2093 = vsel %vm1259, %v2090, 0
  %v2096 = vsel %vm1259, %v2091, 0
  %2098 = vmatprep.subr.mxu0 0.0
  %2099 = vmatpush1.msra.mxu0 %v51
  %2100 = vmatprep.subr.mxu0 0.0
  %2101 = vmatpush1.msra.mxu0 %v1836
  %2102 = vmatprep.subr.mxu0 0.0
  %2103 = vmatpush1.msra.mxu0 0.0
  %2104 = vmatprep.subr.mxu0 0.0
  %2105 = vmatpush1.msra.mxu0 0.0
  %2106 = vmatprep.subr.mxu0 0.0
  %2107 = vmatpush1.msra.mxu0 0.0
  %2108 = vmatprep.subr.mxu0 0.0
  %2109 = vmatpush1.msra.mxu0 0.0
  %2110 = vmatprep.subr.mxu0 0.0
  %2111 = vmatpush1.msra.mxu0 0.0
  %2112 = vmatprep.subr.mxu0 0.0
  %2113 = vmatpush1.msra.mxu0 0.0
  %2114 = vmatprep.subr.mxu0 0.0
  %2115 = vmatpush1.msra.mxu0 0.0
  %2116 = vmatprep.subr.mxu0 0.0
  %2117 = vmatpush1.msra.mxu0 0.0
  %2118 = vmatprep.subr.mxu0 0.0
  %2119 = vmatpush1.msra.mxu0 0.0
  %2120 = vmatprep.subr.mxu0 0.0
  %2121 = vmatpush1.msra.mxu0 0.0
  %2122 = vmatprep.subr.mxu0 0.0
  %2123 = vmatpush1.msra.mxu0 0.0
  %2124 = vmatprep.subr.mxu0 0.0
  %2125 = vmatpush1.msra.mxu0 0.0
  %2126 = vmatprep.subr.mxu0 0.0
  %2127 = vmatpush1.msra.mxu0 0.0
  %2128 = vmatprep.subr.mxu0 0.0
  %2129 = vmatpush1.msra.mxu0 0.0
  %2130 = vmatprep.subr.mxu0 0.0
  %2131 = vmatpush1.msra.mxu0 0.0
  %2132 = vmatprep.subr.mxu0 0.0
  %2133 = vmatpush1.msra.mxu0 0.0
  %2134 = vmatprep.subr.mxu0 0.0
  %2135 = vmatpush1.msra.mxu0 0.0
  %2136 = vmatprep.subr.mxu0 0.0
  %2137 = vmatpush1.msra.mxu0 0.0
  %2138 = vmatprep.subr.mxu0 0.0
  %2139 = vmatpush1.msra.mxu0 0.0
  %2140 = vmatprep.subr.mxu0 0.0
  %2141 = vmatpush1.msra.mxu0 0.0
  %2142 = vmatprep.subr.mxu0 0.0
  %2143 = vmatpush1.msra.mxu0 0.0
  %2144 = vmatprep.subr.mxu0 0.0
  %2145 = vmatpush1.msra.mxu0 0.0
  %2146 = vmatprep.subr.mxu0 0.0
  %2147 = vmatpush1.msra.mxu0 0.0
  %2148 = vmatprep.subr.mxu0 0.0
  %2149 = vmatpush1.msra.mxu0 0.0
  %2150 = vmatprep.subr.mxu0 0.0
  %2151 = vmatpush1.msra.mxu0 0.0
  %2152 = vmatprep.subr.mxu0 0.0
  %2153 = vmatpush1.msra.mxu0 0.0
  %2154 = vmatprep.subr.mxu0 0.0
  %2155 = vmatpush1.msra.mxu0 0.0
  %2156 = vmatprep.subr.mxu0 0.0
  %2157 = vmatpush1.msra.mxu0 0.0
  %2158 = vmatprep.subr.mxu0 0.0
  %2159 = vmatpush1.msra.mxu0 0.0
  %2160 = vmatprep.subr.mxu0 0.0
  %2161 = vmatpush1.msra.mxu0 0.0
  %2162 = vmatprep.mubr.f32.mxu0 0.0
  %2163 = vmatmul.mubr.f32.gmra.mrb[0].mxu0 %v2093
  %v2164 = vpop.f32.mrb[0].mxu0
  %v2165 = vadd.f32 0.0, %v2164
  %v2166 = vpop.f32.mrb[0].mxu0
  %2167 = vmatprep.mubr.f32.mxu0 0.0
  %2168 = vmatmul.mubr.f32.gmra.mrb[0].mxu0 %v2096
  %v2169 = vpop.f32.mrb[0].mxu0
  %v2170 = vadd.f32 0.0, %v2169
  %v2171 = vpop.f32.mrb[0].mxu0
  %2172 = vdwg.mxu0
  %vm2173 = vcmp.lt.f32.partialorder %v2165, %v1991
  %vm2174 = vcmp.lt.f32.partialorder %v2170, %v1996
  %v2175 = vsel %vm2173, 1.0, 0.0
  %v2176 = vsel %vm2174, 1.0, 0.0
  %v2177 = vmul.f32 %v51, %v2175
  %v2178 = vmul.f32 %v52, %v2176
  %v2179 = vmul.f32 %v1747, %v2177
  %v2180 = vmul.f32 %v1748, %v2178
  %2182 = vset.pattern.permute.xlu0 0
  %2183 = vperm.xlu0 %2182, %v2179
  %v2184 = vpop.permute.xlu0 %2183
  %2187 = vset.pattern.permute.xlu0 0
  %2188 = vperm.xlu0 %2187, %v2180
  %v2189 = vpop.permute.xlu0 %2188
  %v2191 = vmul.f32 %v1671, %v2184
  %v2192 = vmul.f32 %v1672, %v2184
  %v2193 = vmul.f32 %v1673, %v2184
  %v2194 = vmul.f32 %v1674, %v2184
  %v2195 = vmul.f32 %v1675, %v2184
  %v2196 = vmul.f32 %v1676, %v2184
  %v2197 = vmul.f32 %v1677, %v2189
  %v2198 = vmul.f32 %v1678, %v2189
  %v2199 = vmul.f32 %v1679, %v2189
  %v2200 = vmul.f32 %v1680, %v2189
  %v2201 = vmul.f32 %v1681, %v2189
  %v2202 = vmul.f32 %v1682, %v2189
  %v2203 = vpack.c.bf16 %v2197, %v2191
  %v2204 = vpack.c.bf16 %v2198, %v2192
  %v2205 = vpack.c.bf16 %v2199, %v2193
  %v2206 = vpack.c.bf16 %v2200, %v2194
  %v2207 = vpack.c.bf16 %v2201, %v2195
  %v2208 = vpack.c.bf16 %v2202, %v2196
  %v2209 = vld [vmem:[%s10] sm:$0xff]
  %v2210 = vld [vmem:[%s10 + $0x8] sm:$0xff]
  %v2211 = vld [vmem:[%s10 + $0x10] sm:$0xff]
  %v2212 = vld [vmem:[%s10 + $0x18] sm:$0xff]
  %v2213 = vld [vmem:[%s10 + $0x20] sm:$0xff]
  %v2214 = vld [vmem:[%s10 + $0x28] sm:$0xff]
  %v2215 = vld [vmem:[%s10 + $0x30] sm:$0xff]
  %v2216 = vld [vmem:[%s10 + $0x38] sm:$0xff]
  %v2217 = vld [vmem:[%s10 + $0x40] sm:$0xff]
  %v2218 = vld [vmem:[%s10 + $0x48] sm:$0xff]
  %v2219 = vld [vmem:[%s10 + $0x50] sm:$0xff]
  %v2220 = vld [vmem:[%s10 + $0x58] sm:$0xff]
  %v2221 = vld [vmem:[%s10 + $0x60] sm:$0xff]
  %v2222 = vld [vmem:[%s10 + $0x68] sm:$0xff]
  %v2223 = vld [vmem:[%s10 + $0x70] sm:$0xff]
  %v2224 = vld [vmem:[%s10 + $0x78] sm:$0xff]
  %v2225 = vld [vmem:[%s10 + $0x80] sm:$0xff]
  %v2226 = vld [vmem:[%s10 + $0x88] sm:$0xff]
  %v2227 = vld [vmem:[%s10 + $0x90] sm:$0xff]
  %v2228 = vld [vmem:[%s10 + $0x98] sm:$0xff]
  %v2229 = vld [vmem:[%s10 + $0xa0] sm:$0xff]
  %v2230 = vld [vmem:[%s10 + $0xa8] sm:$0xff]
  %v2231 = vld [vmem:[%s10 + $0xb0] sm:$0xff]
  %v2232 = vld [vmem:[%s10 + $0xb8] sm:$0xff]
  %v2233 = vld [vmem:[%s10 + $0xc0] sm:$0xff]
  %v2234 = vld [vmem:[%s10 + $0xc8] sm:$0xff]
  %v2235 = vld [vmem:[%s10 + $0xd0] sm:$0xff]
  %v2236 = vld [vmem:[%s10 + $0xd8] sm:$0xff]
  %v2237 = vld [vmem:[%s10 + $0xe0] sm:$0xff]
  %v2238 = vld [vmem:[%s10 + $0xe8] sm:$0xff]
  %v2239 = vld [vmem:[%s10 + $0xf0] sm:$0xff]
  %v2240 = vld [vmem:[%s10 + $0xf8] sm:$0xff]
  %v2241 = vld [vmem:[%s10 + $0x100] sm:$0xff]
  %v2242 = vld [vmem:[%s10 + $0x108] sm:$0xff]
  %v2243 = vld [vmem:[%s10 + $0x110] sm:$0xff]
  %v2244 = vld [vmem:[%s10 + $0x118] sm:$0xff]
  %v2245 = vld [vmem:[%s10 + $0x120] sm:$0xff]
  %v2246 = vld [vmem:[%s10 + $0x128] sm:$0xff]
  %v2247 = vld [vmem:[%s10 + $0x130] sm:$0xff]
  %v2248 = vld [vmem:[%s10 + $0x138] sm:$0xff]
  %v2249 = vld [vmem:[%s10 + $0x140] sm:$0xff]
  %v2250 = vld [vmem:[%s10 + $0x148] sm:$0xff]
  %v2251 = vld [vmem:[%s10 + $0x150] sm:$0xff]
  %v2252 = vld [vmem:[%s10 + $0x158] sm:$0xff]
  %v2253 = vld [vmem:[%s10 + $0x160] sm:$0xff]
  %v2254 = vld [vmem:[%s10 + $0x168] sm:$0xff]
  %v2255 = vld [vmem:[%s10 + $0x170] sm:$0xff]
  %v2256 = vld [vmem:[%s10 + $0x178] sm:$0xff]
  %v2257 = vld [vmem:[%s10 + $0x180] sm:$0xff]
  %v2258 = vld [vmem:[%s10 + $0x188] sm:$0xff]
  %v2259 = vld [vmem:[%s10 + $0x190] sm:$0xff]
  %v2260 = vld [vmem:[%s10 + $0x198] sm:$0xff]
  %v2261 = vld [vmem:[%s10 + $0x1a0] sm:$0xff]
  %v2262 = vld [vmem:[%s10 + $0x1a8] sm:$0xff]
  %v2263 = vld [vmem:[%s10 + $0x1b0] sm:$0xff]
  %v2264 = vld [vmem:[%s10 + $0x1b8] sm:$0xff]
  %v2265 = vld [vmem:[%s10 + $0x1c0] sm:$0xff]
  %v2266 = vld [vmem:[%s10 + $0x1c8] sm:$0xff]
  %v2267 = vld [vmem:[%s10 + $0x1d0] sm:$0xff]
  %v2268 = vld [vmem:[%s10 + $0x1d8] sm:$0xff]
  %v2269 = vld [vmem:[%s10 + $0x1e0] sm:$0xff]
  %v2270 = vld [vmem:[%s10 + $0x1e8] sm:$0xff]
  %v2271 = vld [vmem:[%s10 + $0x1f0] sm:$0xff]
  %v2272 = vld [vmem:[%s10 + $0x1f8] sm:$0xff]
  %v2273 = vld [vmem:[%s10 + $0x200] sm:$0xff]
  %v2274 = vld [vmem:[%s10 + $0x208] sm:$0xff]
  %v2275 = vld [vmem:[%s10 + $0x210] sm:$0xff]
  %v2276 = vld [vmem:[%s10 + $0x218] sm:$0xff]
  %v2277 = vld [vmem:[%s10 + $0x220] sm:$0xff]
  %v2278 = vld [vmem:[%s10 + $0x228] sm:$0xff]
  %v2279 = vld [vmem:[%s10 + $0x230] sm:$0xff]
  %v2280 = vld [vmem:[%s10 + $0x238] sm:$0xff]
  %v2281 = vld [vmem:[%s10 + $0x240] sm:$0xff]
  %v2282 = vld [vmem:[%s10 + $0x248] sm:$0xff]
  %v2283 = vld [vmem:[%s10 + $0x250] sm:$0xff]
  %v2284 = vld [vmem:[%s10 + $0x258] sm:$0xff]
  %v2285 = vld [vmem:[%s10 + $0x260] sm:$0xff]
  %v2286 = vld [vmem:[%s10 + $0x268] sm:$0xff]
  %v2287 = vld [vmem:[%s10 + $0x270] sm:$0xff]
  %v2288 = vld [vmem:[%s10 + $0x278] sm:$0xff]
  %v2289 = vld [vmem:[%s10 + $0x280] sm:$0xff]
  %v2290 = vld [vmem:[%s10 + $0x288] sm:$0xff]
  %v2291 = vld [vmem:[%s10 + $0x290] sm:$0xff]
  %v2292 = vld [vmem:[%s10 + $0x298] sm:$0xff]
  %v2293 = vld [vmem:[%s10 + $0x2a0] sm:$0xff]
  %v2294 = vld [vmem:[%s10 + $0x2a8] sm:$0xff]
  %v2295 = vld [vmem:[%s10 + $0x2b0] sm:$0xff]
  %v2296 = vld [vmem:[%s10 + $0x2b8] sm:$0xff]
  %v2297 = vld [vmem:[%s10 + $0x2c0] sm:$0xff]
  %v2298 = vld [vmem:[%s10 + $0x2c8] sm:$0xff]
  %v2299 = vld [vmem:[%s10 + $0x2d0] sm:$0xff]
  %v2300 = vld [vmem:[%s10 + $0x2d8] sm:$0xff]
  %v2301 = vld [vmem:[%s10 + $0x2e0] sm:$0xff]
  %v2302 = vld [vmem:[%s10 + $0x2e8] sm:$0xff]
  %v2303 = vld [vmem:[%s10 + $0x2f0] sm:$0xff]
  %v2304 = vld [vmem:[%s10 + $0x2f8] sm:$0xff]
  %v2305 = vld [vmem:[%s11] sm:$0x3]
  %v2307 = vlaneseq
  %v2308 = vshrl.u32 %v2307, 7
  %v2309 = vsub.s32 0, %v2308
  %v2310 = vrot.slane %v2305, %v2309
  %v2311 = vlaneseq
  %v2312 = vshrl.u32 %v2311, 7
  %v2313 = vsub.s32 1, %v2312
  %v2314 = vrot.slane %v2305, %v2313
  %v2413 = vunpack.c.l.b16 %v2209
  %v2414 = vunpack.c.h.b16 %v2209
  %v2415 = vunpack.c.l.b16 %v2210
  %v2416 = vunpack.c.h.b16 %v2210
  %v2417 = vunpack.c.l.b16 %v2211
  %v2418 = vunpack.c.h.b16 %v2211
  %v2419 = vunpack.c.l.b16 %v2212
  %v2420 = vunpack.c.h.b16 %v2212
  %v2421 = vunpack.c.l.b16 %v2213
  %v2422 = vunpack.c.h.b16 %v2213
  %v2423 = vunpack.c.l.b16 %v2214
  %v2424 = vunpack.c.h.b16 %v2214
  %v2425 = vunpack.c.l.b16 %v2215
  %v2426 = vunpack.c.h.b16 %v2215
  %v2427 = vunpack.c.l.b16 %v2216
  %v2428 = vunpack.c.h.b16 %v2216
  %v2429 = vunpack.c.l.b16 %v2217
  %v2430 = vunpack.c.h.b16 %v2217
  %v2431 = vunpack.c.l.b16 %v2218
  %v2432 = vunpack.c.h.b16 %v2218
  %v2433 = vunpack.c.l.b16 %v2219
  %v2434 = vunpack.c.h.b16 %v2219
  %v2435 = vunpack.c.l.b16 %v2220
  %v2436 = vunpack.c.h.b16 %v2220
  %v2437 = vunpack.c.l.b16 %v2221
  %v2438 = vunpack.c.h.b16 %v2221
  %v2439 = vunpack.c.l.b16 %v2222
  %v2440 = vunpack.c.h.b16 %v2222
  %v2441 = vunpack.c.l.b16 %v2223
  %v2442 = vunpack.c.h.b16 %v2223
  %v2443 = vunpack.c.l.b16 %v2224
  %v2444 = vunpack.c.h.b16 %v2224
  %v2445 = vunpack.c.l.b16 %v2225
  %v2446 = vunpack.c.h.b16 %v2225
  %v2447 = vunpack.c.l.b16 %v2226
  %v2448 = vunpack.c.h.b16 %v2226
  %v2449 = vunpack.c.l.b16 %v2227
  %v2450 = vunpack.c.h.b16 %v2227
  %v2451 = vunpack.c.l.b16 %v2228
  %v2452 = vunpack.c.h.b16 %v2228
  %v2453 = vunpack.c.l.b16 %v2229
  %v2454 = vunpack.c.h.b16 %v2229
  %v2455 = vunpack.c.l.b16 %v2230
  %v2456 = vunpack.c.h.b16 %v2230
  %v2457 = vunpack.c.l.b16 %v2231
  %v2458 = vunpack.c.h.b16 %v2231
  %v2459 = vunpack.c.l.b16 %v2232
  %v2460 = vunpack.c.h.b16 %v2232
  %v2461 = vunpack.c.l.b16 %v2233
  %v2462 = vunpack.c.h.b16 %v2233
  %v2463 = vunpack.c.l.b16 %v2234
  %v2464 = vunpack.c.h.b16 %v2234
  %v2465 = vunpack.c.l.b16 %v2235
  %v2466 = vunpack.c.h.b16 %v2235
  %v2467 = vunpack.c.l.b16 %v2236
  %v2468 = vunpack.c.h.b16 %v2236
  %v2469 = vunpack.c.l.b16 %v2237
  %v2470 = vunpack.c.h.b16 %v2237
  %v2471 = vunpack.c.l.b16 %v2238
  %v2472 = vunpack.c.h.b16 %v2238
  %v2473 = vunpack.c.l.b16 %v2239
  %v2474 = vunpack.c.h.b16 %v2239
  %v2475 = vunpack.c.l.b16 %v2240
  %v2476 = vunpack.c.h.b16 %v2240
  %v2477 = vunpack.c.l.b16 %v2241
  %v2478 = vunpack.c.h.b16 %v2241
  %v2479 = vunpack.c.l.b16 %v2242
  %v2480 = vunpack.c.h.b16 %v2242
  %v2481 = vunpack.c.l.b16 %v2243
  %v2482 = vunpack.c.h.b16 %v2243
  %v2483 = vunpack.c.l.b16 %v2244
  %v2484 = vunpack.c.h.b16 %v2244
  %v2485 = vunpack.c.l.b16 %v2245
  %v2486 = vunpack.c.h.b16 %v2245
  %v2487 = vunpack.c.l.b16 %v2246
  %v2488 = vunpack.c.h.b16 %v2246
  %v2489 = vunpack.c.l.b16 %v2247
  %v2490 = vunpack.c.h.b16 %v2247
  %v2491 = vunpack.c.l.b16 %v2248
  %v2492 = vunpack.c.h.b16 %v2248
  %v2493 = vunpack.c.l.b16 %v2249
  %v2494 = vunpack.c.h.b16 %v2249
  %v2495 = vunpack.c.l.b16 %v2250
  %v2496 = vunpack.c.h.b16 %v2250
  %v2497 = vunpack.c.l.b16 %v2251
  %v2498 = vunpack.c.h.b16 %v2251
  %v2499 = vunpack.c.l.b16 %v2252
  %v2500 = vunpack.c.h.b16 %v2252
  %v2501 = vunpack.c.l.b16 %v2253
  %v2502 = vunpack.c.h.b16 %v2253
  %v2503 = vunpack.c.l.b16 %v2254
  %v2504 = vunpack.c.h.b16 %v2254
  %v2505 = vunpack.c.l.b16 %v2255
  %v2506 = vunpack.c.h.b16 %v2255
  %v2507 = vunpack.c.l.b16 %v2256
  %v2508 = vunpack.c.h.b16 %v2256
  %v2509 = vunpack.c.l.b16 %v2257
  %v2510 = vunpack.c.h.b16 %v2257
  %v2511 = vunpack.c.l.b16 %v2258
  %v2512 = vunpack.c.h.b16 %v2258
  %v2513 = vunpack.c.l.b16 %v2259
  %v2514 = vunpack.c.h.b16 %v2259
  %v2515 = vunpack.c.l.b16 %v2260
  %v2516 = vunpack.c.h.b16 %v2260
  %v2517 = vunpack.c.l.b16 %v2261
  %v2518 = vunpack.c.h.b16 %v2261
  %v2519 = vunpack.c.l.b16 %v2262
  %v2520 = vunpack.c.h.b16 %v2262
  %v2521 = vunpack.c.l.b16 %v2263
  %v2522 = vunpack.c.h.b16 %v2263
  %v2523 = vunpack.c.l.b16 %v2264
  %v2524 = vunpack.c.h.b16 %v2264
  %v2525 = vunpack.c.l.b16 %v2265
  %v2526 = vunpack.c.h.b16 %v2265
  %v2527 = vunpack.c.l.b16 %v2266
  %v2528 = vunpack.c.h.b16 %v2266
  %v2529 = vunpack.c.l.b16 %v2267
  %v2530 = vunpack.c.h.b16 %v2267
  %v2531 = vunpack.c.l.b16 %v2268
  %v2532 = vunpack.c.h.b16 %v2268
  %v2533 = vunpack.c.l.b16 %v2269
  %v2534 = vunpack.c.h.b16 %v2269
  %v2535 = vunpack.c.l.b16 %v2270
  %v2536 = vunpack.c.h.b16 %v2270
  %v2537 = vunpack.c.l.b16 %v2271
  %v2538 = vunpack.c.h.b16 %v2271
  %v2539 = vunpack.c.l.b16 %v2272
  %v2540 = vunpack.c.h.b16 %v2272
  %v2541 = vunpack.c.l.b16 %v2273
  %v2542 = vunpack.c.h.b16 %v2273
  %v2543 = vunpack.c.l.b16 %v2274
  %v2544 = vunpack.c.h.b16 %v2274
  %v2545 = vunpack.c.l.b16 %v2275
  %v2546 = vunpack.c.h.b16 %v2275
  %v2547 = vunpack.c.l.b16 %v2276
  %v2548 = vunpack.c.h.b16 %v2276
  %v2549 = vunpack.c.l.b16 %v2277
  %v2550 = vunpack.c.h.b16 %v2277
  %v2551 = vunpack.c.l.b16 %v2278
  %v2552 = vunpack.c.h.b16 %v2278
  %v2553 = vunpack.c.l.b16 %v2279
  %v2554 = vunpack.c.h.b16 %v2279
  %v2555 = vunpack.c.l.b16 %v2280
  %v2556 = vunpack.c.h.b16 %v2280
  %v2557 = vunpack.c.l.b16 %v2281
  %v2558 = vunpack.c.h.b16 %v2281
  %v2559 = vunpack.c.l.b16 %v2282
  %v2560 = vunpack.c.h.b16 %v2282
  %v2561 = vunpack.c.l.b16 %v2283
  %v2562 = vunpack.c.h.b16 %v2283
  %v2563 = vunpack.c.l.b16 %v2284
  %v2564 = vunpack.c.h.b16 %v2284
  %v2565 = vunpack.c.l.b16 %v2285
  %v2566 = vunpack.c.h.b16 %v2285
  %v2567 = vunpack.c.l.b16 %v2286
  %v2568 = vunpack.c.h.b16 %v2286
  %v2569 = vunpack.c.l.b16 %v2287
  %v2570 = vunpack.c.h.b16 %v2287
  %v2571 = vunpack.c.l.b16 %v2288
  %v2572 = vunpack.c.h.b16 %v2288
  %v2573 = vunpack.c.l.b16 %v2289
  %v2574 = vunpack.c.h.b16 %v2289
  %v2575 = vunpack.c.l.b16 %v2290
  %v2576 = vunpack.c.h.b16 %v2290
  %v2577 = vunpack.c.l.b16 %v2291
  %v2578 = vunpack.c.h.b16 %v2291
  %v2579 = vunpack.c.l.b16 %v2292
  %v2580 = vunpack.c.h.b16 %v2292
  %v2581 = vunpack.c.l.b16 %v2293
  %v2582 = vunpack.c.h.b16 %v2293
  %v2583 = vunpack.c.l.b16 %v2294
  %v2584 = vunpack.c.h.b16 %v2294
  %v2585 = vunpack.c.l.b16 %v2295
  %v2586 = vunpack.c.h.b16 %v2295
  %v2587 = vunpack.c.l.b16 %v2296
  %v2588 = vunpack.c.h.b16 %v2296
  %v2589 = vunpack.c.l.b16 %v2297
  %v2590 = vunpack.c.h.b16 %v2297
  %v2591 = vunpack.c.l.b16 %v2298
  %v2592 = vunpack.c.h.b16 %v2298
  %v2593 = vunpack.c.l.b16 %v2299
  %v2594 = vunpack.c.h.b16 %v2299
  %v2595 = vunpack.c.l.b16 %v2300
  %v2596 = vunpack.c.h.b16 %v2300
  %v2597 = vunpack.c.l.b16 %v2301
  %v2598 = vunpack.c.h.b16 %v2301
  %v2599 = vunpack.c.l.b16 %v2302
  %v2600 = vunpack.c.h.b16 %v2302
  %v2601 = vunpack.c.l.b16 %v2303
  %v2602 = vunpack.c.h.b16 %v2303
  %v2603 = vunpack.c.l.b16 %v2304
  %v2604 = vunpack.c.h.b16 %v2304
  %v2605 = vpack.c.b16 %v2415, %v2413
  %v2606 = vpack.c.b16 %v2416, %v2414
  %v2607 = vpack.c.b16 %v2419, %v2417
  %v2608 = vpack.c.b16 %v2420, %v2418
  %v2609 = vpack.c.b16 %v2423, %v2421
  %v2610 = vpack.c.b16 %v2424, %v2422
  %v2611 = vpack.c.b16 %v2427, %v2425
  %v2612 = vpack.c.b16 %v2428, %v2426
  %v2613 = vpack.c.b16 %v2431, %v2429
  %v2614 = vpack.c.b16 %v2432, %v2430
  %v2615 = vpack.c.b16 %v2435, %v2433
  %v2616 = vpack.c.b16 %v2436, %v2434
  %v2617 = vpack.c.b16 %v2439, %v2437
  %v2618 = vpack.c.b16 %v2440, %v2438
  %v2619 = vpack.c.b16 %v2443, %v2441
  %v2620 = vpack.c.b16 %v2444, %v2442
  %v2621 = vpack.c.b16 %v2447, %v2445
  %v2622 = vpack.c.b16 %v2448, %v2446
  %v2623 = vpack.c.b16 %v2451, %v2449
  %v2624 = vpack.c.b16 %v2452, %v2450
  %v2625 = vpack.c.b16 %v2455, %v2453
  %v2626 = vpack.c.b16 %v2456, %v2454
  %v2627 = vpack.c.b16 %v2459, %v2457
  %v2628 = vpack.c.b16 %v2460, %v2458
  %v2629 = vpack.c.b16 %v2463, %v2461
  %v2630 = vpack.c.b16 %v2464, %v2462
  %v2631 = vpack.c.b16 %v2467, %v2465
  %v2632 = vpack.c.b16 %v2468, %v2466
  %v2633 = vpack.c.b16 %v2471, %v2469
  %v2634 = vpack.c.b16 %v2472, %v2470
  %v2635 = vpack.c.b16 %v2475, %v2473
  %v2636 = vpack.c.b16 %v2476, %v2474
  %v2637 = vpack.c.b16 %v2479, %v2477
  %v2638 = vpack.c.b16 %v2480, %v2478
  %v2639 = vpack.c.b16 %v2483, %v2481
  %v2640 = vpack.c.b16 %v2484, %v2482
  %v2641 = vpack.c.b16 %v2487, %v2485
  %v2642 = vpack.c.b16 %v2488, %v2486
  %v2643 = vpack.c.b16 %v2491, %v2489
  %v2644 = vpack.c.b16 %v2492, %v2490
  %v2645 = vpack.c.b16 %v2495, %v2493
  %v2646 = vpack.c.b16 %v2496, %v2494
  %v2647 = vpack.c.b16 %v2499, %v2497
  %v2648 = vpack.c.b16 %v2500, %v2498
  %v2649 = vpack.c.b16 %v2503, %v2501
  %v2650 = vpack.c.b16 %v2504, %v2502
  %v2651 = vpack.c.b16 %v2507, %v2505
  %v2652 = vpack.c.b16 %v2508, %v2506
  %v2653 = vpack.c.b16 %v2511, %v2509
  %v2654 = vpack.c.b16 %v2512, %v2510
  %v2655 = vpack.c.b16 %v2515, %v2513
  %v2656 = vpack.c.b16 %v2516, %v2514
  %v2657 = vpack.c.b16 %v2519, %v2517
  %v2658 = vpack.c.b16 %v2520, %v2518
  %v2659 = vpack.c.b16 %v2523, %v2521
  %v2660 = vpack.c.b16 %v2524, %v2522
  %v2661 = vpack.c.b16 %v2527, %v2525
  %v2662 = vpack.c.b16 %v2528, %v2526
  %v2663 = vpack.c.b16 %v2531, %v2529
  %v2664 = vpack.c.b16 %v2532, %v2530
  %v2665 = vpack.c.b16 %v2535, %v2533
  %v2666 = vpack.c.b16 %v2536, %v2534
  %v2667 = vpack.c.b16 %v2539, %v2537
  %v2668 = vpack.c.b16 %v2540, %v2538
  %v2669 = vpack.c.b16 %v2543, %v2541
  %v2670 = vpack.c.b16 %v2544, %v2542
  %v2671 = vpack.c.b16 %v2547, %v2545
  %v2672 = vpack.c.b16 %v2548, %v2546
  %v2673 = vpack.c.b16 %v2551, %v2549
  %v2674 = vpack.c.b16 %v2552, %v2550
  %v2675 = vpack.c.b16 %v2555, %v2553
  %v2676 = vpack.c.b16 %v2556, %v2554
  %v2677 = vpack.c.b16 %v2559, %v2557
  %v2678 = vpack.c.b16 %v2560, %v2558
  %v2679 = vpack.c.b16 %v2563, %v2561
  %v2680 = vpack.c.b16 %v2564, %v2562
  %v2681 = vpack.c.b16 %v2567, %v2565
  %v2682 = vpack.c.b16 %v2568, %v2566
  %v2683 = vpack.c.b16 %v2571, %v2569
  %v2684 = vpack.c.b16 %v2572, %v2570
  %v2685 = vpack.c.b16 %v2575, %v2573
  %v2686 = vpack.c.b16 %v2576, %v2574
  %v2687 = vpack.c.b16 %v2579, %v2577
  %v2688 = vpack.c.b16 %v2580, %v2578
  %v2689 = vpack.c.b16 %v2583, %v2581
  %v2690 = vpack.c.b16 %v2584, %v2582
  %v2691 = vpack.c.b16 %v2587, %v2585
  %v2692 = vpack.c.b16 %v2588, %v2586
  %v2693 = vpack.c.b16 %v2591, %v2589
  %v2694 = vpack.c.b16 %v2592, %v2590
  %v2695 = vpack.c.b16 %v2595, %v2593
  %v2696 = vpack.c.b16 %v2596, %v2594
  %v2697 = vpack.c.b16 %v2599, %v2597
  %v2698 = vpack.c.b16 %v2600, %v2598
  %v2699 = vpack.c.b16 %v2603, %v2601
  %v2700 = vpack.c.b16 %v2604, %v2602
  %2797 = vmatprep.subr.bf16.mxu0 %v2606
  %2798 = vmatpush1.bf16.msra.mxu0 %v2605
  %2799 = vmatprep.subr.bf16.mxu0 %v2608
  %2800 = vmatpush1.bf16.msra.mxu0 %v2607
  %2801 = vmatprep.subr.bf16.mxu0 %v2610
  %2802 = vmatpush1.bf16.msra.mxu0 %v2609
  %2803 = vmatprep.subr.bf16.mxu0 %v2612
  %2804 = vmatpush1.bf16.msra.mxu0 %v2611
  %2805 = vmatprep.subr.bf16.mxu0 %v2614
  %2806 = vmatpush1.bf16.msra.mxu0 %v2613
  %2807 = vmatprep.subr.bf16.mxu0 %v2616
  %2808 = vmatpush1.bf16.msra.mxu0 %v2615
  %2809 = vmatprep.subr.bf16.mxu0 %v2618
  %2810 = vmatpush1.bf16.msra.mxu0 %v2617
  %2811 = vmatprep.subr.bf16.mxu0 %v2620
  %2812 = vmatpush1.bf16.msra.mxu0 %v2619
  %2813 = vmatprep.subr.bf16.mxu0 %v2622
  %2814 = vmatpush1.bf16.msra.mxu0 %v2621
  %2815 = vmatprep.subr.bf16.mxu0 %v2624
  %2816 = vmatpush1.bf16.msra.mxu0 %v2623
  %2817 = vmatprep.subr.bf16.mxu0 %v2626
  %2818 = vmatpush1.bf16.msra.mxu0 %v2625
  %2819 = vmatprep.subr.bf16.mxu0 %v2628
  %2820 = vmatpush1.bf16.msra.mxu0 %v2627
  %2821 = vmatprep.subr.bf16.mxu0 %v2630
  %2822 = vmatpush1.bf16.msra.mxu0 %v2629
  %2823 = vmatprep.subr.bf16.mxu0 %v2632
  %2824 = vmatpush1.bf16.msra.mxu0 %v2631
  %2825 = vmatprep.subr.bf16.mxu0 %v2634
  %2826 = vmatpush1.bf16.msra.mxu0 %v2633
  %2827 = vmatprep.subr.bf16.mxu0 %v2636
  %2828 = vmatpush1.bf16.msra.mxu0 %v2635
  %2829 = vmatprep.mubr.bf16.mxu0 %v2204
  %2830 = vmatmul.mubr.bf16.gmra.mrb[0].mxu0 %v2203
  %v2831 = vpop.f32.mrb[0].mxu0
  %v2832 = vadd.f32 %v2310, %v2831
  %v2833 = vpop.f32.mrb[0].mxu0
  %v2834 = vadd.f32 %v2314, %v2833
  %v2835 = vpop.f32.mrb[0].mxu0
  %v2836 = vadd.f32 %v2310, %v2835
  %v2837 = vpop.f32.mrb[0].mxu0
  %v2838 = vadd.f32 %v2314, %v2837
  %2839 = vdwg.mxu0
  %2840 = vmatprep.subr.bf16.mxu0 %v2638
  %2841 = vmatpush1.bf16.msra.mxu0 %v2637
  %2842 = vmatprep.subr.bf16.mxu0 %v2640
  %2843 = vmatpush1.bf16.msra.mxu0 %v2639
  %2844 = vmatprep.subr.bf16.mxu0 %v2642
  %2845 = vmatpush1.bf16.msra.mxu0 %v2641
  %2846 = vmatprep.subr.bf16.mxu0 %v2644
  %2847 = vmatpush1.bf16.msra.mxu0 %v2643
  %2848 = vmatprep.subr.bf16.mxu0 %v2646
  %2849 = vmatpush1.bf16.msra.mxu0 %v2645
  %2850 = vmatprep.subr.bf16.mxu0 %v2648
  %2851 = vmatpush1.bf16.msra.mxu0 %v2647
  %2852 = vmatprep.subr.bf16.mxu0 %v2650
  %2853 = vmatpush1.bf16.msra.mxu0 %v2649
  %2854 = vmatprep.subr.bf16.mxu0 %v2652
  %2855 = vmatpush1.bf16.msra.mxu0 %v2651
  %2856 = vmatprep.subr.bf16.mxu0 %v2654
  %2857 = vmatpush1.bf16.msra.mxu0 %v2653
  %2858 = vmatprep.subr.bf16.mxu0 %v2656
  %2859 = vmatpush1.bf16.msra.mxu0 %v2655
  %2860 = vmatprep.subr.bf16.mxu0 %v2658
  %2861 = vmatpush1.bf16.msra.mxu0 %v2657
  %2862 = vmatprep.subr.bf16.mxu0 %v2660
  %2863 = vmatpush1.bf16.msra.mxu0 %v2659
  %2864 = vmatprep.subr.bf16.mxu0 %v2662
  %2865 = vmatpush1.bf16.msra.mxu0 %v2661
  %2866 = vmatprep.subr.bf16.mxu0 %v2664
  %2867 = vmatpush1.bf16.msra.mxu0 %v2663
  %2868 = vmatprep.subr.bf16.mxu0 %v2666
  %2869 = vmatpush1.bf16.msra.mxu0 %v2665
  %2870 = vmatprep.subr.bf16.mxu0 %v2668
  %2871 = vmatpush1.bf16.msra.mxu0 %v2667
  %2872 = vmatprep.mubr.bf16.mxu0 %v2206
  %2873 = vmatmul.mubr.bf16.gmra.mrb[0].mxu0 %v2205
  %v2874 = vpop.f32.mrb[0].mxu0
  %v2875 = vadd.f32 %v2832, %v2874
  %v2876 = vpop.f32.mrb[0].mxu0
  %v2877 = vadd.f32 %v2834, %v2876
  %v2878 = vpop.f32.mrb[0].mxu0
  %v2879 = vadd.f32 %v2836, %v2878
  %v2880 = vpop.f32.mrb[0].mxu0
  %v2881 = vadd.f32 %v2838, %v2880
  %2882 = vdwg.mxu0
  %2883 = vmatprep.subr.bf16.mxu0 %v2670
  %2884 = vmatpush1.bf16.msra.mxu0 %v2669
  %2885 = vmatprep.subr.bf16.mxu0 %v2672
  %2886 = vmatpush1.bf16.msra.mxu0 %v2671
  %2887 = vmatprep.subr.bf16.mxu0 %v2674
  %2888 = vmatpush1.bf16.msra.mxu0 %v2673
  %2889 = vmatprep.subr.bf16.mxu0 %v2676
  %2890 = vmatpush1.bf16.msra.mxu0 %v2675
  %2891 = vmatprep.subr.bf16.mxu0 %v2678
  %2892 = vmatpush1.bf16.msra.mxu0 %v2677
  %2893 = vmatprep.subr.bf16.mxu0 %v2680
  %2894 = vmatpush1.bf16.msra.mxu0 %v2679
  %2895 = vmatprep.subr.bf16.mxu0 %v2682
  %2896 = vmatpush1.bf16.msra.mxu0 %v2681
  %2897 = vmatprep.subr.bf16.mxu0 %v2684
  %2898 = vmatpush1.bf16.msra.mxu0 %v2683
  %2899 = vmatprep.subr.bf16.mxu0 %v2686
  %2900 = vmatpush1.bf16.msra.mxu0 %v2685
  %2901 = vmatprep.subr.bf16.mxu0 %v2688
  %2902 = vmatpush1.bf16.msra.mxu0 %v2687
  %2903 = vmatprep.subr.bf16.mxu0 %v2690
  %2904 = vmatpush1.bf16.msra.mxu0 %v2689
  %2905 = vmatprep.subr.bf16.mxu0 %v2692
  %2906 = vmatpush1.bf16.msra.mxu0 %v2691
  %2907 = vmatprep.subr.bf16.mxu0 %v2694
  %2908 = vmatpush1.bf16.msra.mxu0 %v2693
  %2909 = vmatprep.subr.bf16.mxu0 %v2696
  %2910 = vmatpush1.bf16.msra.mxu0 %v2695
  %2911 = vmatprep.subr.bf16.mxu0 %v2698
  %2912 = vmatpush1.bf16.msra.mxu0 %v2697
  %2913 = vmatprep.subr.bf16.mxu0 %v2700
  %2914 = vmatpush1.bf16.msra.mxu0 %v2699
  %2915 = vmatprep.mubr.bf16.mxu0 %v2208
  %2916 = vmatmul.mubr.bf16.gmra.mrb[0].mxu0 %v2207
  %v2917 = vpop.f32.mrb[0].mxu0
  %v2918 = vadd.f32 %v2875, %v2917
  %v2919 = vpop.f32.mrb[0].mxu0
  %v2920 = vadd.f32 %v2877, %v2919
  %v2921 = vpop.f32.mrb[0].mxu0
  %v2922 = vadd.f32 %v2879, %v2921
  %v2923 = vpop.f32.mrb[0].mxu0
  %v2924 = vadd.f32 %v2881, %v2923
  %2925 = vdwg.mxu0
  %2927 = vset.pattern.permute.xlu0 0
  %2928 = vperm.xlu0 %2927, %v2177
  %v2929 = vpop.permute.xlu0 %2928
  %2932 = vset.pattern.permute.xlu0 0
  %2933 = vperm.xlu0 %2932, %v2178
  %v2934 = vpop.permute.xlu0 %2933
  %v2936 = vmul.f32 %v1229, %v2929
  %v2937 = vmul.f32 %v1230, %v2934
  %v2939 = vsel %vm1289, %v2937, 0
  %2941 = vmatprep.subr.mxu0 0.0
  %2942 = vmatpush1.msra.mxu0 %v2936
  %2943 = vmatprep.subr.mxu0 0.0
  %2944 = vmatpush1.msra.mxu0 %v2939
  %2945 = vmatprep.subr.mxu0 0.0
  %2946 = vmatpush1.msra.mxu0 0.0
  %2947 = vmatprep.subr.mxu0 0.0
  %2948 = vmatpush1.msra.mxu0 0.0
  %2949 = vmatprep.subr.mxu0 0.0
  %2950 = vmatpush1.msra.mxu0 0.0
  %2951 = vmatprep.subr.mxu0 0.0
  %2952 = vmatpush1.msra.mxu0 0.0
  %2953 = vmatprep.subr.mxu0 0.0
  %2954 = vmatpush1.msra.mxu0 0.0
  %2955 = vmatprep.subr.mxu0 0.0
  %2956 = vmatpush1.msra.mxu0 0.0
  %2957 = vmatprep.subr.mxu0 0.0
  %2958 = vmatpush1.msra.mxu0 0.0
  %2959 = vmatprep.subr.mxu0 0.0
  %2960 = vmatpush1.msra.mxu0 0.0
  %2961 = vmatprep.subr.mxu0 0.0
  %2962 = vmatpush1.msra.mxu0 0.0
  %2963 = vmatprep.subr.mxu0 0.0
  %2964 = vmatpush1.msra.mxu0 0.0
  %2965 = vmatprep.subr.mxu0 0.0
  %2966 = vmatpush1.msra.mxu0 0.0
  %2967 = vmatprep.subr.mxu0 0.0
  %2968 = vmatpush1.msra.mxu0 0.0
  %2969 = vmatprep.subr.mxu0 0.0
  %2970 = vmatpush1.msra.mxu0 0.0
  %2971 = vmatprep.subr.mxu0 0.0
  %2972 = vmatpush1.msra.mxu0 0.0
  %2973 = vmatprep.subr.mxu0 0.0
  %2974 = vmatpush1.msra.mxu0 0.0
  %2975 = vmatprep.subr.mxu0 0.0
  %2976 = vmatpush1.msra.mxu0 0.0
  %2977 = vmatprep.subr.mxu0 0.0
  %2978 = vmatpush1.msra.mxu0 0.0
  %2979 = vmatprep.subr.mxu0 0.0
  %2980 = vmatpush1.msra.mxu0 0.0
  %2981 = vmatprep.subr.mxu0 0.0
  %2982 = vmatpush1.msra.mxu0 0.0
  %2983 = vmatprep.subr.mxu0 0.0
  %2984 = vmatpush1.msra.mxu0 0.0
  %2985 = vmatprep.subr.mxu0 0.0
  %2986 = vmatpush1.msra.mxu0 0.0
  %2987 = vmatprep.subr.mxu0 0.0
  %2988 = vmatpush1.msra.mxu0 0.0
  %2989 = vmatprep.subr.mxu0 0.0
  %2990 = vmatpush1.msra.mxu0 0.0
  %2991 = vmatprep.subr.mxu0 0.0
  %2992 = vmatpush1.msra.mxu0 0.0
  %2993 = vmatprep.subr.mxu0 0.0
  %2994 = vmatpush1.msra.mxu0 0.0
  %2995 = vmatprep.subr.mxu0 0.0
  %2996 = vmatpush1.msra.mxu0 0.0
  %2997 = vmatprep.subr.mxu0 0.0
  %2998 = vmatpush1.msra.mxu0 0.0
  %2999 = vmatprep.subr.mxu0 0.0
  %3000 = vmatpush1.msra.mxu0 0.0
  %3001 = vmatprep.subr.mxu0 0.0
  %3002 = vmatpush1.msra.mxu0 0.0
  %3003 = vmatprep.subr.mxu0 0.0
  %3004 = vmatpush1.msra.mxu0 0.0
  %3005 = vmatprep.mubr.f32.mxu0 0.0
  %3006 = vmatmul.mubr.f32.gmra.mrb[0].mxu0 %v1752
  %v3007 = vpop.f32.mrb[0].mxu0
  %v3008 = vadd.f32 0.0, %v3007
  %v3009 = vpop.f32.mrb[0].mxu0
  %3010 = vmatprep.mubr.f32.mxu0 0.0
  %3011 = vmatmul.mubr.f32.gmra.mrb[0].mxu0 %v1752
  %v3012 = vpop.f32.mrb[0].mxu0
  %v3013 = vadd.f32 0.0, %v3012
  %v3014 = vpop.f32.mrb[0].mxu0
  %3015 = vdwg.mxu0
  %v3016 = vmul.f32 %v49, %v2929
  %v3017 = vmul.f32 %v50, %v2934
  %v3018 = vmul.f32 %v3016, %v3008
  %v3019 = vmul.f32 %v3017, %v3013
  %v3020 = vmul.f32 %v2918, %v2929
  %v3021 = vmul.f32 %v2920, %v2929
  %v3022 = vmul.f32 %v2922, %v2934
  %v3023 = vmul.f32 %v2924, %v2934
  %v3024 = vsel %vm1289, %v2178, 0
  %3026 = vmatprep.subr.mxu0 0.0
  %3027 = vmatpush1.msra.mxu0 %v2177
  %3028 = vmatprep.subr.mxu0 0.0
  %3029 = vmatpush1.msra.mxu0 %v3024
  %3030 = vmatprep.subr.mxu0 0.0
  %3031 = vmatpush1.msra.mxu0 0.0
  %3032 = vmatprep.subr.mxu0 0.0
  %3033 = vmatpush1.msra.mxu0 0.0
  %3034 = vmatprep.subr.mxu0 0.0
  %3035 = vmatpush1.msra.mxu0 0.0
  %3036 = vmatprep.subr.mxu0 0.0
  %3037 = vmatpush1.msra.mxu0 0.0
  %3038 = vmatprep.subr.mxu0 0.0
  %3039 = vmatpush1.msra.mxu0 0.0
  %3040 = vmatprep.subr.mxu0 0.0
  %3041 = vmatpush1.msra.mxu0 0.0
  %3042 = vmatprep.subr.mxu0 0.0
  %3043 = vmatpush1.msra.mxu0 0.0
  %3044 = vmatprep.subr.mxu0 0.0
  %3045 = vmatpush1.msra.mxu0 0.0
  %3046 = vmatprep.subr.mxu0 0.0
  %3047 = vmatpush1.msra.mxu0 0.0
  %3048 = vmatprep.subr.mxu0 0.0
  %3049 = vmatpush1.msra.mxu0 0.0
  %3050 = vmatprep.subr.mxu0 0.0
  %3051 = vmatpush1.msra.mxu0 0.0
  %3052 = vmatprep.subr.mxu0 0.0
  %3053 = vmatpush1.msra.mxu0 0.0
  %3054 = vmatprep.subr.mxu0 0.0
  %3055 = vmatpush1.msra.mxu0 0.0
  %3056 = vmatprep.subr.mxu0 0.0
  %3057 = vmatpush1.msra.mxu0 0.0
  %3058 = vmatprep.subr.mxu0 0.0
  %3059 = vmatpush1.msra.mxu0 0.0
  %3060 = vmatprep.subr.mxu0 0.0
  %3061 = vmatpush1.msra.mxu0 0.0
  %3062 = vmatprep.subr.mxu0 0.0
  %3063 = vmatpush1.msra.mxu0 0.0
  %3064 = vmatprep.subr.mxu0 0.0
  %3065 = vmatpush1.msra.mxu0 0.0
  %3066 = vmatprep.subr.mxu0 0.0
  %3067 = vmatpush1.msra.mxu0 0.0
  %3068 = vmatprep.subr.mxu0 0.0
  %3069 = vmatpush1.msra.mxu0 0.0
  %3070 = vmatprep.subr.mxu0 0.0
  %3071 = vmatpush1.msra.mxu0 0.0
  %3072 = vmatprep.subr.mxu0 0.0
  %3073 = vmatpush1.msra.mxu0 0.0
  %3074 = vmatprep.subr.mxu0 0.0
  %3075 = vmatpush1.msra.mxu0 0.0
  %3076 = vmatprep.subr.mxu0 0.0
  %3077 = vmatpush1.msra.mxu0 0.0
  %3078 = vmatprep.subr.mxu0 0.0
  %3079 = vmatpush1.msra.mxu0 0.0
  %3080 = vmatprep.subr.mxu0 0.0
  %3081 = vmatpush1.msra.mxu0 0.0
  %3082 = vmatprep.subr.mxu0 0.0
  %3083 = vmatpush1.msra.mxu0 0.0
  %3084 = vmatprep.subr.mxu0 0.0
  %3085 = vmatpush1.msra.mxu0 0.0
  %3086 = vmatprep.subr.mxu0 0.0
  %3087 = vmatpush1.msra.mxu0 0.0
  %3088 = vmatprep.subr.mxu0 0.0
  %3089 = vmatpush1.msra.mxu0 0.0
  %3090 = vmatprep.mubr.f32.mxu0 0.0
  %3091 = vmatmul.mubr.f32.gmra.mrb[0].mxu0 %v1833
  %v3092 = vpop.f32.mrb[0].mxu0
  %v3093 = vadd.f32 0.0, %v3092
  %v3094 = vpop.f32.mrb[0].mxu0
  %3095 = vdwg.mxu0
  %v3097 = vsel %vm1289, %v3022, 0
  %v3100 = vsel %vm1289, %v3023, 0
  %3102 = vmatprep.subr.mxu0 %v3021
  %3103 = vmatpush1.msra.mxu0 %v3020
  %3104 = vmatprep.subr.mxu0 %v3100
  %3105 = vmatpush1.msra.mxu0 %v3097
  %3106 = vmatprep.subr.mxu0 0.0
  %3107 = vmatpush1.msra.mxu0 0.0
  %3108 = vmatprep.subr.mxu0 0.0
  %3109 = vmatpush1.msra.mxu0 0.0
  %3110 = vmatprep.subr.mxu0 0.0
  %3111 = vmatpush1.msra.mxu0 0.0
  %3112 = vmatprep.subr.mxu0 0.0
  %3113 = vmatpush1.msra.mxu0 0.0
  %3114 = vmatprep.subr.mxu0 0.0
  %3115 = vmatpush1.msra.mxu0 0.0
  %3116 = vmatprep.subr.mxu0 0.0
  %3117 = vmatpush1.msra.mxu0 0.0
  %3118 = vmatprep.subr.mxu0 0.0
  %3119 = vmatpush1.msra.mxu0 0.0
  %3120 = vmatprep.subr.mxu0 0.0
  %3121 = vmatpush1.msra.mxu0 0.0
  %3122 = vmatprep.subr.mxu0 0.0
  %3123 = vmatpush1.msra.mxu0 0.0
  %3124 = vmatprep.subr.mxu0 0.0
  %3125 = vmatpush1.msra.mxu0 0.0
  %3126 = vmatprep.subr.mxu0 0.0
  %3127 = vmatpush1.msra.mxu0 0.0
  %3128 = vmatprep.subr.mxu0 0.0
  %3129 = vmatpush1.msra.mxu0 0.0
  %3130 = vmatprep.subr.mxu0 0.0
  %3131 = vmatpush1.msra.mxu0 0.0
  %3132 = vmatprep.subr.mxu0 0.0
  %3133 = vmatpush1.msra.mxu0 0.0
  %3134 = vmatprep.subr.mxu0 0.0
  %3135 = vmatpush1.msra.mxu0 0.0
  %3136 = vmatprep.subr.mxu0 0.0
  %3137 = vmatpush1.msra.mxu0 0.0
  %3138 = vmatprep.subr.mxu0 0.0
  %3139 = vmatpush1.msra.mxu0 0.0
  %3140 = vmatprep.subr.mxu0 0.0
  %3141 = vmatpush1.msra.mxu0 0.0
  %3142 = vmatprep.subr.mxu0 0.0
  %3143 = vmatpush1.msra.mxu0 0.0
  %3144 = vmatprep.subr.mxu0 0.0
  %3145 = vmatpush1.msra.mxu0 0.0
  %3146 = vmatprep.subr.mxu0 0.0
  %3147 = vmatpush1.msra.mxu0 0.0
  %3148 = vmatprep.subr.mxu0 0.0
  %3149 = vmatpush1.msra.mxu0 0.0
  %3150 = vmatprep.subr.mxu0 0.0
  %3151 = vmatpush1.msra.mxu0 0.0
  %3152 = vmatprep.subr.mxu0 0.0
  %3153 = vmatpush1.msra.mxu0 0.0
  %3154 = vmatprep.subr.mxu0 0.0
  %3155 = vmatpush1.msra.mxu0 0.0
  %3156 = vmatprep.subr.mxu0 0.0
  %3157 = vmatpush1.msra.mxu0 0.0
  %3158 = vmatprep.subr.mxu0 0.0
  %3159 = vmatpush1.msra.mxu0 0.0
  %3160 = vmatprep.subr.mxu0 0.0
  %3161 = vmatpush1.msra.mxu0 0.0
  %3162 = vmatprep.subr.mxu0 0.0
  %3163 = vmatpush1.msra.mxu0 0.0
  %3164 = vmatprep.subr.mxu0 0.0
  %3165 = vmatpush1.msra.mxu0 0.0
  %3166 = vmatprep.mubr.f32.mxu0 0.0
  %3167 = vmatmul.mubr.f32.gmra.mrb[0].mxu0 %v1833
  %v3168 = vpop.f32.mrb[0].mxu0
  %v3169 = vadd.f32 0.0, %v3168
  %v3170 = vpop.f32.mrb[0].mxu0
  %v3171 = vadd.f32 0.0, %v3170
  %3172 = vdwg.mxu0
  %v3173 = vrcp.pop %v3093
  %3175 = vset.pattern.permute.xlu0 0
  %3176 = vperm.xlu0 %3175, %v3173
  %v3177 = vpop.permute.xlu0 %3176
  %v3179 = vmul.f32 %v3169, %v3177
  %v3180 = vmul.f32 %v3171, %v3177
  %v3181 = vmul.f32 %v53, %v2929
  %v3182 = vmul.f32 %v54, %v2934
  %vm3183 = vcmp.gt.f32.partialorder %v3181, 0.0
  %vm3184 = vcmp.gt.f32.partialorder %v3182, 0.0
  %v3185 = vsel %vm3183, 1, 0
  %v3186 = vsel %vm3184, 1, 0
  %3187 = vset.pattern.permute.xlu0 0
  %3188 = vperm.xlu0 %3187, %v3185
  %v3189 = vpop.permute.xlu0 %3188
  %3190 = vset.pattern.permute.xlu0 0
  %3191 = vperm.xlu0 %3190, %v3186
  %v3192 = vpop.permute.xlu0 %3191
  %vm3193 = vcmp.eq.s32.totalorder %v3189, 1
  %vm3194 = vcmp.eq.s32.totalorder %v3192, 1
  %v3195 = vsel %vm3193, %v2918, -1e+30
  %v3196 = vsel %vm3193, %v2920, -1e+30
  %v3197 = vsel %vm3194, %v2922, -1e+30
  %v3198 = vsel %vm3194, %v2924, -1e+30
  %v3199 = vsel %vm1289, %v3197, -inf
  %v3200 = vmax.f32 %v3195, %v3199
  %v3201 = vrot.slane %v3200, 4
  %v3202 = vmax.f32 %v3200, %v3201
  %v3203 = vrot.slane %v3202, 2
  %v3204 = vmax.f32 %v3202, %v3203
  %v3205 = vrot.slane %v3204, 1
  %v3206 = vmax.f32 %v3204, %v3205
  %v3207 = vsel %vm1289, %v3198, -inf
  %v3208 = vmax.f32 %v3196, %v3207
  %v3209 = vrot.slane %v3208, 4
  %v3210 = vmax.f32 %v3208, %v3209
  %v3211 = vrot.slane %v3210, 2
  %v3212 = vmax.f32 %v3210, %v3211
  %v3213 = vrot.slane %v3212, 1
  %v3214 = vmax.f32 %v3212, %v3213
  %vm3215 = vcmp.eq.s32.totalorder %v1223, 0
  %v3216 = vsel %vm3215, 1.0, 0.0
  %v3217 = vmul.f32 %v3216, %v3206
  %v3218 = vmul.f32 %v3216, %v3214
  %v3219 = vadd.f32 %v3217, 0.0
  %v3220 = vadd.f32 %v3218, 0.0
  %3221 = vset.pattern.permute.xlu0 1
  %3222 = vperm.xlu0 %3221, %v3185
  %v3223 = vpop.permute.xlu0 %3222
  %3224 = vset.pattern.permute.xlu0 1
  %3225 = vperm.xlu0 %3224, %v3186
  %v3226 = vpop.permute.xlu0 %3225
  %vm3227 = vcmp.eq.s32.totalorder %v3223, 1
  %vm3228 = vcmp.eq.s32.totalorder %v3226, 1
  %v3229 = vsel %vm3227, %v2918, -1e+30
  %v3230 = vsel %vm3227, %v2920, -1e+30
  %v3231 = vsel %vm3228, %v2922, -1e+30
  %v3232 = vsel %vm3228, %v2924, -1e+30
  %v3233 = vsel %vm1289, %v3231, -inf
  %v3234 = vmax.f32 %v3229, %v3233
  %v3235 = vrot.slane %v3234, 4
  %v3236 = vmax.f32 %v3234, %v3235
  %v3237 = vrot.slane %v3236, 2
  %v3238 = vmax.f32 %v3236, %v3237
  %v3239 = vrot.slane %v3238, 1
  %v3240 = vmax.f32 %v3238, %v3239
  %v3241 = vsel %vm1289, %v3232, -inf
  %v3242 = vmax.f32 %v3230, %v3241
  %v3243 = vrot.slane %v3242, 4
  %v3244 = vmax.f32 %v3242, %v3243
  %v3245 = vrot.slane %v3244, 2
  %v3246 = vmax.f32 %v3244, %v3245
  %v3247 = vrot.slane %v3246, 1
  %v3248 = vmax.f32 %v3246, %v3247
  %vm3249 = vcmp.eq.s32.totalorder %v1223, 1
  %v3250 = vsel %vm3249, 1.0, 0.0
  %v3251 = vmul.f32 %v3250, %v3240
  %v3252 = vmul.f32 %v3250, %v3248
  %v3253 = vadd.f32 %v3219, %v3251
  %v3254 = vadd.f32 %v3220, %v3252
  %3255 = vst [vmem:[%s12] sm:$0xff] %v2918
  %3256 = vst [vmem:[%s12 + $0x8] sm:$0xff] %v2920
  %3257 = vst [vmem:[%s12 + $0x10] sm:$0xf] %v2922
  %3258 = vst [vmem:[%s12 + $0x18] sm:$0xf] %v2924
  %vm3259 = vcmask 7168
  %3260 = vst.msk [vmem:[%s13] sm:$0xff] %vm3259, %v2177
  %vm3261 = vcmask 3072
  %3262 = vst.msk [vmem:[%s13 + $0x8] sm:$0xf] %vm3261, %v2178
  %3263 = vst.msk [vmem:[%s14] sm:$0xff] %vm1259, %v3018
  %3264 = vst.msk [vmem:[%s14 + $0x8] sm:$0xf] %vm1263, %v3019
  %v3269 = vcombine.low %v3253, %v3254
  %v3270 = vcombine.low %v3179, %v3180
  %v3272 = vunpack.c.l.s4 1983009808
  %v3273 = vunpack.c.0.s8 %v3272
  %v3274 = vlaneseq
  %v3275 = vshrl.u32 %v3274, 7
  %v3276 = vsub.s32 %v3273, %v3275
  %v3277 = vrot.slane %v3269, %v3276
  %v3279 = vunpack.c.l.s4 1983009808
  %v3280 = vunpack.c.0.s8 %v3279
  %v3281 = vlaneseq
  %v3282 = vshrl.u32 %v3281, 7
  %v3283 = vsub.s32 %v3280, %v3282
  %v3284 = vrot.slane %v3270, %v3283
  %v3285 = vcombine.low %v3277, %v3284
  %3287 = vst [vmem:[%s15] sm:$0xff] %v3285
  // Predicated region
  $region50: #{_forward_device.5} parent=0 // pred_check
    _
  $region51: #{_forward_device.5} parent=0 // pred_check_branch
    %3289 = sbr.rel (0) target = $region53
  $region52: #{_forward_device.5} parent=0 // pred_region
    _
  $region53: #{_forward_device.5} parent=0 // pred_fallthru
    _
  // Predicated region
  $region54: #{_forward_device.5} parent=0 // pred_check
    _
  $region55: #{_forward_device.5} parent=0 // pred_check_branch
    %3291 = sbr.rel (0) target = $region57
  $region56: #{_forward_device.5} parent=0 // pred_region
    _
  $region57: #{_forward_device.5} parent=0 // pred_fallthru
    _
  // Predicated region
  $region58: #{_forward_device.5} parent=0 // pred_check
    _
  $region59: #{_forward_device.5} parent=0 // pred_check_branch
    %3293 = sbr.rel (0) target = $region61
  $region60: #{_forward_device.5} parent=0 // pred_region
    _
  $region61: #{_forward_device.5} parent=0 // pred_fallthru
    _
  // Predicated region
  $region62: #{_forward_device.5} parent=0 // pred_check
    _
  $region63: #{_forward_device.5} parent=0 // pred_check_branch
    %3295 = sbr.rel (0) target = $region65
  $region64: #{_forward_device.5} parent=0 // pred_region
    _
  $region65: #{_forward_device.5} parent=0 // pred_fallthru
    _
  // Predicated region
  $region66: #{_forward_device.5} parent=0 // pred_check
    _
  $region67: #{_forward_device.5} parent=0 // pred_check_branch
    %3297 = sbr.rel (0) target = $region69
  $region68: #{_forward_device.5} parent=0 // pred_region
    _
  $region69: #{_forward_device.5} parent=0 // pred_fallthru
    _
  // Predicated region
  $region70: #{_forward_device.5} parent=0 // pred_check
    _
  $region71: #{_forward_device.5} parent=0 // pred_check_branch
    %3299 = sbr.rel (0) target = $region73
  $region72: #{_forward_device.5} parent=0 // pred_region
    _
  $region73: #{_forward_device.5} parent=0 // pred_fallthru
    _
  // Predicated region
  $region74: #{_forward_device.5} parent=0 // pred_check
    _
  $region75: #{_forward_device.5} parent=0 // pred_check_branch
    %3301 = sbr.rel (0) target = $region77
  $region76: #{_forward_device.5} parent=0 // pred_region
    _
  $region77: #{_forward_device.5} parent=0 // pred_fallthru
    _
  // Predicated region
  $region78: #{_forward_device.5} parent=0 // pred_check
    _
  $region79: #{_forward_device.5} parent=0 // pred_check_branch
    %3303 = sbr.rel (0) target = $region81
  $region80: #{_forward_device.5} parent=0 // pred_region
    _
  $region81: #{_forward_device.5} parent=0 // pred_fallthru
    _

// kernel: _forward_device.7
$region0: #{_forward_device.7}
  #allocation0 [shape = 'u32[]', space=smem, size = 0x4, offset = 0x4, fixed_abs, tag = 'smem constant byte address 0x4 - core index']
  #allocation1 [shape = 'u32[144,128]{1,0:T(1,128)}', space=vmem, size = 0x12000, scoped, tag = 'internal scratch']
  %s0 = inlined_call_operand.vmem [shape: f32[2,512], index: 0, kind: input, shape index: {}]
  %s1 = inlined_call_operand.vmem [shape: f32[2,512], index: 1, kind: input, shape index: {}]
  %s2 = inlined_call_operand.vmem [shape: f32[2,512], index: 2, kind: input, shape index: {}]
  %s3 = inlined_call_operand.vmem [shape: bf16[512,1024], index: 3, kind: input, shape index: {}]
  %s4 = inlined_call_operand.vmem [shape: f32[1,1024], index: 4, kind: input, shape index: {}]
  %s5 = inlined_call_operand.vmem [shape: bf16[1024,2], index: 5, kind: input, shape index: {}]
  %s6 = inlined_call_operand.vmem [shape: f32[1,2], index: 6, kind: input, shape index: {}]
  %s7 = inlined_call_operand.hbm [shape: f32[2,2], index: 7, kind: output, shape index: {}]
  %s8 = sld [smem:[#allocation0]]
  $region38: #{_forward_device.7} parent=0
    _
  %s10 = ssub.s32 1, %s8
  %s11 = scalar_select 0, %s10, %s8
  $region1: #{_forward_device.7} parent=0
    #allocation2 [shape = 'u8[1024]{0}', space=vmem, size = 0x400, scoped, tag = 'output window, operand 0, single buffered']
    #allocation3 [shape = 's32[1]{0}', space=sflag, size = 0x4, scoped, tag = 'scoped memory for _forward_device.7']
    %12 = vsyncpa [#allocation3], 0
    // Predicated region
    $region2: #{_forward_device.7} parent=1 // pred_check
      _
    $region3: #{_forward_device.7} parent=1 // pred_check_branch
      %14 = sbr.rel (0) target = $region5
    $region4: #{_forward_device.7} parent=1 // pred_region
      _
    $region5: #{_forward_device.7} parent=1 // pred_fallthru
      _
    // Predicated region
    $region6: #{_forward_device.7} parent=1 // pred_check
      _
    $region7: #{_forward_device.7} parent=1 // pred_check_branch
      %16 = sbr.rel (0) target = $region9
    $region8: #{_forward_device.7} parent=1 // pred_region
      _
    $region9: #{_forward_device.7} parent=1 // pred_fallthru
      _
    // Predicated region
    $region10: #{_forward_device.7} parent=1 // pred_check
      _
    $region11: #{_forward_device.7} parent=1 // pred_check_branch
      %18 = sbr.rel (0) target = $region13
    $region12: #{_forward_device.7} parent=1 // pred_region
      _
    $region13: #{_forward_device.7} parent=1 // pred_fallthru
      _
    // Predicated region
    $region14: #{_forward_device.7} parent=1 // pred_check
      _
    $region15: #{_forward_device.7} parent=1 // pred_check_branch
      %20 = sbr.rel (0) target = $region17
    $region16: #{_forward_device.7} parent=1 // pred_region
      _
    $region17: #{_forward_device.7} parent=1 // pred_fallthru
      _
    // Predicated region
    $region18: #{_forward_device.7} parent=1 // pred_check
      _
    $region19: #{_forward_device.7} parent=1 // pred_check_branch
      %22 = sbr.rel (0) target = $region21
    $region20: #{_forward_device.7} parent=1 // pred_region
      _
    $region21: #{_forward_device.7} parent=1 // pred_fallthru
      _
    // Predicated region
    $region22: #{_forward_device.7} parent=1 // pred_check
      _
    $region23: #{_forward_device.7} parent=1 // pred_check_branch
      %24 = sbr.rel (0) target = $region25
    $region24: #{_forward_device.7} parent=1 // pred_region
      _
    $region25: #{_forward_device.7} parent=1 // pred_fallthru
      _
    // Predicated region
    $region26: #{_forward_device.7} parent=1 // pred_check
      _
    $region27: #{_forward_device.7} parent=1 // pred_check_branch
      %26 = sbr.rel (0) target = $region29
    $region28: #{_forward_device.7} parent=1 // pred_region
      _
    $region29: #{_forward_device.7} parent=1 // pred_fallthru
      _
    %v28 = vld [vmem:[%s0] sm:$0xff]
    %v29 = vld [vmem:[%s1] sm:$0xff]
    %v30 = vadd.f32 %v28, %v29
    %v31 = vld [vmem:[%s2] sm:$0xff]
    %v32 = vadd.f32 %v30, %v31
    %v34 = vcombine.high %v32, %v32
    %v36 = vunpack.c.l.s4 1983009808
    %v37 = vunpack.c.0.s8 %v36
    %v38 = vlaneseq
    %v39 = vshrl.u32 %v38, 7
    %v40 = vsub.s32 %v37, %v39
    %v41 = vrot.slane %v32, %v40
    %v43 = vunpack.c.l.s4 1983009808
    %v44 = vunpack.c.0.s8 %v43
    %v45 = vlaneseq
    %v46 = vshrl.u32 %v45, 7
    %v47 = vsub.s32 %v44, %v46
    %v48 = vrot.slane %v34, %v47
    %v49 = vcombine.high %v41, %v41
    %v50 = vcombine.high %v48, %v48
    %v55 = vpack.c.bf16 %v41, %v41
    %v56 = vpack.c.bf16 %v49, %v49
    %v57 = vpack.c.bf16 %v48, %v48
    %v58 = vpack.c.bf16 %v50, %v50
    %v59 = vld [vmem:[%s3] sm:$0xff]
    %v60 = vld [vmem:[%s3 + $0x8] sm:$0xff]
    %v61 = vld [vmem:[%s3 + $0x10] sm:$0xff]
    %v62 = vld [vmem:[%s3 + $0x18] sm:$0xff]
    %v63 = vld [vmem:[%s3 + $0x20] sm:$0xff]
    %v64 = vld [vmem:[%s3 + $0x28] sm:$0xff]
    %v65 = vld [vmem:[%s3 + $0x30] sm:$0xff]
    %v66 = vld [vmem:[%s3 + $0x38] sm:$0xff]
    %v67 = vld [vmem:[%s3 + $0x40] sm:$0xff]
    %v68 = vld [vmem:[%s3 + $0x48] sm:$0xff]
    %v69 = vld [vmem:[%s3 + $0x50] sm:$0xff]
    %v70 = vld [vmem:[%s3 + $0x58] sm:$0xff]
    %v71 = vld [vmem:[%s3 + $0x60] sm:$0xff]
    %v72 = vld [vmem:[%s3 + $0x68] sm:$0xff]
    %v73 = vld [vmem:[%s3 + $0x70] sm:$0xff]
    %v74 = vld [vmem:[%s3 + $0x78] sm:$0xff]
    %v75 = vld [vmem:[%s3 + $0x80] sm:$0xff]
    %v76 = vld [vmem:[%s3 + $0x88] sm:$0xff]
    %v77 = vld [vmem:[%s3 + $0x90] sm:$0xff]
    %v78 = vld [vmem:[%s3 + $0x98] sm:$0xff]
    %v79 = vld [vmem:[%s3 + $0xa0] sm:$0xff]
    %v80 = vld [vmem:[%s3 + $0xa8] sm:$0xff]
    %v81 = vld [vmem:[%s3 + $0xb0] sm:$0xff]
    %v82 = vld [vmem:[%s3 + $0xb8] sm:$0xff]
    %v83 = vld [vmem:[%s3 + $0xc0] sm:$0xff]
    %v84 = vld [vmem:[%s3 + $0xc8] sm:$0xff]
    %v85 = vld [vmem:[%s3 + $0xd0] sm:$0xff]
    %v86 = vld [vmem:[%s3 + $0xd8] sm:$0xff]
    %v87 = vld [vmem:[%s3 + $0xe0] sm:$0xff]
    %v88 = vld [vmem:[%s3 + $0xe8] sm:$0xff]
    %v89 = vld [vmem:[%s3 + $0xf0] sm:$0xff]
    %v90 = vld [vmem:[%s3 + $0xf8] sm:$0xff]
    %v91 = vld [vmem:[%s3 + $0x100] sm:$0xff]
    %v92 = vld [vmem:[%s3 + $0x108] sm:$0xff]
    %v93 = vld [vmem:[%s3 + $0x110] sm:$0xff]
    %v94 = vld [vmem:[%s3 + $0x118] sm:$0xff]
    %v95 = vld [vmem:[%s3 + $0x120] sm:$0xff]
    %v96 = vld [vmem:[%s3 + $0x128] sm:$0xff]
    %v97 = vld [vmem:[%s3 + $0x130] sm:$0xff]
    %v98 = vld [vmem:[%s3 + $0x138] sm:$0xff]
    %v99 = vld [vmem:[%s3 + $0x140] sm:$0xff]
    %v100 = vld [vmem:[%s3 + $0x148] sm:$0xff]
    %v101 = vld [vmem:[%s3 + $0x150] sm:$0xff]
    %v102 = vld [vmem:[%s3 + $0x158] sm:$0xff]
    %v103 = vld [vmem:[%s3 + $0x160] sm:$0xff]
    %v104 = vld [vmem:[%s3 + $0x168] sm:$0xff]
    %v105 = vld [vmem:[%s3 + $0x170] sm:$0xff]
    %v106 = vld [vmem:[%s3 + $0x178] sm:$0xff]
    %v107 = vld [vmem:[%s3 + $0x180] sm:$0xff]
    %v108 = vld [vmem:[%s3 + $0x188] sm:$0xff]
    %v109 = vld [vmem:[%s3 + $0x190] sm:$0xff]
    %v110 = vld [vmem:[%s3 + $0x198] sm:$0xff]
    %v111 = vld [vmem:[%s3 + $0x1a0] sm:$0xff]
    %v112 = vld [vmem:[%s3 + $0x1a8] sm:$0xff]
    %v113 = vld [vmem:[%s3 + $0x1b0] sm:$0xff]
    %v114 = vld [vmem:[%s3 + $0x1b8] sm:$0xff]
    %v115 = vld [vmem:[%s3 + $0x1c0] sm:$0xff]
    %v116 = vld [vmem:[%s3 + $0x1c8] sm:$0xff]
    %v117 = vld [vmem:[%s3 + $0x1d0] sm:$0xff]
    %v118 = vld [vmem:[%s3 + $0x1d8] sm:$0xff]
    %v119 = vld [vmem:[%s3 + $0x1e0] sm:$0xff]
    %v120 = vld [vmem:[%s3 + $0x1e8] sm:$0xff]
    %v121 = vld [vmem:[%s3 + $0x1f0] sm:$0xff]
    %v122 = vld [vmem:[%s3 + $0x1f8] sm:$0xff]
    %v123 = vld [vmem:[%s3 + $0x200] sm:$0xff]
    %v124 = vld [vmem:[%s3 + $0x208] sm:$0xff]
    %v125 = vld [vmem:[%s3 + $0x210] sm:$0xff]
    %v126 = vld [vmem:[%s3 + $0x218] sm:$0xff]
    %v127 = vld [vmem:[%s3 + $0x220] sm:$0xff]
    %v128 = vld [vmem:[%s3 + $0x228] sm:$0xff]
    %v129 = vld [vmem:[%s3 + $0x230] sm:$0xff]
    %v130 = vld [vmem:[%s3 + $0x238] sm:$0xff]
    %v131 = vld [vmem:[%s3 + $0x240] sm:$0xff]
    %v132 = vld [vmem:[%s3 + $0x248] sm:$0xff]
    %v133 = vld [vmem:[%s3 + $0x250] sm:$0xff]
    %v134 = vld [vmem:[%s3 + $0x258] sm:$0xff]
    %v135 = vld [vmem:[%s3 + $0x260] sm:$0xff]
    %v136 = vld [vmem:[%s3 + $0x268] sm:$0xff]
    %v137 = vld [vmem:[%s3 + $0x270] sm:$0xff]
    %v138 = vld [vmem:[%s3 + $0x278] sm:$0xff]
    %v139 = vld [vmem:[%s3 + $0x280] sm:$0xff]
    %v140 = vld [vmem:[%s3 + $0x288] sm:$0xff]
    %v141 = vld [vmem:[%s3 + $0x290] sm:$0xff]
    %v142 = vld [vmem:[%s3 + $0x298] sm:$0xff]
    %v143 = vld [vmem:[%s3 + $0x2a0] sm:$0xff]
    %v144 = vld [vmem:[%s3 + $0x2a8] sm:$0xff]
    %v145 = vld [vmem:[%s3 + $0x2b0] sm:$0xff]
    %v146 = vld [vmem:[%s3 + $0x2b8] sm:$0xff]
    %v147 = vld [vmem:[%s3 + $0x2c0] sm:$0xff]
    %v148 = vld [vmem:[%s3 + $0x2c8] sm:$0xff]
    %v149 = vld [vmem:[%s3 + $0x2d0] sm:$0xff]
    %v150 = vld [vmem:[%s3 + $0x2d8] sm:$0xff]
    %v151 = vld [vmem:[%s3 + $0x2e0] sm:$0xff]
    %v152 = vld [vmem:[%s3 + $0x2e8] sm:$0xff]
    %v153 = vld [vmem:[%s3 + $0x2f0] sm:$0xff]
    %v154 = vld [vmem:[%s3 + $0x2f8] sm:$0xff]
    %v155 = vld [vmem:[%s3 + $0x300] sm:$0xff]
    %v156 = vld [vmem:[%s3 + $0x308] sm:$0xff]
    %v157 = vld [vmem:[%s3 + $0x310] sm:$0xff]
    %v158 = vld [vmem:[%s3 + $0x318] sm:$0xff]
    %v159 = vld [vmem:[%s3 + $0x320] sm:$0xff]
    %v160 = vld [vmem:[%s3 + $0x328] sm:$0xff]
    %v161 = vld [vmem:[%s3 + $0x330] sm:$0xff]
    %v162 = vld [vmem:[%s3 + $0x338] sm:$0xff]
    %v163 = vld [vmem:[%s3 + $0x340] sm:$0xff]
    %v164 = vld [vmem:[%s3 + $0x348] sm:$0xff]
    %v165 = vld [vmem:[%s3 + $0x350] sm:$0xff]
    %v166 = vld [vmem:[%s3 + $0x358] sm:$0xff]
    %v167 = vld [vmem:[%s3 + $0x360] sm:$0xff]
    %v168 = vld [vmem:[%s3 + $0x368] sm:$0xff]
    %v169 = vld [vmem:[%s3 + $0x370] sm:$0xff]
    %v170 = vld [vmem:[%s3 + $0x378] sm:$0xff]
    %v171 = vld [vmem:[%s3 + $0x380] sm:$0xff]
    %v172 = vld [vmem:[%s3 + $0x388] sm:$0xff]
    %v173 = vld [vmem:[%s3 + $0x390] sm:$0xff]
    %v174 = vld [vmem:[%s3 + $0x398] sm:$0xff]
    %v175 = vld [vmem:[%s3 + $0x3a0] sm:$0xff]
    %v176 = vld [vmem:[%s3 + $0x3a8] sm:$0xff]
    %v177 = vld [vmem:[%s3 + $0x3b0] sm:$0xff]
    %v178 = vld [vmem:[%s3 + $0x3b8] sm:$0xff]
    %v179 = vld [vmem:[%s3 + $0x3c0] sm:$0xff]
    %v180 = vld [vmem:[%s3 + $0x3c8] sm:$0xff]
    %v181 = vld [vmem:[%s3 + $0x3d0] sm:$0xff]
    %v182 = vld [vmem:[%s3 + $0x3d8] sm:$0xff]
    %v183 = vld [vmem:[%s3 + $0x3e0] sm:$0xff]
    %v184 = vld [vmem:[%s3 + $0x3e8] sm:$0xff]
    %v185 = vld [vmem:[%s3 + $0x3f0] sm:$0xff]
    %v186 = vld [vmem:[%s3 + $0x3f8] sm:$0xff]
    %v187 = vld [vmem:[%s3 + $0x400] sm:$0xff]
    %v188 = vld [vmem:[%s3 + $0x408] sm:$0xff]
    %v189 = vld [vmem:[%s3 + $0x410] sm:$0xff]
    %v190 = vld [vmem:[%s3 + $0x418] sm:$0xff]
    %v191 = vld [vmem:[%s3 + $0x420] sm:$0xff]
    %v192 = vld [vmem:[%s3 + $0x428] sm:$0xff]
    %v193 = vld [vmem:[%s3 + $0x430] sm:$0xff]
    %v194 = vld [vmem:[%s3 + $0x438] sm:$0xff]
    %v195 = vld [vmem:[%s3 + $0x440] sm:$0xff]
    %v196 = vld [vmem:[%s3 + $0x448] sm:$0xff]
    %v197 = vld [vmem:[%s3 + $0x450] sm:$0xff]
    %v198 = vld [vmem:[%s3 + $0x458] sm:$0xff]
    %v199 = vld [vmem:[%s3 + $0x460] sm:$0xff]
    %v200 = vld [vmem:[%s3 + $0x468] sm:$0xff]
    %v201 = vld [vmem:[%s3 + $0x470] sm:$0xff]
    %v202 = vld [vmem:[%s3 + $0x478] sm:$0xff]
    %v203 = vld [vmem:[%s3 + $0x480] sm:$0xff]
    %v204 = vld [vmem:[%s3 + $0x488] sm:$0xff]
    %v205 = vld [vmem:[%s3 + $0x490] sm:$0xff]
    %v206 = vld [vmem:[%s3 + $0x498] sm:$0xff]
    %v207 = vld [vmem:[%s3 + $0x4a0] sm:$0xff]
    %v208 = vld [vmem:[%s3 + $0x4a8] sm:$0xff]
    %v209 = vld [vmem:[%s3 + $0x4b0] sm:$0xff]
    %v210 = vld [vmem:[%s3 + $0x4b8] sm:$0xff]
    %v211 = vld [vmem:[%s3 + $0x4c0] sm:$0xff]
    %v212 = vld [vmem:[%s3 + $0x4c8] sm:$0xff]
    %v213 = vld [vmem:[%s3 + $0x4d0] sm:$0xff]
    %v214 = vld [vmem:[%s3 + $0x4d8] sm:$0xff]
    %v215 = vld [vmem:[%s3 + $0x4e0] sm:$0xff]
    %v216 = vld [vmem:[%s3 + $0x4e8] sm:$0xff]
    %v217 = vld [vmem:[%s3 + $0x4f0] sm:$0xff]
    %v218 = vld [vmem:[%s3 + $0x4f8] sm:$0xff]
    %v219 = vld [vmem:[%s3 + $0x500] sm:$0xff]
    %v220 = vld [vmem:[%s3 + $0x508] sm:$0xff]
    %v221 = vld [vmem:[%s3 + $0x510] sm:$0xff]
    %v222 = vld [vmem:[%s3 + $0x518] sm:$0xff]
    %v223 = vld [vmem:[%s3 + $0x520] sm:$0xff]
    %v224 = vld [vmem:[%s3 + $0x528] sm:$0xff]
    %v225 = vld [vmem:[%s3 + $0x530] sm:$0xff]
    %v226 = vld [vmem:[%s3 + $0x538] sm:$0xff]
    %v227 = vld [vmem:[%s3 + $0x540] sm:$0xff]
    %v228 = vld [vmem:[%s3 + $0x548] sm:$0xff]
    %v229 = vld [vmem:[%s3 + $0x550] sm:$0xff]
    %v230 = vld [vmem:[%s3 + $0x558] sm:$0xff]
    %v231 = vld [vmem:[%s3 + $0x560] sm:$0xff]
    %v232 = vld [vmem:[%s3 + $0x568] sm:$0xff]
    %v233 = vld [vmem:[%s3 + $0x570] sm:$0xff]
    %v234 = vld [vmem:[%s3 + $0x578] sm:$0xff]
    %v235 = vld [vmem:[%s3 + $0x580] sm:$0xff]
    %v236 = vld [vmem:[%s3 + $0x588] sm:$0xff]
    %v237 = vld [vmem:[%s3 + $0x590] sm:$0xff]
    %v238 = vld [vmem:[%s3 + $0x598] sm:$0xff]
    %v239 = vld [vmem:[%s3 + $0x5a0] sm:$0xff]
    %v240 = vld [vmem:[%s3 + $0x5a8] sm:$0xff]
    %v241 = vld [vmem:[%s3 + $0x5b0] sm:$0xff]
    %v242 = vld [vmem:[%s3 + $0x5b8] sm:$0xff]
    %v243 = vld [vmem:[%s3 + $0x5c0] sm:$0xff]
    %v244 = vld [vmem:[%s3 + $0x5c8] sm:$0xff]
    %v245 = vld [vmem:[%s3 + $0x5d0] sm:$0xff]
    %v246 = vld [vmem:[%s3 + $0x5d8] sm:$0xff]
    %v247 = vld [vmem:[%s3 + $0x5e0] sm:$0xff]
    %v248 = vld [vmem:[%s3 + $0x5e8] sm:$0xff]
    %v249 = vld [vmem:[%s3 + $0x5f0] sm:$0xff]
    %v250 = vld [vmem:[%s3 + $0x5f8] sm:$0xff]
    %v251 = vld [vmem:[%s3 + $0x600] sm:$0xff]
    %v252 = vld [vmem:[%s3 + $0x608] sm:$0xff]
    %v253 = vld [vmem:[%s3 + $0x610] sm:$0xff]
    %v254 = vld [vmem:[%s3 + $0x618] sm:$0xff]
    %v255 = vld [vmem:[%s3 + $0x620] sm:$0xff]
    %v256 = vld [vmem:[%s3 + $0x628] sm:$0xff]
    %v257 = vld [vmem:[%s3 + $0x630] sm:$0xff]
    %v258 = vld [vmem:[%s3 + $0x638] sm:$0xff]
    %v259 = vld [vmem:[%s3 + $0x640] sm:$0xff]
    %v260 = vld [vmem:[%s3 + $0x648] sm:$0xff]
    %v261 = vld [vmem:[%s3 + $0x650] sm:$0xff]
    %v262 = vld [vmem:[%s3 + $0x658] sm:$0xff]
    %v263 = vld [vmem:[%s3 + $0x660] sm:$0xff]
    %v264 = vld [vmem:[%s3 + $0x668] sm:$0xff]
    %v265 = vld [vmem:[%s3 + $0x670] sm:$0xff]
    %v266 = vld [vmem:[%s3 + $0x678] sm:$0xff]
    %v267 = vld [vmem:[%s3 + $0x680] sm:$0xff]
    %v268 = vld [vmem:[%s3 + $0x688] sm:$0xff]
    %v269 = vld [vmem:[%s3 + $0x690] sm:$0xff]
    %v270 = vld [vmem:[%s3 + $0x698] sm:$0xff]
    %v271 = vld [vmem:[%s3 + $0x6a0] sm:$0xff]
    %v272 = vld [vmem:[%s3 + $0x6a8] sm:$0xff]
    %v273 = vld [vmem:[%s3 + $0x6b0] sm:$0xff]
    %v274 = vld [vmem:[%s3 + $0x6b8] sm:$0xff]
    %v275 = vld [vmem:[%s3 + $0x6c0] sm:$0xff]
    %v276 = vld [vmem:[%s3 + $0x6c8] sm:$0xff]
    %v277 = vld [vmem:[%s3 + $0x6d0] sm:$0xff]
    %v278 = vld [vmem:[%s3 + $0x6d8] sm:$0xff]
    %v279 = vld [vmem:[%s3 + $0x6e0] sm:$0xff]
    %v280 = vld [vmem:[%s3 + $0x6e8] sm:$0xff]
    %v281 = vld [vmem:[%s3 + $0x6f0] sm:$0xff]
    %v282 = vld [vmem:[%s3 + $0x6f8] sm:$0xff]
    %v283 = vld [vmem:[%s3 + $0x700] sm:$0xff]
    %v284 = vld [vmem:[%s3 + $0x708] sm:$0xff]
    %v285 = vld [vmem:[%s3 + $0x710] sm:$0xff]
    %v286 = vld [vmem:[%s3 + $0x718] sm:$0xff]
    %v287 = vld [vmem:[%s3 + $0x720] sm:$0xff]
    %v288 = vld [vmem:[%s3 + $0x728] sm:$0xff]
    %v289 = vld [vmem:[%s3 + $0x730] sm:$0xff]
    %v290 = vld [vmem:[%s3 + $0x738] sm:$0xff]
    %v291 = vld [vmem:[%s3 + $0x740] sm:$0xff]
    %v292 = vld [vmem:[%s3 + $0x748] sm:$0xff]
    %v293 = vld [vmem:[%s3 + $0x750] sm:$0xff]
    %v294 = vld [vmem:[%s3 + $0x758] sm:$0xff]
    %v295 = vld [vmem:[%s3 + $0x760] sm:$0xff]
    %v296 = vld [vmem:[%s3 + $0x768] sm:$0xff]
    %v297 = vld [vmem:[%s3 + $0x770] sm:$0xff]
    %v298 = vld [vmem:[%s3 + $0x778] sm:$0xff]
    %v299 = vld [vmem:[%s3 + $0x780] sm:$0xff]
    %v300 = vld [vmem:[%s3 + $0x788] sm:$0xff]
    %v301 = vld [vmem:[%s3 + $0x790] sm:$0xff]
    %v302 = vld [vmem:[%s3 + $0x798] sm:$0xff]
    %v303 = vld [vmem:[%s3 + $0x7a0] sm:$0xff]
    %v304 = vld [vmem:[%s3 + $0x7a8] sm:$0xff]
    %v305 = vld [vmem:[%s3 + $0x7b0] sm:$0xff]
    %v306 = vld [vmem:[%s3 + $0x7b8] sm:$0xff]
    %v307 = vld [vmem:[%s3 + $0x7c0] sm:$0xff]
    %v308 = vld [vmem:[%s3 + $0x7c8] sm:$0xff]
    %v309 = vld [vmem:[%s3 + $0x7d0] sm:$0xff]
    %v310 = vld [vmem:[%s3 + $0x7d8] sm:$0xff]
    %v311 = vld [vmem:[%s3 + $0x7e0] sm:$0xff]
    %v312 = vld [vmem:[%s3 + $0x7e8] sm:$0xff]
    %v313 = vld [vmem:[%s3 + $0x7f0] sm:$0xff]
    %v314 = vld [vmem:[%s3 + $0x7f8] sm:$0xff]
    %v315 = vld [vmem:[%s4] sm:$0xff]
    %v317 = vlaneseq
    %v318 = vshrl.u32 %v317, 7
    %v319 = vsub.s32 0, %v318
    %v320 = vrot.slane %v315, %v319
    %v321 = vlaneseq
    %v322 = vshrl.u32 %v321, 7
    %v323 = vsub.s32 1, %v322
    %v324 = vrot.slane %v315, %v323
    %v325 = vlaneseq
    %v326 = vshrl.u32 %v325, 7
    %v327 = vsub.s32 2, %v326
    %v328 = vrot.slane %v315, %v327
    %v329 = vlaneseq
    %v330 = vshrl.u32 %v329, 7
    %v331 = vsub.s32 3, %v330
    %v332 = vrot.slane %v315, %v331
    %v333 = vlaneseq
    %v334 = vshrl.u32 %v333, 7
    %v335 = vsub.s32 4, %v334
    %v336 = vrot.slane %v315, %v335
    %v337 = vlaneseq
    %v338 = vshrl.u32 %v337, 7
    %v339 = vsub.s32 5, %v338
    %v340 = vrot.slane %v315, %v339
    %v341 = vlaneseq
    %v342 = vshrl.u32 %v341, 7
    %v343 = vsub.s32 6, %v342
    %v344 = vrot.slane %v315, %v343
    %v345 = vlaneseq
    %v346 = vshrl.u32 %v345, 7
    %v347 = vsub.s32 7, %v346
    %v348 = vrot.slane %v315, %v347
    %v613 = vunpack.c.l.b16 %v59
    %v614 = vunpack.c.h.b16 %v59
    %v615 = vunpack.c.l.b16 %v60
    %v616 = vunpack.c.h.b16 %v60
    %v617 = vunpack.c.l.b16 %v61
    %v618 = vunpack.c.h.b16 %v61
    %v619 = vunpack.c.l.b16 %v62
    %v620 = vunpack.c.h.b16 %v62
    %v621 = vunpack.c.l.b16 %v63
    %v622 = vunpack.c.h.b16 %v63
    %v623 = vunpack.c.l.b16 %v64
    %v624 = vunpack.c.h.b16 %v64
    %v625 = vunpack.c.l.b16 %v65
    %v626 = vunpack.c.h.b16 %v65
    %v627 = vunpack.c.l.b16 %v66
    %v628 = vunpack.c.h.b16 %v66
    %v629 = vunpack.c.l.b16 %v67
    %v630 = vunpack.c.h.b16 %v67
    %v631 = vunpack.c.l.b16 %v68
    %v632 = vunpack.c.h.b16 %v68
    %v633 = vunpack.c.l.b16 %v69
    %v634 = vunpack.c.h.b16 %v69
    %v635 = vunpack.c.l.b16 %v70
    %v636 = vunpack.c.h.b16 %v70
    %v637 = vunpack.c.l.b16 %v71
    %v638 = vunpack.c.h.b16 %v71
    %v639 = vunpack.c.l.b16 %v72
    %v640 = vunpack.c.h.b16 %v72
    %v641 = vunpack.c.l.b16 %v73
    %v642 = vunpack.c.h.b16 %v73
    %v643 = vunpack.c.l.b16 %v74
    %v644 = vunpack.c.h.b16 %v74
    %v645 = vunpack.c.l.b16 %v75
    %v646 = vunpack.c.h.b16 %v75
    %v647 = vunpack.c.l.b16 %v76
    %v648 = vunpack.c.h.b16 %v76
    %v649 = vunpack.c.l.b16 %v77
    %v650 = vunpack.c.h.b16 %v77
    %v651 = vunpack.c.l.b16 %v78
    %v652 = vunpack.c.h.b16 %v78
    %v653 = vunpack.c.l.b16 %v79
    %v654 = vunpack.c.h.b16 %v79
    %v655 = vunpack.c.l.b16 %v80
    %v656 = vunpack.c.h.b16 %v80
    %v657 = vunpack.c.l.b16 %v81
    %v658 = vunpack.c.h.b16 %v81
    %v659 = vunpack.c.l.b16 %v82
    %v660 = vunpack.c.h.b16 %v82
    %v661 = vunpack.c.l.b16 %v83
    %v662 = vunpack.c.h.b16 %v83
    %v663 = vunpack.c.l.b16 %v84
    %v664 = vunpack.c.h.b16 %v84
    %v665 = vunpack.c.l.b16 %v85
    %v666 = vunpack.c.h.b16 %v85
    %v667 = vunpack.c.l.b16 %v86
    %v668 = vunpack.c.h.b16 %v86
    %v669 = vunpack.c.l.b16 %v87
    %v670 = vunpack.c.h.b16 %v87
    %v671 = vunpack.c.l.b16 %v88
    %v672 = vunpack.c.h.b16 %v88
    %v673 = vunpack.c.l.b16 %v89
    %v674 = vunpack.c.h.b16 %v89
    %v675 = vunpack.c.l.b16 %v90
    %v676 = vunpack.c.h.b16 %v90
    %v677 = vunpack.c.l.b16 %v91
    %v678 = vunpack.c.h.b16 %v91
    %v679 = vunpack.c.l.b16 %v92
    %v680 = vunpack.c.h.b16 %v92
    %v681 = vunpack.c.l.b16 %v93
    %v682 = vunpack.c.h.b16 %v93
    %v683 = vunpack.c.l.b16 %v94
    %v684 = vunpack.c.h.b16 %v94
    %v685 = vunpack.c.l.b16 %v95
    %v686 = vunpack.c.h.b16 %v95
    %v687 = vunpack.c.l.b16 %v96
    %v688 = vunpack.c.h.b16 %v96
    %v689 = vunpack.c.l.b16 %v97
    %v690 = vunpack.c.h.b16 %v97
    %v691 = vunpack.c.l.b16 %v98
    %v692 = vunpack.c.h.b16 %v98
    %v693 = vunpack.c.l.b16 %v99
    %v694 = vunpack.c.h.b16 %v99
    %v695 = vunpack.c.l.b16 %v100
    %v696 = vunpack.c.h.b16 %v100
    %v697 = vunpack.c.l.b16 %v101
    %v698 = vunpack.c.h.b16 %v101
    %v699 = vunpack.c.l.b16 %v102
    %v700 = vunpack.c.h.b16 %v102
    %v701 = vunpack.c.l.b16 %v103
    %v702 = vunpack.c.h.b16 %v103
    %v703 = vunpack.c.l.b16 %v104
    %v704 = vunpack.c.h.b16 %v104
    %v705 = vunpack.c.l.b16 %v105
    %v706 = vunpack.c.h.b16 %v105
    %v707 = vunpack.c.l.b16 %v106
    %v708 = vunpack.c.h.b16 %v106
    %v709 = vunpack.c.l.b16 %v107
    %v710 = vunpack.c.h.b16 %v107
    %v711 = vunpack.c.l.b16 %v108
    %v712 = vunpack.c.h.b16 %v108
    %v713 = vunpack.c.l.b16 %v109
    %v714 = vunpack.c.h.b16 %v109
    %v715 = vunpack.c.l.b16 %v110
    %v716 = vunpack.c.h.b16 %v110
    %v717 = vunpack.c.l.b16 %v111
    %v718 = vunpack.c.h.b16 %v111
    %v719 = vunpack.c.l.b16 %v112
    %v720 = vunpack.c.h.b16 %v112
    %v721 = vunpack.c.l.b16 %v113
    %v722 = vunpack.c.h.b16 %v113
    %v723 = vunpack.c.l.b16 %v114
    %v724 = vunpack.c.h.b16 %v114
    %v725 = vunpack.c.l.b16 %v115
    %v726 = vunpack.c.h.b16 %v115
    %v727 = vunpack.c.l.b16 %v116
    %v728 = vunpack.c.h.b16 %v116
    %v729 = vunpack.c.l.b16 %v117
    %v730 = vunpack.c.h.b16 %v117
    %v731 = vunpack.c.l.b16 %v118
    %v732 = vunpack.c.h.b16 %v118
    %v733 = vunpack.c.l.b16 %v119
    %v734 = vunpack.c.h.b16 %v119
    %v735 = vunpack.c.l.b16 %v120
    %v736 = vunpack.c.h.b16 %v120
    %v737 = vunpack.c.l.b16 %v121
    %v738 = vunpack.c.h.b16 %v121
    %v739 = vunpack.c.l.b16 %v122
    %v740 = vunpack.c.h.b16 %v122
    %v741 = vunpack.c.l.b16 %v123
    %v742 = vunpack.c.h.b16 %v123
    %v743 = vunpack.c.l.b16 %v124
    %v744 = vunpack.c.h.b16 %v124
    %v745 = vunpack.c.l.b16 %v125
    %v746 = vunpack.c.h.b16 %v125
    %v747 = vunpack.c.l.b16 %v126
    %v748 = vunpack.c.h.b16 %v126
    %v749 = vunpack.c.l.b16 %v127
    %v750 = vunpack.c.h.b16 %v127
    %v751 = vunpack.c.l.b16 %v128
    %v752 = vunpack.c.h.b16 %v128
    %v753 = vunpack.c.l.b16 %v129
    %v754 = vunpack.c.h.b16 %v129
    %v755 = vunpack.c.l.b16 %v130
    %v756 = vunpack.c.h.b16 %v130
    %v757 = vunpack.c.l.b16 %v131
    %v758 = vunpack.c.h.b16 %v131
    %v759 = vunpack.c.l.b16 %v132
    %v760 = vunpack.c.h.b16 %v132
    %v761 = vunpack.c.l.b16 %v133
    %v762 = vunpack.c.h.b16 %v133
    %v763 = vunpack.c.l.b16 %v134
    %v764 = vunpack.c.h.b16 %v134
    %v765 = vunpack.c.l.b16 %v135
    %v766 = vunpack.c.h.b16 %v135
    %v767 = vunpack.c.l.b16 %v136
    %v768 = vunpack.c.h.b16 %v136
    %v769 = vunpack.c.l.b16 %v137
    %v770 = vunpack.c.h.b16 %v137
    %v771 = vunpack.c.l.b16 %v138
    %v772 = vunpack.c.h.b16 %v138
    %v773 = vunpack.c.l.b16 %v139
    %v774 = vunpack.c.h.b16 %v139
    %v775 = vunpack.c.l.b16 %v140
    %v776 = vunpack.c.h.b16 %v140
    %v777 = vunpack.c.l.b16 %v141
    %v778 = vunpack.c.h.b16 %v141
    %v779 = vunpack.c.l.b16 %v142
    %v780 = vunpack.c.h.b16 %v142
    %v781 = vunpack.c.l.b16 %v143
    %v782 = vunpack.c.h.b16 %v143
    %v783 = vunpack.c.l.b16 %v144
    %v784 = vunpack.c.h.b16 %v144
    %v785 = vunpack.c.l.b16 %v145
    %v786 = vunpack.c.h.b16 %v145
    %v787 = vunpack.c.l.b16 %v146
    %v788 = vunpack.c.h.b16 %v146
    %v789 = vunpack.c.l.b16 %v147
    %v790 = vunpack.c.h.b16 %v147
    %v791 = vunpack.c.l.b16 %v148
    %v792 = vunpack.c.h.b16 %v148
    %v793 = vunpack.c.l.b16 %v149
    %v794 = vunpack.c.h.b16 %v149
    %v795 = vunpack.c.l.b16 %v150
    %v796 = vunpack.c.h.b16 %v150
    %v797 = vunpack.c.l.b16 %v151
    %v798 = vunpack.c.h.b16 %v151
    %v799 = vunpack.c.l.b16 %v152
    %v800 = vunpack.c.h.b16 %v152
    %v801 = vunpack.c.l.b16 %v153
    %v802 = vunpack.c.h.b16 %v153
    %v803 = vunpack.c.l.b16 %v154
    %v804 = vunpack.c.h.b16 %v154
    %v805 = vunpack.c.l.b16 %v155
    %v806 = vunpack.c.h.b16 %v155
    %v807 = vunpack.c.l.b16 %v156
    %v808 = vunpack.c.h.b16 %v156
    %v809 = vunpack.c.l.b16 %v157
    %v810 = vunpack.c.h.b16 %v157
    %v811 = vunpack.c.l.b16 %v158
    %v812 = vunpack.c.h.b16 %v158
    %v813 = vunpack.c.l.b16 %v159
    %v814 = vunpack.c.h.b16 %v159
    %v815 = vunpack.c.l.b16 %v160
    %v816 = vunpack.c.h.b16 %v160
    %v817 = vunpack.c.l.b16 %v161
    %v818 = vunpack.c.h.b16 %v161
    %v819 = vunpack.c.l.b16 %v162
    %v820 = vunpack.c.h.b16 %v162
    %v821 = vunpack.c.l.b16 %v163
    %v822 = vunpack.c.h.b16 %v163
    %v823 = vunpack.c.l.b16 %v164
    %v824 = vunpack.c.h.b16 %v164
    %v825 = vunpack.c.l.b16 %v165
    %v826 = vunpack.c.h.b16 %v165
    %v827 = vunpack.c.l.b16 %v166
    %v828 = vunpack.c.h.b16 %v166
    %v829 = vunpack.c.l.b16 %v167
    %v830 = vunpack.c.h.b16 %v167
    %v831 = vunpack.c.l.b16 %v168
    %v832 = vunpack.c.h.b16 %v168
    %v833 = vunpack.c.l.b16 %v169
    %v834 = vunpack.c.h.b16 %v169
    %v835 = vunpack.c.l.b16 %v170
    %v836 = vunpack.c.h.b16 %v170
    %v837 = vunpack.c.l.b16 %v171
    %v838 = vunpack.c.h.b16 %v171
    %v839 = vunpack.c.l.b16 %v172
    %v840 = vunpack.c.h.b16 %v172
    %v841 = vunpack.c.l.b16 %v173
    %v842 = vunpack.c.h.b16 %v173
    %v843 = vunpack.c.l.b16 %v174
    %v844 = vunpack.c.h.b16 %v174
    %v845 = vunpack.c.l.b16 %v175
    %v846 = vunpack.c.h.b16 %v175
    %v847 = vunpack.c.l.b16 %v176
    %v848 = vunpack.c.h.b16 %v176
    %v849 = vunpack.c.l.b16 %v177
    %v850 = vunpack.c.h.b16 %v177
    %v851 = vunpack.c.l.b16 %v178
    %v852 = vunpack.c.h.b16 %v178
    %v853 = vunpack.c.l.b16 %v179
    %v854 = vunpack.c.h.b16 %v179
    %v855 = vunpack.c.l.b16 %v180
    %v856 = vunpack.c.h.b16 %v180
    %v857 = vunpack.c.l.b16 %v181
    %v858 = vunpack.c.h.b16 %v181
    %v859 = vunpack.c.l.b16 %v182
    %v860 = vunpack.c.h.b16 %v182
    %v861 = vunpack.c.l.b16 %v183
    %v862 = vunpack.c.h.b16 %v183
    %v863 = vunpack.c.l.b16 %v184
    %v864 = vunpack.c.h.b16 %v184
    %v865 = vunpack.c.l.b16 %v185
    %v866 = vunpack.c.h.b16 %v185
    %v867 = vunpack.c.l.b16 %v186
    %v868 = vunpack.c.h.b16 %v186
    %v869 = vunpack.c.l.b16 %v187
    %v870 = vunpack.c.h.b16 %v187
    %v871 = vunpack.c.l.b16 %v188
    %v872 = vunpack.c.h.b16 %v188
    %v873 = vunpack.c.l.b16 %v189
    %v874 = vunpack.c.h.b16 %v189
    %v875 = vunpack.c.l.b16 %v190
    %v876 = vunpack.c.h.b16 %v190
    %v877 = vunpack.c.l.b16 %v191
    %v878 = vunpack.c.h.b16 %v191
    %v879 = vunpack.c.l.b16 %v192
    %v880 = vunpack.c.h.b16 %v192
    %v881 = vunpack.c.l.b16 %v193
    %v882 = vunpack.c.h.b16 %v193
    %v883 = vunpack.c.l.b16 %v194
    %v884 = vunpack.c.h.b16 %v194
    %v885 = vunpack.c.l.b16 %v195
    %v886 = vunpack.c.h.b16 %v195
    %v887 = vunpack.c.l.b16 %v196
    %v888 = vunpack.c.h.b16 %v196
    %v889 = vunpack.c.l.b16 %v197
    %v890 = vunpack.c.h.b16 %v197
    %v891 = vunpack.c.l.b16 %v198
    %v892 = vunpack.c.h.b16 %v198
    %v893 = vunpack.c.l.b16 %v199
    %v894 = vunpack.c.h.b16 %v199
    %v895 = vunpack.c.l.b16 %v200
    %v896 = vunpack.c.h.b16 %v200
    %v897 = vunpack.c.l.b16 %v201
    %v898 = vunpack.c.h.b16 %v201
    %v899 = vunpack.c.l.b16 %v202
    %v900 = vunpack.c.h.b16 %v202
    %v901 = vunpack.c.l.b16 %v203
    %v902 = vunpack.c.h.b16 %v203
    %v903 = vunpack.c.l.b16 %v204
    %v904 = vunpack.c.h.b16 %v204
    %v905 = vunpack.c.l.b16 %v205
    %v906 = vunpack.c.h.b16 %v205
    %v907 = vunpack.c.l.b16 %v206
    %v908 = vunpack.c.h.b16 %v206
    %v909 = vunpack.c.l.b16 %v207
    %v910 = vunpack.c.h.b16 %v207
    %v911 = vunpack.c.l.b16 %v208
    %v912 = vunpack.c.h.b16 %v208
    %v913 = vunpack.c.l.b16 %v209
    %v914 = vunpack.c.h.b16 %v209
    %v915 = vunpack.c.l.b16 %v210
    %v916 = vunpack.c.h.b16 %v210
    %v917 = vunpack.c.l.b16 %v211
    %v918 = vunpack.c.h.b16 %v211
    %v919 = vunpack.c.l.b16 %v212
    %v920 = vunpack.c.h.b16 %v212
    %v921 = vunpack.c.l.b16 %v213
    %v922 = vunpack.c.h.b16 %v213
    %v923 = vunpack.c.l.b16 %v214
    %v924 = vunpack.c.h.b16 %v214
    %v925 = vunpack.c.l.b16 %v215
    %v926 = vunpack.c.h.b16 %v215
    %v927 = vunpack.c.l.b16 %v216
    %v928 = vunpack.c.h.b16 %v216
    %v929 = vunpack.c.l.b16 %v217
    %v930 = vunpack.c.h.b16 %v217
    %v931 = vunpack.c.l.b16 %v218
    %v932 = vunpack.c.h.b16 %v218
    %v933 = vunpack.c.l.b16 %v219
    %v934 = vunpack.c.h.b16 %v219
    %v935 = vunpack.c.l.b16 %v220
    %v936 = vunpack.c.h.b16 %v220
    %v937 = vunpack.c.l.b16 %v221
    %v938 = vunpack.c.h.b16 %v221
    %v939 = vunpack.c.l.b16 %v222
    %v940 = vunpack.c.h.b16 %v222
    %v941 = vunpack.c.l.b16 %v223
    %v942 = vunpack.c.h.b16 %v223
    %v943 = vunpack.c.l.b16 %v224
    %v944 = vunpack.c.h.b16 %v224
    %v945 = vunpack.c.l.b16 %v225
    %v946 = vunpack.c.h.b16 %v225
    %v947 = vunpack.c.l.b16 %v226
    %v948 = vunpack.c.h.b16 %v226
    %v949 = vunpack.c.l.b16 %v227
    %v950 = vunpack.c.h.b16 %v227
    %v951 = vunpack.c.l.b16 %v228
    %v952 = vunpack.c.h.b16 %v228
    %v953 = vunpack.c.l.b16 %v229
    %v954 = vunpack.c.h.b16 %v229
    %v955 = vunpack.c.l.b16 %v230
    %v956 = vunpack.c.h.b16 %v230
    %v957 = vunpack.c.l.b16 %v231
    %v958 = vunpack.c.h.b16 %v231
    %v959 = vunpack.c.l.b16 %v232
    %v960 = vunpack.c.h.b16 %v232
    %v961 = vunpack.c.l.b16 %v233
    %v962 = vunpack.c.h.b16 %v233
    %v963 = vunpack.c.l.b16 %v234
    %v964 = vunpack.c.h.b16 %v234
    %v965 = vunpack.c.l.b16 %v235
    %v966 = vunpack.c.h.b16 %v235
    %v967 = vunpack.c.l.b16 %v236
    %v968 = vunpack.c.h.b16 %v236
    %v969 = vunpack.c.l.b16 %v237
    %v970 = vunpack.c.h.b16 %v237
    %v971 = vunpack.c.l.b16 %v238
    %v972 = vunpack.c.h.b16 %v238
    %v973 = vunpack.c.l.b16 %v239
    %v974 = vunpack.c.h.b16 %v239
    %v975 = vunpack.c.l.b16 %v240
    %v976 = vunpack.c.h.b16 %v240
    %v977 = vunpack.c.l.b16 %v241
    %v978 = vunpack.c.h.b16 %v241
    %v979 = vunpack.c.l.b16 %v242
    %v980 = vunpack.c.h.b16 %v242
    %v981 = vunpack.c.l.b16 %v243
    %v982 = vunpack.c.h.b16 %v243
    %v983 = vunpack.c.l.b16 %v244
    %v984 = vunpack.c.h.b16 %v244
    %v985 = vunpack.c.l.b16 %v245
    %v986 = vunpack.c.h.b16 %v245
    %v987 = vunpack.c.l.b16 %v246
    %v988 = vunpack.c.h.b16 %v246
    %v989 = vunpack.c.l.b16 %v247
    %v990 = vunpack.c.h.b16 %v247
    %v991 = vunpack.c.l.b16 %v248
    %v992 = vunpack.c.h.b16 %v248
    %v993 = vunpack.c.l.b16 %v249
    %v994 = vunpack.c.h.b16 %v249
    %v995 = vunpack.c.l.b16 %v250
    %v996 = vunpack.c.h.b16 %v250
    %v997 = vunpack.c.l.b16 %v251
    %v998 = vunpack.c.h.b16 %v251
    %v999 = vunpack.c.l.b16 %v252
    %v1000 = vunpack.c.h.b16 %v252
    %v1001 = vunpack.c.l.b16 %v253
    %v1002 = vunpack.c.h.b16 %v253
    %v1003 = vunpack.c.l.b16 %v254
    %v1004 = vunpack.c.h.b16 %v254
    %v1005 = vunpack.c.l.b16 %v255
    %v1006 = vunpack.c.h.b16 %v255
    %v1007 = vunpack.c.l.b16 %v256
    %v1008 = vunpack.c.h.b16 %v256
    %v1009 = vunpack.c.l.b16 %v257
    %v1010 = vunpack.c.h.b16 %v257
    %v1011 = vunpack.c.l.b16 %v258
    %v1012 = vunpack.c.h.b16 %v258
    %v1013 = vunpack.c.l.b16 %v259
    %v1014 = vunpack.c.h.b16 %v259
    %v1015 = vunpack.c.l.b16 %v260
    %v1016 = vunpack.c.h.b16 %v260
    %v1017 = vunpack.c.l.b16 %v261
    %v1018 = vunpack.c.h.b16 %v261
    %v1019 = vunpack.c.l.b16 %v262
    %v1020 = vunpack.c.h.b16 %v262
    %v1021 = vunpack.c.l.b16 %v263
    %v1022 = vunpack.c.h.b16 %v263
    %v1023 = vunpack.c.l.b16 %v264
    %v1024 = vunpack.c.h.b16 %v264
    %v1025 = vunpack.c.l.b16 %v265
    %v1026 = vunpack.c.h.b16 %v265
    %v1027 = vunpack.c.l.b16 %v266
    %v1028 = vunpack.c.h.b16 %v266
    %v1029 = vunpack.c.l.b16 %v267
    %v1030 = vunpack.c.h.b16 %v267
    %v1031 = vunpack.c.l.b16 %v268
    %v1032 = vunpack.c.h.b16 %v268
    %v1033 = vunpack.c.l.b16 %v269
    %v1034 = vunpack.c.h.b16 %v269
    %v1035 = vunpack.c.l.b16 %v270
    %v1036 = vunpack.c.h.b16 %v270
    %v1037 = vunpack.c.l.b16 %v271
    %v1038 = vunpack.c.h.b16 %v271
    %v1039 = vunpack.c.l.b16 %v272
    %v1040 = vunpack.c.h.b16 %v272
    %v1041 = vunpack.c.l.b16 %v273
    %v1042 = vunpack.c.h.b16 %v273
    %v1043 = vunpack.c.l.b16 %v274
    %v1044 = vunpack.c.h.b16 %v274
    %v1045 = vunpack.c.l.b16 %v275
    %v1046 = vunpack.c.h.b16 %v275
    %v1047 = vunpack.c.l.b16 %v276
    %v1048 = vunpack.c.h.b16 %v276
    %v1049 = vunpack.c.l.b16 %v277
    %v1050 = vunpack.c.h.b16 %v277
    %v1051 = vunpack.c.l.b16 %v278
    %v1052 = vunpack.c.h.b16 %v278
    %v1053 = vunpack.c.l.b16 %v279
    %v1054 = vunpack.c.h.b16 %v279
    %v1055 = vunpack.c.l.b16 %v280
    %v1056 = vunpack.c.h.b16 %v280
    %v1057 = vunpack.c.l.b16 %v281
    %v1058 = vunpack.c.h.b16 %v281
    %v1059 = vunpack.c.l.b16 %v282
    %v1060 = vunpack.c.h.b16 %v282
    %v1061 = vunpack.c.l.b16 %v283
    %v1062 = vunpack.c.h.b16 %v283
    %v1063 = vunpack.c.l.b16 %v284
    %v1064 = vunpack.c.h.b16 %v284
    %v1065 = vunpack.c.l.b16 %v285
    %v1066 = vunpack.c.h.b16 %v285
    %v1067 = vunpack.c.l.b16 %v286
    %v1068 = vunpack.c.h.b16 %v286
    %v1069 = vunpack.c.l.b16 %v287
    %v1070 = vunpack.c.h.b16 %v287
    %v1071 = vunpack.c.l.b16 %v288
    %v1072 = vunpack.c.h.b16 %v288
    %v1073 = vunpack.c.l.b16 %v289
    %v1074 = vunpack.c.h.b16 %v289
    %v1075 = vunpack.c.l.b16 %v290
    %v1076 = vunpack.c.h.b16 %v290
    %v1077 = vunpack.c.l.b16 %v291
    %v1078 = vunpack.c.h.b16 %v291
    %v1079 = vunpack.c.l.b16 %v292
    %v1080 = vunpack.c.h.b16 %v292
    %v1081 = vunpack.c.l.b16 %v293
    %v1082 = vunpack.c.h.b16 %v293
    %v1083 = vunpack.c.l.b16 %v294
    %v1084 = vunpack.c.h.b16 %v294
    %v1085 = vunpack.c.l.b16 %v295
    %v1086 = vunpack.c.h.b16 %v295
    %v1087 = vunpack.c.l.b16 %v296
    %v1088 = vunpack.c.h.b16 %v296
    %v1089 = vunpack.c.l.b16 %v297
    %v1090 = vunpack.c.h.b16 %v297
    %v1091 = vunpack.c.l.b16 %v298
    %v1092 = vunpack.c.h.b16 %v298
    %v1093 = vunpack.c.l.b16 %v299
    %v1094 = vunpack.c.h.b16 %v299
    %v1095 = vunpack.c.l.b16 %v300
    %v1096 = vunpack.c.h.b16 %v300
    %v1097 = vunpack.c.l.b16 %v301
    %v1098 = vunpack.c.h.b16 %v301
    %v1099 = vunpack.c.l.b16 %v302
    %v1100 = vunpack.c.h.b16 %v302
    %v1101 = vunpack.c.l.b16 %v303
    %v1102 = vunpack.c.h.b16 %v303
    %v1103 = vunpack.c.l.b16 %v304
    %v1104 = vunpack.c.h.b16 %v304
    %v1105 = vunpack.c.l.b16 %v305
    %v1106 = vunpack.c.h.b16 %v305
    %v1107 = vunpack.c.l.b16 %v306
    %v1108 = vunpack.c.h.b16 %v306
    %v1109 = vunpack.c.l.b16 %v307
    %v1110 = vunpack.c.h.b16 %v307
    %v1111 = vunpack.c.l.b16 %v308
    %v1112 = vunpack.c.h.b16 %v308
    %v1113 = vunpack.c.l.b16 %v309
    %v1114 = vunpack.c.h.b16 %v309
    %v1115 = vunpack.c.l.b16 %v310
    %v1116 = vunpack.c.h.b16 %v310
    %v1117 = vunpack.c.l.b16 %v311
    %v1118 = vunpack.c.h.b16 %v311
    %v1119 = vunpack.c.l.b16 %v312
    %v1120 = vunpack.c.h.b16 %v312
    %v1121 = vunpack.c.l.b16 %v313
    %v1122 = vunpack.c.h.b16 %v313
    %v1123 = vunpack.c.l.b16 %v314
    %v1124 = vunpack.c.h.b16 %v314
    %v1125 = vpack.c.b16 %v621, %v613
    %v1126 = vpack.c.b16 %v622, %v614
    %v1127 = vpack.c.b16 %v623, %v615
    %v1128 = vpack.c.b16 %v624, %v616
    %v1129 = vpack.c.b16 %v625, %v617
    %v1130 = vpack.c.b16 %v626, %v618
    %v1131 = vpack.c.b16 %v627, %v619
    %v1132 = vpack.c.b16 %v628, %v620
    %v1133 = vpack.c.b16 %v637, %v629
    %v1134 = vpack.c.b16 %v638, %v630
    %v1135 = vpack.c.b16 %v639, %v631
    %v1136 = vpack.c.b16 %v640, %v632
    %v1137 = vpack.c.b16 %v641, %v633
    %v1138 = vpack.c.b16 %v642, %v634
    %v1139 = vpack.c.b16 %v643, %v635
    %v1140 = vpack.c.b16 %v644, %v636
    %v1141 = vpack.c.b16 %v653, %v645
    %v1142 = vpack.c.b16 %v654, %v646
    %v1143 = vpack.c.b16 %v655, %v647
    %v1144 = vpack.c.b16 %v656, %v648
    %v1145 = vpack.c.b16 %v657, %v649
    %v1146 = vpack.c.b16 %v658, %v650
    %v1147 = vpack.c.b16 %v659, %v651
    %v1148 = vpack.c.b16 %v660, %v652
    %v1149 = vpack.c.b16 %v669, %v661
    %v1150 = vpack.c.b16 %v670, %v662
    %v1151 = vpack.c.b16 %v671, %v663
    %v1152 = vpack.c.b16 %v672, %v664
    %v1153 = vpack.c.b16 %v673, %v665
    %v1154 = vpack.c.b16 %v674, %v666
    %v1155 = vpack.c.b16 %v675, %v667
    %v1156 = vpack.c.b16 %v676, %v668
    %v1157 = vpack.c.b16 %v685, %v677
    %v1158 = vpack.c.b16 %v686, %v678
    %v1159 = vpack.c.b16 %v687, %v679
    %v1160 = vpack.c.b16 %v688, %v680
    %v1161 = vpack.c.b16 %v689, %v681
    %v1162 = vpack.c.b16 %v690, %v682
    %v1163 = vpack.c.b16 %v691, %v683
    %v1164 = vpack.c.b16 %v692, %v684
    %v1165 = vpack.c.b16 %v701, %v693
    %v1166 = vpack.c.b16 %v702, %v694
    %v1167 = vpack.c.b16 %v703, %v695
    %v1168 = vpack.c.b16 %v704, %v696
    %v1169 = vpack.c.b16 %v705, %v697
    %v1170 = vpack.c.b16 %v706, %v698
    %v1171 = vpack.c.b16 %v707, %v699
    %v1172 = vpack.c.b16 %v708, %v700
    %v1173 = vpack.c.b16 %v717, %v709
    %v1174 = vpack.c.b16 %v718, %v710
    %v1175 = vpack.c.b16 %v719, %v711
    %v1176 = vpack.c.b16 %v720, %v712
    %v1177 = vpack.c.b16 %v721, %v713
    %v1178 = vpack.c.b16 %v722, %v714
    %v1179 = vpack.c.b16 %v723, %v715
    %v1180 = vpack.c.b16 %v724, %v716
    %v1181 = vpack.c.b16 %v733, %v725
    %v1182 = vpack.c.b16 %v734, %v726
    %v1183 = vpack.c.b16 %v735, %v727
    %v1184 = vpack.c.b16 %v736, %v728
    %v1185 = vpack.c.b16 %v737, %v729
    %v1186 = vpack.c.b16 %v738, %v730
    %v1187 = vpack.c.b16 %v739, %v731
    %v1188 = vpack.c.b16 %v740, %v732
    %v1189 = vpack.c.b16 %v749, %v741
    %v1190 = vpack.c.b16 %v750, %v742
    %v1191 = vpack.c.b16 %v751, %v743
    %v1192 = vpack.c.b16 %v752, %v744
    %v1193 = vpack.c.b16 %v753, %v745
    %v1194 = vpack.c.b16 %v754, %v746
    %v1195 = vpack.c.b16 %v755, %v747
    %v1196 = vpack.c.b16 %v756, %v748
    %v1197 = vpack.c.b16 %v765, %v757
    %v1198 = vpack.c.b16 %v766, %v758
    %v1199 = vpack.c.b16 %v767, %v759
    %v1200 = vpack.c.b16 %v768, %v760
    %v1201 = vpack.c.b16 %v769, %v761
    %v1202 = vpack.c.b16 %v770, %v762
    %v1203 = vpack.c.b16 %v771, %v763
    %v1204 = vpack.c.b16 %v772, %v764
    %v1205 = vpack.c.b16 %v781, %v773
    %v1206 = vpack.c.b16 %v782, %v774
    %v1207 = vpack.c.b16 %v783, %v775
    %v1208 = vpack.c.b16 %v784, %v776
    %v1209 = vpack.c.b16 %v785, %v777
    %v1210 = vpack.c.b16 %v786, %v778
    %v1211 = vpack.c.b16 %v787, %v779
    %v1212 = vpack.c.b16 %v788, %v780
    %v1213 = vpack.c.b16 %v797, %v789
    %v1214 = vpack.c.b16 %v798, %v790
    %v1215 = vpack.c.b16 %v799, %v791
    %v1216 = vpack.c.b16 %v800, %v792
    %v1217 = vpack.c.b16 %v801, %v793
    %v1218 = vpack.c.b16 %v802, %v794
    %v1219 = vpack.c.b16 %v803, %v795
    %v1220 = vpack.c.b16 %v804, %v796
    %v1221 = vpack.c.b16 %v813, %v805
    %v1222 = vpack.c.b16 %v814, %v806
    %v1223 = vpack.c.b16 %v815, %v807
    %v1224 = vpack.c.b16 %v816, %v808
    %v1225 = vpack.c.b16 %v817, %v809
    %v1226 = vpack.c.b16 %v818, %v810
    %v1227 = vpack.c.b16 %v819, %v811
    %v1228 = vpack.c.b16 %v820, %v812
    %v1229 = vpack.c.b16 %v829, %v821
    %v1230 = vpack.c.b16 %v830, %v822
    %v1231 = vpack.c.b16 %v831, %v823
    %v1232 = vpack.c.b16 %v832, %v824
    %v1233 = vpack.c.b16 %v833, %v825
    %v1234 = vpack.c.b16 %v834, %v826
    %v1235 = vpack.c.b16 %v835, %v827
    %v1236 = vpack.c.b16 %v836, %v828
    %v1237 = vpack.c.b16 %v845, %v837
    %v1238 = vpack.c.b16 %v846, %v838
    %v1239 = vpack.c.b16 %v847, %v839
    %v1240 = vpack.c.b16 %v848, %v840
    %v1241 = vpack.c.b16 %v849, %v841
    %v1242 = vpack.c.b16 %v850, %v842
    %v1243 = vpack.c.b16 %v851, %v843
    %v1244 = vpack.c.b16 %v852, %v844
    %v1245 = vpack.c.b16 %v861, %v853
    %v1246 = vpack.c.b16 %v862, %v854
    %v1247 = vpack.c.b16 %v863, %v855
    %v1248 = vpack.c.b16 %v864, %v856
    %v1249 = vpack.c.b16 %v865, %v857
    %v1250 = vpack.c.b16 %v866, %v858
    %v1251 = vpack.c.b16 %v867, %v859
    %v1252 = vpack.c.b16 %v868, %v860
    %v1253 = vpack.c.b16 %v877, %v869
    %v1254 = vpack.c.b16 %v878, %v870
    %v1255 = vpack.c.b16 %v879, %v871
    %v1256 = vpack.c.b16 %v880, %v872
    %v1257 = vpack.c.b16 %v881, %v873
    %v1258 = vpack.c.b16 %v882, %v874
    %v1259 = vpack.c.b16 %v883, %v875
    %v1260 = vpack.c.b16 %v884, %v876
    %v1261 = vpack.c.b16 %v893, %v885
    %v1262 = vpack.c.b16 %v894, %v886
    %v1263 = vpack.c.b16 %v895, %v887
    %v1264 = vpack.c.b16 %v896, %v888
    %v1265 = vpack.c.b16 %v897, %v889
    %v1266 = vpack.c.b16 %v898, %v890
    %v1267 = vpack.c.b16 %v899, %v891
    %v1268 = vpack.c.b16 %v900, %v892
    %v1269 = vpack.c.b16 %v909, %v901
    %v1270 = vpack.c.b16 %v910, %v902
    %v1271 = vpack.c.b16 %v911, %v903
    %v1272 = vpack.c.b16 %v912, %v904
    %v1273 = vpack.c.b16 %v913, %v905
    %v1274 = vpack.c.b16 %v914, %v906
    %v1275 = vpack.c.b16 %v915, %v907
    %v1276 = vpack.c.b16 %v916, %v908
    %v1277 = vpack.c.b16 %v925, %v917
    %v1278 = vpack.c.b16 %v926, %v918
    %v1279 = vpack.c.b16 %v927, %v919
    %v1280 = vpack.c.b16 %v928, %v920
    %v1281 = vpack.c.b16 %v929, %v921
    %v1282 = vpack.c.b16 %v930, %v922
    %v1283 = vpack.c.b16 %v931, %v923
    %v1284 = vpack.c.b16 %v932, %v924
    %v1285 = vpack.c.b16 %v941, %v933
    %v1286 = vpack.c.b16 %v942, %v934
    %v1287 = vpack.c.b16 %v943, %v935
    %v1288 = vpack.c.b16 %v944, %v936
    %v1289 = vpack.c.b16 %v945, %v937
    %v1290 = vpack.c.b16 %v946, %v938
    %v1291 = vpack.c.b16 %v947, %v939
    %v1292 = vpack.c.b16 %v948, %v940
    %v1293 = vpack.c.b16 %v957, %v949
    %v1294 = vpack.c.b16 %v958, %v950
    %v1295 = vpack.c.b16 %v959, %v951
    %v1296 = vpack.c.b16 %v960, %v952
    %v1297 = vpack.c.b16 %v961, %v953
    %v1298 = vpack.c.b16 %v962, %v954
    %v1299 = vpack.c.b16 %v963, %v955
    %v1300 = vpack.c.b16 %v964, %v956
    %v1301 = vpack.c.b16 %v973, %v965
    %v1302 = vpack.c.b16 %v974, %v966
    %v1303 = vpack.c.b16 %v975, %v967
    %v1304 = vpack.c.b16 %v976, %v968
    %v1305 = vpack.c.b16 %v977, %v969
    %v1306 = vpack.c.b16 %v978, %v970
    %v1307 = vpack.c.b16 %v979, %v971
    %v1308 = vpack.c.b16 %v980, %v972
    %v1309 = vpack.c.b16 %v989, %v981
    %v1310 = vpack.c.b16 %v990, %v982
    %v1311 = vpack.c.b16 %v991, %v983
    %v1312 = vpack.c.b16 %v992, %v984
    %v1313 = vpack.c.b16 %v993, %v985
    %v1314 = vpack.c.b16 %v994, %v986
    %v1315 = vpack.c.b16 %v995, %v987
    %v1316 = vpack.c.b16 %v996, %v988
    %v1317 = vpack.c.b16 %v1005, %v997
    %v1318 = vpack.c.b16 %v1006, %v998
    %v1319 = vpack.c.b16 %v1007, %v999
    %v1320 = vpack.c.b16 %v1008, %v1000
    %v1321 = vpack.c.b16 %v1009, %v1001
    %v1322 = vpack.c.b16 %v1010, %v1002
    %v1323 = vpack.c.b16 %v1011, %v1003
    %v1324 = vpack.c.b16 %v1012, %v1004
    %v1325 = vpack.c.b16 %v1021, %v1013
    %v1326 = vpack.c.b16 %v1022, %v1014
    %v1327 = vpack.c.b16 %v1023, %v1015
    %v1328 = vpack.c.b16 %v1024, %v1016
    %v1329 = vpack.c.b16 %v1025, %v1017
    %v1330 = vpack.c.b16 %v1026, %v1018
    %v1331 = vpack.c.b16 %v1027, %v1019
    %v1332 = vpack.c.b16 %v1028, %v1020
    %v1333 = vpack.c.b16 %v1037, %v1029
    %v1334 = vpack.c.b16 %v1038, %v1030
    %v1335 = vpack.c.b16 %v1039, %v1031
    %v1336 = vpack.c.b16 %v1040, %v1032
    %v1337 = vpack.c.b16 %v1041, %v1033
    %v1338 = vpack.c.b16 %v1042, %v1034
    %v1339 = vpack.c.b16 %v1043, %v1035
    %v1340 = vpack.c.b16 %v1044, %v1036
    %v1341 = vpack.c.b16 %v1053, %v1045
    %v1342 = vpack.c.b16 %v1054, %v1046
    %v1343 = vpack.c.b16 %v1055, %v1047
    %v1344 = vpack.c.b16 %v1056, %v1048
    %v1345 = vpack.c.b16 %v1057, %v1049
    %v1346 = vpack.c.b16 %v1058, %v1050
    %v1347 = vpack.c.b16 %v1059, %v1051
    %v1348 = vpack.c.b16 %v1060, %v1052
    %v1349 = vpack.c.b16 %v1069, %v1061
    %v1350 = vpack.c.b16 %v1070, %v1062
    %v1351 = vpack.c.b16 %v1071, %v1063
    %v1352 = vpack.c.b16 %v1072, %v1064
    %v1353 = vpack.c.b16 %v1073, %v1065
    %v1354 = vpack.c.b16 %v1074, %v1066
    %v1355 = vpack.c.b16 %v1075, %v1067
    %v1356 = vpack.c.b16 %v1076, %v1068
    %v1357 = vpack.c.b16 %v1085, %v1077
    %v1358 = vpack.c.b16 %v1086, %v1078
    %v1359 = vpack.c.b16 %v1087, %v1079
    %v1360 = vpack.c.b16 %v1088, %v1080
    %v1361 = vpack.c.b16 %v1089, %v1081
    %v1362 = vpack.c.b16 %v1090, %v1082
    %v1363 = vpack.c.b16 %v1091, %v1083
    %v1364 = vpack.c.b16 %v1092, %v1084
    %v1365 = vpack.c.b16 %v1101, %v1093
    %v1366 = vpack.c.b16 %v1102, %v1094
    %v1367 = vpack.c.b16 %v1103, %v1095
    %v1368 = vpack.c.b16 %v1104, %v1096
    %v1369 = vpack.c.b16 %v1105, %v1097
    %v1370 = vpack.c.b16 %v1106, %v1098
    %v1371 = vpack.c.b16 %v1107, %v1099
    %v1372 = vpack.c.b16 %v1108, %v1100
    %v1373 = vpack.c.b16 %v1117, %v1109
    %v1374 = vpack.c.b16 %v1118, %v1110
    %v1375 = vpack.c.b16 %v1119, %v1111
    %v1376 = vpack.c.b16 %v1120, %v1112
    %v1377 = vpack.c.b16 %v1121, %v1113
    %v1378 = vpack.c.b16 %v1122, %v1114
    %v1379 = vpack.c.b16 %v1123, %v1115
    %v1380 = vpack.c.b16 %v1124, %v1116
    %1637 = vmatprep.subr.bf16.mxu0 %v1126
    %1638 = vmatpush1.bf16.msra.mxu0 %v1125
    %1639 = vmatprep.subr.bf16.mxu0 %v1134
    %1640 = vmatpush1.bf16.msra.mxu0 %v1133
    %1641 = vmatprep.subr.bf16.mxu0 %v1142
    %1642 = vmatpush1.bf16.msra.mxu0 %v1141
    %1643 = vmatprep.subr.bf16.mxu0 %v1150
    %1644 = vmatpush1.bf16.msra.mxu0 %v1149
    %1645 = vmatprep.subr.bf16.mxu0 %v1158
    %1646 = vmatpush1.bf16.msra.mxu0 %v1157
    %1647 = vmatprep.subr.bf16.mxu0 %v1166
    %1648 = vmatpush1.bf16.msra.mxu0 %v1165
    %1649 = vmatprep.subr.bf16.mxu0 %v1174
    %1650 = vmatpush1.bf16.msra.mxu0 %v1173
    %1651 = vmatprep.subr.bf16.mxu0 %v1182
    %1652 = vmatpush1.bf16.msra.mxu0 %v1181
    %1653 = vmatprep.subr.bf16.mxu0 %v1190
    %1654 = vmatpush1.bf16.msra.mxu0 %v1189
    %1655 = vmatprep.subr.bf16.mxu0 %v1198
    %1656 = vmatpush1.bf16.msra.mxu0 %v1197
    %1657 = vmatprep.subr.bf16.mxu0 %v1206
    %1658 = vmatpush1.bf16.msra.mxu0 %v1205
    %1659 = vmatprep.subr.bf16.mxu0 %v1214
    %1660 = vmatpush1.bf16.msra.mxu0 %v1213
    %1661 = vmatprep.subr.bf16.mxu0 %v1222
    %1662 = vmatpush1.bf16.msra.mxu0 %v1221
    %1663 = vmatprep.subr.bf16.mxu0 %v1230
    %1664 = vmatpush1.bf16.msra.mxu0 %v1229
    %1665 = vmatprep.subr.bf16.mxu0 %v1238
    %1666 = vmatpush1.bf16.msra.mxu0 %v1237
    %1667 = vmatprep.subr.bf16.mxu0 %v1246
    %1668 = vmatpush1.bf16.msra.mxu0 %v1245
    %1669 = vmatprep.mubr.bf16.mxu0 %v56
    %1670 = vmatmul.mubr.bf16.gmra.mrb[0].mxu0 %v55
    %v1671 = vpop.f32.mrb[0].mxu0
    %v1672 = vadd.f32 %v320, %v1671
    %v1673 = vpop.f32.mrb[0].mxu0
    %v1674 = vadd.f32 %v324, %v1673
    %v1675 = vpop.f32.mrb[0].mxu0
    %v1676 = vpop.f32.mrb[0].mxu0
    %1677 = vdwg.mxu0
    %1678 = vmatprep.subr.bf16.mxu0 %v1254
    %1679 = vmatpush1.bf16.msra.mxu0 %v1253
    %1680 = vmatprep.subr.bf16.mxu0 %v1262
    %1681 = vmatpush1.bf16.msra.mxu0 %v1261
    %1682 = vmatprep.subr.bf16.mxu0 %v1270
    %1683 = vmatpush1.bf16.msra.mxu0 %v1269
    %1684 = vmatprep.subr.bf16.mxu0 %v1278
    %1685 = vmatpush1.bf16.msra.mxu0 %v1277
    %1686 = vmatprep.subr.bf16.mxu0 %v1286
    %1687 = vmatpush1.bf16.msra.mxu0 %v1285
    %1688 = vmatprep.subr.bf16.mxu0 %v1294
    %1689 = vmatpush1.bf16.msra.mxu0 %v1293
    %1690 = vmatprep.subr.bf16.mxu0 %v1302
    %1691 = vmatpush1.bf16.msra.mxu0 %v1301
    %1692 = vmatprep.subr.bf16.mxu0 %v1310
    %1693 = vmatpush1.bf16.msra.mxu0 %v1309
    %1694 = vmatprep.subr.bf16.mxu0 %v1318
    %1695 = vmatpush1.bf16.msra.mxu0 %v1317
    %1696 = vmatprep.subr.bf16.mxu0 %v1326
    %1697 = vmatpush1.bf16.msra.mxu0 %v1325
    %1698 = vmatprep.subr.bf16.mxu0 %v1334
    %1699 = vmatpush1.bf16.msra.mxu0 %v1333
    %1700 = vmatprep.subr.bf16.mxu0 %v1342
    %1701 = vmatpush1.bf16.msra.mxu0 %v1341
    %1702 = vmatprep.subr.bf16.mxu0 %v1350
    %1703 = vmatpush1.bf16.msra.mxu0 %v1349
    %1704 = vmatprep.subr.bf16.mxu0 %v1358
    %1705 = vmatpush1.bf16.msra.mxu0 %v1357
    %1706 = vmatprep.subr.bf16.mxu0 %v1366
    %1707 = vmatpush1.bf16.msra.mxu0 %v1365
    %1708 = vmatprep.subr.bf16.mxu0 %v1374
    %1709 = vmatpush1.bf16.msra.mxu0 %v1373
    %1710 = vmatprep.mubr.bf16.mxu0 %v58
    %1711 = vmatmul.mubr.bf16.gmra.mrb[0].mxu0 %v57
    %v1712 = vpop.f32.mrb[0].mxu0
    %v1713 = vadd.f32 %v1672, %v1712
    %v1714 = vpop.f32.mrb[0].mxu0
    %v1715 = vadd.f32 %v1674, %v1714
    %v1716 = vpop.f32.mrb[0].mxu0
    %v1717 = vpop.f32.mrb[0].mxu0
    %1718 = vdwg.mxu0
    %1719 = vmatprep.subr.bf16.mxu0 %v1128
    %1720 = vmatpush1.bf16.msra.mxu0 %v1127
    %1721 = vmatprep.subr.bf16.mxu0 %v1136
    %1722 = vmatpush1.bf16.msra.mxu0 %v1135
    %1723 = vmatprep.subr.bf16.mxu0 %v1144
    %1724 = vmatpush1.bf16.msra.mxu0 %v1143
    %1725 = vmatprep.subr.bf16.mxu0 %v1152
    %1726 = vmatpush1.bf16.msra.mxu0 %v1151
    %1727 = vmatprep.subr.bf16.mxu0 %v1160
    %1728 = vmatpush1.bf16.msra.mxu0 %v1159
    %1729 = vmatprep.subr.bf16.mxu0 %v1168
    %1730 = vmatpush1.bf16.msra.mxu0 %v1167
    %1731 = vmatprep.subr.bf16.mxu0 %v1176
    %1732 = vmatpush1.bf16.msra.mxu0 %v1175
    %1733 = vmatprep.subr.bf16.mxu0 %v1184
    %1734 = vmatpush1.bf16.msra.mxu0 %v1183
    %1735 = vmatprep.subr.bf16.mxu0 %v1192
    %1736 = vmatpush1.bf16.msra.mxu0 %v1191
    %1737 = vmatprep.subr.bf16.mxu0 %v1200
    %1738 = vmatpush1.bf16.msra.mxu0 %v1199
    %1739 = vmatprep.subr.bf16.mxu0 %v1208
    %1740 = vmatpush1.bf16.msra.mxu0 %v1207
    %1741 = vmatprep.subr.bf16.mxu0 %v1216
    %1742 = vmatpush1.bf16.msra.mxu0 %v1215
    %1743 = vmatprep.subr.bf16.mxu0 %v1224
    %1744 = vmatpush1.bf16.msra.mxu0 %v1223
    %1745 = vmatprep.subr.bf16.mxu0 %v1232
    %1746 = vmatpush1.bf16.msra.mxu0 %v1231
    %1747 = vmatprep.subr.bf16.mxu0 %v1240
    %1748 = vmatpush1.bf16.msra.mxu0 %v1239
    %1749 = vmatprep.subr.bf16.mxu0 %v1248
    %1750 = vmatpush1.bf16.msra.mxu0 %v1247
    %1751 = vmatprep.mubr.bf16.mxu0 %v56
    %1752 = vmatmul.mubr.bf16.gmra.mrb[0].mxu0 %v55
    %v1753 = vpop.f32.mrb[0].mxu0
    %v1754 = vadd.f32 %v328, %v1753
    %v1755 = vpop.f32.mrb[0].mxu0
    %v1756 = vadd.f32 %v332, %v1755
    %v1757 = vpop.f32.mrb[0].mxu0
    %v1758 = vpop.f32.mrb[0].mxu0
    %1759 = vdwg.mxu0
    %1760 = vmatprep.subr.bf16.mxu0 %v1256
    %1761 = vmatpush1.bf16.msra.mxu0 %v1255
    %1762 = vmatprep.subr.bf16.mxu0 %v1264
    %1763 = vmatpush1.bf16.msra.mxu0 %v1263
    %1764 = vmatprep.subr.bf16.mxu0 %v1272
    %1765 = vmatpush1.bf16.msra.mxu0 %v1271
    %1766 = vmatprep.subr.bf16.mxu0 %v1280
    %1767 = vmatpush1.bf16.msra.mxu0 %v1279
    %1768 = vmatprep.subr.bf16.mxu0 %v1288
    %1769 = vmatpush1.bf16.msra.mxu0 %v1287
    %1770 = vmatprep.subr.bf16.mxu0 %v1296
    %1771 = vmatpush1.bf16.msra.mxu0 %v1295
    %1772 = vmatprep.subr.bf16.mxu0 %v1304
    %1773 = vmatpush1.bf16.msra.mxu0 %v1303
    %1774 = vmatprep.subr.bf16.mxu0 %v1312
    %1775 = vmatpush1.bf16.msra.mxu0 %v1311
    %1776 = vmatprep.subr.bf16.mxu0 %v1320
    %1777 = vmatpush1.bf16.msra.mxu0 %v1319
    %1778 = vmatprep.subr.bf16.mxu0 %v1328
    %1779 = vmatpush1.bf16.msra.mxu0 %v1327
    %1780 = vmatprep.subr.bf16.mxu0 %v1336
    %1781 = vmatpush1.bf16.msra.mxu0 %v1335
    %1782 = vmatprep.subr.bf16.mxu0 %v1344
    %1783 = vmatpush1.bf16.msra.mxu0 %v1343
    %1784 = vmatprep.subr.bf16.mxu0 %v1352
    %1785 = vmatpush1.bf16.msra.mxu0 %v1351
    %1786 = vmatprep.subr.bf16.mxu0 %v1360
    %1787 = vmatpush1.bf16.msra.mxu0 %v1359
    %1788 = vmatprep.subr.bf16.mxu0 %v1368
    %1789 = vmatpush1.bf16.msra.mxu0 %v1367
    %1790 = vmatprep.subr.bf16.mxu0 %v1376
    %1791 = vmatpush1.bf16.msra.mxu0 %v1375
    %1792 = vmatprep.mubr.bf16.mxu0 %v58
    %1793 = vmatmul.mubr.bf16.gmra.mrb[0].mxu0 %v57
    %v1794 = vpop.f32.mrb[0].mxu0
    %v1795 = vadd.f32 %v1754, %v1794
    %v1796 = vpop.f32.mrb[0].mxu0
    %v1797 = vadd.f32 %v1756, %v1796
    %v1798 = vpop.f32.mrb[0].mxu0
    %v1799 = vpop.f32.mrb[0].mxu0
    %1800 = vdwg.mxu0
    %1801 = vmatprep.subr.bf16.mxu0 %v1130
    %1802 = vmatpush1.bf16.msra.mxu0 %v1129
    %1803 = vmatprep.subr.bf16.mxu0 %v1138
    %1804 = vmatpush1.bf16.msra.mxu0 %v1137
    %1805 = vmatprep.subr.bf16.mxu0 %v1146
    %1806 = vmatpush1.bf16.msra.mxu0 %v1145
    %1807 = vmatprep.subr.bf16.mxu0 %v1154
    %1808 = vmatpush1.bf16.msra.mxu0 %v1153
    %1809 = vmatprep.subr.bf16.mxu0 %v1162
    %1810 = vmatpush1.bf16.msra.mxu0 %v1161
    %1811 = vmatprep.subr.bf16.mxu0 %v1170
    %1812 = vmatpush1.bf16.msra.mxu0 %v1169
    %1813 = vmatprep.subr.bf16.mxu0 %v1178
    %1814 = vmatpush1.bf16.msra.mxu0 %v1177
    %1815 = vmatprep.subr.bf16.mxu0 %v1186
    %1816 = vmatpush1.bf16.msra.mxu0 %v1185
    %1817 = vmatprep.subr.bf16.mxu0 %v1194
    %1818 = vmatpush1.bf16.msra.mxu0 %v1193
    %1819 = vmatprep.subr.bf16.mxu0 %v1202
    %1820 = vmatpush1.bf16.msra.mxu0 %v1201
    %1821 = vmatprep.subr.bf16.mxu0 %v1210
    %1822 = vmatpush1.bf16.msra.mxu0 %v1209
    %1823 = vmatprep.subr.bf16.mxu0 %v1218
    %1824 = vmatpush1.bf16.msra.mxu0 %v1217
    %1825 = vmatprep.subr.bf16.mxu0 %v1226
    %1826 = vmatpush1.bf16.msra.mxu0 %v1225
    %1827 = vmatprep.subr.bf16.mxu0 %v1234
    %1828 = vmatpush1.bf16.msra.mxu0 %v1233
    %1829 = vmatprep.subr.bf16.mxu0 %v1242
    %1830 = vmatpush1.bf16.msra.mxu0 %v1241
    %1831 = vmatprep.subr.bf16.mxu0 %v1250
    %1832 = vmatpush1.bf16.msra.mxu0 %v1249
    %1833 = vmatprep.mubr.bf16.mxu0 %v56
    %1834 = vmatmul.mubr.bf16.gmra.mrb[0].mxu0 %v55
    %v1835 = vpop.f32.mrb[0].mxu0
    %v1836 = vadd.f32 %v336, %v1835
    %v1837 = vpop.f32.mrb[0].mxu0
    %v1838 = vadd.f32 %v340, %v1837
    %v1839 = vpop.f32.mrb[0].mxu0
    %v1840 = vpop.f32.mrb[0].mxu0
    %1841 = vdwg.mxu0
    %1842 = vmatprep.subr.bf16.mxu0 %v1258
    %1843 = vmatpush1.bf16.msra.mxu0 %v1257
    %1844 = vmatprep.subr.bf16.mxu0 %v1266
    %1845 = vmatpush1.bf16.msra.mxu0 %v1265
    %1846 = vmatprep.subr.bf16.mxu0 %v1274
    %1847 = vmatpush1.bf16.msra.mxu0 %v1273
    %1848 = vmatprep.subr.bf16.mxu0 %v1282
    %1849 = vmatpush1.bf16.msra.mxu0 %v1281
    %1850 = vmatprep.subr.bf16.mxu0 %v1290
    %1851 = vmatpush1.bf16.msra.mxu0 %v1289
    %1852 = vmatprep.subr.bf16.mxu0 %v1298
    %1853 = vmatpush1.bf16.msra.mxu0 %v1297
    %1854 = vmatprep.subr.bf16.mxu0 %v1306
    %1855 = vmatpush1.bf16.msra.mxu0 %v1305
    %1856 = vmatprep.subr.bf16.mxu0 %v1314
    %1857 = vmatpush1.bf16.msra.mxu0 %v1313
    %1858 = vmatprep.subr.bf16.mxu0 %v1322
    %1859 = vmatpush1.bf16.msra.mxu0 %v1321
    %1860 = vmatprep.subr.bf16.mxu0 %v1330
    %1861 = vmatpush1.bf16.msra.mxu0 %v1329
    %1862 = vmatprep.subr.bf16.mxu0 %v1338
    %1863 = vmatpush1.bf16.msra.mxu0 %v1337
    %1864 = vmatprep.subr.bf16.mxu0 %v1346
    %1865 = vmatpush1.bf16.msra.mxu0 %v1345
    %1866 = vmatprep.subr.bf16.mxu0 %v1354
    %1867 = vmatpush1.bf16.msra.mxu0 %v1353
    %1868 = vmatprep.subr.bf16.mxu0 %v1362
    %1869 = vmatpush1.bf16.msra.mxu0 %v1361
    %1870 = vmatprep.subr.bf16.mxu0 %v1370
    %1871 = vmatpush1.bf16.msra.mxu0 %v1369
    %1872 = vmatprep.subr.bf16.mxu0 %v1378
    %1873 = vmatpush1.bf16.msra.mxu0 %v1377
    %1874 = vmatprep.mubr.bf16.mxu0 %v58
    %1875 = vmatmul.mubr.bf16.gmra.mrb[0].mxu0 %v57
    %v1876 = vpop.f32.mrb[0].mxu0
    %v1877 = vadd.f32 %v1836, %v1876
    %v1878 = vpop.f32.mrb[0].mxu0
    %v1879 = vadd.f32 %v1838, %v1878
    %v1880 = vpop.f32.mrb[0].mxu0
    %v1881 = vpop.f32.mrb[0].mxu0
    %1882 = vdwg.mxu0
    %1883 = vmatprep.subr.bf16.mxu0 %v1132
    %1884 = vmatpush1.bf16.msra.mxu0 %v1131
    %1885 = vmatprep.subr.bf16.mxu0 %v1140
    %1886 = vmatpush1.bf16.msra.mxu0 %v1139
    %1887 = vmatprep.subr.bf16.mxu0 %v1148
    %1888 = vmatpush1.bf16.msra.mxu0 %v1147
    %1889 = vmatprep.subr.bf16.mxu0 %v1156
    %1890 = vmatpush1.bf16.msra.mxu0 %v1155
    %1891 = vmatprep.subr.bf16.mxu0 %v1164
    %1892 = vmatpush1.bf16.msra.mxu0 %v1163
    %1893 = vmatprep.subr.bf16.mxu0 %v1172
    %1894 = vmatpush1.bf16.msra.mxu0 %v1171
    %1895 = vmatprep.subr.bf16.mxu0 %v1180
    %1896 = vmatpush1.bf16.msra.mxu0 %v1179
    %1897 = vmatprep.subr.bf16.mxu0 %v1188
    %1898 = vmatpush1.bf16.msra.mxu0 %v1187
    %1899 = vmatprep.subr.bf16.mxu0 %v1196
    %1900 = vmatpush1.bf16.msra.mxu0 %v1195
    %1901 = vmatprep.subr.bf16.mxu0 %v1204
    %1902 = vmatpush1.bf16.msra.mxu0 %v1203
    %1903 = vmatprep.subr.bf16.mxu0 %v1212
    %1904 = vmatpush1.bf16.msra.mxu0 %v1211
    %1905 = vmatprep.subr.bf16.mxu0 %v1220
    %1906 = vmatpush1.bf16.msra.mxu0 %v1219
    %1907 = vmatprep.subr.bf16.mxu0 %v1228
    %1908 = vmatpush1.bf16.msra.mxu0 %v1227
    %1909 = vmatprep.subr.bf16.mxu0 %v1236
    %1910 = vmatpush1.bf16.msra.mxu0 %v1235
    %1911 = vmatprep.subr.bf16.mxu0 %v1244
    %1912 = vmatpush1.bf16.msra.mxu0 %v1243
    %1913 = vmatprep.subr.bf16.mxu0 %v1252
    %1914 = vmatpush1.bf16.msra.mxu0 %v1251
    %1915 = vmatprep.mubr.bf16.mxu0 %v56
    %1916 = vmatmul.mubr.bf16.gmra.mrb[0].mxu0 %v55
    %v1917 = vpop.f32.mrb[0].mxu0
    %v1918 = vadd.f32 %v344, %v1917
    %v1919 = vpop.f32.mrb[0].mxu0
    %v1920 = vadd.f32 %v348, %v1919
    %v1921 = vpop.f32.mrb[0].mxu0
    %v1922 = vpop.f32.mrb[0].mxu0
    %1923 = vdwg.mxu0
    %1924 = vmatprep.subr.bf16.mxu0 %v1260
    %1925 = vmatpush1.bf16.msra.mxu0 %v1259
    %1926 = vmatprep.subr.bf16.mxu0 %v1268
    %1927 = vmatpush1.bf16.msra.mxu0 %v1267
    %1928 = vmatprep.subr.bf16.mxu0 %v1276
    %1929 = vmatpush1.bf16.msra.mxu0 %v1275
    %1930 = vmatprep.subr.bf16.mxu0 %v1284
    %1931 = vmatpush1.bf16.msra.mxu0 %v1283
    %1932 = vmatprep.subr.bf16.mxu0 %v1292
    %1933 = vmatpush1.bf16.msra.mxu0 %v1291
    %1934 = vmatprep.subr.bf16.mxu0 %v1300
    %1935 = vmatpush1.bf16.msra.mxu0 %v1299
    %1936 = vmatprep.subr.bf16.mxu0 %v1308
    %1937 = vmatpush1.bf16.msra.mxu0 %v1307
    %1938 = vmatprep.subr.bf16.mxu0 %v1316
    %1939 = vmatpush1.bf16.msra.mxu0 %v1315
    %1940 = vmatprep.subr.bf16.mxu0 %v1324
    %1941 = vmatpush1.bf16.msra.mxu0 %v1323
    %1942 = vmatprep.subr.bf16.mxu0 %v1332
    %1943 = vmatpush1.bf16.msra.mxu0 %v1331
    %1944 = vmatprep.subr.bf16.mxu0 %v1340
    %1945 = vmatpush1.bf16.msra.mxu0 %v1339
    %1946 = vmatprep.subr.bf16.mxu0 %v1348
    %1947 = vmatpush1.bf16.msra.mxu0 %v1347
    %1948 = vmatprep.subr.bf16.mxu0 %v1356
    %1949 = vmatpush1.bf16.msra.mxu0 %v1355
    %1950 = vmatprep.subr.bf16.mxu0 %v1364
    %1951 = vmatpush1.bf16.msra.mxu0 %v1363
    %1952 = vmatprep.subr.bf16.mxu0 %v1372
    %1953 = vmatpush1.bf16.msra.mxu0 %v1371
    %1954 = vmatprep.subr.bf16.mxu0 %v1380
    %1955 = vmatpush1.bf16.msra.mxu0 %v1379
    %1956 = vmatprep.mubr.bf16.mxu0 %v58
    %1957 = vmatmul.mubr.bf16.gmra.mrb[0].mxu0 %v57
    %v1958 = vpop.f32.mrb[0].mxu0
    %v1959 = vadd.f32 %v1918, %v1958
    %v1960 = vpop.f32.mrb[0].mxu0
    %v1961 = vadd.f32 %v1920, %v1960
    %v1962 = vpop.f32.mrb[0].mxu0
    %v1963 = vpop.f32.mrb[0].mxu0
    %1964 = vdwg.mxu0
    %vm1965 = vcmp.ge.f32.partialorder %v1713, 0.0
    %vm1966 = vcmp.ge.f32.partialorder %v1715, 0.0
    %vm1967 = vcmp.ge.f32.partialorder %v1795, 0.0
    %vm1968 = vcmp.ge.f32.partialorder %v1797, 0.0
    %vm1969 = vcmp.ge.f32.partialorder %v1877, 0.0
    %vm1970 = vcmp.ge.f32.partialorder %v1879, 0.0
    %vm1971 = vcmp.ge.f32.partialorder %v1959, 0.0
    %vm1972 = vcmp.ge.f32.partialorder %v1961, 0.0
    %v1973 = vmul.f32 %v1713, 0.01
    %v1974 = vmul.f32 %v1715, 0.01
    %v1975 = vmul.f32 %v1795, 0.01
    %v1976 = vmul.f32 %v1797, 0.01
    %v1977 = vmul.f32 %v1877, 0.01
    %v1978 = vmul.f32 %v1879, 0.01
    %v1979 = vmul.f32 %v1959, 0.01
    %v1980 = vmul.f32 %v1961, 0.01
    %v1981 = vsel %vm1965, %v1713, %v1973
    %v1982 = vsel %vm1966, %v1715, %v1974
    %v1983 = vsel %vm1967, %v1795, %v1975
    %v1984 = vsel %vm1968, %v1797, %v1976
    %v1985 = vsel %vm1969, %v1877, %v1977
    %v1986 = vsel %vm1970, %v1879, %v1978
    %v1987 = vsel %vm1971, %v1959, %v1979
    %v1988 = vsel %vm1972, %v1961, %v1980
    %v1989 = vpack.c.bf16 %v1981, %v1981
    %v1990 = vpack.c.bf16 %v1982, %v1982
    %v1991 = vpack.c.bf16 %v1983, %v1983
    %v1992 = vpack.c.bf16 %v1984, %v1984
    %v1993 = vpack.c.bf16 %v1985, %v1985
    %v1994 = vpack.c.bf16 %v1986, %v1986
    %v1995 = vpack.c.bf16 %v1987, %v1987
    %v1996 = vpack.c.bf16 %v1988, %v1988
    %v1997 = vld [vmem:[%s5] sm:$0xf]
    %v1998 = vld [vmem:[%s5 + $0x4] sm:$0xf]
    %v1999 = vld [vmem:[%s5 + $0x8] sm:$0xf]
    %v2000 = vld [vmem:[%s5 + $0xc] sm:$0xf]
    %v2001 = vld [vmem:[%s5 + $0x10] sm:$0xf]
    %v2002 = vld [vmem:[%s5 + $0x14] sm:$0xf]
    %v2003 = vld [vmem:[%s5 + $0x18] sm:$0xf]
    %v2004 = vld [vmem:[%s5 + $0x1c] sm:$0xf]
    %v2005 = vld [vmem:[%s5 + $0x20] sm:$0xf]
    %v2006 = vld [vmem:[%s5 + $0x24] sm:$0xf]
    %v2007 = vld [vmem:[%s5 + $0x28] sm:$0xf]
    %v2008 = vld [vmem:[%s5 + $0x2c] sm:$0xf]
    %v2009 = vld [vmem:[%s5 + $0x30] sm:$0xf]
    %v2010 = vld [vmem:[%s5 + $0x34] sm:$0xf]
    %v2011 = vld [vmem:[%s5 + $0x38] sm:$0xf]
    %v2012 = vld [vmem:[%s5 + $0x3c] sm:$0xf]
    %v2013 = vld [vmem:[%s5 + $0x40] sm:$0xf]
    %v2014 = vld [vmem:[%s5 + $0x44] sm:$0xf]
    %v2015 = vld [vmem:[%s5 + $0x48] sm:$0xf]
    %v2016 = vld [vmem:[%s5 + $0x4c] sm:$0xf]
    %v2017 = vld [vmem:[%s5 + $0x50] sm:$0xf]
    %v2018 = vld [vmem:[%s5 + $0x54] sm:$0xf]
    %v2019 = vld [vmem:[%s5 + $0x58] sm:$0xf]
    %v2020 = vld [vmem:[%s5 + $0x5c] sm:$0xf]
    %v2021 = vld [vmem:[%s5 + $0x60] sm:$0xf]
    %v2022 = vld [vmem:[%s5 + $0x64] sm:$0xf]
    %v2023 = vld [vmem:[%s5 + $0x68] sm:$0xf]
    %v2024 = vld [vmem:[%s5 + $0x6c] sm:$0xf]
    %v2025 = vld [vmem:[%s5 + $0x70] sm:$0xf]
    %v2026 = vld [vmem:[%s5 + $0x74] sm:$0xf]
    %v2027 = vld [vmem:[%s5 + $0x78] sm:$0xf]
    %v2028 = vld [vmem:[%s5 + $0x7c] sm:$0xf]
    %v2029 = vld [vmem:[%s5 + $0x80] sm:$0xf]
    %v2030 = vld [vmem:[%s5 + $0x84] sm:$0xf]
    %v2031 = vld [vmem:[%s5 + $0x88] sm:$0xf]
    %v2032 = vld [vmem:[%s5 + $0x8c] sm:$0xf]
    %v2033 = vld [vmem:[%s5 + $0x90] sm:$0xf]
    %v2034 = vld [vmem:[%s5 + $0x94] sm:$0xf]
    %v2035 = vld [vmem:[%s5 + $0x98] sm:$0xf]
    %v2036 = vld [vmem:[%s5 + $0x9c] sm:$0xf]
    %v2037 = vld [vmem:[%s5 + $0xa0] sm:$0xf]
    %v2038 = vld [vmem:[%s5 + $0xa4] sm:$0xf]
    %v2039 = vld [vmem:[%s5 + $0xa8] sm:$0xf]
    %v2040 = vld [vmem:[%s5 + $0xac] sm:$0xf]
    %v2041 = vld [vmem:[%s5 + $0xb0] sm:$0xf]
    %v2042 = vld [vmem:[%s5 + $0xb4] sm:$0xf]
    %v2043 = vld [vmem:[%s5 + $0xb8] sm:$0xf]
    %v2044 = vld [vmem:[%s5 + $0xbc] sm:$0xf]
    %v2045 = vld [vmem:[%s5 + $0xc0] sm:$0xf]
    %v2046 = vld [vmem:[%s5 + $0xc4] sm:$0xf]
    %v2047 = vld [vmem:[%s5 + $0xc8] sm:$0xf]
    %v2048 = vld [vmem:[%s5 + $0xcc] sm:$0xf]
    %v2049 = vld [vmem:[%s5 + $0xd0] sm:$0xf]
    %v2050 = vld [vmem:[%s5 + $0xd4] sm:$0xf]
    %v2051 = vld [vmem:[%s5 + $0xd8] sm:$0xf]
    %v2052 = vld [vmem:[%s5 + $0xdc] sm:$0xf]
    %v2053 = vld [vmem:[%s5 + $0xe0] sm:$0xf]
    %v2054 = vld [vmem:[%s5 + $0xe4] sm:$0xf]
    %v2055 = vld [vmem:[%s5 + $0xe8] sm:$0xf]
    %v2056 = vld [vmem:[%s5 + $0xec] sm:$0xf]
    %v2057 = vld [vmem:[%s5 + $0xf0] sm:$0xf]
    %v2058 = vld [vmem:[%s5 + $0xf4] sm:$0xf]
    %v2059 = vld [vmem:[%s5 + $0xf8] sm:$0xf]
    %v2060 = vld [vmem:[%s5 + $0xfc] sm:$0xf]
    %v2061 = vld [vmem:[%s5 + $0x100] sm:$0xf]
    %v2062 = vld [vmem:[%s5 + $0x104] sm:$0xf]
    %v2063 = vld [vmem:[%s5 + $0x108] sm:$0xf]
    %v2064 = vld [vmem:[%s5 + $0x10c] sm:$0xf]
    %v2065 = vld [vmem:[%s5 + $0x110] sm:$0xf]
    %v2066 = vld [vmem:[%s5 + $0x114] sm:$0xf]
    %v2067 = vld [vmem:[%s5 + $0x118] sm:$0xf]
    %v2068 = vld [vmem:[%s5 + $0x11c] sm:$0xf]
    %v2069 = vld [vmem:[%s5 + $0x120] sm:$0xf]
    %v2070 = vld [vmem:[%s5 + $0x124] sm:$0xf]
    %v2071 = vld [vmem:[%s5 + $0x128] sm:$0xf]
    %v2072 = vld [vmem:[%s5 + $0x12c] sm:$0xf]
    %v2073 = vld [vmem:[%s5 + $0x130] sm:$0xf]
    %v2074 = vld [vmem:[%s5 + $0x134] sm:$0xf]
    %v2075 = vld [vmem:[%s5 + $0x138] sm:$0xf]
    %v2076 = vld [vmem:[%s5 + $0x13c] sm:$0xf]
    %v2077 = vld [vmem:[%s5 + $0x140] sm:$0xf]
    %v2078 = vld [vmem:[%s5 + $0x144] sm:$0xf]
    %v2079 = vld [vmem:[%s5 + $0x148] sm:$0xf]
    %v2080 = vld [vmem:[%s5 + $0x14c] sm:$0xf]
    %v2081 = vld [vmem:[%s5 + $0x150] sm:$0xf]
    %v2082 = vld [vmem:[%s5 + $0x154] sm:$0xf]
    %v2083 = vld [vmem:[%s5 + $0x158] sm:$0xf]
    %v2084 = vld [vmem:[%s5 + $0x15c] sm:$0xf]
    %v2085 = vld [vmem:[%s5 + $0x160] sm:$0xf]
    %v2086 = vld [vmem:[%s5 + $0x164] sm:$0xf]
    %v2087 = vld [vmem:[%s5 + $0x168] sm:$0xf]
    %v2088 = vld [vmem:[%s5 + $0x16c] sm:$0xf]
    %v2089 = vld [vmem:[%s5 + $0x170] sm:$0xf]
    %v2090 = vld [vmem:[%s5 + $0x174] sm:$0xf]
    %v2091 = vld [vmem:[%s5 + $0x178] sm:$0xf]
    %v2092 = vld [vmem:[%s5 + $0x17c] sm:$0xf]
    %v2093 = vld [vmem:[%s5 + $0x180] sm:$0xf]
    %v2094 = vld [vmem:[%s5 + $0x184] sm:$0xf]
    %v2095 = vld [vmem:[%s5 + $0x188] sm:$0xf]
    %v2096 = vld [vmem:[%s5 + $0x18c] sm:$0xf]
    %v2097 = vld [vmem:[%s5 + $0x190] sm:$0xf]
    %v2098 = vld [vmem:[%s5 + $0x194] sm:$0xf]
    %v2099 = vld [vmem:[%s5 + $0x198] sm:$0xf]
    %v2100 = vld [vmem:[%s5 + $0x19c] sm:$0xf]
    %v2101 = vld [vmem:[%s5 + $0x1a0] sm:$0xf]
    %v2102 = vld [vmem:[%s5 + $0x1a4] sm:$0xf]
    %v2103 = vld [vmem:[%s5 + $0x1a8] sm:$0xf]
    %v2104 = vld [vmem:[%s5 + $0x1ac] sm:$0xf]
    %v2105 = vld [vmem:[%s5 + $0x1b0] sm:$0xf]
    %v2106 = vld [vmem:[%s5 + $0x1b4] sm:$0xf]
    %v2107 = vld [vmem:[%s5 + $0x1b8] sm:$0xf]
    %v2108 = vld [vmem:[%s5 + $0x1bc] sm:$0xf]
    %v2109 = vld [vmem:[%s5 + $0x1c0] sm:$0xf]
    %v2110 = vld [vmem:[%s5 + $0x1c4] sm:$0xf]
    %v2111 = vld [vmem:[%s5 + $0x1c8] sm:$0xf]
    %v2112 = vld [vmem:[%s5 + $0x1cc] sm:$0xf]
    %v2113 = vld [vmem:[%s5 + $0x1d0] sm:$0xf]
    %v2114 = vld [vmem:[%s5 + $0x1d4] sm:$0xf]
    %v2115 = vld [vmem:[%s5 + $0x1d8] sm:$0xf]
    %v2116 = vld [vmem:[%s5 + $0x1dc] sm:$0xf]
    %v2117 = vld [vmem:[%s5 + $0x1e0] sm:$0xf]
    %v2118 = vld [vmem:[%s5 + $0x1e4] sm:$0xf]
    %v2119 = vld [vmem:[%s5 + $0x1e8] sm:$0xf]
    %v2120 = vld [vmem:[%s5 + $0x1ec] sm:$0xf]
    %v2121 = vld [vmem:[%s5 + $0x1f0] sm:$0xf]
    %v2122 = vld [vmem:[%s5 + $0x1f4] sm:$0xf]
    %v2123 = vld [vmem:[%s5 + $0x1f8] sm:$0xf]
    %v2124 = vld [vmem:[%s5 + $0x1fc] sm:$0xf]
    %v2125 = vld [vmem:[%s6] sm:$0x1]
    %v2127 = vlaneseq
    %v2128 = vshrl.u32 %v2127, 7
    %v2129 = vsub.s32 0, %v2128
    %v2130 = vrot.slane %v2125, %v2129
    %v2260 = vunpack.c.l.b16 %v1997
    %v2261 = vunpack.c.l.b16 %v1998
    %v2262 = vunpack.c.l.b16 %v1999
    %v2263 = vunpack.c.l.b16 %v2000
    %v2264 = vunpack.c.l.b16 %v2001
    %v2265 = vunpack.c.l.b16 %v2002
    %v2266 = vunpack.c.l.b16 %v2003
    %v2267 = vunpack.c.l.b16 %v2004
    %v2268 = vunpack.c.l.b16 %v2005
    %v2269 = vunpack.c.l.b16 %v2006
    %v2270 = vunpack.c.l.b16 %v2007
    %v2271 = vunpack.c.l.b16 %v2008
    %v2272 = vunpack.c.l.b16 %v2009
    %v2273 = vunpack.c.l.b16 %v2010
    %v2274 = vunpack.c.l.b16 %v2011
    %v2275 = vunpack.c.l.b16 %v2012
    %v2276 = vunpack.c.l.b16 %v2013
    %v2277 = vunpack.c.l.b16 %v2014
    %v2278 = vunpack.c.l.b16 %v2015
    %v2279 = vunpack.c.l.b16 %v2016
    %v2280 = vunpack.c.l.b16 %v2017
    %v2281 = vunpack.c.l.b16 %v2018
    %v2282 = vunpack.c.l.b16 %v2019
    %v2283 = vunpack.c.l.b16 %v2020
    %v2284 = vunpack.c.l.b16 %v2021
    %v2285 = vunpack.c.l.b16 %v2022
    %v2286 = vunpack.c.l.b16 %v2023
    %v2287 = vunpack.c.l.b16 %v2024
    %v2288 = vunpack.c.l.b16 %v2025
    %v2289 = vunpack.c.l.b16 %v2026
    %v2290 = vunpack.c.l.b16 %v2027
    %v2291 = vunpack.c.l.b16 %v2028
    %v2292 = vunpack.c.l.b16 %v2029
    %v2293 = vunpack.c.l.b16 %v2030
    %v2294 = vunpack.c.l.b16 %v2031
    %v2295 = vunpack.c.l.b16 %v2032
    %v2296 = vunpack.c.l.b16 %v2033
    %v2297 = vunpack.c.l.b16 %v2034
    %v2298 = vunpack.c.l.b16 %v2035
    %v2299 = vunpack.c.l.b16 %v2036
    %v2300 = vunpack.c.l.b16 %v2037
    %v2301 = vunpack.c.l.b16 %v2038
    %v2302 = vunpack.c.l.b16 %v2039
    %v2303 = vunpack.c.l.b16 %v2040
    %v2304 = vunpack.c.l.b16 %v2041
    %v2305 = vunpack.c.l.b16 %v2042
    %v2306 = vunpack.c.l.b16 %v2043
    %v2307 = vunpack.c.l.b16 %v2044
    %v2308 = vunpack.c.l.b16 %v2045
    %v2309 = vunpack.c.l.b16 %v2046
    %v2310 = vunpack.c.l.b16 %v2047
    %v2311 = vunpack.c.l.b16 %v2048
    %v2312 = vunpack.c.l.b16 %v2049
    %v2313 = vunpack.c.l.b16 %v2050
    %v2314 = vunpack.c.l.b16 %v2051
    %v2315 = vunpack.c.l.b16 %v2052
    %v2316 = vunpack.c.l.b16 %v2053
    %v2317 = vunpack.c.l.b16 %v2054
    %v2318 = vunpack.c.l.b16 %v2055
    %v2319 = vunpack.c.l.b16 %v2056
    %v2320 = vunpack.c.l.b16 %v2057
    %v2321 = vunpack.c.l.b16 %v2058
    %v2322 = vunpack.c.l.b16 %v2059
    %v2323 = vunpack.c.l.b16 %v2060
    %v2324 = vunpack.c.l.b16 %v2061
    %v2325 = vunpack.c.l.b16 %v2062
    %v2326 = vunpack.c.l.b16 %v2063
    %v2327 = vunpack.c.l.b16 %v2064
    %v2328 = vunpack.c.l.b16 %v2065
    %v2329 = vunpack.c.l.b16 %v2066
    %v2330 = vunpack.c.l.b16 %v2067
    %v2331 = vunpack.c.l.b16 %v2068
    %v2332 = vunpack.c.l.b16 %v2069
    %v2333 = vunpack.c.l.b16 %v2070
    %v2334 = vunpack.c.l.b16 %v2071
    %v2335 = vunpack.c.l.b16 %v2072
    %v2336 = vunpack.c.l.b16 %v2073
    %v2337 = vunpack.c.l.b16 %v2074
    %v2338 = vunpack.c.l.b16 %v2075
    %v2339 = vunpack.c.l.b16 %v2076
    %v2340 = vunpack.c.l.b16 %v2077
    %v2341 = vunpack.c.l.b16 %v2078
    %v2342 = vunpack.c.l.b16 %v2079
    %v2343 = vunpack.c.l.b16 %v2080
    %v2344 = vunpack.c.l.b16 %v2081
    %v2345 = vunpack.c.l.b16 %v2082
    %v2346 = vunpack.c.l.b16 %v2083
    %v2347 = vunpack.c.l.b16 %v2084
    %v2348 = vunpack.c.l.b16 %v2085
    %v2349 = vunpack.c.l.b16 %v2086
    %v2350 = vunpack.c.l.b16 %v2087
    %v2351 = vunpack.c.l.b16 %v2088
    %v2352 = vunpack.c.l.b16 %v2089
    %v2353 = vunpack.c.l.b16 %v2090
    %v2354 = vunpack.c.l.b16 %v2091
    %v2355 = vunpack.c.l.b16 %v2092
    %v2356 = vunpack.c.l.b16 %v2093
    %v2357 = vunpack.c.l.b16 %v2094
    %v2358 = vunpack.c.l.b16 %v2095
    %v2359 = vunpack.c.l.b16 %v2096
    %v2360 = vunpack.c.l.b16 %v2097
    %v2361 = vunpack.c.l.b16 %v2098
    %v2362 = vunpack.c.l.b16 %v2099
    %v2363 = vunpack.c.l.b16 %v2100
    %v2364 = vunpack.c.l.b16 %v2101
    %v2365 = vunpack.c.l.b16 %v2102
    %v2366 = vunpack.c.l.b16 %v2103
    %v2367 = vunpack.c.l.b16 %v2104
    %v2368 = vunpack.c.l.b16 %v2105
    %v2369 = vunpack.c.l.b16 %v2106
    %v2370 = vunpack.c.l.b16 %v2107
    %v2371 = vunpack.c.l.b16 %v2108
    %v2372 = vunpack.c.l.b16 %v2109
    %v2373 = vunpack.c.l.b16 %v2110
    %v2374 = vunpack.c.l.b16 %v2111
    %v2375 = vunpack.c.l.b16 %v2112
    %v2376 = vunpack.c.l.b16 %v2113
    %v2377 = vunpack.c.l.b16 %v2114
    %v2378 = vunpack.c.l.b16 %v2115
    %v2379 = vunpack.c.l.b16 %v2116
    %v2380 = vunpack.c.l.b16 %v2117
    %v2381 = vunpack.c.l.b16 %v2118
    %v2382 = vunpack.c.l.b16 %v2119
    %v2383 = vunpack.c.l.b16 %v2120
    %v2384 = vunpack.c.l.b16 %v2121
    %v2385 = vunpack.c.l.b16 %v2122
    %v2386 = vunpack.c.l.b16 %v2123
    %v2387 = vunpack.c.l.b16 %v2124
    %v2388 = vpack.c.b16 %v2261, %v2260
    %v2389 = vpack.c.b16 %v2263, %v2262
    %v2390 = vpack.c.b16 %v2265, %v2264
    %v2391 = vpack.c.b16 %v2267, %v2266
    %v2392 = vpack.c.b16 %v2269, %v2268
    %v2393 = vpack.c.b16 %v2271, %v2270
    %v2394 = vpack.c.b16 %v2273, %v2272
    %v2395 = vpack.c.b16 %v2275, %v2274
    %v2396 = vpack.c.b16 %v2277, %v2276
    %v2397 = vpack.c.b16 %v2279, %v2278
    %v2398 = vpack.c.b16 %v2281, %v2280
    %v2399 = vpack.c.b16 %v2283, %v2282
    %v2400 = vpack.c.b16 %v2285, %v2284
    %v2401 = vpack.c.b16 %v2287, %v2286
    %v2402 = vpack.c.b16 %v2289, %v2288
    %v2403 = vpack.c.b16 %v2291, %v2290
    %v2404 = vpack.c.b16 %v2293, %v2292
    %v2405 = vpack.c.b16 %v2295, %v2294
    %v2406 = vpack.c.b16 %v2297, %v2296
    %v2407 = vpack.c.b16 %v2299, %v2298
    %v2408 = vpack.c.b16 %v2301, %v2300
    %v2409 = vpack.c.b16 %v2303, %v2302
    %v2410 = vpack.c.b16 %v2305, %v2304
    %v2411 = vpack.c.b16 %v2307, %v2306
    %v2412 = vpack.c.b16 %v2309, %v2308
    %v2413 = vpack.c.b16 %v2311, %v2310
    %v2414 = vpack.c.b16 %v2313, %v2312
    %v2415 = vpack.c.b16 %v2315, %v2314
    %v2416 = vpack.c.b16 %v2317, %v2316
    %v2417 = vpack.c.b16 %v2319, %v2318
    %v2418 = vpack.c.b16 %v2321, %v2320
    %v2419 = vpack.c.b16 %v2323, %v2322
    %v2420 = vpack.c.b16 %v2325, %v2324
    %v2421 = vpack.c.b16 %v2327, %v2326
    %v2422 = vpack.c.b16 %v2329, %v2328
    %v2423 = vpack.c.b16 %v2331, %v2330
    %v2424 = vpack.c.b16 %v2333, %v2332
    %v2425 = vpack.c.b16 %v2335, %v2334
    %v2426 = vpack.c.b16 %v2337, %v2336
    %v2427 = vpack.c.b16 %v2339, %v2338
    %v2428 = vpack.c.b16 %v2341, %v2340
    %v2429 = vpack.c.b16 %v2343, %v2342
    %v2430 = vpack.c.b16 %v2345, %v2344
    %v2431 = vpack.c.b16 %v2347, %v2346
    %v2432 = vpack.c.b16 %v2349, %v2348
    %v2433 = vpack.c.b16 %v2351, %v2350
    %v2434 = vpack.c.b16 %v2353, %v2352
    %v2435 = vpack.c.b16 %v2355, %v2354
    %v2436 = vpack.c.b16 %v2357, %v2356
    %v2437 = vpack.c.b16 %v2359, %v2358
    %v2438 = vpack.c.b16 %v2361, %v2360
    %v2439 = vpack.c.b16 %v2363, %v2362
    %v2440 = vpack.c.b16 %v2365, %v2364
    %v2441 = vpack.c.b16 %v2367, %v2366
    %v2442 = vpack.c.b16 %v2369, %v2368
    %v2443 = vpack.c.b16 %v2371, %v2370
    %v2444 = vpack.c.b16 %v2373, %v2372
    %v2445 = vpack.c.b16 %v2375, %v2374
    %v2446 = vpack.c.b16 %v2377, %v2376
    %v2447 = vpack.c.b16 %v2379, %v2378
    %v2448 = vpack.c.b16 %v2381, %v2380
    %v2449 = vpack.c.b16 %v2383, %v2382
    %v2450 = vpack.c.b16 %v2385, %v2384
    %v2451 = vpack.c.b16 %v2387, %v2386
    %2516 = vmatprep.subr.bf16.mxu0 0
    %2517 = vmatpush1.bf16.msra.mxu0 %v2388
    %2518 = vmatprep.subr.bf16.mxu0 0
    %2519 = vmatpush1.bf16.msra.mxu0 %v2389
    %2520 = vmatprep.subr.bf16.mxu0 0
    %2521 = vmatpush1.bf16.msra.mxu0 %v2390
    %2522 = vmatprep.subr.bf16.mxu0 0
    %2523 = vmatpush1.bf16.msra.mxu0 %v2391
    %2524 = vmatprep.subr.bf16.mxu0 0
    %2525 = vmatpush1.bf16.msra.mxu0 %v2392
    %2526 = vmatprep.subr.bf16.mxu0 0
    %2527 = vmatpush1.bf16.msra.mxu0 %v2393
    %2528 = vmatprep.subr.bf16.mxu0 0
    %2529 = vmatpush1.bf16.msra.mxu0 %v2394
    %2530 = vmatprep.subr.bf16.mxu0 0
    %2531 = vmatpush1.bf16.msra.mxu0 %v2395
    %2532 = vmatprep.subr.bf16.mxu0 0
    %2533 = vmatpush1.bf16.msra.mxu0 %v2396
    %2534 = vmatprep.subr.bf16.mxu0 0
    %2535 = vmatpush1.bf16.msra.mxu0 %v2397
    %2536 = vmatprep.subr.bf16.mxu0 0
    %2537 = vmatpush1.bf16.msra.mxu0 %v2398
    %2538 = vmatprep.subr.bf16.mxu0 0
    %2539 = vmatpush1.bf16.msra.mxu0 %v2399
    %2540 = vmatprep.subr.bf16.mxu0 0
    %2541 = vmatpush1.bf16.msra.mxu0 %v2400
    %2542 = vmatprep.subr.bf16.mxu0 0
    %2543 = vmatpush1.bf16.msra.mxu0 %v2401
    %2544 = vmatprep.subr.bf16.mxu0 0
    %2545 = vmatpush1.bf16.msra.mxu0 %v2402
    %2546 = vmatprep.subr.bf16.mxu0 0
    %2547 = vmatpush1.bf16.msra.mxu0 %v2403
    %2548 = vmatprep.mubr.bf16.mxu0 %v1990
    %2549 = vmatmul.mubr.bf16.gmra.mrb[0].mxu0 %v1989
    %v2550 = vpop.f32.mrb[0].mxu0
    %v2551 = vadd.f32 %v2130, %v2550
    %v2552 = vpop.f32.mrb[0].mxu0
    %v2553 = vpop.f32.mrb[0].mxu0
    %v2554 = vpop.f32.mrb[0].mxu0
    %2555 = vdwg.mxu0
    %2556 = vmatprep.subr.bf16.mxu0 0
    %2557 = vmatpush1.bf16.msra.mxu0 %v2404
    %2558 = vmatprep.subr.bf16.mxu0 0
    %2559 = vmatpush1.bf16.msra.mxu0 %v2405
    %2560 = vmatprep.subr.bf16.mxu0 0
    %2561 = vmatpush1.bf16.msra.mxu0 %v2406
    %2562 = vmatprep.subr.bf16.mxu0 0
    %2563 = vmatpush1.bf16.msra.mxu0 %v2407
    %2564 = vmatprep.subr.bf16.mxu0 0
    %2565 = vmatpush1.bf16.msra.mxu0 %v2408
    %2566 = vmatprep.subr.bf16.mxu0 0
    %2567 = vmatpush1.bf16.msra.mxu0 %v2409
    %2568 = vmatprep.subr.bf16.mxu0 0
    %2569 = vmatpush1.bf16.msra.mxu0 %v2410
    %2570 = vmatprep.subr.bf16.mxu0 0
    %2571 = vmatpush1.bf16.msra.mxu0 %v2411
    %2572 = vmatprep.subr.bf16.mxu0 0
    %2573 = vmatpush1.bf16.msra.mxu0 %v2412
    %2574 = vmatprep.subr.bf16.mxu0 0
    %2575 = vmatpush1.bf16.msra.mxu0 %v2413
    %2576 = vmatprep.subr.bf16.mxu0 0
    %2577 = vmatpush1.bf16.msra.mxu0 %v2414
    %2578 = vmatprep.subr.bf16.mxu0 0
    %2579 = vmatpush1.bf16.msra.mxu0 %v2415
    %2580 = vmatprep.subr.bf16.mxu0 0
    %2581 = vmatpush1.bf16.msra.mxu0 %v2416
    %2582 = vmatprep.subr.bf16.mxu0 0
    %2583 = vmatpush1.bf16.msra.mxu0 %v2417
    %2584 = vmatprep.subr.bf16.mxu0 0
    %2585 = vmatpush1.bf16.msra.mxu0 %v2418
    %2586 = vmatprep.subr.bf16.mxu0 0
    %2587 = vmatpush1.bf16.msra.mxu0 %v2419
    %2588 = vmatprep.mubr.bf16.mxu0 %v1992
    %2589 = vmatmul.mubr.bf16.gmra.mrb[0].mxu0 %v1991
    %v2590 = vpop.f32.mrb[0].mxu0
    %v2591 = vadd.f32 %v2551, %v2590
    %v2592 = vpop.f32.mrb[0].mxu0
    %v2593 = vpop.f32.mrb[0].mxu0
    %v2594 = vpop.f32.mrb[0].mxu0
    %2595 = vdwg.mxu0
    %2596 = vmatprep.subr.bf16.mxu0 0
    %2597 = vmatpush1.bf16.msra.mxu0 %v2420
    %2598 = vmatprep.subr.bf16.mxu0 0
    %2599 = vmatpush1.bf16.msra.mxu0 %v2421
    %2600 = vmatprep.subr.bf16.mxu0 0
    %2601 = vmatpush1.bf16.msra.mxu0 %v2422
    %2602 = vmatprep.subr.bf16.mxu0 0
    %2603 = vmatpush1.bf16.msra.mxu0 %v2423
    %2604 = vmatprep.subr.bf16.mxu0 0
    %2605 = vmatpush1.bf16.msra.mxu0 %v2424
    %2606 = vmatprep.subr.bf16.mxu0 0
    %2607 = vmatpush1.bf16.msra.mxu0 %v2425
    %2608 = vmatprep.subr.bf16.mxu0 0
    %2609 = vmatpush1.bf16.msra.mxu0 %v2426
    %2610 = vmatprep.subr.bf16.mxu0 0
    %2611 = vmatpush1.bf16.msra.mxu0 %v2427
    %2612 = vmatprep.subr.bf16.mxu0 0
    %2613 = vmatpush1.bf16.msra.mxu0 %v2428
    %2614 = vmatprep.subr.bf16.mxu0 0
    %2615 = vmatpush1.bf16.msra.mxu0 %v2429
    %2616 = vmatprep.subr.bf16.mxu0 0
    %2617 = vmatpush1.bf16.msra.mxu0 %v2430
    %2618 = vmatprep.subr.bf16.mxu0 0
    %2619 = vmatpush1.bf16.msra.mxu0 %v2431
    %2620 = vmatprep.subr.bf16.mxu0 0
    %2621 = vmatpush1.bf16.msra.mxu0 %v2432
    %2622 = vmatprep.subr.bf16.mxu0 0
    %2623 = vmatpush1.bf16.msra.mxu0 %v2433
    %2624 = vmatprep.subr.bf16.mxu0 0
    %2625 = vmatpush1.bf16.msra.mxu0 %v2434
    %2626 = vmatprep.subr.bf16.mxu0 0
    %2627 = vmatpush1.bf16.msra.mxu0 %v2435
    %2628 = vmatprep.mubr.bf16.mxu0 %v1994
    %2629 = vmatmul.mubr.bf16.gmra.mrb[0].mxu0 %v1993
    %v2630 = vpop.f32.mrb[0].mxu0
    %v2631 = vadd.f32 %v2591, %v2630
    %v2632 = vpop.f32.mrb[0].mxu0
    %v2633 = vpop.f32.mrb[0].mxu0
    %v2634 = vpop.f32.mrb[0].mxu0
    %2635 = vdwg.mxu0
    %2636 = vmatprep.subr.bf16.mxu0 0
    %2637 = vmatpush1.bf16.msra.mxu0 %v2436
    %2638 = vmatprep.subr.bf16.mxu0 0
    %2639 = vmatpush1.bf16.msra.mxu0 %v2437
    %2640 = vmatprep.subr.bf16.mxu0 0
    %2641 = vmatpush1.bf16.msra.mxu0 %v2438
    %2642 = vmatprep.subr.bf16.mxu0 0
    %2643 = vmatpush1.bf16.msra.mxu0 %v2439
    %2644 = vmatprep.subr.bf16.mxu0 0
    %2645 = vmatpush1.bf16.msra.mxu0 %v2440
    %2646 = vmatprep.subr.bf16.mxu0 0
    %2647 = vmatpush1.bf16.msra.mxu0 %v2441
    %2648 = vmatprep.subr.bf16.mxu0 0
    %2649 = vmatpush1.bf16.msra.mxu0 %v2442
    %2650 = vmatprep.subr.bf16.mxu0 0
    %2651 = vmatpush1.bf16.msra.mxu0 %v2443
    %2652 = vmatprep.subr.bf16.mxu0 0
    %2653 = vmatpush1.bf16.msra.mxu0 %v2444
    %2654 = vmatprep.subr.bf16.mxu0 0
    %2655 = vmatpush1.bf16.msra.mxu0 %v2445
    %2656 = vmatprep.subr.bf16.mxu0 0
    %2657 = vmatpush1.bf16.msra.mxu0 %v2446
    %2658 = vmatprep.subr.bf16.mxu0 0
    %2659 = vmatpush1.bf16.msra.mxu0 %v2447
    %2660 = vmatprep.subr.bf16.mxu0 0
    %2661 = vmatpush1.bf16.msra.mxu0 %v2448
    %2662 = vmatprep.subr.bf16.mxu0 0
    %2663 = vmatpush1.bf16.msra.mxu0 %v2449
    %2664 = vmatprep.subr.bf16.mxu0 0
    %2665 = vmatpush1.bf16.msra.mxu0 %v2450
    %2666 = vmatprep.subr.bf16.mxu0 0
    %2667 = vmatpush1.bf16.msra.mxu0 %v2451
    %2668 = vmatprep.mubr.bf16.mxu0 %v1996
    %2669 = vmatmul.mubr.bf16.gmra.mrb[0].mxu0 %v1995
    %v2670 = vpop.f32.mrb[0].mxu0
    %v2671 = vadd.f32 %v2631, %v2670
    %v2672 = vpop.f32.mrb[0].mxu0
    %v2673 = vpop.f32.mrb[0].mxu0
    %v2674 = vpop.f32.mrb[0].mxu0
    %2675 = vdwg.mxu0
    %vm2676 = vcmask 9216
    %2677 = vst.msk [vmem:[#allocation2] sm:$0x3] %vm2676, %v2671
    // Predicated region
    $region30: #{_forward_device.7} parent=1 // pred_check
      _
    $region31: #{_forward_device.7} parent=1 // pred_check_branch
      %2679 = sbr.rel (0) target = $region33
    $region32: #{_forward_device.7} parent=1 // pred_region
      %s2681 = ssub.s32 32, 32
      %2682 = vsyncadd [#allocation3], %s2681
      %s2684 = sshll.u32 [#allocation2], 4
      %s2685 = int_to_ptr.vmem [resolvable:$true] %s2684
      %2687 = dma.vmem_to_hbm [thread:$0]  %s2685, 32, %s7, [#allocation3]
    $region33: #{_forward_device.7} parent=1 // pred_fallthru
      _
    // Predicated region
    $region34: #{_forward_device.7} parent=1 // pred_check
      _
    $region35: #{_forward_device.7} parent=1 // pred_check_branch
      %2689 = sbr.rel (0) target = $region37
    $region36: #{_forward_device.7} parent=1 // pred_region
      %2690 = dma.done [#allocation3], 32
    $region37: #{_forward_device.7} parent=1 // pred_fallthru
      _
    %2691 = vsyncpa [#allocation3], 1

</llo_original>
